<compile_context>
chip_gen: v7x
topology: tpu7x:2x2x1
jax: 0.10.0
libtpu: 0.0.40
codegen_flags: <defaults>
</compile_context>

<pallas_src>
import jax
import jax.numpy as jnp
from jax.experimental import pallas as pl
from jax.experimental.pallas import tpu as pltpu


# --------------------------- fused SimSiam kernel -----------------------------
def _simsiam_kernel(x_ref, we_ref, be_ref, w1_ref, b1_ref, g_ref, beta_ref,
                    w2_ref, b2_ref, enc_ref, pred_ref):
    k = pl.program_id(0)

    @pl.when(k == 0)
    def _():
        enc_ref[...] = jnp.zeros_like(enc_ref)

    # Streamed K-tile of the encoder matmul (bf16 MXU, f32 accumulate directly
    # into the resident encoder-output block).
    enc_ref[...] += jnp.dot(x_ref[...], we_ref[...],
                            preferred_element_type=jnp.float32)

    @pl.when(k == pl.num_programs(0) - 1)
    def _():
        # ---- encoder output (both views stacked, stays in VMEM) ----
        e = enc_ref[...] + be_ref[...]                        # (2B, E) f32
        enc_ref[...] = e

        # ---- predictor Linear(512 -> H) on both views at once ----
        h = jnp.dot(e.astype(w1_ref.dtype), w1_ref[...],
                    preferred_element_type=jnp.float32) + b1_ref[...]   # (2B, H)
        two_b = h.shape[0]
        b = two_b // 2
        inv_b = 1.0 / b

        # ---- BatchNorm1d (training mode) + ReLU, statistics PER VIEW ----
        def bn_relu(hv):                                      # hv: (B, H) f32
            s1 = jnp.sum(hv, axis=0, keepdims=True)
            s2 = jnp.sum(hv * hv, axis=0, keepdims=True)
            mean = s1 * inv_b
            var = s2 * inv_b - mean * mean                    # biased variance
            hn = (hv - mean) * jax.lax.rsqrt(var + 1e-5)
            return jnp.maximum(hn * g_ref[...] + beta_ref[...], 0.0)

        hn = jnp.concatenate([bn_relu(h[:b]), bn_relu(h[b:])], axis=0)  # (2B, H)

        # ---- predictor Linear(H -> P) on both views at once ----
        pred_ref[...] = (jnp.dot(hn.astype(w2_ref.dtype), w2_ref[...],
                                 preferred_element_type=jnp.float32)
                         + b2_ref[...]).astype(pred_ref.dtype)


def simsiam_fused(x12, we, be, w1, b1, gamma, beta, w2, b2, *, tk=512):
    M, K = x12.shape                      # M = 2 * batch
    E = we.shape[1]
    H = w1.shape[1]
    P = w2.shape[1]

    # Zero-pad the contraction dim so the K grid tiles exactly.
    k_pad = ((K + tk - 1) // tk) * tk
    if k_pad != K:
        x12 = jnp.pad(x12, ((0, 0), (0, k_pad - K)))
        we = jnp.pad(we, ((0, k_pad - K), (0, 0)))
    n_k = k_pad // tk

    enc, pred = pl.pallas_call(
        _simsiam_kernel,
        out_shape=(jax.ShapeDtypeStruct((M, E), jnp.float32),
                   jax.ShapeDtypeStruct((M, P), jnp.float32)),
        grid_spec=pltpu.PrefetchScalarGridSpec(
            num_scalar_prefetch=0,
            grid=(n_k,),
            in_specs=[
                pl.BlockSpec((M, tk), lambda k: (0, k)),      # x (both views, K-tiled)
                pl.BlockSpec((tk, E), lambda k: (k, 0)),      # we (K-tiled)
                pl.BlockSpec((1, E), lambda k: (0, 0)),       # be
                pl.BlockSpec((E, H), lambda k: (0, 0)),       # w1 (resident)
                pl.BlockSpec((1, H), lambda k: (0, 0)),       # b1
                pl.BlockSpec((1, H), lambda k: (0, 0)),       # gamma
                pl.BlockSpec((1, H), lambda k: (0, 0)),       # beta
                pl.BlockSpec((H, P), lambda k: (0, 0)),       # w2 (resident)
                pl.BlockSpec((1, P), lambda k: (0, 0)),       # b2
            ],
            out_specs=[
                pl.BlockSpec((M, E), lambda k: (0, 0)),       # encodings (acts as accumulator)
                pl.BlockSpec((M, P), lambda k: (0, 0)),       # predictions
            ],
        ),
        compiler_params=pltpu.CompilerParams(
            dimension_semantics=("arbitrary",)),
    )(x12, we, be, w1, b1, gamma, beta, w2, b2)
    return enc, pred


# ------------------------------ SimSiam wrapper -------------------------------
def init_params(key, in_features, enc_dim=512, hidden_dim=2048, projection_dim=512):
    k = jax.random.split(key, 6)
    scale = lambda fan_in: 1.0 / jnp.sqrt(jnp.float32(fan_in))
    u = lambda kk, shape, s: jax.random.uniform(kk, shape, jnp.float32, -s, s)
    return {
        # synthetic base_encoder: Linear(in_features, 512), bf16 weight storage
        "we": u(k[0], (in_features, enc_dim), scale(in_features)).astype(jnp.bfloat16),
        "be": u(k[1], (1, enc_dim), scale(in_features)),
        # predictor Linear(512, hidden_dim)
        "w1": u(k[2], (enc_dim, hidden_dim), scale(enc_dim)).astype(jnp.bfloat16),
        "b1": u(k[3], (1, hidden_dim), scale(enc_dim)),
        # BatchNorm1d(hidden_dim) affine params (PyTorch init: gamma=1, beta=0)
        "gamma": jnp.ones((1, hidden_dim), jnp.float32),
        "beta": jnp.zeros((1, hidden_dim), jnp.float32),
        # predictor Linear(hidden_dim, projection_dim)
        "w2": u(k[4], (hidden_dim, projection_dim), scale(hidden_dim)).astype(jnp.bfloat16),
        "b2": u(k[5], (1, projection_dim), scale(hidden_dim)),
    }


def simsiam_forward(params, x1, x2):
    B = x1.shape[0]
    # NCHW -> flatten, stack both views along the batch dim, bf16 for the MXU.
    x12 = jnp.concatenate([x1.reshape(B, -1), x2.reshape(B, -1)],
                          axis=0).astype(jnp.bfloat16)
    enc, pred = simsiam_fused(x12, params["we"], params["be"],
                              params["w1"], params["b1"],
                              params["gamma"], params["beta"],
                              params["w2"], params["b2"])
    enc1, enc2 = enc[:B], enc[B:]
    pred1, pred2 = pred[:B], pred[B:]
    # .detach() -> stop_gradient
    return (pred1, jax.lax.stop_gradient(enc2),
            pred2, jax.lax.stop_gradient(enc1))


if __name__ == "__main__":
    key = jax.random.PRNGKey(0)
    kx1, kx2, kp = jax.random.split(key, 3)

    B, C, H, W = 8, 4, 16, 16          # small NCHW images -> in_features = 1024
    x1 = jax.random.normal(kx1, (B, C, H, W), jnp.float32)
    x2 = jax.random.normal(kx2, (B, C, H, W), jnp.float32)

    hidden_dim, projection_dim = 2048, 512   # PyTorch module defaults
    params = init_params(kp, in_features=C * H * W, enc_dim=512,
                         hidden_dim=hidden_dim, projection_dim=projection_dim)

    pred1, enc2, pred2, enc1 = jax.jit(simsiam_forward)(params, x1, x2)
    jax.block_until_ready((pred1, enc2, pred2, enc1))

    assert pred1.shape == (B, projection_dim) and pred2.shape == (B, projection_dim)
    assert enc1.shape == (B, 512) and enc2.shape == (B, 512)
    assert jnp.all(jnp.isfinite(pred1)) and jnp.all(jnp.isfinite(pred2))
    assert jnp.all(jnp.isfinite(enc1)) and jnp.all(jnp.isfinite(enc2))
    print("KERNEL_OK")
</pallas_src>

<mosaic_0001>
module attributes {stable_mosaic.version = 11 : i64} {
  func.func @_simsiam_kernel(%arg0: i32, %arg1: memref<16x512xbf16, #tpu.memory_space<vmem>>, %arg2: memref<512x512xbf16, #tpu.memory_space<vmem>>, %arg3: memref<1x512xf32, #tpu.memory_space<vmem>>, %arg4: memref<512x2048xbf16, #tpu.memory_space<vmem>>, %arg5: memref<1x2048xf32, #tpu.memory_space<vmem>>, %arg6: memref<1x2048xf32, #tpu.memory_space<vmem>>, %arg7: memref<1x2048xf32, #tpu.memory_space<vmem>>, %arg8: memref<2048x512xbf16, #tpu.memory_space<vmem>>, %arg9: memref<1x512xf32, #tpu.memory_space<vmem>>, %arg10: memref<16x512xf32, #tpu.memory_space<vmem>>, %arg11: memref<16x512xf32, #tpu.memory_space<vmem>>) attributes {dimension_semantics = [#tpu.dimension_semantics<arbitrary>], iteration_bounds = array<i64: 2>, scalar_prefetch = 0 : i64, scratch_operands = 0 : i64, tpu.core_type = #tpu.core_type<tc>, window_params = [{transform_indices = @transform_0, window_bounds = array<i64: 16, 512>}, {transform_indices = @transform_1, window_bounds = array<i64: 512, 512>}, {pipeline_mode = #tpu.pipeline_mode<synchronous>, transform_indices = @transform_2, window_bounds = array<i64: 1, 512>}, {pipeline_mode = #tpu.pipeline_mode<synchronous>, transform_indices = @transform_3, window_bounds = array<i64: 512, 2048>}, {pipeline_mode = #tpu.pipeline_mode<synchronous>, transform_indices = @transform_4, window_bounds = array<i64: 1, 2048>}, {pipeline_mode = #tpu.pipeline_mode<synchronous>, transform_indices = @transform_5, window_bounds = array<i64: 1, 2048>}, {pipeline_mode = #tpu.pipeline_mode<synchronous>, transform_indices = @transform_6, window_bounds = array<i64: 1, 2048>}, {pipeline_mode = #tpu.pipeline_mode<synchronous>, transform_indices = @transform_7, window_bounds = array<i64: 2048, 512>}, {pipeline_mode = #tpu.pipeline_mode<synchronous>, transform_indices = @transform_8, window_bounds = array<i64: 1, 512>}, {pipeline_mode = #tpu.pipeline_mode<synchronous>, transform_indices = @transform_9, window_bounds = array<i64: 16, 512>}, {pipeline_mode = #tpu.pipeline_mode<synchronous>, transform_indices = @transform_10, window_bounds = array<i64: 16, 512>}]} {
    %c0_i32 = arith.constant 0 : i32
    %0 = arith.cmpi eq, %arg0, %c0_i32 : i32
    %1 = arith.extui %0 : i1 to i32
    %c0_i32_0 = arith.constant 0 : i32
    %2 = arith.cmpi ne, %1, %c0_i32_0 : i32
    scf.if %2 {
      %cst_9 = arith.constant 0.000000e+00 : f32
      %12 = vector.broadcast %cst_9 : f32 to vector<16x512xf32>
      %c0_10 = arith.constant 0 : index
      %c0_11 = arith.constant 0 : index
      %13 = vector.load %arg10[%c0_10, %c0_11] : memref<16x512xf32, #tpu.memory_space<vmem>>, vector<16x512xf32>
      tpu.vector_store %arg10[%c0_10, %c0_11], %12 {strides = array<i32>} : memref<16x512xf32, #tpu.memory_space<vmem>>, vector<16x512xf32>,
    } else {
    }
    %c0 = arith.constant 0 : index
    %c0_1 = arith.constant 0 : index
    %3 = vector.load %arg10[%c0, %c0_1] : memref<16x512xf32, #tpu.memory_space<vmem>>, vector<16x512xf32>
    %c0_2 = arith.constant 0 : index
    %c0_3 = arith.constant 0 : index
    %4 = vector.load %arg1[%c0_2, %c0_3] : memref<16x512xbf16, #tpu.memory_space<vmem>>, vector<16x512xbf16>
    %c0_4 = arith.constant 0 : index
    %c0_5 = arith.constant 0 : index
    %5 = vector.load %arg2[%c0_4, %c0_5] : memref<512x512xbf16, #tpu.memory_space<vmem>>, vector<512x512xbf16>
    %cst = arith.constant dense<0.000000e+00> : vector<16x512xf32>
    %6 = tpu.matmul %4, %5, %cst {dimension_numbers = #tpu.dot_dimension_numbers<[1], [0], [0], [1], [0, 0, 1, 1], [], []>} : vector<16x512xbf16>, vector<512x512xbf16>, vector<16x512xf32> -> vector<16x512xf32>
    %7 = arith.addf %3, %6 : vector<16x512xf32>
    %c0_6 = arith.constant 0 : index
    %c0_7 = arith.constant 0 : index
    %8 = vector.load %arg10[%c0_6, %c0_7] : memref<16x512xf32, #tpu.memory_space<vmem>>, vector<16x512xf32>
    tpu.vector_store %arg10[%c0_6, %c0_7], %7 {strides = array<i32>} : memref<16x512xf32, #tpu.memory_space<vmem>>, vector<16x512xf32>,
    %c1_i32 = arith.constant 1 : i32
    %9 = arith.cmpi eq, %arg0, %c1_i32 : i32
    %10 = arith.extui %9 : i1 to i32
    %c0_i32_8 = arith.constant 0 : i32
    %11 = arith.cmpi ne, %10, %c0_i32_8 : i32
    scf.if %11 {
      %c0_9 = arith.constant 0 : index
      %c0_10 = arith.constant 0 : index
      %12 = vector.load %arg10[%c0_9, %c0_10] : memref<16x512xf32, #tpu.memory_space<vmem>>, vector<16x512xf32>
      %c0_11 = arith.constant 0 : index
      %c0_12 = arith.constant 0 : index
      %13 = vector.load %arg3[%c0_11, %c0_12] : memref<1x512xf32, #tpu.memory_space<vmem>>, vector<1x512xf32>
      %14 = vector.broadcast %13 : vector<1x512xf32> to vector<16x512xf32>
      %15 = arith.addf %12, %14 : vector<16x512xf32>
      %c0_13 = arith.constant 0 : index
      %c0_14 = arith.constant 0 : index
      %16 = vector.load %arg10[%c0_13, %c0_14] : memref<16x512xf32, #tpu.memory_space<vmem>>, vector<16x512xf32>
      tpu.vector_store %arg10[%c0_13, %c0_14], %15 {strides = array<i32>} : memref<16x512xf32, #tpu.memory_space<vmem>>, vector<16x512xf32>,
      %17 = arith.truncf %15 : vector<16x512xf32> to vector<16x512xbf16>
      %c0_15 = arith.constant 0 : index
      %c0_16 = arith.constant 0 : index
      %18 = vector.load %arg4[%c0_15, %c0_16] : memref<512x2048xbf16, #tpu.memory_space<vmem>>, vector<512x2048xbf16>
      %cst_17 = arith.constant dense<0.000000e+00> : vector<16x2048xf32>
      %19 = tpu.matmul %17, %18, %cst_17 {dimension_numbers = #tpu.dot_dimension_numbers<[1], [0], [0], [1], [0, 0, 1, 1], [], []>} : vector<16x512xbf16>, vector<512x2048xbf16>, vector<16x2048xf32> -> vector<16x2048xf32>
      %c0_18 = arith.constant 0 : index
      %c0_19 = arith.constant 0 : index
      %20 = vector.load %arg5[%c0_18, %c0_19] : memref<1x2048xf32, #tpu.memory_space<vmem>>, vector<1x2048xf32>
      %21 = vector.broadcast %20 : vector<1x2048xf32> to vector<16x2048xf32>
      %22 = arith.addf %19, %21 : vector<16x2048xf32>
      %23 = vector.extract_strided_slice %22 {offsets = [0, 0], sizes = [8, 2048], strides = [1, 1]} : vector<16x2048xf32> to vector<8x2048xf32>
      %cst_20 = arith.constant dense<0.000000e+00> : vector<2048xf32>
      %24 = vector.multi_reduction <add>, %23, %cst_20 [0] : vector<8x2048xf32> to vector<2048xf32>
      %25 = vector.shape_cast %24 : vector<2048xf32> to vector<1x2048xf32>
      %26 = arith.mulf %23, %23 : vector<8x2048xf32>
      %cst_21 = arith.constant dense<0.000000e+00> : vector<2048xf32>
      %27 = vector.multi_reduction <add>, %26, %cst_21 [0] : vector<8x2048xf32> to vector<2048xf32>
      %28 = vector.shape_cast %27 : vector<2048xf32> to vector<1x2048xf32>
      %cst_22 = arith.constant 1.250000e-01 : f32
      %29 = vector.broadcast %cst_22 : f32 to vector<1x2048xf32>
      %30 = arith.mulf %25, %29 : vector<1x2048xf32>
      %cst_23 = arith.constant 1.250000e-01 : f32
      %31 = vector.broadcast %cst_23 : f32 to vector<1x2048xf32>
      %32 = arith.mulf %28, %31 : vector<1x2048xf32>
      %33 = arith.mulf %30, %30 : vector<1x2048xf32>
      %34 = arith.subf %32, %33 : vector<1x2048xf32>
      %35 = vector.broadcast %30 : vector<1x2048xf32> to vector<8x2048xf32>
      %36 = arith.subf %23, %35 : vector<8x2048xf32>
      %cst_24 = arith.constant 9.99999974E-6 : f32
      %37 = vector.broadcast %cst_24 : f32 to vector<1x2048xf32>
      %38 = arith.addf %34, %37 : vector<1x2048xf32>
      %39 = math.rsqrt %38 : vector<1x2048xf32>
      %40 = vector.broadcast %39 : vector<1x2048xf32> to vector<8x2048xf32>
      %41 = arith.mulf %36, %40 : vector<8x2048xf32>
      %c0_25 = arith.constant 0 : index
      %c0_26 = arith.constant 0 : index
      %42 = vector.load %arg6[%c0_25, %c0_26] : memref<1x2048xf32, #tpu.memory_space<vmem>>, vector<1x2048xf32>
      %43 = vector.broadcast %42 : vector<1x2048xf32> to vector<8x2048xf32>
      %44 = arith.mulf %41, %43 : vector<8x2048xf32>
      %c0_27 = arith.constant 0 : index
      %c0_28 = arith.constant 0 : index
      %45 = vector.load %arg7[%c0_27, %c0_28] : memref<1x2048xf32, #tpu.memory_space<vmem>>, vector<1x2048xf32>
      %46 = vector.broadcast %45 : vector<1x2048xf32> to vector<8x2048xf32>
      %47 = arith.addf %44, %46 : vector<8x2048xf32>
      %cst_29 = arith.constant 0.000000e+00 : f32
      %48 = vector.broadcast %cst_29 : f32 to vector<8x2048xf32>
      %49 = arith.maximumf %47, %48 : vector<8x2048xf32>
      %50 = vector.extract_strided_slice %22 {offsets = [8, 0], sizes = [8, 2048], strides = [1, 1]} : vector<16x2048xf32> to vector<8x2048xf32>
      %cst_30 = arith.constant dense<0.000000e+00> : vector<2048xf32>
      %51 = vector.multi_reduction <add>, %50, %cst_30 [0] : vector<8x2048xf32> to vector<2048xf32>
      %52 = vector.shape_cast %51 : vector<2048xf32> to vector<1x2048xf32>
      %53 = arith.mulf %50, %50 : vector<8x2048xf32>
      %cst_31 = arith.constant dense<0.000000e+00> : vector<2048xf32>
      %54 = vector.multi_reduction <add>, %53, %cst_31 [0] : vector<8x2048xf32> to vector<2048xf32>
      %55 = vector.shape_cast %54 : vector<2048xf32> to vector<1x2048xf32>
      %cst_32 = arith.constant 1.250000e-01 : f32
      %56 = vector.broadcast %cst_32 : f32 to vector<1x2048xf32>
      %57 = arith.mulf %52, %56 : vector<1x2048xf32>
      %cst_33 = arith.constant 1.250000e-01 : f32
      %58 = vector.broadcast %cst_33 : f32 to vector<1x2048xf32>
      %59 = arith.mulf %55, %58 : vector<1x2048xf32>
      %60 = arith.mulf %57, %57 : vector<1x2048xf32>
      %61 = arith.subf %59, %60 : vector<1x2048xf32>
      %62 = vector.broadcast %57 : vector<1x2048xf32> to vector<8x2048xf32>
      %63 = arith.subf %50, %62 : vector<8x2048xf32>
      %cst_34 = arith.constant 9.99999974E-6 : f32
      %64 = vector.broadcast %cst_34 : f32 to vector<1x2048xf32>
      %65 = arith.addf %61, %64 : vector<1x2048xf32>
      %66 = math.rsqrt %65 : vector<1x2048xf32>
      %67 = vector.broadcast %66 : vector<1x2048xf32> to vector<8x2048xf32>
      %68 = arith.mulf %63, %67 : vector<8x2048xf32>
      %c0_35 = arith.constant 0 : index
      %c0_36 = arith.constant 0 : index
      %69 = vector.load %arg6[%c0_35, %c0_36] : memref<1x2048xf32, #tpu.memory_space<vmem>>, vector<1x2048xf32>
      %70 = vector.broadcast %69 : vector<1x2048xf32> to vector<8x2048xf32>
      %71 = arith.mulf %68, %70 : vector<8x2048xf32>
      %c0_37 = arith.constant 0 : index
      %c0_38 = arith.constant 0 : index
      %72 = vector.load %arg7[%c0_37, %c0_38] : memref<1x2048xf32, #tpu.memory_space<vmem>>, vector<1x2048xf32>
      %73 = vector.broadcast %72 : vector<1x2048xf32> to vector<8x2048xf32>
      %74 = arith.addf %71, %73 : vector<8x2048xf32>
      %cst_39 = arith.constant 0.000000e+00 : f32
      %75 = vector.broadcast %cst_39 : f32 to vector<8x2048xf32>
      %76 = arith.maximumf %74, %75 : vector<8x2048xf32>
      %77 = tpu.concatenate %49, %76 in 0 : vector<8x2048xf32>, vector<8x2048xf32> -> vector<16x2048xf32>
      %78 = arith.truncf %77 : vector<16x2048xf32> to vector<16x2048xbf16>
      %c0_40 = arith.constant 0 : index
      %c0_41 = arith.constant 0 : index
      %79 = vector.load %arg8[%c0_40, %c0_41] : memref<2048x512xbf16, #tpu.memory_space<vmem>>, vector<2048x512xbf16>
      %cst_42 = arith.constant dense<0.000000e+00> : vector<16x512xf32>
      %80 = tpu.matmul %78, %79, %cst_42 {dimension_numbers = #tpu.dot_dimension_numbers<[1], [0], [0], [1], [0, 0, 1, 1], [], []>} : vector<16x2048xbf16>, vector<2048x512xbf16>, vector<16x512xf32> -> vector<16x512xf32>
      %c0_43 = arith.constant 0 : index
      %c0_44 = arith.constant 0 : index
      %81 = vector.load %arg9[%c0_43, %c0_44] : memref<1x512xf32, #tpu.memory_space<vmem>>, vector<1x512xf32>
      %82 = vector.broadcast %81 : vector<1x512xf32> to vector<16x512xf32>
      %83 = arith.addf %80, %82 : vector<16x512xf32>
      %c0_45 = arith.constant 0 : index
      %c0_46 = arith.constant 0 : index
      %84 = vector.load %arg11[%c0_45, %c0_46] : memref<16x512xf32, #tpu.memory_space<vmem>>, vector<16x512xf32>
      tpu.vector_store %arg11[%c0_45, %c0_46], %83 {strides = array<i32>} : memref<16x512xf32, #tpu.memory_space<vmem>>, vector<16x512xf32>,
    } else {
    }
    return
  }
  func.func @transform_0(%arg0: i32) -> (i32, i32) {
    %c0_i32 = arith.constant 0 : i32
    %c0_i32_0 = arith.constant 0 : i32
    return %c0_i32, %arg0 : i32, i32
  }
  func.func @transform_1(%arg0: i32) -> (i32, i32) {
    %c0_i32 = arith.constant 0 : i32
    %c0_i32_0 = arith.constant 0 : i32
    return %arg0, %c0_i32 : i32, i32
  }
  func.func @transform_2(%arg0: i32) -> (i32, i32) {
    %c0_i32 = arith.constant 0 : i32
    %c0_i32_0 = arith.constant 0 : i32
    %c0_i32_1 = arith.constant 0 : i32
    return %c0_i32, %c0_i32_0 : i32, i32
  }
  func.func @transform_3(%arg0: i32) -> (i32, i32) {
    %c0_i32 = arith.constant 0 : i32
    %c0_i32_0 = arith.constant 0 : i32
    %c0_i32_1 = arith.constant 0 : i32
    return %c0_i32, %c0_i32_0 : i32, i32
  }
  func.func @transform_4(%arg0: i32) -> (i32, i32) {
    %c0_i32 = arith.constant 0 : i32
    %c0_i32_0 = arith.constant 0 : i32
    %c0_i32_1 = arith.constant 0 : i32
    return %c0_i32, %c0_i32_0 : i32, i32
  }
  func.func @transform_5(%arg0: i32) -> (i32, i32) {
    %c0_i32 = arith.constant 0 : i32
    %c0_i32_0 = arith.constant 0 : i32
    %c0_i32_1 = arith.constant 0 : i32
    return %c0_i32, %c0_i32_0 : i32, i32
  }
  func.func @transform_6(%arg0: i32) -> (i32, i32) {
    %c0_i32 = arith.constant 0 : i32
    %c0_i32_0 = arith.constant 0 : i32
    %c0_i32_1 = arith.constant 0 : i32
    return %c0_i32, %c0_i32_0 : i32, i32
  }
  func.func @transform_7(%arg0: i32) -> (i32, i32) {
    %c0_i32 = arith.constant 0 : i32
    %c0_i32_0 = arith.constant 0 : i32
    %c0_i32_1 = arith.constant 0 : i32
    return %c0_i32, %c0_i32_0 : i32, i32
  }
  func.func @transform_8(%arg0: i32) -> (i32, i32) {
    %c0_i32 = arith.constant 0 : i32
    %c0_i32_0 = arith.constant 0 : i32
    %c0_i32_1 = arith.constant 0 : i32
    return %c0_i32, %c0_i32_0 : i32, i32
  }
  func.func @transform_9(%arg0: i32) -> (i32, i32) {
    %c0_i32 = arith.constant 0 : i32
    %c0_i32_0 = arith.constant 0 : i32
    %c0_i32_1 = arith.constant 0 : i32
    return %c0_i32, %c0_i32_0 : i32, i32
  }
  func.func @transform_10(%arg0: i32) -> (i32, i32) {
    %c0_i32 = arith.constant 0 : i32
    %c0_i32_0 = arith.constant 0 : i32
    %c0_i32_1 = arith.constant 0 : i32
    return %c0_i32, %c0_i32_0 : i32, i32
  }
}

</mosaic_0001>

<llo_original>
// kernel: simsiam_forward.1
$region0: #{simsiam_forward.1}
  #allocation0 [shape = 'u32[]', space=smem, size = 0x4, offset = 0x4, fixed_abs, tag = 'smem constant byte address 0x4 - core index']
  #allocation1 [shape = 'u32[144,128]{1,0:T(1,128)}', space=vmem, size = 0x12000, scoped, tag = 'internal scratch']
  %s0 = inlined_call_operand.vmem [shape: bf16[16,1024], index: 0, kind: input, shape index: {}]
  %s1 = inlined_call_operand.hbm [shape: bf16[1024,512], index: 1, kind: input, shape index: {}]
  %s2 = inlined_call_operand.hbm [shape: f32[1,512], index: 2, kind: input, shape index: {}]
  %s3 = inlined_call_operand.hbm [shape: bf16[512,2048], index: 3, kind: input, shape index: {}]
  %s4 = inlined_call_operand.hbm [shape: f32[1,2048], index: 4, kind: input, shape index: {}]
  %s5 = inlined_call_operand.hbm [shape: f32[1,2048], index: 5, kind: input, shape index: {}]
  %s6 = inlined_call_operand.hbm [shape: f32[1,2048], index: 6, kind: input, shape index: {}]
  %s7 = inlined_call_operand.hbm [shape: bf16[2048,512], index: 7, kind: input, shape index: {}]
  %s8 = inlined_call_operand.hbm [shape: f32[1,512], index: 8, kind: input, shape index: {}]
  %s9 = inlined_call_operand.vmem [shape: f32[16,512], index: 9, kind: output, shape index: {0}]
  %s10 = inlined_call_operand.vmem [shape: f32[16,512], index: 10, kind: output, shape index: {1}]
  %11 = xla_tuple %s9, %s10
  %s12 = sld [smem:[#allocation0]]
  $region140: #{simsiam_forward.1} parent=0
    _
  %s14 = ssub.s32 1, %s12
  %s15 = scalar_select 0, %s14, %s12
  $region1: #{simsiam_forward.1} parent=0
    #allocation2 [shape = 'u8[32768]{0}', space=vmem, size = 0x8000, scoped, tag = 'input window, operand 0']
    #allocation3 [shape = 'u8[1048576]{0}', space=vmem, size = 0x100000, scoped, tag = 'input window, operand 1']
    #allocation4 [shape = 's32[2]{0}', space=sflag, size = 0x8, scoped, tag = 'scoped memory for simsiam_forward.1']
    #allocation5 [shape = 'u8[2048]{0}', space=vmem, size = 0x800, scoped, tag = 'input window, operand 2, single buffered']
    #allocation6 [shape = 's32[1]{0}', space=sflag, size = 0x4, scoped, tag = 'scoped memory for simsiam_forward.1']
    #allocation7 [shape = 'u8[2097152]{0}', space=vmem, size = 0x200000, scoped, tag = 'input window, operand 3, single buffered']
    #allocation8 [shape = 'u8[8192]{0}', space=vmem, size = 0x2000, scoped, tag = 'input window, operand 4, single buffered']
    #allocation9 [shape = 's32[1]{0}', space=sflag, size = 0x4, scoped, tag = 'scoped memory for simsiam_forward.1']
    #allocation10 [shape = 'u8[8192]{0}', space=vmem, size = 0x2000, scoped, tag = 'input window, operand 5, single buffered']
    #allocation11 [shape = 'u8[8192]{0}', space=vmem, size = 0x2000, scoped, tag = 'input window, operand 6, single buffered']
    #allocation12 [shape = 's32[1]{0}', space=sflag, size = 0x4, scoped, tag = 'scoped memory for simsiam_forward.1']
    #allocation13 [shape = 'u8[2097152]{0}', space=vmem, size = 0x200000, scoped, tag = 'input window, operand 7, single buffered']
    #allocation14 [shape = 'u8[2048]{0}', space=vmem, size = 0x800, scoped, tag = 'input window, operand 8, single buffered']
    #allocation15 [shape = 's32[1]{0}', space=sflag, size = 0x4, scoped, tag = 'scoped memory for simsiam_forward.1']
    %16 = vsyncpa [#allocation4], 0
    %s17 = scalar_lea.sflag [#allocation4], 1
    %18 = vsyncpa %s17, 0
    %19 = vsyncpa [#allocation6], 0
    %20 = vsyncpa [#allocation9], 0
    %21 = vsyncpa [#allocation12], 0
    %22 = vsyncpa [#allocation15], 0
    loop: start=0, step=1, limit=4
    $region2: #{simsiam_forward.1} parent=1 // loop_pre_header
      _
    $region3: #{simsiam_forward.1} parent=1 // loop_header
      %s24 = sphi 0, %s28
      %p25 = scmp.ge.s32.totalorder %s24, 4
      %s34 = sphi 0, %s36
      %s37 = sphi 0, %s34
      %s38 = sphi 0, %s37
      %s54 = sphi 0, %s38
      %s60 = sphi 0, %s62
      %s63 = sphi 0, %s60
      %s64 = sphi 0, %s63
      %s80 = sphi 0, %s64
      %s84 = sphi 0, %s84
      %s86 = sphi 0, %s84
      %s87 = sphi 0, %s86
      %s101 = sphi 0, %s87
      %s105 = sphi 0, %s105
      %s107 = sphi 0, %s105
      %s108 = sphi 0, %s107
      %s122 = sphi 0, %s108
      %s126 = sphi 0, %s126
      %s128 = sphi 0, %s126
      %s129 = sphi 0, %s128
      %s143 = sphi 0, %s129
      %s147 = sphi 0, %s147
      %s149 = sphi 0, %s147
      %s150 = sphi 0, %s149
      %s164 = sphi 0, %s150
      %s168 = sphi 0, %s168
      %s170 = sphi 0, %s168
      %s171 = sphi 0, %s170
      %s185 = sphi 0, %s171
      %s189 = sphi 0, %s189
      %s191 = sphi 0, %s189
      %s192 = sphi 0, %s191
      %s206 = sphi 0, %s192
      %s210 = sphi 0, %s210
      %s212 = sphi 0, %s210
      %s213 = sphi 0, %s212
      %s227 = sphi 0, %s213
      %s231 = sphi 0, %s231
      %s233 = sphi 0, %s231
      %s234 = sphi 0, %s233
      %s248 = sphi 0, %s234
      %s252 = sphi 0, %s252
      %s254 = sphi 0, %s252
      %s255 = sphi 0, %s254
      %s269 = sphi 0, %s255
    $region4: #{simsiam_forward.1} parent=1 // loop_header_branch
      %27 = sbr.rel (%p25) target = $region8
    $region5: #{simsiam_forward.1} parent=1 // loop_body
      %s29 = ssub.s32 %s24, 1
      %s30 = ssub.s32 %s24, 2
      %s31 = sadd.s32 %s24, 1
      %s32 = ssub.s32 %s24, %s31
      %p33 = scmp.eq.s32.totalorder %s32, 0
      %s35 = sadd.s32 %s34, 1
      %s36 = scalar_select %p33, %s34, %s35
      %p39 = pneg %p33
      %p40 = scmp.eq.s32.totalorder %s24, 1
      %p41 = por %p39, %p40
      %p42 = scmp.ne.s32.totalorder %s34, %s37
      %p43 = scmp.eq.s32.totalorder %s24, 0
      %p44 = por %p42, %p43
      %p45 = scmp.ne.s32.totalorder %s34, %s37
      %p46 = scmp.eq.s32.totalorder %s29, 1
      %p47 = por %p45, %p46
      %p48 = scmp.ne.s32.totalorder %s37, %s38
      %p49 = scmp.eq.s32.totalorder %s29, 0
      %p50 = por %p48, %p49
      %p51 = scmp.ne.s32.totalorder %s37, %s38
      %p52 = scmp.eq.s32.totalorder %s30, 1
      %p53 = por %p51, %p52
      %p55 = scmp.ne.s32.totalorder %s38, %s54
      %p56 = scmp.eq.s32.totalorder %s30, 0
      %p57 = por %p55, %p56
      %s58 = ssub.s32 %s24, %s31
      %p59 = scmp.eq.s32.totalorder %s58, 0
      %s61 = sadd.s32 %s60, 1
      %s62 = scalar_select %p59, %s60, %s61
      %p65 = pneg %p59
      %p66 = scmp.eq.s32.totalorder %s24, 1
      %p67 = por %p65, %p66
      %p68 = scmp.ne.s32.totalorder %s60, %s63
      %p69 = scmp.eq.s32.totalorder %s24, 0
      %p70 = por %p68, %p69
      %p71 = scmp.ne.s32.totalorder %s60, %s63
      %p72 = scmp.eq.s32.totalorder %s29, 1
      %p73 = por %p71, %p72
      %p74 = scmp.ne.s32.totalorder %s63, %s64
      %p75 = scmp.eq.s32.totalorder %s29, 0
      %p76 = por %p74, %p75
      %p77 = scmp.ne.s32.totalorder %s63, %s64
      %p78 = scmp.eq.s32.totalorder %s30, 1
      %p79 = por %p77, %p78
      %p81 = scmp.ne.s32.totalorder %s64, %s80
      %p82 = scmp.eq.s32.totalorder %s30, 0
      %p83 = por %p81, %p82
      %s85 = sadd.s32 %s84, 1
      %p88 = scmp.eq.s32.totalorder %s24, 1
      %p89 = scmp.ne.s32.totalorder %s84, %s86
      %p90 = scmp.eq.s32.totalorder %s24, 0
      %p91 = por %p89, %p90
      %p92 = scmp.ne.s32.totalorder %s84, %s86
      %p93 = scmp.eq.s32.totalorder %s29, 1
      %p94 = por %p92, %p93
      %p95 = scmp.ne.s32.totalorder %s86, %s87
      %p96 = scmp.eq.s32.totalorder %s29, 0
      %p97 = por %p95, %p96
      %p98 = scmp.ne.s32.totalorder %s86, %s87
      %p99 = scmp.eq.s32.totalorder %s30, 1
      %p100 = por %p98, %p99
      %p102 = scmp.ne.s32.totalorder %s87, %s101
      %p103 = scmp.eq.s32.totalorder %s30, 0
      %p104 = por %p102, %p103
      %s106 = sadd.s32 %s105, 1
      %p109 = scmp.eq.s32.totalorder %s24, 1
      %p110 = scmp.ne.s32.totalorder %s105, %s107
      %p111 = scmp.eq.s32.totalorder %s24, 0
      %p112 = por %p110, %p111
      %p113 = scmp.ne.s32.totalorder %s105, %s107
      %p114 = scmp.eq.s32.totalorder %s29, 1
      %p115 = por %p113, %p114
      %p116 = scmp.ne.s32.totalorder %s107, %s108
      %p117 = scmp.eq.s32.totalorder %s29, 0
      %p118 = por %p116, %p117
      %p119 = scmp.ne.s32.totalorder %s107, %s108
      %p120 = scmp.eq.s32.totalorder %s30, 1
      %p121 = por %p119, %p120
      %p123 = scmp.ne.s32.totalorder %s108, %s122
      %p124 = scmp.eq.s32.totalorder %s30, 0
      %p125 = por %p123, %p124
      %s127 = sadd.s32 %s126, 1
      %p130 = scmp.eq.s32.totalorder %s24, 1
      %p131 = scmp.ne.s32.totalorder %s126, %s128
      %p132 = scmp.eq.s32.totalorder %s24, 0
      %p133 = por %p131, %p132
      %p134 = scmp.ne.s32.totalorder %s126, %s128
      %p135 = scmp.eq.s32.totalorder %s29, 1
      %p136 = por %p134, %p135
      %p137 = scmp.ne.s32.totalorder %s128, %s129
      %p138 = scmp.eq.s32.totalorder %s29, 0
      %p139 = por %p137, %p138
      %p140 = scmp.ne.s32.totalorder %s128, %s129
      %p141 = scmp.eq.s32.totalorder %s30, 1
      %p142 = por %p140, %p141
      %p144 = scmp.ne.s32.totalorder %s129, %s143
      %p145 = scmp.eq.s32.totalorder %s30, 0
      %p146 = por %p144, %p145
      %s148 = sadd.s32 %s147, 1
      %p151 = scmp.eq.s32.totalorder %s24, 1
      %p152 = scmp.ne.s32.totalorder %s147, %s149
      %p153 = scmp.eq.s32.totalorder %s24, 0
      %p154 = por %p152, %p153
      %p155 = scmp.ne.s32.totalorder %s147, %s149
      %p156 = scmp.eq.s32.totalorder %s29, 1
      %p157 = por %p155, %p156
      %p158 = scmp.ne.s32.totalorder %s149, %s150
      %p159 = scmp.eq.s32.totalorder %s29, 0
      %p160 = por %p158, %p159
      %p161 = scmp.ne.s32.totalorder %s149, %s150
      %p162 = scmp.eq.s32.totalorder %s30, 1
      %p163 = por %p161, %p162
      %p165 = scmp.ne.s32.totalorder %s150, %s164
      %p166 = scmp.eq.s32.totalorder %s30, 0
      %p167 = por %p165, %p166
      %s169 = sadd.s32 %s168, 1
      %p172 = scmp.eq.s32.totalorder %s24, 1
      %p173 = scmp.ne.s32.totalorder %s168, %s170
      %p174 = scmp.eq.s32.totalorder %s24, 0
      %p175 = por %p173, %p174
      %p176 = scmp.ne.s32.totalorder %s168, %s170
      %p177 = scmp.eq.s32.totalorder %s29, 1
      %p178 = por %p176, %p177
      %p179 = scmp.ne.s32.totalorder %s170, %s171
      %p180 = scmp.eq.s32.totalorder %s29, 0
      %p181 = por %p179, %p180
      %p182 = scmp.ne.s32.totalorder %s170, %s171
      %p183 = scmp.eq.s32.totalorder %s30, 1
      %p184 = por %p182, %p183
      %p186 = scmp.ne.s32.totalorder %s171, %s185
      %p187 = scmp.eq.s32.totalorder %s30, 0
      %p188 = por %p186, %p187
      %s190 = sadd.s32 %s189, 1
      %p193 = scmp.eq.s32.totalorder %s24, 1
      %p194 = scmp.ne.s32.totalorder %s189, %s191
      %p195 = scmp.eq.s32.totalorder %s24, 0
      %p196 = por %p194, %p195
      %p197 = scmp.ne.s32.totalorder %s189, %s191
      %p198 = scmp.eq.s32.totalorder %s29, 1
      %p199 = por %p197, %p198
      %p200 = scmp.ne.s32.totalorder %s191, %s192
      %p201 = scmp.eq.s32.totalorder %s29, 0
      %p202 = por %p200, %p201
      %p203 = scmp.ne.s32.totalorder %s191, %s192
      %p204 = scmp.eq.s32.totalorder %s30, 1
      %p205 = por %p203, %p204
      %p207 = scmp.ne.s32.totalorder %s192, %s206
      %p208 = scmp.eq.s32.totalorder %s30, 0
      %p209 = por %p207, %p208
      %s211 = sadd.s32 %s210, 1
      %p214 = scmp.eq.s32.totalorder %s24, 1
      %p215 = scmp.ne.s32.totalorder %s210, %s212
      %p216 = scmp.eq.s32.totalorder %s24, 0
      %p217 = por %p215, %p216
      %p218 = scmp.ne.s32.totalorder %s210, %s212
      %p219 = scmp.eq.s32.totalorder %s29, 1
      %p220 = por %p218, %p219
      %p221 = scmp.ne.s32.totalorder %s212, %s213
      %p222 = scmp.eq.s32.totalorder %s29, 0
      %p223 = por %p221, %p222
      %p224 = scmp.ne.s32.totalorder %s212, %s213
      %p225 = scmp.eq.s32.totalorder %s30, 1
      %p226 = por %p224, %p225
      %p228 = scmp.ne.s32.totalorder %s213, %s227
      %p229 = scmp.eq.s32.totalorder %s30, 0
      %p230 = por %p228, %p229
      %s232 = sadd.s32 %s231, 1
      %p235 = scmp.eq.s32.totalorder %s24, 1
      %p236 = scmp.ne.s32.totalorder %s231, %s233
      %p237 = scmp.eq.s32.totalorder %s24, 0
      %p238 = por %p236, %p237
      %p239 = scmp.ne.s32.totalorder %s231, %s233
      %p240 = scmp.eq.s32.totalorder %s29, 1
      %p241 = por %p239, %p240
      %p242 = scmp.ne.s32.totalorder %s233, %s234
      %p243 = scmp.eq.s32.totalorder %s29, 0
      %p244 = por %p242, %p243
      %p245 = scmp.ne.s32.totalorder %s233, %s234
      %p246 = scmp.eq.s32.totalorder %s30, 1
      %p247 = por %p245, %p246
      %p249 = scmp.ne.s32.totalorder %s234, %s248
      %p250 = scmp.eq.s32.totalorder %s30, 0
      %p251 = por %p249, %p250
      %s253 = sadd.s32 %s252, 1
      %p256 = scmp.eq.s32.totalorder %s24, 1
      %p257 = scmp.ne.s32.totalorder %s252, %s254
      %p258 = scmp.eq.s32.totalorder %s24, 0
      %p259 = por %p257, %p258
      %p260 = scmp.ne.s32.totalorder %s252, %s254
      %p261 = scmp.eq.s32.totalorder %s29, 1
      %p262 = por %p260, %p261
      %p263 = scmp.ne.s32.totalorder %s254, %s255
      %p264 = scmp.eq.s32.totalorder %s29, 0
      %p265 = por %p263, %p264
      %p266 = scmp.ne.s32.totalorder %s254, %s255
      %p267 = scmp.eq.s32.totalorder %s30, 1
      %p268 = por %p266, %p267
      %p270 = scmp.ne.s32.totalorder %s255, %s269
      %p271 = scmp.eq.s32.totalorder %s30, 0
      %p272 = por %p270, %p271
      %p273 = scmp.le.s32.totalorder 1, %s24
      %p274 = scmp.lt.s32.totalorder %s24, 3
      %p275 = pnand %p273, %p274
      %p276 = pneg %p275
      // Predicated region
      $region9: #{simsiam_forward.1} parent=5 // pred_check
        _
      $region10: #{simsiam_forward.1} parent=5 // pred_check_branch
        %278 = sbr.rel (%p275) target = $region12
      $region11: #{simsiam_forward.1} parent=5 // pred_region
        %s279 = ssub.s32 %s24, 1
        // Predicated region
        $region13: #{simsiam_forward.1} parent=11 // pred_check
          %p280 = pneg %p97
        $region14: #{simsiam_forward.1} parent=11 // pred_check_branch
          %282 = sbr.rel (%p280) target = $region16
        $region15: #{simsiam_forward.1} parent=11 // pred_region
          %s284 = ssub.s32 64, 64
          %285 = vsyncadd [#allocation6], %s284
          %s287 = sshll.u32 [#allocation5], 4
          %s288 = int_to_ptr.vmem [resolvable:$true] %s287
          %290 = dma.hbm_to_vmem [thread:$0]  %s2, 64, %s288, [#allocation6]
        $region16: #{simsiam_forward.1} parent=11 // pred_fallthru
          _
        // Predicated region
        $region17: #{simsiam_forward.1} parent=11 // pred_check
          %p291 = pneg %p118
        $region18: #{simsiam_forward.1} parent=11 // pred_check_branch
          %293 = sbr.rel (%p291) target = $region20
        $region19: #{simsiam_forward.1} parent=11 // pred_region
          %s295 = ssub.s32 65536, 65536
          %296 = vsyncadd [#allocation6], %s295
          %s297 = sshll.u32 [#allocation7], 4
          %s298 = int_to_ptr.vmem [resolvable:$true] %s297
          %303 = dma.hbm_to_vmem [thread:$0]  %s3, 65536, %s298, [#allocation6], 1024, 1024, 64
        $region20: #{simsiam_forward.1} parent=11 // pred_fallthru
          _
        // Predicated region
        $region21: #{simsiam_forward.1} parent=11 // pred_check
          %p304 = pneg %p139
        $region22: #{simsiam_forward.1} parent=11 // pred_check_branch
          %306 = sbr.rel (%p304) target = $region24
        $region23: #{simsiam_forward.1} parent=11 // pred_region
          %s308 = ssub.s32 256, 256
          %309 = vsyncadd [#allocation9], %s308
          %s311 = sshll.u32 [#allocation8], 4
          %s312 = int_to_ptr.vmem [resolvable:$true] %s311
          %314 = dma.hbm_to_vmem [thread:$0]  %s4, 256, %s312, [#allocation9]
        $region24: #{simsiam_forward.1} parent=11 // pred_fallthru
          _
        // Predicated region
        $region25: #{simsiam_forward.1} parent=11 // pred_check
          %p315 = pneg %p160
        $region26: #{simsiam_forward.1} parent=11 // pred_check_branch
          %317 = sbr.rel (%p315) target = $region28
        $region27: #{simsiam_forward.1} parent=11 // pred_region
          %s319 = ssub.s32 256, 256
          %320 = vsyncadd [#allocation9], %s319
          %s322 = sshll.u32 [#allocation10], 4
          %s323 = int_to_ptr.vmem [resolvable:$true] %s322
          %325 = dma.hbm_to_vmem [thread:$0]  %s5, 256, %s323, [#allocation9]
        $region28: #{simsiam_forward.1} parent=11 // pred_fallthru
          _
        // Predicated region
        $region29: #{simsiam_forward.1} parent=11 // pred_check
          %p326 = pneg %p181
        $region30: #{simsiam_forward.1} parent=11 // pred_check_branch
          %328 = sbr.rel (%p326) target = $region32
        $region31: #{simsiam_forward.1} parent=11 // pred_region
          %s330 = ssub.s32 256, 256
          %331 = vsyncadd [#allocation12], %s330
          %s333 = sshll.u32 [#allocation11], 4
          %s334 = int_to_ptr.vmem [resolvable:$true] %s333
          %336 = dma.hbm_to_vmem [thread:$0]  %s6, 256, %s334, [#allocation12]
        $region32: #{simsiam_forward.1} parent=11 // pred_fallthru
          _
        // Predicated region
        $region33: #{simsiam_forward.1} parent=11 // pred_check
          %p337 = pneg %p202
        $region34: #{simsiam_forward.1} parent=11 // pred_check_branch
          %339 = sbr.rel (%p337) target = $region36
        $region35: #{simsiam_forward.1} parent=11 // pred_region
          %s341 = ssub.s32 65536, 65536
          %342 = vsyncadd [#allocation12], %s341
          %s343 = sshll.u32 [#allocation13], 4
          %s344 = int_to_ptr.vmem [resolvable:$true] %s343
          %349 = dma.hbm_to_vmem [thread:$0]  %s7, 65536, %s344, [#allocation12], 256, 256, 16
        $region36: #{simsiam_forward.1} parent=11 // pred_fallthru
          _
        // Predicated region
        $region37: #{simsiam_forward.1} parent=11 // pred_check
          %p350 = pneg %p223
        $region38: #{simsiam_forward.1} parent=11 // pred_check_branch
          %352 = sbr.rel (%p350) target = $region40
        $region39: #{simsiam_forward.1} parent=11 // pred_region
          %s354 = ssub.s32 64, 64
          %355 = vsyncadd [#allocation15], %s354
          %s357 = sshll.u32 [#allocation14], 4
          %s358 = int_to_ptr.vmem [resolvable:$true] %s357
          %360 = dma.hbm_to_vmem [thread:$0]  %s8, 64, %s358, [#allocation15]
        $region40: #{simsiam_forward.1} parent=11 // pred_fallthru
          _
      $region12: #{simsiam_forward.1} parent=5 // pred_fallthru
        _
      %p361 = scmp.lt.s32.totalorder %s24, 2
      // Predicated region
      $region41: #{simsiam_forward.1} parent=5 // pred_check
        %p362 = pneg %p361
      $region42: #{simsiam_forward.1} parent=5 // pred_check_branch
        %364 = sbr.rel (%p362) target = $region44
      $region43: #{simsiam_forward.1} parent=5 // pred_region
        // Predicated region
        $region45: #{simsiam_forward.1} parent=43 // pred_check
          %p365 = pneg %p44
        $region46: #{simsiam_forward.1} parent=43 // pred_check_branch
          %367 = sbr.rel (%p365) target = $region48
        $region47: #{simsiam_forward.1} parent=43 // pred_region
          %s368 = sand.u32 %s34, 1
          %s369 = sand.u32 %s34, 1
          %s370 = smul.addr %s369, 32
          %s371 = scalar_lea.vmem [#allocation2], %s370
          %s372 = smul.u32 4, %s24
          %s373 = smul.addr %s372, 4
          %s374 = scalar_lea.vmem %s0, %s373
          // Predicated region
          $region49: #{simsiam_forward.1} parent=47 // pred_check
            _
          $region50: #{simsiam_forward.1} parent=47 // pred_check_branch
            %376 = sbr.rel (0) target = $region52
          $region51: #{simsiam_forward.1} parent=47 // pred_region
            // Predicated region
            $region53: #{simsiam_forward.1} parent=51 // pred_check
              _
            $region54: #{simsiam_forward.1} parent=51 // pred_check_branch
              %378 = sbr.rel (0) target = $region56
            $region55: #{simsiam_forward.1} parent=51 // pred_region
              loop: start=0, step=1, limit=1
              $region57: #{simsiam_forward.1} parent=55 // loop_pre_header
                _
              $region58: #{simsiam_forward.1} parent=55 // loop_header
                %s380 = sphi 0, %s384
                %p381 = scmp.ge.s32.totalorder %s380, 1
                %s385 = sphi %s374, %s374
                %s386 = sphi %s371, %s371
              $region59: #{simsiam_forward.1} parent=55 // loop_header_branch
                %383 = sbr.rel (%p381) target = $region63
              $region60: #{simsiam_forward.1} parent=55 // loop_body
                %v387 = vld [vmem:[%s385] sm:$0xff]
                %388 = vst [vmem:[%s386] sm:$0xff] %v387
                %v389 = vld [vmem:[%s385 + $0x8] sm:$0xff]
                %390 = vst [vmem:[%s386 + $0x8] sm:$0xff] %v389
                %v391 = vld [vmem:[%s385 + $0x20] sm:$0xff]
                %392 = vst [vmem:[%s386 + $0x10] sm:$0xff] %v391
                %v393 = vld [vmem:[%s385 + $0x28] sm:$0xff]
                %394 = vst [vmem:[%s386 + $0x18] sm:$0xff] %v393
              $region61: #{simsiam_forward.1} parent=55 // loop_footer
                %s384 = sadd.s32 1, %s380
              $region62: #{simsiam_forward.1} parent=55 // loop_footer_branch
                %379 = sbr.rel target = $region58
              $region63: #{simsiam_forward.1} parent=55 // loop_exit
                _
            $region56: #{simsiam_forward.1} parent=51 // pred_fallthru
              _
            // Predicated region
            $region64: #{simsiam_forward.1} parent=51 // pred_check
              _
            $region65: #{simsiam_forward.1} parent=51 // pred_check_branch
              %396 = sbr.rel target = $region67
            $region66: #{simsiam_forward.1} parent=51 // pred_region
              _
            $region67: #{simsiam_forward.1} parent=51 // pred_fallthru
              _
          $region52: #{simsiam_forward.1} parent=47 // pred_fallthru
            _
          %397 = vnop
        $region48: #{simsiam_forward.1} parent=43 // pred_fallthru
          _
        // Predicated region
        $region68: #{simsiam_forward.1} parent=43 // pred_check
          %p398 = pneg %p70
        $region69: #{simsiam_forward.1} parent=43 // pred_check_branch
          %400 = sbr.rel (%p398) target = $region71
        $region70: #{simsiam_forward.1} parent=43 // pred_region
          %s401 = sand.u32 %s60, 1
          %s402 = scalar_lea.sflag [#allocation4], %s401
          %s403 = sand.u32 %s60, 1
          %s404 = smul.addr %s403, 1024
          %s405 = scalar_lea.vmem [#allocation3], %s404
          %s406 = smul.u32 64, %s24
          %s408 = ssub.s32 16384, 16384
          %409 = vsyncadd %s402, %s408
          %s410 = smul.addr %s406, 4
          %s411 = smul.addr %s410, 64
          %s412 = scalar_lea.hbm %s1, %s411
          %s413 = sshll.u32 %s405, 4
          %s414 = int_to_ptr.vmem [resolvable:$true] %s413
          %419 = dma.hbm_to_vmem [thread:$0]  %s412, 16384, %s414, %s402, 256, 256, 16
        $region71: #{simsiam_forward.1} parent=43 // pred_fallthru
          _
      $region44: #{simsiam_forward.1} parent=5 // pred_fallthru
        _
      %p420 = scmp.le.s32.totalorder 1, %s24
      %p421 = scmp.lt.s32.totalorder %s24, 3
      %p422 = pnand %p420, %p421
      %p423 = pneg %p422
      // Predicated region
      $region72: #{simsiam_forward.1} parent=5 // pred_check
        _
      $region73: #{simsiam_forward.1} parent=5 // pred_check_branch
        %425 = sbr.rel (%p422) target = $region75
      $region74: #{simsiam_forward.1} parent=5 // pred_region
        %s426 = ssub.s32 %s24, 1
        %s427 = sand.u32 %s37, 1
        %s428 = sand.u32 %s37, 1
        %s429 = smul.addr %s428, 32
        %s430 = scalar_lea.vmem [#allocation2], %s429
        // Predicated region
        $region76: #{simsiam_forward.1} parent=74 // pred_check
          %p431 = pneg %p50
        $region77: #{simsiam_forward.1} parent=74 // pred_check_branch
          %433 = sbr.rel (%p431) target = $region79
        $region78: #{simsiam_forward.1} parent=74 // pred_region
          _
        $region79: #{simsiam_forward.1} parent=74 // pred_fallthru
          _
        %s434 = sand.u32 %s63, 1
        %s435 = scalar_lea.sflag [#allocation4], %s434
        %s436 = sand.u32 %s63, 1
        %s437 = smul.addr %s436, 1024
        %s438 = scalar_lea.vmem [#allocation3], %s437
        // Predicated region
        $region80: #{simsiam_forward.1} parent=74 // pred_check
          %p439 = pneg %p76
        $region81: #{simsiam_forward.1} parent=74 // pred_check_branch
          %441 = sbr.rel (%p439) target = $region83
        $region82: #{simsiam_forward.1} parent=74 // pred_region
          %442 = dma.done %s435, 16384
        $region83: #{simsiam_forward.1} parent=74 // pred_fallthru
          _
        // Predicated region
        $region84: #{simsiam_forward.1} parent=74 // pred_check
          %p443 = pneg %p97
        $region85: #{simsiam_forward.1} parent=74 // pred_check_branch
          %445 = sbr.rel (%p443) target = $region87
        $region86: #{simsiam_forward.1} parent=74 // pred_region
          %446 = dma.done [#allocation6], 64
        $region87: #{simsiam_forward.1} parent=74 // pred_fallthru
          _
        // Predicated region
        $region88: #{simsiam_forward.1} parent=74 // pred_check
          %p447 = pneg %p118
        $region89: #{simsiam_forward.1} parent=74 // pred_check_branch
          %449 = sbr.rel (%p447) target = $region91
        $region90: #{simsiam_forward.1} parent=74 // pred_region
          %450 = dma.done [#allocation6], 65536
        $region91: #{simsiam_forward.1} parent=74 // pred_fallthru
          _
        // Predicated region
        $region92: #{simsiam_forward.1} parent=74 // pred_check
          %p451 = pneg %p139
        $region93: #{simsiam_forward.1} parent=74 // pred_check_branch
          %453 = sbr.rel (%p451) target = $region95
        $region94: #{simsiam_forward.1} parent=74 // pred_region
          %454 = dma.done [#allocation9], 256
        $region95: #{simsiam_forward.1} parent=74 // pred_fallthru
          _
        // Predicated region
        $region96: #{simsiam_forward.1} parent=74 // pred_check
          %p455 = pneg %p160
        $region97: #{simsiam_forward.1} parent=74 // pred_check_branch
          %457 = sbr.rel (%p455) target = $region99
        $region98: #{simsiam_forward.1} parent=74 // pred_region
          %458 = dma.done [#allocation9], 256
        $region99: #{simsiam_forward.1} parent=74 // pred_fallthru
          _
        // Predicated region
        $region100: #{simsiam_forward.1} parent=74 // pred_check
          %p459 = pneg %p181
        $region101: #{simsiam_forward.1} parent=74 // pred_check_branch
          %461 = sbr.rel (%p459) target = $region103
        $region102: #{simsiam_forward.1} parent=74 // pred_region
          %462 = dma.done [#allocation12], 256
        $region103: #{simsiam_forward.1} parent=74 // pred_fallthru
          _
        // Predicated region
        $region104: #{simsiam_forward.1} parent=74 // pred_check
          %p463 = pneg %p202
        $region105: #{simsiam_forward.1} parent=74 // pred_check_branch
          %465 = sbr.rel (%p463) target = $region107
        $region106: #{simsiam_forward.1} parent=74 // pred_region
          %466 = dma.done [#allocation12], 65536
        $region107: #{simsiam_forward.1} parent=74 // pred_fallthru
          _
        // Predicated region
        $region108: #{simsiam_forward.1} parent=74 // pred_check
          %p467 = pneg %p223
        $region109: #{simsiam_forward.1} parent=74 // pred_check_branch
          %469 = sbr.rel (%p467) target = $region111
        $region110: #{simsiam_forward.1} parent=74 // pred_region
          %470 = dma.done [#allocation15], 64
        $region111: #{simsiam_forward.1} parent=74 // pred_fallthru
          _
        %s471 = sand.u32 %s37, 1
        %s472 = sand.u32 %s37, 1
        %s473 = smul.addr %s472, 32
        %s474 = scalar_lea.vmem [#allocation2], %s473
        %p475 = pneg %p50
        %p476 = pneg %p47
        %s477 = sand.u32 %s63, 1
        %s478 = scalar_lea.sflag [#allocation4], %s477
        %s479 = sand.u32 %s63, 1
        %s480 = smul.addr %s479, 1024
        %s481 = scalar_lea.vmem [#allocation3], %s480
        %p482 = pneg %p76
        %p483 = pneg %p73
        %p484 = pneg %p97
        %p485 = pneg %p94
        %p486 = pneg %p118
        %p487 = pneg %p115
        %p488 = pneg %p139
        %p489 = pneg %p136
        %p490 = pneg %p160
        %p491 = pneg %p157
        %p492 = pneg %p181
        %p493 = pneg %p178
        %p494 = pneg %p202
        %p495 = pneg %p199
        %p496 = pneg %p223
        %p497 = pneg %p220
        %p498 = pneg %p244
        %p499 = pneg %p241
        %p500 = pneg %p265
        %p501 = pneg %p262
        %s502 = smul.u32 4, %s29
        %s503 = smul.u32 64, %s29
        %p504 = scmp.eq.s32.totalorder %s29, 0
        // Predicated region
        $region112: #{simsiam_forward.1} parent=74 // pred_check
          %p505 = pneg %p504
        $region113: #{simsiam_forward.1} parent=74 // pred_check_branch
          %507 = sbr.rel (%p505) target = $region115
        $region114: #{simsiam_forward.1} parent=74 // pred_region
          %508 = vst [vmem:[%s9] sm:$0xff] 0.0
          %509 = vst [vmem:[%s9 + $0x8] sm:$0xff] 0.0
          %510 = vst [vmem:[%s9 + $0x10] sm:$0xff] 0.0
          %511 = vst [vmem:[%s9 + $0x18] sm:$0xff] 0.0
          %512 = vst [vmem:[%s9 + $0x20] sm:$0xff] 0.0
          %513 = vst [vmem:[%s9 + $0x28] sm:$0xff] 0.0
          %514 = vst [vmem:[%s9 + $0x30] sm:$0xff] 0.0
          %515 = vst [vmem:[%s9 + $0x38] sm:$0xff] 0.0
        $region115: #{simsiam_forward.1} parent=74 // pred_fallthru
          _
        %v516 = vld [vmem:[%s9] sm:$0xff]
        %v517 = vld [vmem:[%s9 + $0x8] sm:$0xff]
        %v518 = vld [vmem:[%s9 + $0x10] sm:$0xff]
        %v519 = vld [vmem:[%s9 + $0x18] sm:$0xff]
        %v520 = vld [vmem:[%s9 + $0x20] sm:$0xff]
        %v521 = vld [vmem:[%s9 + $0x28] sm:$0xff]
        %v522 = vld [vmem:[%s9 + $0x30] sm:$0xff]
        %v523 = vld [vmem:[%s9 + $0x38] sm:$0xff]
        %v524 = vld [vmem:[%s430] sm:$0xff]
        %v525 = vld [vmem:[%s430 + $0x8] sm:$0xff]
        %v526 = vld [vmem:[%s430 + $0x10] sm:$0xff]
        %v527 = vld [vmem:[%s430 + $0x18] sm:$0xff]
        %v528 = vld [vmem:[%s438] sm:$0xff]
        %v529 = vld [vmem:[%s438 + $0x8] sm:$0xff]
        %v530 = vld [vmem:[%s438 + $0x10] sm:$0xff]
        %v531 = vld [vmem:[%s438 + $0x18] sm:$0xff]
        %v532 = vld [vmem:[%s438 + $0x20] sm:$0xff]
        %v533 = vld [vmem:[%s438 + $0x28] sm:$0xff]
        %v534 = vld [vmem:[%s438 + $0x30] sm:$0xff]
        %v535 = vld [vmem:[%s438 + $0x38] sm:$0xff]
        %v536 = vld [vmem:[%s438 + $0x40] sm:$0xff]
        %v537 = vld [vmem:[%s438 + $0x48] sm:$0xff]
        %v538 = vld [vmem:[%s438 + $0x50] sm:$0xff]
        %v539 = vld [vmem:[%s438 + $0x58] sm:$0xff]
        %v540 = vld [vmem:[%s438 + $0x60] sm:$0xff]
        %v541 = vld [vmem:[%s438 + $0x68] sm:$0xff]
        %v542 = vld [vmem:[%s438 + $0x70] sm:$0xff]
        %v543 = vld [vmem:[%s438 + $0x78] sm:$0xff]
        %v544 = vld [vmem:[%s438 + $0x80] sm:$0xff]
        %v545 = vld [vmem:[%s438 + $0x88] sm:$0xff]
        %v546 = vld [vmem:[%s438 + $0x90] sm:$0xff]
        %v547 = vld [vmem:[%s438 + $0x98] sm:$0xff]
        %v548 = vld [vmem:[%s438 + $0xa0] sm:$0xff]
        %v549 = vld [vmem:[%s438 + $0xa8] sm:$0xff]
        %v550 = vld [vmem:[%s438 + $0xb0] sm:$0xff]
        %v551 = vld [vmem:[%s438 + $0xb8] sm:$0xff]
        %v552 = vld [vmem:[%s438 + $0xc0] sm:$0xff]
        %v553 = vld [vmem:[%s438 + $0xc8] sm:$0xff]
        %v554 = vld [vmem:[%s438 + $0xd0] sm:$0xff]
        %v555 = vld [vmem:[%s438 + $0xd8] sm:$0xff]
        %v556 = vld [vmem:[%s438 + $0xe0] sm:$0xff]
        %v557 = vld [vmem:[%s438 + $0xe8] sm:$0xff]
        %v558 = vld [vmem:[%s438 + $0xf0] sm:$0xff]
        %v559 = vld [vmem:[%s438 + $0xf8] sm:$0xff]
        %v560 = vld [vmem:[%s438 + $0x100] sm:$0xff]
        %v561 = vld [vmem:[%s438 + $0x108] sm:$0xff]
        %v562 = vld [vmem:[%s438 + $0x110] sm:$0xff]
        %v563 = vld [vmem:[%s438 + $0x118] sm:$0xff]
        %v564 = vld [vmem:[%s438 + $0x120] sm:$0xff]
        %v565 = vld [vmem:[%s438 + $0x128] sm:$0xff]
        %v566 = vld [vmem:[%s438 + $0x130] sm:$0xff]
        %v567 = vld [vmem:[%s438 + $0x138] sm:$0xff]
        %v568 = vld [vmem:[%s438 + $0x140] sm:$0xff]
        %v569 = vld [vmem:[%s438 + $0x148] sm:$0xff]
        %v570 = vld [vmem:[%s438 + $0x150] sm:$0xff]
        %v571 = vld [vmem:[%s438 + $0x158] sm:$0xff]
        %v572 = vld [vmem:[%s438 + $0x160] sm:$0xff]
        %v573 = vld [vmem:[%s438 + $0x168] sm:$0xff]
        %v574 = vld [vmem:[%s438 + $0x170] sm:$0xff]
        %v575 = vld [vmem:[%s438 + $0x178] sm:$0xff]
        %v576 = vld [vmem:[%s438 + $0x180] sm:$0xff]
        %v577 = vld [vmem:[%s438 + $0x188] sm:$0xff]
        %v578 = vld [vmem:[%s438 + $0x190] sm:$0xff]
        %v579 = vld [vmem:[%s438 + $0x198] sm:$0xff]
        %v580 = vld [vmem:[%s438 + $0x1a0] sm:$0xff]
        %v581 = vld [vmem:[%s438 + $0x1a8] sm:$0xff]
        %v582 = vld [vmem:[%s438 + $0x1b0] sm:$0xff]
        %v583 = vld [vmem:[%s438 + $0x1b8] sm:$0xff]
        %v584 = vld [vmem:[%s438 + $0x1c0] sm:$0xff]
        %v585 = vld [vmem:[%s438 + $0x1c8] sm:$0xff]
        %v586 = vld [vmem:[%s438 + $0x1d0] sm:$0xff]
        %v587 = vld [vmem:[%s438 + $0x1d8] sm:$0xff]
        %v588 = vld [vmem:[%s438 + $0x1e0] sm:$0xff]
        %v589 = vld [vmem:[%s438 + $0x1e8] sm:$0xff]
        %v590 = vld [vmem:[%s438 + $0x1f0] sm:$0xff]
        %v591 = vld [vmem:[%s438 + $0x1f8] sm:$0xff]
        %v592 = vld [vmem:[%s438 + $0x200] sm:$0xff]
        %v593 = vld [vmem:[%s438 + $0x208] sm:$0xff]
        %v594 = vld [vmem:[%s438 + $0x210] sm:$0xff]
        %v595 = vld [vmem:[%s438 + $0x218] sm:$0xff]
        %v596 = vld [vmem:[%s438 + $0x220] sm:$0xff]
        %v597 = vld [vmem:[%s438 + $0x228] sm:$0xff]
        %v598 = vld [vmem:[%s438 + $0x230] sm:$0xff]
        %v599 = vld [vmem:[%s438 + $0x238] sm:$0xff]
        %v600 = vld [vmem:[%s438 + $0x240] sm:$0xff]
        %v601 = vld [vmem:[%s438 + $0x248] sm:$0xff]
        %v602 = vld [vmem:[%s438 + $0x250] sm:$0xff]
        %v603 = vld [vmem:[%s438 + $0x258] sm:$0xff]
        %v604 = vld [vmem:[%s438 + $0x260] sm:$0xff]
        %v605 = vld [vmem:[%s438 + $0x268] sm:$0xff]
        %v606 = vld [vmem:[%s438 + $0x270] sm:$0xff]
        %v607 = vld [vmem:[%s438 + $0x278] sm:$0xff]
        %v608 = vld [vmem:[%s438 + $0x280] sm:$0xff]
        %v609 = vld [vmem:[%s438 + $0x288] sm:$0xff]
        %v610 = vld [vmem:[%s438 + $0x290] sm:$0xff]
        %v611 = vld [vmem:[%s438 + $0x298] sm:$0xff]
        %v612 = vld [vmem:[%s438 + $0x2a0] sm:$0xff]
        %v613 = vld [vmem:[%s438 + $0x2a8] sm:$0xff]
        %v614 = vld [vmem:[%s438 + $0x2b0] sm:$0xff]
        %v615 = vld [vmem:[%s438 + $0x2b8] sm:$0xff]
        %v616 = vld [vmem:[%s438 + $0x2c0] sm:$0xff]
        %v617 = vld [vmem:[%s438 + $0x2c8] sm:$0xff]
        %v618 = vld [vmem:[%s438 + $0x2d0] sm:$0xff]
        %v619 = vld [vmem:[%s438 + $0x2d8] sm:$0xff]
        %v620 = vld [vmem:[%s438 + $0x2e0] sm:$0xff]
        %v621 = vld [vmem:[%s438 + $0x2e8] sm:$0xff]
        %v622 = vld [vmem:[%s438 + $0x2f0] sm:$0xff]
        %v623 = vld [vmem:[%s438 + $0x2f8] sm:$0xff]
        %v624 = vld [vmem:[%s438 + $0x300] sm:$0xff]
        %v625 = vld [vmem:[%s438 + $0x308] sm:$0xff]
        %v626 = vld [vmem:[%s438 + $0x310] sm:$0xff]
        %v627 = vld [vmem:[%s438 + $0x318] sm:$0xff]
        %v628 = vld [vmem:[%s438 + $0x320] sm:$0xff]
        %v629 = vld [vmem:[%s438 + $0x328] sm:$0xff]
        %v630 = vld [vmem:[%s438 + $0x330] sm:$0xff]
        %v631 = vld [vmem:[%s438 + $0x338] sm:$0xff]
        %v632 = vld [vmem:[%s438 + $0x340] sm:$0xff]
        %v633 = vld [vmem:[%s438 + $0x348] sm:$0xff]
        %v634 = vld [vmem:[%s438 + $0x350] sm:$0xff]
        %v635 = vld [vmem:[%s438 + $0x358] sm:$0xff]
        %v636 = vld [vmem:[%s438 + $0x360] sm:$0xff]
        %v637 = vld [vmem:[%s438 + $0x368] sm:$0xff]
        %v638 = vld [vmem:[%s438 + $0x370] sm:$0xff]
        %v639 = vld [vmem:[%s438 + $0x378] sm:$0xff]
        %v640 = vld [vmem:[%s438 + $0x380] sm:$0xff]
        %v641 = vld [vmem:[%s438 + $0x388] sm:$0xff]
        %v642 = vld [vmem:[%s438 + $0x390] sm:$0xff]
        %v643 = vld [vmem:[%s438 + $0x398] sm:$0xff]
        %v644 = vld [vmem:[%s438 + $0x3a0] sm:$0xff]
        %v645 = vld [vmem:[%s438 + $0x3a8] sm:$0xff]
        %v646 = vld [vmem:[%s438 + $0x3b0] sm:$0xff]
        %v647 = vld [vmem:[%s438 + $0x3b8] sm:$0xff]
        %v648 = vld [vmem:[%s438 + $0x3c0] sm:$0xff]
        %v649 = vld [vmem:[%s438 + $0x3c8] sm:$0xff]
        %v650 = vld [vmem:[%s438 + $0x3d0] sm:$0xff]
        %v651 = vld [vmem:[%s438 + $0x3d8] sm:$0xff]
        %v652 = vld [vmem:[%s438 + $0x3e0] sm:$0xff]
        %v653 = vld [vmem:[%s438 + $0x3e8] sm:$0xff]
        %v654 = vld [vmem:[%s438 + $0x3f0] sm:$0xff]
        %v655 = vld [vmem:[%s438 + $0x3f8] sm:$0xff]
        %v660 = vunpack.c.l.b16 %v524
        %v661 = vunpack.c.h.b16 %v524
        %v662 = vunpack.c.l.b16 %v525
        %v663 = vunpack.c.h.b16 %v525
        %v664 = vunpack.c.l.b16 %v526
        %v665 = vunpack.c.h.b16 %v526
        %v666 = vunpack.c.l.b16 %v527
        %v667 = vunpack.c.h.b16 %v527
        %v668 = vpack.c.b16 %v664, %v660
        %v669 = vpack.c.b16 %v665, %v661
        %v670 = vpack.c.b16 %v666, %v662
        %v671 = vpack.c.b16 %v667, %v663
        %v804 = vunpack.c.l.b16 %v528
        %v805 = vunpack.c.h.b16 %v528
        %v806 = vunpack.c.l.b16 %v529
        %v807 = vunpack.c.h.b16 %v529
        %v808 = vunpack.c.l.b16 %v530
        %v809 = vunpack.c.h.b16 %v530
        %v810 = vunpack.c.l.b16 %v531
        %v811 = vunpack.c.h.b16 %v531
        %v812 = vunpack.c.l.b16 %v532
        %v813 = vunpack.c.h.b16 %v532
        %v814 = vunpack.c.l.b16 %v533
        %v815 = vunpack.c.h.b16 %v533
        %v816 = vunpack.c.l.b16 %v534
        %v817 = vunpack.c.h.b16 %v534
        %v818 = vunpack.c.l.b16 %v535
        %v819 = vunpack.c.h.b16 %v535
        %v820 = vunpack.c.l.b16 %v536
        %v821 = vunpack.c.h.b16 %v536
        %v822 = vunpack.c.l.b16 %v537
        %v823 = vunpack.c.h.b16 %v537
        %v824 = vunpack.c.l.b16 %v538
        %v825 = vunpack.c.h.b16 %v538
        %v826 = vunpack.c.l.b16 %v539
        %v827 = vunpack.c.h.b16 %v539
        %v828 = vunpack.c.l.b16 %v540
        %v829 = vunpack.c.h.b16 %v540
        %v830 = vunpack.c.l.b16 %v541
        %v831 = vunpack.c.h.b16 %v541
        %v832 = vunpack.c.l.b16 %v542
        %v833 = vunpack.c.h.b16 %v542
        %v834 = vunpack.c.l.b16 %v543
        %v835 = vunpack.c.h.b16 %v543
        %v836 = vunpack.c.l.b16 %v544
        %v837 = vunpack.c.h.b16 %v544
        %v838 = vunpack.c.l.b16 %v545
        %v839 = vunpack.c.h.b16 %v545
        %v840 = vunpack.c.l.b16 %v546
        %v841 = vunpack.c.h.b16 %v546
        %v842 = vunpack.c.l.b16 %v547
        %v843 = vunpack.c.h.b16 %v547
        %v844 = vunpack.c.l.b16 %v548
        %v845 = vunpack.c.h.b16 %v548
        %v846 = vunpack.c.l.b16 %v549
        %v847 = vunpack.c.h.b16 %v549
        %v848 = vunpack.c.l.b16 %v550
        %v849 = vunpack.c.h.b16 %v550
        %v850 = vunpack.c.l.b16 %v551
        %v851 = vunpack.c.h.b16 %v551
        %v852 = vunpack.c.l.b16 %v552
        %v853 = vunpack.c.h.b16 %v552
        %v854 = vunpack.c.l.b16 %v553
        %v855 = vunpack.c.h.b16 %v553
        %v856 = vunpack.c.l.b16 %v554
        %v857 = vunpack.c.h.b16 %v554
        %v858 = vunpack.c.l.b16 %v555
        %v859 = vunpack.c.h.b16 %v555
        %v860 = vunpack.c.l.b16 %v556
        %v861 = vunpack.c.h.b16 %v556
        %v862 = vunpack.c.l.b16 %v557
        %v863 = vunpack.c.h.b16 %v557
        %v864 = vunpack.c.l.b16 %v558
        %v865 = vunpack.c.h.b16 %v558
        %v866 = vunpack.c.l.b16 %v559
        %v867 = vunpack.c.h.b16 %v559
        %v868 = vunpack.c.l.b16 %v560
        %v869 = vunpack.c.h.b16 %v560
        %v870 = vunpack.c.l.b16 %v561
        %v871 = vunpack.c.h.b16 %v561
        %v872 = vunpack.c.l.b16 %v562
        %v873 = vunpack.c.h.b16 %v562
        %v874 = vunpack.c.l.b16 %v563
        %v875 = vunpack.c.h.b16 %v563
        %v876 = vunpack.c.l.b16 %v564
        %v877 = vunpack.c.h.b16 %v564
        %v878 = vunpack.c.l.b16 %v565
        %v879 = vunpack.c.h.b16 %v565
        %v880 = vunpack.c.l.b16 %v566
        %v881 = vunpack.c.h.b16 %v566
        %v882 = vunpack.c.l.b16 %v567
        %v883 = vunpack.c.h.b16 %v567
        %v884 = vunpack.c.l.b16 %v568
        %v885 = vunpack.c.h.b16 %v568
        %v886 = vunpack.c.l.b16 %v569
        %v887 = vunpack.c.h.b16 %v569
        %v888 = vunpack.c.l.b16 %v570
        %v889 = vunpack.c.h.b16 %v570
        %v890 = vunpack.c.l.b16 %v571
        %v891 = vunpack.c.h.b16 %v571
        %v892 = vunpack.c.l.b16 %v572
        %v893 = vunpack.c.h.b16 %v572
        %v894 = vunpack.c.l.b16 %v573
        %v895 = vunpack.c.h.b16 %v573
        %v896 = vunpack.c.l.b16 %v574
        %v897 = vunpack.c.h.b16 %v574
        %v898 = vunpack.c.l.b16 %v575
        %v899 = vunpack.c.h.b16 %v575
        %v900 = vunpack.c.l.b16 %v576
        %v901 = vunpack.c.h.b16 %v576
        %v902 = vunpack.c.l.b16 %v577
        %v903 = vunpack.c.h.b16 %v577
        %v904 = vunpack.c.l.b16 %v578
        %v905 = vunpack.c.h.b16 %v578
        %v906 = vunpack.c.l.b16 %v579
        %v907 = vunpack.c.h.b16 %v579
        %v908 = vunpack.c.l.b16 %v580
        %v909 = vunpack.c.h.b16 %v580
        %v910 = vunpack.c.l.b16 %v581
        %v911 = vunpack.c.h.b16 %v581
        %v912 = vunpack.c.l.b16 %v582
        %v913 = vunpack.c.h.b16 %v582
        %v914 = vunpack.c.l.b16 %v583
        %v915 = vunpack.c.h.b16 %v583
        %v916 = vunpack.c.l.b16 %v584
        %v917 = vunpack.c.h.b16 %v584
        %v918 = vunpack.c.l.b16 %v585
        %v919 = vunpack.c.h.b16 %v585
        %v920 = vunpack.c.l.b16 %v586
        %v921 = vunpack.c.h.b16 %v586
        %v922 = vunpack.c.l.b16 %v587
        %v923 = vunpack.c.h.b16 %v587
        %v924 = vunpack.c.l.b16 %v588
        %v925 = vunpack.c.h.b16 %v588
        %v926 = vunpack.c.l.b16 %v589
        %v927 = vunpack.c.h.b16 %v589
        %v928 = vunpack.c.l.b16 %v590
        %v929 = vunpack.c.h.b16 %v590
        %v930 = vunpack.c.l.b16 %v591
        %v931 = vunpack.c.h.b16 %v591
        %v932 = vunpack.c.l.b16 %v592
        %v933 = vunpack.c.h.b16 %v592
        %v934 = vunpack.c.l.b16 %v593
        %v935 = vunpack.c.h.b16 %v593
        %v936 = vunpack.c.l.b16 %v594
        %v937 = vunpack.c.h.b16 %v594
        %v938 = vunpack.c.l.b16 %v595
        %v939 = vunpack.c.h.b16 %v595
        %v940 = vunpack.c.l.b16 %v596
        %v941 = vunpack.c.h.b16 %v596
        %v942 = vunpack.c.l.b16 %v597
        %v943 = vunpack.c.h.b16 %v597
        %v944 = vunpack.c.l.b16 %v598
        %v945 = vunpack.c.h.b16 %v598
        %v946 = vunpack.c.l.b16 %v599
        %v947 = vunpack.c.h.b16 %v599
        %v948 = vunpack.c.l.b16 %v600
        %v949 = vunpack.c.h.b16 %v600
        %v950 = vunpack.c.l.b16 %v601
        %v951 = vunpack.c.h.b16 %v601
        %v952 = vunpack.c.l.b16 %v602
        %v953 = vunpack.c.h.b16 %v602
        %v954 = vunpack.c.l.b16 %v603
        %v955 = vunpack.c.h.b16 %v603
        %v956 = vunpack.c.l.b16 %v604
        %v957 = vunpack.c.h.b16 %v604
        %v958 = vunpack.c.l.b16 %v605
        %v959 = vunpack.c.h.b16 %v605
        %v960 = vunpack.c.l.b16 %v606
        %v961 = vunpack.c.h.b16 %v606
        %v962 = vunpack.c.l.b16 %v607
        %v963 = vunpack.c.h.b16 %v607
        %v964 = vunpack.c.l.b16 %v608
        %v965 = vunpack.c.h.b16 %v608
        %v966 = vunpack.c.l.b16 %v609
        %v967 = vunpack.c.h.b16 %v609
        %v968 = vunpack.c.l.b16 %v610
        %v969 = vunpack.c.h.b16 %v610
        %v970 = vunpack.c.l.b16 %v611
        %v971 = vunpack.c.h.b16 %v611
        %v972 = vunpack.c.l.b16 %v612
        %v973 = vunpack.c.h.b16 %v612
        %v974 = vunpack.c.l.b16 %v613
        %v975 = vunpack.c.h.b16 %v613
        %v976 = vunpack.c.l.b16 %v614
        %v977 = vunpack.c.h.b16 %v614
        %v978 = vunpack.c.l.b16 %v615
        %v979 = vunpack.c.h.b16 %v615
        %v980 = vunpack.c.l.b16 %v616
        %v981 = vunpack.c.h.b16 %v616
        %v982 = vunpack.c.l.b16 %v617
        %v983 = vunpack.c.h.b16 %v617
        %v984 = vunpack.c.l.b16 %v618
        %v985 = vunpack.c.h.b16 %v618
        %v986 = vunpack.c.l.b16 %v619
        %v987 = vunpack.c.h.b16 %v619
        %v988 = vunpack.c.l.b16 %v620
        %v989 = vunpack.c.h.b16 %v620
        %v990 = vunpack.c.l.b16 %v621
        %v991 = vunpack.c.h.b16 %v621
        %v992 = vunpack.c.l.b16 %v622
        %v993 = vunpack.c.h.b16 %v622
        %v994 = vunpack.c.l.b16 %v623
        %v995 = vunpack.c.h.b16 %v623
        %v996 = vunpack.c.l.b16 %v624
        %v997 = vunpack.c.h.b16 %v624
        %v998 = vunpack.c.l.b16 %v625
        %v999 = vunpack.c.h.b16 %v625
        %v1000 = vunpack.c.l.b16 %v626
        %v1001 = vunpack.c.h.b16 %v626
        %v1002 = vunpack.c.l.b16 %v627
        %v1003 = vunpack.c.h.b16 %v627
        %v1004 = vunpack.c.l.b16 %v628
        %v1005 = vunpack.c.h.b16 %v628
        %v1006 = vunpack.c.l.b16 %v629
        %v1007 = vunpack.c.h.b16 %v629
        %v1008 = vunpack.c.l.b16 %v630
        %v1009 = vunpack.c.h.b16 %v630
        %v1010 = vunpack.c.l.b16 %v631
        %v1011 = vunpack.c.h.b16 %v631
        %v1012 = vunpack.c.l.b16 %v632
        %v1013 = vunpack.c.h.b16 %v632
        %v1014 = vunpack.c.l.b16 %v633
        %v1015 = vunpack.c.h.b16 %v633
        %v1016 = vunpack.c.l.b16 %v634
        %v1017 = vunpack.c.h.b16 %v634
        %v1018 = vunpack.c.l.b16 %v635
        %v1019 = vunpack.c.h.b16 %v635
        %v1020 = vunpack.c.l.b16 %v636
        %v1021 = vunpack.c.h.b16 %v636
        %v1022 = vunpack.c.l.b16 %v637
        %v1023 = vunpack.c.h.b16 %v637
        %v1024 = vunpack.c.l.b16 %v638
        %v1025 = vunpack.c.h.b16 %v638
        %v1026 = vunpack.c.l.b16 %v639
        %v1027 = vunpack.c.h.b16 %v639
        %v1028 = vunpack.c.l.b16 %v640
        %v1029 = vunpack.c.h.b16 %v640
        %v1030 = vunpack.c.l.b16 %v641
        %v1031 = vunpack.c.h.b16 %v641
        %v1032 = vunpack.c.l.b16 %v642
        %v1033 = vunpack.c.h.b16 %v642
        %v1034 = vunpack.c.l.b16 %v643
        %v1035 = vunpack.c.h.b16 %v643
        %v1036 = vunpack.c.l.b16 %v644
        %v1037 = vunpack.c.h.b16 %v644
        %v1038 = vunpack.c.l.b16 %v645
        %v1039 = vunpack.c.h.b16 %v645
        %v1040 = vunpack.c.l.b16 %v646
        %v1041 = vunpack.c.h.b16 %v646
        %v1042 = vunpack.c.l.b16 %v647
        %v1043 = vunpack.c.h.b16 %v647
        %v1044 = vunpack.c.l.b16 %v648
        %v1045 = vunpack.c.h.b16 %v648
        %v1046 = vunpack.c.l.b16 %v649
        %v1047 = vunpack.c.h.b16 %v649
        %v1048 = vunpack.c.l.b16 %v650
        %v1049 = vunpack.c.h.b16 %v650
        %v1050 = vunpack.c.l.b16 %v651
        %v1051 = vunpack.c.h.b16 %v651
        %v1052 = vunpack.c.l.b16 %v652
        %v1053 = vunpack.c.h.b16 %v652
        %v1054 = vunpack.c.l.b16 %v653
        %v1055 = vunpack.c.h.b16 %v653
        %v1056 = vunpack.c.l.b16 %v654
        %v1057 = vunpack.c.h.b16 %v654
        %v1058 = vunpack.c.l.b16 %v655
        %v1059 = vunpack.c.h.b16 %v655
        %v1060 = vpack.c.b16 %v808, %v804
        %v1061 = vpack.c.b16 %v809, %v805
        %v1062 = vpack.c.b16 %v810, %v806
        %v1063 = vpack.c.b16 %v811, %v807
        %v1064 = vpack.c.b16 %v816, %v812
        %v1065 = vpack.c.b16 %v817, %v813
        %v1066 = vpack.c.b16 %v818, %v814
        %v1067 = vpack.c.b16 %v819, %v815
        %v1068 = vpack.c.b16 %v824, %v820
        %v1069 = vpack.c.b16 %v825, %v821
        %v1070 = vpack.c.b16 %v826, %v822
        %v1071 = vpack.c.b16 %v827, %v823
        %v1072 = vpack.c.b16 %v832, %v828
        %v1073 = vpack.c.b16 %v833, %v829
        %v1074 = vpack.c.b16 %v834, %v830
        %v1075 = vpack.c.b16 %v835, %v831
        %v1076 = vpack.c.b16 %v840, %v836
        %v1077 = vpack.c.b16 %v841, %v837
        %v1078 = vpack.c.b16 %v842, %v838
        %v1079 = vpack.c.b16 %v843, %v839
        %v1080 = vpack.c.b16 %v848, %v844
        %v1081 = vpack.c.b16 %v849, %v845
        %v1082 = vpack.c.b16 %v850, %v846
        %v1083 = vpack.c.b16 %v851, %v847
        %v1084 = vpack.c.b16 %v856, %v852
        %v1085 = vpack.c.b16 %v857, %v853
        %v1086 = vpack.c.b16 %v858, %v854
        %v1087 = vpack.c.b16 %v859, %v855
        %v1088 = vpack.c.b16 %v864, %v860
        %v1089 = vpack.c.b16 %v865, %v861
        %v1090 = vpack.c.b16 %v866, %v862
        %v1091 = vpack.c.b16 %v867, %v863
        %v1092 = vpack.c.b16 %v872, %v868
        %v1093 = vpack.c.b16 %v873, %v869
        %v1094 = vpack.c.b16 %v874, %v870
        %v1095 = vpack.c.b16 %v875, %v871
        %v1096 = vpack.c.b16 %v880, %v876
        %v1097 = vpack.c.b16 %v881, %v877
        %v1098 = vpack.c.b16 %v882, %v878
        %v1099 = vpack.c.b16 %v883, %v879
        %v1100 = vpack.c.b16 %v888, %v884
        %v1101 = vpack.c.b16 %v889, %v885
        %v1102 = vpack.c.b16 %v890, %v886
        %v1103 = vpack.c.b16 %v891, %v887
        %v1104 = vpack.c.b16 %v896, %v892
        %v1105 = vpack.c.b16 %v897, %v893
        %v1106 = vpack.c.b16 %v898, %v894
        %v1107 = vpack.c.b16 %v899, %v895
        %v1108 = vpack.c.b16 %v904, %v900
        %v1109 = vpack.c.b16 %v905, %v901
        %v1110 = vpack.c.b16 %v906, %v902
        %v1111 = vpack.c.b16 %v907, %v903
        %v1112 = vpack.c.b16 %v912, %v908
        %v1113 = vpack.c.b16 %v913, %v909
        %v1114 = vpack.c.b16 %v914, %v910
        %v1115 = vpack.c.b16 %v915, %v911
        %v1116 = vpack.c.b16 %v920, %v916
        %v1117 = vpack.c.b16 %v921, %v917
        %v1118 = vpack.c.b16 %v922, %v918
        %v1119 = vpack.c.b16 %v923, %v919
        %v1120 = vpack.c.b16 %v928, %v924
        %v1121 = vpack.c.b16 %v929, %v925
        %v1122 = vpack.c.b16 %v930, %v926
        %v1123 = vpack.c.b16 %v931, %v927
        %v1124 = vpack.c.b16 %v936, %v932
        %v1125 = vpack.c.b16 %v937, %v933
        %v1126 = vpack.c.b16 %v938, %v934
        %v1127 = vpack.c.b16 %v939, %v935
        %v1128 = vpack.c.b16 %v944, %v940
        %v1129 = vpack.c.b16 %v945, %v941
        %v1130 = vpack.c.b16 %v946, %v942
        %v1131 = vpack.c.b16 %v947, %v943
        %v1132 = vpack.c.b16 %v952, %v948
        %v1133 = vpack.c.b16 %v953, %v949
        %v1134 = vpack.c.b16 %v954, %v950
        %v1135 = vpack.c.b16 %v955, %v951
        %v1136 = vpack.c.b16 %v960, %v956
        %v1137 = vpack.c.b16 %v961, %v957
        %v1138 = vpack.c.b16 %v962, %v958
        %v1139 = vpack.c.b16 %v963, %v959
        %v1140 = vpack.c.b16 %v968, %v964
        %v1141 = vpack.c.b16 %v969, %v965
        %v1142 = vpack.c.b16 %v970, %v966
        %v1143 = vpack.c.b16 %v971, %v967
        %v1144 = vpack.c.b16 %v976, %v972
        %v1145 = vpack.c.b16 %v977, %v973
        %v1146 = vpack.c.b16 %v978, %v974
        %v1147 = vpack.c.b16 %v979, %v975
        %v1148 = vpack.c.b16 %v984, %v980
        %v1149 = vpack.c.b16 %v985, %v981
        %v1150 = vpack.c.b16 %v986, %v982
        %v1151 = vpack.c.b16 %v987, %v983
        %v1152 = vpack.c.b16 %v992, %v988
        %v1153 = vpack.c.b16 %v993, %v989
        %v1154 = vpack.c.b16 %v994, %v990
        %v1155 = vpack.c.b16 %v995, %v991
        %v1156 = vpack.c.b16 %v1000, %v996
        %v1157 = vpack.c.b16 %v1001, %v997
        %v1158 = vpack.c.b16 %v1002, %v998
        %v1159 = vpack.c.b16 %v1003, %v999
        %v1160 = vpack.c.b16 %v1008, %v1004
        %v1161 = vpack.c.b16 %v1009, %v1005
        %v1162 = vpack.c.b16 %v1010, %v1006
        %v1163 = vpack.c.b16 %v1011, %v1007
        %v1164 = vpack.c.b16 %v1016, %v1012
        %v1165 = vpack.c.b16 %v1017, %v1013
        %v1166 = vpack.c.b16 %v1018, %v1014
        %v1167 = vpack.c.b16 %v1019, %v1015
        %v1168 = vpack.c.b16 %v1024, %v1020
        %v1169 = vpack.c.b16 %v1025, %v1021
        %v1170 = vpack.c.b16 %v1026, %v1022
        %v1171 = vpack.c.b16 %v1027, %v1023
        %v1172 = vpack.c.b16 %v1032, %v1028
        %v1173 = vpack.c.b16 %v1033, %v1029
        %v1174 = vpack.c.b16 %v1034, %v1030
        %v1175 = vpack.c.b16 %v1035, %v1031
        %v1176 = vpack.c.b16 %v1040, %v1036
        %v1177 = vpack.c.b16 %v1041, %v1037
        %v1178 = vpack.c.b16 %v1042, %v1038
        %v1179 = vpack.c.b16 %v1043, %v1039
        %v1180 = vpack.c.b16 %v1048, %v1044
        %v1181 = vpack.c.b16 %v1049, %v1045
        %v1182 = vpack.c.b16 %v1050, %v1046
        %v1183 = vpack.c.b16 %v1051, %v1047
        %v1184 = vpack.c.b16 %v1056, %v1052
        %v1185 = vpack.c.b16 %v1057, %v1053
        %v1186 = vpack.c.b16 %v1058, %v1054
        %v1187 = vpack.c.b16 %v1059, %v1055
        %1316 = vmatprep.subr.bf16.mxu0 %v1061
        %1317 = vmatpush1.bf16.msra.mxu0 %v1060
        %1318 = vmatprep.subr.bf16.mxu0 %v1065
        %1319 = vmatpush1.bf16.msra.mxu0 %v1064
        %1320 = vmatprep.subr.bf16.mxu0 %v1069
        %1321 = vmatpush1.bf16.msra.mxu0 %v1068
        %1322 = vmatprep.subr.bf16.mxu0 %v1073
        %1323 = vmatpush1.bf16.msra.mxu0 %v1072
        %1324 = vmatprep.subr.bf16.mxu0 %v1077
        %1325 = vmatpush1.bf16.msra.mxu0 %v1076
        %1326 = vmatprep.subr.bf16.mxu0 %v1081
        %1327 = vmatpush1.bf16.msra.mxu0 %v1080
        %1328 = vmatprep.subr.bf16.mxu0 %v1085
        %1329 = vmatpush1.bf16.msra.mxu0 %v1084
        %1330 = vmatprep.subr.bf16.mxu0 %v1089
        %1331 = vmatpush1.bf16.msra.mxu0 %v1088
        %1332 = vmatprep.subr.bf16.mxu0 %v1093
        %1333 = vmatpush1.bf16.msra.mxu0 %v1092
        %1334 = vmatprep.subr.bf16.mxu0 %v1097
        %1335 = vmatpush1.bf16.msra.mxu0 %v1096
        %1336 = vmatprep.subr.bf16.mxu0 %v1101
        %1337 = vmatpush1.bf16.msra.mxu0 %v1100
        %1338 = vmatprep.subr.bf16.mxu0 %v1105
        %1339 = vmatpush1.bf16.msra.mxu0 %v1104
        %1340 = vmatprep.subr.bf16.mxu0 %v1109
        %1341 = vmatpush1.bf16.msra.mxu0 %v1108
        %1342 = vmatprep.subr.bf16.mxu0 %v1113
        %1343 = vmatpush1.bf16.msra.mxu0 %v1112
        %1344 = vmatprep.subr.bf16.mxu0 %v1117
        %1345 = vmatpush1.bf16.msra.mxu0 %v1116
        %1346 = vmatprep.subr.bf16.mxu0 %v1121
        %1347 = vmatpush1.bf16.msra.mxu0 %v1120
        %1348 = vmatprep.mubr.bf16.mxu0 %v669
        %1349 = vmatmul.mubr.bf16.gmra.mrb[0].mxu0 %v668
        %v1350 = vpop.f32.mrb[0].mxu0
        %v1351 = vadd.f32 0.0, %v1350
        %v1352 = vpop.f32.mrb[0].mxu0
        %v1353 = vadd.f32 0.0, %v1352
        %v1354 = vpop.f32.mrb[0].mxu0
        %v1355 = vadd.f32 0.0, %v1354
        %v1356 = vpop.f32.mrb[0].mxu0
        %v1357 = vadd.f32 0.0, %v1356
        %1358 = vdwg.mxu0
        %1359 = vmatprep.subr.bf16.mxu0 %v1125
        %1360 = vmatpush1.bf16.msra.mxu0 %v1124
        %1361 = vmatprep.subr.bf16.mxu0 %v1129
        %1362 = vmatpush1.bf16.msra.mxu0 %v1128
        %1363 = vmatprep.subr.bf16.mxu0 %v1133
        %1364 = vmatpush1.bf16.msra.mxu0 %v1132
        %1365 = vmatprep.subr.bf16.mxu0 %v1137
        %1366 = vmatpush1.bf16.msra.mxu0 %v1136
        %1367 = vmatprep.subr.bf16.mxu0 %v1141
        %1368 = vmatpush1.bf16.msra.mxu0 %v1140
        %1369 = vmatprep.subr.bf16.mxu0 %v1145
        %1370 = vmatpush1.bf16.msra.mxu0 %v1144
        %1371 = vmatprep.subr.bf16.mxu0 %v1149
        %1372 = vmatpush1.bf16.msra.mxu0 %v1148
        %1373 = vmatprep.subr.bf16.mxu0 %v1153
        %1374 = vmatpush1.bf16.msra.mxu0 %v1152
        %1375 = vmatprep.subr.bf16.mxu0 %v1157
        %1376 = vmatpush1.bf16.msra.mxu0 %v1156
        %1377 = vmatprep.subr.bf16.mxu0 %v1161
        %1378 = vmatpush1.bf16.msra.mxu0 %v1160
        %1379 = vmatprep.subr.bf16.mxu0 %v1165
        %1380 = vmatpush1.bf16.msra.mxu0 %v1164
        %1381 = vmatprep.subr.bf16.mxu0 %v1169
        %1382 = vmatpush1.bf16.msra.mxu0 %v1168
        %1383 = vmatprep.subr.bf16.mxu0 %v1173
        %1384 = vmatpush1.bf16.msra.mxu0 %v1172
        %1385 = vmatprep.subr.bf16.mxu0 %v1177
        %1386 = vmatpush1.bf16.msra.mxu0 %v1176
        %1387 = vmatprep.subr.bf16.mxu0 %v1181
        %1388 = vmatpush1.bf16.msra.mxu0 %v1180
        %1389 = vmatprep.subr.bf16.mxu0 %v1185
        %1390 = vmatpush1.bf16.msra.mxu0 %v1184
        %1391 = vmatprep.mubr.bf16.mxu0 %v671
        %1392 = vmatmul.mubr.bf16.gmra.mrb[0].mxu0 %v670
        %v1393 = vpop.f32.mrb[0].mxu0
        %v1394 = vadd.f32 %v1351, %v1393
        %v1395 = vpop.f32.mrb[0].mxu0
        %v1396 = vadd.f32 %v1353, %v1395
        %v1397 = vpop.f32.mrb[0].mxu0
        %v1398 = vadd.f32 %v1355, %v1397
        %v1399 = vpop.f32.mrb[0].mxu0
        %v1400 = vadd.f32 %v1357, %v1399
        %1401 = vdwg.mxu0
        %1402 = vmatprep.subr.bf16.mxu0 %v1063
        %1403 = vmatpush1.bf16.msra.mxu0 %v1062
        %1404 = vmatprep.subr.bf16.mxu0 %v1067
        %1405 = vmatpush1.bf16.msra.mxu0 %v1066
        %1406 = vmatprep.subr.bf16.mxu0 %v1071
        %1407 = vmatpush1.bf16.msra.mxu0 %v1070
        %1408 = vmatprep.subr.bf16.mxu0 %v1075
        %1409 = vmatpush1.bf16.msra.mxu0 %v1074
        %1410 = vmatprep.subr.bf16.mxu0 %v1079
        %1411 = vmatpush1.bf16.msra.mxu0 %v1078
        %1412 = vmatprep.subr.bf16.mxu0 %v1083
        %1413 = vmatpush1.bf16.msra.mxu0 %v1082
        %1414 = vmatprep.subr.bf16.mxu0 %v1087
        %1415 = vmatpush1.bf16.msra.mxu0 %v1086
        %1416 = vmatprep.subr.bf16.mxu0 %v1091
        %1417 = vmatpush1.bf16.msra.mxu0 %v1090
        %1418 = vmatprep.subr.bf16.mxu0 %v1095
        %1419 = vmatpush1.bf16.msra.mxu0 %v1094
        %1420 = vmatprep.subr.bf16.mxu0 %v1099
        %1421 = vmatpush1.bf16.msra.mxu0 %v1098
        %1422 = vmatprep.subr.bf16.mxu0 %v1103
        %1423 = vmatpush1.bf16.msra.mxu0 %v1102
        %1424 = vmatprep.subr.bf16.mxu0 %v1107
        %1425 = vmatpush1.bf16.msra.mxu0 %v1106
        %1426 = vmatprep.subr.bf16.mxu0 %v1111
        %1427 = vmatpush1.bf16.msra.mxu0 %v1110
        %1428 = vmatprep.subr.bf16.mxu0 %v1115
        %1429 = vmatpush1.bf16.msra.mxu0 %v1114
        %1430 = vmatprep.subr.bf16.mxu0 %v1119
        %1431 = vmatpush1.bf16.msra.mxu0 %v1118
        %1432 = vmatprep.subr.bf16.mxu0 %v1123
        %1433 = vmatpush1.bf16.msra.mxu0 %v1122
        %1434 = vmatprep.mubr.bf16.mxu0 %v669
        %1435 = vmatmul.mubr.bf16.gmra.mrb[0].mxu0 %v668
        %v1436 = vpop.f32.mrb[0].mxu0
        %v1437 = vadd.f32 0.0, %v1436
        %v1438 = vpop.f32.mrb[0].mxu0
        %v1439 = vadd.f32 0.0, %v1438
        %v1440 = vpop.f32.mrb[0].mxu0
        %v1441 = vadd.f32 0.0, %v1440
        %v1442 = vpop.f32.mrb[0].mxu0
        %v1443 = vadd.f32 0.0, %v1442
        %1444 = vdwg.mxu0
        %1445 = vmatprep.subr.bf16.mxu0 %v1127
        %1446 = vmatpush1.bf16.msra.mxu0 %v1126
        %1447 = vmatprep.subr.bf16.mxu0 %v1131
        %1448 = vmatpush1.bf16.msra.mxu0 %v1130
        %1449 = vmatprep.subr.bf16.mxu0 %v1135
        %1450 = vmatpush1.bf16.msra.mxu0 %v1134
        %1451 = vmatprep.subr.bf16.mxu0 %v1139
        %1452 = vmatpush1.bf16.msra.mxu0 %v1138
        %1453 = vmatprep.subr.bf16.mxu0 %v1143
        %1454 = vmatpush1.bf16.msra.mxu0 %v1142
        %1455 = vmatprep.subr.bf16.mxu0 %v1147
        %1456 = vmatpush1.bf16.msra.mxu0 %v1146
        %1457 = vmatprep.subr.bf16.mxu0 %v1151
        %1458 = vmatpush1.bf16.msra.mxu0 %v1150
        %1459 = vmatprep.subr.bf16.mxu0 %v1155
        %1460 = vmatpush1.bf16.msra.mxu0 %v1154
        %1461 = vmatprep.subr.bf16.mxu0 %v1159
        %1462 = vmatpush1.bf16.msra.mxu0 %v1158
        %1463 = vmatprep.subr.bf16.mxu0 %v1163
        %1464 = vmatpush1.bf16.msra.mxu0 %v1162
        %1465 = vmatprep.subr.bf16.mxu0 %v1167
        %1466 = vmatpush1.bf16.msra.mxu0 %v1166
        %1467 = vmatprep.subr.bf16.mxu0 %v1171
        %1468 = vmatpush1.bf16.msra.mxu0 %v1170
        %1469 = vmatprep.subr.bf16.mxu0 %v1175
        %1470 = vmatpush1.bf16.msra.mxu0 %v1174
        %1471 = vmatprep.subr.bf16.mxu0 %v1179
        %1472 = vmatpush1.bf16.msra.mxu0 %v1178
        %1473 = vmatprep.subr.bf16.mxu0 %v1183
        %1474 = vmatpush1.bf16.msra.mxu0 %v1182
        %1475 = vmatprep.subr.bf16.mxu0 %v1187
        %1476 = vmatpush1.bf16.msra.mxu0 %v1186
        %1477 = vmatprep.mubr.bf16.mxu0 %v671
        %1478 = vmatmul.mubr.bf16.gmra.mrb[0].mxu0 %v670
        %v1479 = vpop.f32.mrb[0].mxu0
        %v1480 = vadd.f32 %v1437, %v1479
        %v1481 = vpop.f32.mrb[0].mxu0
        %v1482 = vadd.f32 %v1439, %v1481
        %v1483 = vpop.f32.mrb[0].mxu0
        %v1484 = vadd.f32 %v1441, %v1483
        %v1485 = vpop.f32.mrb[0].mxu0
        %v1486 = vadd.f32 %v1443, %v1485
        %1487 = vdwg.mxu0
        %v1488 = vadd.f32 %v516, %v1394
        %v1489 = vadd.f32 %v517, %v1396
        %v1490 = vadd.f32 %v518, %v1480
        %v1491 = vadd.f32 %v519, %v1482
        %v1492 = vadd.f32 %v520, %v1398
        %v1493 = vadd.f32 %v521, %v1400
        %v1494 = vadd.f32 %v522, %v1484
        %v1495 = vadd.f32 %v523, %v1486
        %1496 = vst [vmem:[%s9] sm:$0xff] %v1488
        %1497 = vst [vmem:[%s9 + $0x8] sm:$0xff] %v1489
        %1498 = vst [vmem:[%s9 + $0x10] sm:$0xff] %v1490
        %1499 = vst [vmem:[%s9 + $0x18] sm:$0xff] %v1491
        %1500 = vst [vmem:[%s9 + $0x20] sm:$0xff] %v1492
        %1501 = vst [vmem:[%s9 + $0x28] sm:$0xff] %v1493
        %1502 = vst [vmem:[%s9 + $0x30] sm:$0xff] %v1494
        %1503 = vst [vmem:[%s9 + $0x38] sm:$0xff] %v1495
        %p1504 = scmp.eq.s32.totalorder %s29, 1
        // Predicated region
        $region116: #{simsiam_forward.1} parent=74 // pred_check
          %p1505 = pneg %p1504
        $region117: #{simsiam_forward.1} parent=74 // pred_check_branch
          %1507 = sbr.rel (%p1505) target = $region119
        $region118: #{simsiam_forward.1} parent=74 // pred_region
          %v1508 = vld [vmem:[%s9] sm:$0xff]
          %v1509 = vld [vmem:[%s9 + $0x8] sm:$0xff]
          %v1510 = vld [vmem:[%s9 + $0x10] sm:$0xff]
          %v1511 = vld [vmem:[%s9 + $0x18] sm:$0xff]
          %v1512 = vld [vmem:[%s9 + $0x20] sm:$0xff]
          %v1513 = vld [vmem:[%s9 + $0x28] sm:$0xff]
          %v1514 = vld [vmem:[%s9 + $0x30] sm:$0xff]
          %v1515 = vld [vmem:[%s9 + $0x38] sm:$0xff]
          %v1516 = vld [vmem:[#allocation5] sm:$0xf]
          %v1518 = vlaneseq
          %v1519 = vshrl.u32 %v1518, 7
          %v1520 = vsub.s32 0, %v1519
          %v1521 = vrot.slane %v1516, %v1520
          %v1522 = vlaneseq
          %v1523 = vshrl.u32 %v1522, 7
          %v1524 = vsub.s32 1, %v1523
          %v1525 = vrot.slane %v1516, %v1524
          %v1526 = vlaneseq
          %v1527 = vshrl.u32 %v1526, 7
          %v1528 = vsub.s32 2, %v1527
          %v1529 = vrot.slane %v1516, %v1528
          %v1530 = vlaneseq
          %v1531 = vshrl.u32 %v1530, 7
          %v1532 = vsub.s32 3, %v1531
          %v1533 = vrot.slane %v1516, %v1532
          %v1538 = vadd.f32 %v1508, %v1521
          %v1539 = vadd.f32 %v1509, %v1525
          %v1540 = vadd.f32 %v1510, %v1529
          %v1541 = vadd.f32 %v1511, %v1533
          %v1542 = vadd.f32 %v1512, %v1521
          %v1543 = vadd.f32 %v1513, %v1525
          %v1544 = vadd.f32 %v1514, %v1529
          %v1545 = vadd.f32 %v1515, %v1533
          %1546 = vst [vmem:[%s9] sm:$0xff] %v1538
          %1547 = vst [vmem:[%s9 + $0x8] sm:$0xff] %v1539
          %1548 = vst [vmem:[%s9 + $0x10] sm:$0xff] %v1540
          %1549 = vst [vmem:[%s9 + $0x18] sm:$0xff] %v1541
          %1550 = vst [vmem:[%s9 + $0x20] sm:$0xff] %v1542
          %1551 = vst [vmem:[%s9 + $0x28] sm:$0xff] %v1543
          %1552 = vst [vmem:[%s9 + $0x30] sm:$0xff] %v1544
          %1553 = vst [vmem:[%s9 + $0x38] sm:$0xff] %v1545
          %v1554 = vpack.c.bf16 %v1542, %v1538
          %v1555 = vpack.c.bf16 %v1543, %v1539
          %v1556 = vpack.c.bf16 %v1544, %v1540
          %v1557 = vpack.c.bf16 %v1545, %v1541
          %v1558 = vld [vmem:[#allocation7] sm:$0xff]
          %v1559 = vld [vmem:[#allocation7 + $0x8] sm:$0xff]
          %v1560 = vld [vmem:[#allocation7 + $0x10] sm:$0xff]
          %v1561 = vld [vmem:[#allocation7 + $0x18] sm:$0xff]
          %v1562 = vld [vmem:[#allocation7 + $0x20] sm:$0xff]
          %v1563 = vld [vmem:[#allocation7 + $0x28] sm:$0xff]
          %v1564 = vld [vmem:[#allocation7 + $0x30] sm:$0xff]
          %v1565 = vld [vmem:[#allocation7 + $0x38] sm:$0xff]
          %v1566 = vld [vmem:[#allocation7 + $0x40] sm:$0xff]
          %v1567 = vld [vmem:[#allocation7 + $0x48] sm:$0xff]
          %v1568 = vld [vmem:[#allocation7 + $0x50] sm:$0xff]
          %v1569 = vld [vmem:[#allocation7 + $0x58] sm:$0xff]
          %v1570 = vld [vmem:[#allocation7 + $0x60] sm:$0xff]
          %v1571 = vld [vmem:[#allocation7 + $0x68] sm:$0xff]
          %v1572 = vld [vmem:[#allocation7 + $0x70] sm:$0xff]
          %v1573 = vld [vmem:[#allocation7 + $0x78] sm:$0xff]
          %v1574 = vld [vmem:[#allocation7 + $0x80] sm:$0xff]
          %v1575 = vld [vmem:[#allocation7 + $0x88] sm:$0xff]
          %v1576 = vld [vmem:[#allocation7 + $0x90] sm:$0xff]
          %v1577 = vld [vmem:[#allocation7 + $0x98] sm:$0xff]
          %v1578 = vld [vmem:[#allocation7 + $0xa0] sm:$0xff]
          %v1579 = vld [vmem:[#allocation7 + $0xa8] sm:$0xff]
          %v1580 = vld [vmem:[#allocation7 + $0xb0] sm:$0xff]
          %v1581 = vld [vmem:[#allocation7 + $0xb8] sm:$0xff]
          %v1582 = vld [vmem:[#allocation7 + $0xc0] sm:$0xff]
          %v1583 = vld [vmem:[#allocation7 + $0xc8] sm:$0xff]
          %v1584 = vld [vmem:[#allocation7 + $0xd0] sm:$0xff]
          %v1585 = vld [vmem:[#allocation7 + $0xd8] sm:$0xff]
          %v1586 = vld [vmem:[#allocation7 + $0xe0] sm:$0xff]
          %v1587 = vld [vmem:[#allocation7 + $0xe8] sm:$0xff]
          %v1588 = vld [vmem:[#allocation7 + $0xf0] sm:$0xff]
          %v1589 = vld [vmem:[#allocation7 + $0xf8] sm:$0xff]
          %v1590 = vld [vmem:[#allocation7 + $0x100] sm:$0xff]
          %v1591 = vld [vmem:[#allocation7 + $0x108] sm:$0xff]
          %v1592 = vld [vmem:[#allocation7 + $0x110] sm:$0xff]
          %v1593 = vld [vmem:[#allocation7 + $0x118] sm:$0xff]
          %v1594 = vld [vmem:[#allocation7 + $0x120] sm:$0xff]
          %v1595 = vld [vmem:[#allocation7 + $0x128] sm:$0xff]
          %v1596 = vld [vmem:[#allocation7 + $0x130] sm:$0xff]
          %v1597 = vld [vmem:[#allocation7 + $0x138] sm:$0xff]
          %v1598 = vld [vmem:[#allocation7 + $0x140] sm:$0xff]
          %v1599 = vld [vmem:[#allocation7 + $0x148] sm:$0xff]
          %v1600 = vld [vmem:[#allocation7 + $0x150] sm:$0xff]
          %v1601 = vld [vmem:[#allocation7 + $0x158] sm:$0xff]
          %v1602 = vld [vmem:[#allocation7 + $0x160] sm:$0xff]
          %v1603 = vld [vmem:[#allocation7 + $0x168] sm:$0xff]
          %v1604 = vld [vmem:[#allocation7 + $0x170] sm:$0xff]
          %v1605 = vld [vmem:[#allocation7 + $0x178] sm:$0xff]
          %v1606 = vld [vmem:[#allocation7 + $0x180] sm:$0xff]
          %v1607 = vld [vmem:[#allocation7 + $0x188] sm:$0xff]
          %v1608 = vld [vmem:[#allocation7 + $0x190] sm:$0xff]
          %v1609 = vld [vmem:[#allocation7 + $0x198] sm:$0xff]
          %v1610 = vld [vmem:[#allocation7 + $0x1a0] sm:$0xff]
          %v1611 = vld [vmem:[#allocation7 + $0x1a8] sm:$0xff]
          %v1612 = vld [vmem:[#allocation7 + $0x1b0] sm:$0xff]
          %v1613 = vld [vmem:[#allocation7 + $0x1b8] sm:$0xff]
          %v1614 = vld [vmem:[#allocation7 + $0x1c0] sm:$0xff]
          %v1615 = vld [vmem:[#allocation7 + $0x1c8] sm:$0xff]
          %v1616 = vld [vmem:[#allocation7 + $0x1d0] sm:$0xff]
          %v1617 = vld [vmem:[#allocation7 + $0x1d8] sm:$0xff]
          %v1618 = vld [vmem:[#allocation7 + $0x1e0] sm:$0xff]
          %v1619 = vld [vmem:[#allocation7 + $0x1e8] sm:$0xff]
          %v1620 = vld [vmem:[#allocation7 + $0x1f0] sm:$0xff]
          %v1621 = vld [vmem:[#allocation7 + $0x1f8] sm:$0xff]
          %v1622 = vld [vmem:[#allocation7 + $0x200] sm:$0xff]
          %v1623 = vld [vmem:[#allocation7 + $0x208] sm:$0xff]
          %v1624 = vld [vmem:[#allocation7 + $0x210] sm:$0xff]
          %v1625 = vld [vmem:[#allocation7 + $0x218] sm:$0xff]
          %v1626 = vld [vmem:[#allocation7 + $0x220] sm:$0xff]
          %v1627 = vld [vmem:[#allocation7 + $0x228] sm:$0xff]
          %v1628 = vld [vmem:[#allocation7 + $0x230] sm:$0xff]
          %v1629 = vld [vmem:[#allocation7 + $0x238] sm:$0xff]
          %v1630 = vld [vmem:[#allocation7 + $0x240] sm:$0xff]
          %v1631 = vld [vmem:[#allocation7 + $0x248] sm:$0xff]
          %v1632 = vld [vmem:[#allocation7 + $0x250] sm:$0xff]
          %v1633 = vld [vmem:[#allocation7 + $0x258] sm:$0xff]
          %v1634 = vld [vmem:[#allocation7 + $0x260] sm:$0xff]
          %v1635 = vld [vmem:[#allocation7 + $0x268] sm:$0xff]
          %v1636 = vld [vmem:[#allocation7 + $0x270] sm:$0xff]
          %v1637 = vld [vmem:[#allocation7 + $0x278] sm:$0xff]
          %v1638 = vld [vmem:[#allocation7 + $0x280] sm:$0xff]
          %v1639 = vld [vmem:[#allocation7 + $0x288] sm:$0xff]
          %v1640 = vld [vmem:[#allocation7 + $0x290] sm:$0xff]
          %v1641 = vld [vmem:[#allocation7 + $0x298] sm:$0xff]
          %v1642 = vld [vmem:[#allocation7 + $0x2a0] sm:$0xff]
          %v1643 = vld [vmem:[#allocation7 + $0x2a8] sm:$0xff]
          %v1644 = vld [vmem:[#allocation7 + $0x2b0] sm:$0xff]
          %v1645 = vld [vmem:[#allocation7 + $0x2b8] sm:$0xff]
          %v1646 = vld [vmem:[#allocation7 + $0x2c0] sm:$0xff]
          %v1647 = vld [vmem:[#allocation7 + $0x2c8] sm:$0xff]
          %v1648 = vld [vmem:[#allocation7 + $0x2d0] sm:$0xff]
          %v1649 = vld [vmem:[#allocation7 + $0x2d8] sm:$0xff]
          %v1650 = vld [vmem:[#allocation7 + $0x2e0] sm:$0xff]
          %v1651 = vld [vmem:[#allocation7 + $0x2e8] sm:$0xff]
          %v1652 = vld [vmem:[#allocation7 + $0x2f0] sm:$0xff]
          %v1653 = vld [vmem:[#allocation7 + $0x2f8] sm:$0xff]
          %v1654 = vld [vmem:[#allocation7 + $0x300] sm:$0xff]
          %v1655 = vld [vmem:[#allocation7 + $0x308] sm:$0xff]
          %v1656 = vld [vmem:[#allocation7 + $0x310] sm:$0xff]
          %v1657 = vld [vmem:[#allocation7 + $0x318] sm:$0xff]
          %v1658 = vld [vmem:[#allocation7 + $0x320] sm:$0xff]
          %v1659 = vld [vmem:[#allocation7 + $0x328] sm:$0xff]
          %v1660 = vld [vmem:[#allocation7 + $0x330] sm:$0xff]
          %v1661 = vld [vmem:[#allocation7 + $0x338] sm:$0xff]
          %v1662 = vld [vmem:[#allocation7 + $0x340] sm:$0xff]
          %v1663 = vld [vmem:[#allocation7 + $0x348] sm:$0xff]
          %v1664 = vld [vmem:[#allocation7 + $0x350] sm:$0xff]
          %v1665 = vld [vmem:[#allocation7 + $0x358] sm:$0xff]
          %v1666 = vld [vmem:[#allocation7 + $0x360] sm:$0xff]
          %v1667 = vld [vmem:[#allocation7 + $0x368] sm:$0xff]
          %v1668 = vld [vmem:[#allocation7 + $0x370] sm:$0xff]
          %v1669 = vld [vmem:[#allocation7 + $0x378] sm:$0xff]
          %v1670 = vld [vmem:[#allocation7 + $0x380] sm:$0xff]
          %v1671 = vld [vmem:[#allocation7 + $0x388] sm:$0xff]
          %v1672 = vld [vmem:[#allocation7 + $0x390] sm:$0xff]
          %v1673 = vld [vmem:[#allocation7 + $0x398] sm:$0xff]
          %v1674 = vld [vmem:[#allocation7 + $0x3a0] sm:$0xff]
          %v1675 = vld [vmem:[#allocation7 + $0x3a8] sm:$0xff]
          %v1676 = vld [vmem:[#allocation7 + $0x3b0] sm:$0xff]
          %v1677 = vld [vmem:[#allocation7 + $0x3b8] sm:$0xff]
          %v1678 = vld [vmem:[#allocation7 + $0x3c0] sm:$0xff]
          %v1679 = vld [vmem:[#allocation7 + $0x3c8] sm:$0xff]
          %v1680 = vld [vmem:[#allocation7 + $0x3d0] sm:$0xff]
          %v1681 = vld [vmem:[#allocation7 + $0x3d8] sm:$0xff]
          %v1682 = vld [vmem:[#allocation7 + $0x3e0] sm:$0xff]
          %v1683 = vld [vmem:[#allocation7 + $0x3e8] sm:$0xff]
          %v1684 = vld [vmem:[#allocation7 + $0x3f0] sm:$0xff]
          %v1685 = vld [vmem:[#allocation7 + $0x3f8] sm:$0xff]
          %v1686 = vld [vmem:[#allocation7 + $0x400] sm:$0xff]
          %v1687 = vld [vmem:[#allocation7 + $0x408] sm:$0xff]
          %v1688 = vld [vmem:[#allocation7 + $0x410] sm:$0xff]
          %v1689 = vld [vmem:[#allocation7 + $0x418] sm:$0xff]
          %v1690 = vld [vmem:[#allocation7 + $0x420] sm:$0xff]
          %v1691 = vld [vmem:[#allocation7 + $0x428] sm:$0xff]
          %v1692 = vld [vmem:[#allocation7 + $0x430] sm:$0xff]
          %v1693 = vld [vmem:[#allocation7 + $0x438] sm:$0xff]
          %v1694 = vld [vmem:[#allocation7 + $0x440] sm:$0xff]
          %v1695 = vld [vmem:[#allocation7 + $0x448] sm:$0xff]
          %v1696 = vld [vmem:[#allocation7 + $0x450] sm:$0xff]
          %v1697 = vld [vmem:[#allocation7 + $0x458] sm:$0xff]
          %v1698 = vld [vmem:[#allocation7 + $0x460] sm:$0xff]
          %v1699 = vld [vmem:[#allocation7 + $0x468] sm:$0xff]
          %v1700 = vld [vmem:[#allocation7 + $0x470] sm:$0xff]
          %v1701 = vld [vmem:[#allocation7 + $0x478] sm:$0xff]
          %v1702 = vld [vmem:[#allocation7 + $0x480] sm:$0xff]
          %v1703 = vld [vmem:[#allocation7 + $0x488] sm:$0xff]
          %v1704 = vld [vmem:[#allocation7 + $0x490] sm:$0xff]
          %v1705 = vld [vmem:[#allocation7 + $0x498] sm:$0xff]
          %v1706 = vld [vmem:[#allocation7 + $0x4a0] sm:$0xff]
          %v1707 = vld [vmem:[#allocation7 + $0x4a8] sm:$0xff]
          %v1708 = vld [vmem:[#allocation7 + $0x4b0] sm:$0xff]
          %v1709 = vld [vmem:[#allocation7 + $0x4b8] sm:$0xff]
          %v1710 = vld [vmem:[#allocation7 + $0x4c0] sm:$0xff]
          %v1711 = vld [vmem:[#allocation7 + $0x4c8] sm:$0xff]
          %v1712 = vld [vmem:[#allocation7 + $0x4d0] sm:$0xff]
          %v1713 = vld [vmem:[#allocation7 + $0x4d8] sm:$0xff]
          %v1714 = vld [vmem:[#allocation7 + $0x4e0] sm:$0xff]
          %v1715 = vld [vmem:[#allocation7 + $0x4e8] sm:$0xff]
          %v1716 = vld [vmem:[#allocation7 + $0x4f0] sm:$0xff]
          %v1717 = vld [vmem:[#allocation7 + $0x4f8] sm:$0xff]
          %v1718 = vld [vmem:[#allocation7 + $0x500] sm:$0xff]
          %v1719 = vld [vmem:[#allocation7 + $0x508] sm:$0xff]
          %v1720 = vld [vmem:[#allocation7 + $0x510] sm:$0xff]
          %v1721 = vld [vmem:[#allocation7 + $0x518] sm:$0xff]
          %v1722 = vld [vmem:[#allocation7 + $0x520] sm:$0xff]
          %v1723 = vld [vmem:[#allocation7 + $0x528] sm:$0xff]
          %v1724 = vld [vmem:[#allocation7 + $0x530] sm:$0xff]
          %v1725 = vld [vmem:[#allocation7 + $0x538] sm:$0xff]
          %v1726 = vld [vmem:[#allocation7 + $0x540] sm:$0xff]
          %v1727 = vld [vmem:[#allocation7 + $0x548] sm:$0xff]
          %v1728 = vld [vmem:[#allocation7 + $0x550] sm:$0xff]
          %v1729 = vld [vmem:[#allocation7 + $0x558] sm:$0xff]
          %v1730 = vld [vmem:[#allocation7 + $0x560] sm:$0xff]
          %v1731 = vld [vmem:[#allocation7 + $0x568] sm:$0xff]
          %v1732 = vld [vmem:[#allocation7 + $0x570] sm:$0xff]
          %v1733 = vld [vmem:[#allocation7 + $0x578] sm:$0xff]
          %v1734 = vld [vmem:[#allocation7 + $0x580] sm:$0xff]
          %v1735 = vld [vmem:[#allocation7 + $0x588] sm:$0xff]
          %v1736 = vld [vmem:[#allocation7 + $0x590] sm:$0xff]
          %v1737 = vld [vmem:[#allocation7 + $0x598] sm:$0xff]
          %v1738 = vld [vmem:[#allocation7 + $0x5a0] sm:$0xff]
          %v1739 = vld [vmem:[#allocation7 + $0x5a8] sm:$0xff]
          %v1740 = vld [vmem:[#allocation7 + $0x5b0] sm:$0xff]
          %v1741 = vld [vmem:[#allocation7 + $0x5b8] sm:$0xff]
          %v1742 = vld [vmem:[#allocation7 + $0x5c0] sm:$0xff]
          %v1743 = vld [vmem:[#allocation7 + $0x5c8] sm:$0xff]
          %v1744 = vld [vmem:[#allocation7 + $0x5d0] sm:$0xff]
          %v1745 = vld [vmem:[#allocation7 + $0x5d8] sm:$0xff]
          %v1746 = vld [vmem:[#allocation7 + $0x5e0] sm:$0xff]
          %v1747 = vld [vmem:[#allocation7 + $0x5e8] sm:$0xff]
          %v1748 = vld [vmem:[#allocation7 + $0x5f0] sm:$0xff]
          %v1749 = vld [vmem:[#allocation7 + $0x5f8] sm:$0xff]
          %v1750 = vld [vmem:[#allocation7 + $0x600] sm:$0xff]
          %v1751 = vld [vmem:[#allocation7 + $0x608] sm:$0xff]
          %v1752 = vld [vmem:[#allocation7 + $0x610] sm:$0xff]
          %v1753 = vld [vmem:[#allocation7 + $0x618] sm:$0xff]
          %v1754 = vld [vmem:[#allocation7 + $0x620] sm:$0xff]
          %v1755 = vld [vmem:[#allocation7 + $0x628] sm:$0xff]
          %v1756 = vld [vmem:[#allocation7 + $0x630] sm:$0xff]
          %v1757 = vld [vmem:[#allocation7 + $0x638] sm:$0xff]
          %v1758 = vld [vmem:[#allocation7 + $0x640] sm:$0xff]
          %v1759 = vld [vmem:[#allocation7 + $0x648] sm:$0xff]
          %v1760 = vld [vmem:[#allocation7 + $0x650] sm:$0xff]
          %v1761 = vld [vmem:[#allocation7 + $0x658] sm:$0xff]
          %v1762 = vld [vmem:[#allocation7 + $0x660] sm:$0xff]
          %v1763 = vld [vmem:[#allocation7 + $0x668] sm:$0xff]
          %v1764 = vld [vmem:[#allocation7 + $0x670] sm:$0xff]
          %v1765 = vld [vmem:[#allocation7 + $0x678] sm:$0xff]
          %v1766 = vld [vmem:[#allocation7 + $0x680] sm:$0xff]
          %v1767 = vld [vmem:[#allocation7 + $0x688] sm:$0xff]
          %v1768 = vld [vmem:[#allocation7 + $0x690] sm:$0xff]
          %v1769 = vld [vmem:[#allocation7 + $0x698] sm:$0xff]
          %v1770 = vld [vmem:[#allocation7 + $0x6a0] sm:$0xff]
          %v1771 = vld [vmem:[#allocation7 + $0x6a8] sm:$0xff]
          %v1772 = vld [vmem:[#allocation7 + $0x6b0] sm:$0xff]
          %v1773 = vld [vmem:[#allocation7 + $0x6b8] sm:$0xff]
          %v1774 = vld [vmem:[#allocation7 + $0x6c0] sm:$0xff]
          %v1775 = vld [vmem:[#allocation7 + $0x6c8] sm:$0xff]
          %v1776 = vld [vmem:[#allocation7 + $0x6d0] sm:$0xff]
          %v1777 = vld [vmem:[#allocation7 + $0x6d8] sm:$0xff]
          %v1778 = vld [vmem:[#allocation7 + $0x6e0] sm:$0xff]
          %v1779 = vld [vmem:[#allocation7 + $0x6e8] sm:$0xff]
          %v1780 = vld [vmem:[#allocation7 + $0x6f0] sm:$0xff]
          %v1781 = vld [vmem:[#allocation7 + $0x6f8] sm:$0xff]
          %v1782 = vld [vmem:[#allocation7 + $0x700] sm:$0xff]
          %v1783 = vld [vmem:[#allocation7 + $0x708] sm:$0xff]
          %v1784 = vld [vmem:[#allocation7 + $0x710] sm:$0xff]
          %v1785 = vld [vmem:[#allocation7 + $0x718] sm:$0xff]
          %v1786 = vld [vmem:[#allocation7 + $0x720] sm:$0xff]
          %v1787 = vld [vmem:[#allocation7 + $0x728] sm:$0xff]
          %v1788 = vld [vmem:[#allocation7 + $0x730] sm:$0xff]
          %v1789 = vld [vmem:[#allocation7 + $0x738] sm:$0xff]
          %v1790 = vld [vmem:[#allocation7 + $0x740] sm:$0xff]
          %v1791 = vld [vmem:[#allocation7 + $0x748] sm:$0xff]
          %v1792 = vld [vmem:[#allocation7 + $0x750] sm:$0xff]
          %v1793 = vld [vmem:[#allocation7 + $0x758] sm:$0xff]
          %v1794 = vld [vmem:[#allocation7 + $0x760] sm:$0xff]
          %v1795 = vld [vmem:[#allocation7 + $0x768] sm:$0xff]
          %v1796 = vld [vmem:[#allocation7 + $0x770] sm:$0xff]
          %v1797 = vld [vmem:[#allocation7 + $0x778] sm:$0xff]
          %v1798 = vld [vmem:[#allocation7 + $0x780] sm:$0xff]
          %v1799 = vld [vmem:[#allocation7 + $0x788] sm:$0xff]
          %v1800 = vld [vmem:[#allocation7 + $0x790] sm:$0xff]
          %v1801 = vld [vmem:[#allocation7 + $0x798] sm:$0xff]
          %v1802 = vld [vmem:[#allocation7 + $0x7a0] sm:$0xff]
          %v1803 = vld [vmem:[#allocation7 + $0x7a8] sm:$0xff]
          %v1804 = vld [vmem:[#allocation7 + $0x7b0] sm:$0xff]
          %v1805 = vld [vmem:[#allocation7 + $0x7b8] sm:$0xff]
          %v1806 = vld [vmem:[#allocation7 + $0x7c0] sm:$0xff]
          %v1807 = vld [vmem:[#allocation7 + $0x7c8] sm:$0xff]
          %v1808 = vld [vmem:[#allocation7 + $0x7d0] sm:$0xff]
          %v1809 = vld [vmem:[#allocation7 + $0x7d8] sm:$0xff]
          %v1810 = vld [vmem:[#allocation7 + $0x7e0] sm:$0xff]
          %v1811 = vld [vmem:[#allocation7 + $0x7e8] sm:$0xff]
          %v1812 = vld [vmem:[#allocation7 + $0x7f0] sm:$0xff]
          %v1813 = vld [vmem:[#allocation7 + $0x7f8] sm:$0xff]
          %v1814 = vld [vmem:[#allocation7 + $0x800] sm:$0xff]
          %v1815 = vld [vmem:[#allocation7 + $0x808] sm:$0xff]
          %v1816 = vld [vmem:[#allocation7 + $0x810] sm:$0xff]
          %v1817 = vld [vmem:[#allocation7 + $0x818] sm:$0xff]
          %v1818 = vld [vmem:[#allocation7 + $0x820] sm:$0xff]
          %v1819 = vld [vmem:[#allocation7 + $0x828] sm:$0xff]
          %v1820 = vld [vmem:[#allocation7 + $0x830] sm:$0xff]
          %v1821 = vld [vmem:[#allocation7 + $0x838] sm:$0xff]
          %v1822 = vld [vmem:[#allocation7 + $0x840] sm:$0xff]
          %v1823 = vld [vmem:[#allocation7 + $0x848] sm:$0xff]
          %v1824 = vld [vmem:[#allocation7 + $0x850] sm:$0xff]
          %v1825 = vld [vmem:[#allocation7 + $0x858] sm:$0xff]
          %v1826 = vld [vmem:[#allocation7 + $0x860] sm:$0xff]
          %v1827 = vld [vmem:[#allocation7 + $0x868] sm:$0xff]
          %v1828 = vld [vmem:[#allocation7 + $0x870] sm:$0xff]
          %v1829 = vld [vmem:[#allocation7 + $0x878] sm:$0xff]
          %v1830 = vld [vmem:[#allocation7 + $0x880] sm:$0xff]
          %v1831 = vld [vmem:[#allocation7 + $0x888] sm:$0xff]
          %v1832 = vld [vmem:[#allocation7 + $0x890] sm:$0xff]
          %v1833 = vld [vmem:[#allocation7 + $0x898] sm:$0xff]
          %v1834 = vld [vmem:[#allocation7 + $0x8a0] sm:$0xff]
          %v1835 = vld [vmem:[#allocation7 + $0x8a8] sm:$0xff]
          %v1836 = vld [vmem:[#allocation7 + $0x8b0] sm:$0xff]
          %v1837 = vld [vmem:[#allocation7 + $0x8b8] sm:$0xff]
          %v1838 = vld [vmem:[#allocation7 + $0x8c0] sm:$0xff]
          %v1839 = vld [vmem:[#allocation7 + $0x8c8] sm:$0xff]
          %v1840 = vld [vmem:[#allocation7 + $0x8d0] sm:$0xff]
          %v1841 = vld [vmem:[#allocation7 + $0x8d8] sm:$0xff]
          %v1842 = vld [vmem:[#allocation7 + $0x8e0] sm:$0xff]
          %v1843 = vld [vmem:[#allocation7 + $0x8e8] sm:$0xff]
          %v1844 = vld [vmem:[#allocation7 + $0x8f0] sm:$0xff]
          %v1845 = vld [vmem:[#allocation7 + $0x8f8] sm:$0xff]
          %v1846 = vld [vmem:[#allocation7 + $0x900] sm:$0xff]
          %v1847 = vld [vmem:[#allocation7 + $0x908] sm:$0xff]
          %v1848 = vld [vmem:[#allocation7 + $0x910] sm:$0xff]
          %v1849 = vld [vmem:[#allocation7 + $0x918] sm:$0xff]
          %v1850 = vld [vmem:[#allocation7 + $0x920] sm:$0xff]
          %v1851 = vld [vmem:[#allocation7 + $0x928] sm:$0xff]
          %v1852 = vld [vmem:[#allocation7 + $0x930] sm:$0xff]
          %v1853 = vld [vmem:[#allocation7 + $0x938] sm:$0xff]
          %v1854 = vld [vmem:[#allocation7 + $0x940] sm:$0xff]
          %v1855 = vld [vmem:[#allocation7 + $0x948] sm:$0xff]
          %v1856 = vld [vmem:[#allocation7 + $0x950] sm:$0xff]
          %v1857 = vld [vmem:[#allocation7 + $0x958] sm:$0xff]
          %v1858 = vld [vmem:[#allocation7 + $0x960] sm:$0xff]
          %v1859 = vld [vmem:[#allocation7 + $0x968] sm:$0xff]
          %v1860 = vld [vmem:[#allocation7 + $0x970] sm:$0xff]
          %v1861 = vld [vmem:[#allocation7 + $0x978] sm:$0xff]
          %v1862 = vld [vmem:[#allocation7 + $0x980] sm:$0xff]
          %v1863 = vld [vmem:[#allocation7 + $0x988] sm:$0xff]
          %v1864 = vld [vmem:[#allocation7 + $0x990] sm:$0xff]
          %v1865 = vld [vmem:[#allocation7 + $0x998] sm:$0xff]
          %v1866 = vld [vmem:[#allocation7 + $0x9a0] sm:$0xff]
          %v1867 = vld [vmem:[#allocation7 + $0x9a8] sm:$0xff]
          %v1868 = vld [vmem:[#allocation7 + $0x9b0] sm:$0xff]
          %v1869 = vld [vmem:[#allocation7 + $0x9b8] sm:$0xff]
          %v1870 = vld [vmem:[#allocation7 + $0x9c0] sm:$0xff]
          %v1871 = vld [vmem:[#allocation7 + $0x9c8] sm:$0xff]
          %v1872 = vld [vmem:[#allocation7 + $0x9d0] sm:$0xff]
          %v1873 = vld [vmem:[#allocation7 + $0x9d8] sm:$0xff]
          %v1874 = vld [vmem:[#allocation7 + $0x9e0] sm:$0xff]
          %v1875 = vld [vmem:[#allocation7 + $0x9e8] sm:$0xff]
          %v1876 = vld [vmem:[#allocation7 + $0x9f0] sm:$0xff]
          %v1877 = vld [vmem:[#allocation7 + $0x9f8] sm:$0xff]
          %v1878 = vld [vmem:[#allocation7 + $0xa00] sm:$0xff]
          %v1879 = vld [vmem:[#allocation7 + $0xa08] sm:$0xff]
          %v1880 = vld [vmem:[#allocation7 + $0xa10] sm:$0xff]
          %v1881 = vld [vmem:[#allocation7 + $0xa18] sm:$0xff]
          %v1882 = vld [vmem:[#allocation7 + $0xa20] sm:$0xff]
          %v1883 = vld [vmem:[#allocation7 + $0xa28] sm:$0xff]
          %v1884 = vld [vmem:[#allocation7 + $0xa30] sm:$0xff]
          %v1885 = vld [vmem:[#allocation7 + $0xa38] sm:$0xff]
          %v1886 = vld [vmem:[#allocation7 + $0xa40] sm:$0xff]
          %v1887 = vld [vmem:[#allocation7 + $0xa48] sm:$0xff]
          %v1888 = vld [vmem:[#allocation7 + $0xa50] sm:$0xff]
          %v1889 = vld [vmem:[#allocation7 + $0xa58] sm:$0xff]
          %v1890 = vld [vmem:[#allocation7 + $0xa60] sm:$0xff]
          %v1891 = vld [vmem:[#allocation7 + $0xa68] sm:$0xff]
          %v1892 = vld [vmem:[#allocation7 + $0xa70] sm:$0xff]
          %v1893 = vld [vmem:[#allocation7 + $0xa78] sm:$0xff]
          %v1894 = vld [vmem:[#allocation7 + $0xa80] sm:$0xff]
          %v1895 = vld [vmem:[#allocation7 + $0xa88] sm:$0xff]
          %v1896 = vld [vmem:[#allocation7 + $0xa90] sm:$0xff]
          %v1897 = vld [vmem:[#allocation7 + $0xa98] sm:$0xff]
          %v1898 = vld [vmem:[#allocation7 + $0xaa0] sm:$0xff]
          %v1899 = vld [vmem:[#allocation7 + $0xaa8] sm:$0xff]
          %v1900 = vld [vmem:[#allocation7 + $0xab0] sm:$0xff]
          %v1901 = vld [vmem:[#allocation7 + $0xab8] sm:$0xff]
          %v1902 = vld [vmem:[#allocation7 + $0xac0] sm:$0xff]
          %v1903 = vld [vmem:[#allocation7 + $0xac8] sm:$0xff]
          %v1904 = vld [vmem:[#allocation7 + $0xad0] sm:$0xff]
          %v1905 = vld [vmem:[#allocation7 + $0xad8] sm:$0xff]
          %v1906 = vld [vmem:[#allocation7 + $0xae0] sm:$0xff]
          %v1907 = vld [vmem:[#allocation7 + $0xae8] sm:$0xff]
          %v1908 = vld [vmem:[#allocation7 + $0xaf0] sm:$0xff]
          %v1909 = vld [vmem:[#allocation7 + $0xaf8] sm:$0xff]
          %v1910 = vld [vmem:[#allocation7 + $0xb00] sm:$0xff]
          %v1911 = vld [vmem:[#allocation7 + $0xb08] sm:$0xff]
          %v1912 = vld [vmem:[#allocation7 + $0xb10] sm:$0xff]
          %v1913 = vld [vmem:[#allocation7 + $0xb18] sm:$0xff]
          %v1914 = vld [vmem:[#allocation7 + $0xb20] sm:$0xff]
          %v1915 = vld [vmem:[#allocation7 + $0xb28] sm:$0xff]
          %v1916 = vld [vmem:[#allocation7 + $0xb30] sm:$0xff]
          %v1917 = vld [vmem:[#allocation7 + $0xb38] sm:$0xff]
          %v1918 = vld [vmem:[#allocation7 + $0xb40] sm:$0xff]
          %v1919 = vld [vmem:[#allocation7 + $0xb48] sm:$0xff]
          %v1920 = vld [vmem:[#allocation7 + $0xb50] sm:$0xff]
          %v1921 = vld [vmem:[#allocation7 + $0xb58] sm:$0xff]
          %v1922 = vld [vmem:[#allocation7 + $0xb60] sm:$0xff]
          %v1923 = vld [vmem:[#allocation7 + $0xb68] sm:$0xff]
          %v1924 = vld [vmem:[#allocation7 + $0xb70] sm:$0xff]
          %v1925 = vld [vmem:[#allocation7 + $0xb78] sm:$0xff]
          %v1926 = vld [vmem:[#allocation7 + $0xb80] sm:$0xff]
          %v1927 = vld [vmem:[#allocation7 + $0xb88] sm:$0xff]
          %v1928 = vld [vmem:[#allocation7 + $0xb90] sm:$0xff]
          %v1929 = vld [vmem:[#allocation7 + $0xb98] sm:$0xff]
          %v1930 = vld [vmem:[#allocation7 + $0xba0] sm:$0xff]
          %v1931 = vld [vmem:[#allocation7 + $0xba8] sm:$0xff]
          %v1932 = vld [vmem:[#allocation7 + $0xbb0] sm:$0xff]
          %v1933 = vld [vmem:[#allocation7 + $0xbb8] sm:$0xff]
          %v1934 = vld [vmem:[#allocation7 + $0xbc0] sm:$0xff]
          %v1935 = vld [vmem:[#allocation7 + $0xbc8] sm:$0xff]
          %v1936 = vld [vmem:[#allocation7 + $0xbd0] sm:$0xff]
          %v1937 = vld [vmem:[#allocation7 + $0xbd8] sm:$0xff]
          %v1938 = vld [vmem:[#allocation7 + $0xbe0] sm:$0xff]
          %v1939 = vld [vmem:[#allocation7 + $0xbe8] sm:$0xff]
          %v1940 = vld [vmem:[#allocation7 + $0xbf0] sm:$0xff]
          %v1941 = vld [vmem:[#allocation7 + $0xbf8] sm:$0xff]
          %v1942 = vld [vmem:[#allocation7 + $0xc00] sm:$0xff]
          %v1943 = vld [vmem:[#allocation7 + $0xc08] sm:$0xff]
          %v1944 = vld [vmem:[#allocation7 + $0xc10] sm:$0xff]
          %v1945 = vld [vmem:[#allocation7 + $0xc18] sm:$0xff]
          %v1946 = vld [vmem:[#allocation7 + $0xc20] sm:$0xff]
          %v1947 = vld [vmem:[#allocation7 + $0xc28] sm:$0xff]
          %v1948 = vld [vmem:[#allocation7 + $0xc30] sm:$0xff]
          %v1949 = vld [vmem:[#allocation7 + $0xc38] sm:$0xff]
          %v1950 = vld [vmem:[#allocation7 + $0xc40] sm:$0xff]
          %v1951 = vld [vmem:[#allocation7 + $0xc48] sm:$0xff]
          %v1952 = vld [vmem:[#allocation7 + $0xc50] sm:$0xff]
          %v1953 = vld [vmem:[#allocation7 + $0xc58] sm:$0xff]
          %v1954 = vld [vmem:[#allocation7 + $0xc60] sm:$0xff]
          %v1955 = vld [vmem:[#allocation7 + $0xc68] sm:$0xff]
          %v1956 = vld [vmem:[#allocation7 + $0xc70] sm:$0xff]
          %v1957 = vld [vmem:[#allocation7 + $0xc78] sm:$0xff]
          %v1958 = vld [vmem:[#allocation7 + $0xc80] sm:$0xff]
          %v1959 = vld [vmem:[#allocation7 + $0xc88] sm:$0xff]
          %v1960 = vld [vmem:[#allocation7 + $0xc90] sm:$0xff]
          %v1961 = vld [vmem:[#allocation7 + $0xc98] sm:$0xff]
          %v1962 = vld [vmem:[#allocation7 + $0xca0] sm:$0xff]
          %v1963 = vld [vmem:[#allocation7 + $0xca8] sm:$0xff]
          %v1964 = vld [vmem:[#allocation7 + $0xcb0] sm:$0xff]
          %v1965 = vld [vmem:[#allocation7 + $0xcb8] sm:$0xff]
          %v1966 = vld [vmem:[#allocation7 + $0xcc0] sm:$0xff]
          %v1967 = vld [vmem:[#allocation7 + $0xcc8] sm:$0xff]
          %v1968 = vld [vmem:[#allocation7 + $0xcd0] sm:$0xff]
          %v1969 = vld [vmem:[#allocation7 + $0xcd8] sm:$0xff]
          %v1970 = vld [vmem:[#allocation7 + $0xce0] sm:$0xff]
          %v1971 = vld [vmem:[#allocation7 + $0xce8] sm:$0xff]
          %v1972 = vld [vmem:[#allocation7 + $0xcf0] sm:$0xff]
          %v1973 = vld [vmem:[#allocation7 + $0xcf8] sm:$0xff]
          %v1974 = vld [vmem:[#allocation7 + $0xd00] sm:$0xff]
          %v1975 = vld [vmem:[#allocation7 + $0xd08] sm:$0xff]
          %v1976 = vld [vmem:[#allocation7 + $0xd10] sm:$0xff]
          %v1977 = vld [vmem:[#allocation7 + $0xd18] sm:$0xff]
          %v1978 = vld [vmem:[#allocation7 + $0xd20] sm:$0xff]
          %v1979 = vld [vmem:[#allocation7 + $0xd28] sm:$0xff]
          %v1980 = vld [vmem:[#allocation7 + $0xd30] sm:$0xff]
          %v1981 = vld [vmem:[#allocation7 + $0xd38] sm:$0xff]
          %v1982 = vld [vmem:[#allocation7 + $0xd40] sm:$0xff]
          %v1983 = vld [vmem:[#allocation7 + $0xd48] sm:$0xff]
          %v1984 = vld [vmem:[#allocation7 + $0xd50] sm:$0xff]
          %v1985 = vld [vmem:[#allocation7 + $0xd58] sm:$0xff]
          %v1986 = vld [vmem:[#allocation7 + $0xd60] sm:$0xff]
          %v1987 = vld [vmem:[#allocation7 + $0xd68] sm:$0xff]
          %v1988 = vld [vmem:[#allocation7 + $0xd70] sm:$0xff]
          %v1989 = vld [vmem:[#allocation7 + $0xd78] sm:$0xff]
          %v1990 = vld [vmem:[#allocation7 + $0xd80] sm:$0xff]
          %v1991 = vld [vmem:[#allocation7 + $0xd88] sm:$0xff]
          %v1992 = vld [vmem:[#allocation7 + $0xd90] sm:$0xff]
          %v1993 = vld [vmem:[#allocation7 + $0xd98] sm:$0xff]
          %v1994 = vld [vmem:[#allocation7 + $0xda0] sm:$0xff]
          %v1995 = vld [vmem:[#allocation7 + $0xda8] sm:$0xff]
          %v1996 = vld [vmem:[#allocation7 + $0xdb0] sm:$0xff]
          %v1997 = vld [vmem:[#allocation7 + $0xdb8] sm:$0xff]
          %v1998 = vld [vmem:[#allocation7 + $0xdc0] sm:$0xff]
          %v1999 = vld [vmem:[#allocation7 + $0xdc8] sm:$0xff]
          %v2000 = vld [vmem:[#allocation7 + $0xdd0] sm:$0xff]
          %v2001 = vld [vmem:[#allocation7 + $0xdd8] sm:$0xff]
          %v2002 = vld [vmem:[#allocation7 + $0xde0] sm:$0xff]
          %v2003 = vld [vmem:[#allocation7 + $0xde8] sm:$0xff]
          %v2004 = vld [vmem:[#allocation7 + $0xdf0] sm:$0xff]
          %v2005 = vld [vmem:[#allocation7 + $0xdf8] sm:$0xff]
          %v2006 = vld [vmem:[#allocation7 + $0xe00] sm:$0xff]
          %v2007 = vld [vmem:[#allocation7 + $0xe08] sm:$0xff]
          %v2008 = vld [vmem:[#allocation7 + $0xe10] sm:$0xff]
          %v2009 = vld [vmem:[#allocation7 + $0xe18] sm:$0xff]
          %v2010 = vld [vmem:[#allocation7 + $0xe20] sm:$0xff]
          %v2011 = vld [vmem:[#allocation7 + $0xe28] sm:$0xff]
          %v2012 = vld [vmem:[#allocation7 + $0xe30] sm:$0xff]
          %v2013 = vld [vmem:[#allocation7 + $0xe38] sm:$0xff]
          %v2014 = vld [vmem:[#allocation7 + $0xe40] sm:$0xff]
          %v2015 = vld [vmem:[#allocation7 + $0xe48] sm:$0xff]
          %v2016 = vld [vmem:[#allocation7 + $0xe50] sm:$0xff]
          %v2017 = vld [vmem:[#allocation7 + $0xe58] sm:$0xff]
          %v2018 = vld [vmem:[#allocation7 + $0xe60] sm:$0xff]
          %v2019 = vld [vmem:[#allocation7 + $0xe68] sm:$0xff]
          %v2020 = vld [vmem:[#allocation7 + $0xe70] sm:$0xff]
          %v2021 = vld [vmem:[#allocation7 + $0xe78] sm:$0xff]
          %v2022 = vld [vmem:[#allocation7 + $0xe80] sm:$0xff]
          %v2023 = vld [vmem:[#allocation7 + $0xe88] sm:$0xff]
          %v2024 = vld [vmem:[#allocation7 + $0xe90] sm:$0xff]
          %v2025 = vld [vmem:[#allocation7 + $0xe98] sm:$0xff]
          %v2026 = vld [vmem:[#allocation7 + $0xea0] sm:$0xff]
          %v2027 = vld [vmem:[#allocation7 + $0xea8] sm:$0xff]
          %v2028 = vld [vmem:[#allocation7 + $0xeb0] sm:$0xff]
          %v2029 = vld [vmem:[#allocation7 + $0xeb8] sm:$0xff]
          %v2030 = vld [vmem:[#allocation7 + $0xec0] sm:$0xff]
          %v2031 = vld [vmem:[#allocation7 + $0xec8] sm:$0xff]
          %v2032 = vld [vmem:[#allocation7 + $0xed0] sm:$0xff]
          %v2033 = vld [vmem:[#allocation7 + $0xed8] sm:$0xff]
          %v2034 = vld [vmem:[#allocation7 + $0xee0] sm:$0xff]
          %v2035 = vld [vmem:[#allocation7 + $0xee8] sm:$0xff]
          %v2036 = vld [vmem:[#allocation7 + $0xef0] sm:$0xff]
          %v2037 = vld [vmem:[#allocation7 + $0xef8] sm:$0xff]
          %v2038 = vld [vmem:[#allocation7 + $0xf00] sm:$0xff]
          %v2039 = vld [vmem:[#allocation7 + $0xf08] sm:$0xff]
          %v2040 = vld [vmem:[#allocation7 + $0xf10] sm:$0xff]
          %v2041 = vld [vmem:[#allocation7 + $0xf18] sm:$0xff]
          %v2042 = vld [vmem:[#allocation7 + $0xf20] sm:$0xff]
          %v2043 = vld [vmem:[#allocation7 + $0xf28] sm:$0xff]
          %v2044 = vld [vmem:[#allocation7 + $0xf30] sm:$0xff]
          %v2045 = vld [vmem:[#allocation7 + $0xf38] sm:$0xff]
          %v2046 = vld [vmem:[#allocation7 + $0xf40] sm:$0xff]
          %v2047 = vld [vmem:[#allocation7 + $0xf48] sm:$0xff]
          %v2048 = vld [vmem:[#allocation7 + $0xf50] sm:$0xff]
          %v2049 = vld [vmem:[#allocation7 + $0xf58] sm:$0xff]
          %v2050 = vld [vmem:[#allocation7 + $0xf60] sm:$0xff]
          %v2051 = vld [vmem:[#allocation7 + $0xf68] sm:$0xff]
          %v2052 = vld [vmem:[#allocation7 + $0xf70] sm:$0xff]
          %v2053 = vld [vmem:[#allocation7 + $0xf78] sm:$0xff]
          %v2054 = vld [vmem:[#allocation7 + $0xf80] sm:$0xff]
          %v2055 = vld [vmem:[#allocation7 + $0xf88] sm:$0xff]
          %v2056 = vld [vmem:[#allocation7 + $0xf90] sm:$0xff]
          %v2057 = vld [vmem:[#allocation7 + $0xf98] sm:$0xff]
          %v2058 = vld [vmem:[#allocation7 + $0xfa0] sm:$0xff]
          %v2059 = vld [vmem:[#allocation7 + $0xfa8] sm:$0xff]
          %v2060 = vld [vmem:[#allocation7 + $0xfb0] sm:$0xff]
          %v2061 = vld [vmem:[#allocation7 + $0xfb8] sm:$0xff]
          %v2062 = vld [vmem:[#allocation7 + $0xfc0] sm:$0xff]
          %v2063 = vld [vmem:[#allocation7 + $0xfc8] sm:$0xff]
          %v2064 = vld [vmem:[#allocation7 + $0xfd0] sm:$0xff]
          %v2065 = vld [vmem:[#allocation7 + $0xfd8] sm:$0xff]
          %v2066 = vld [vmem:[#allocation7 + $0xfe0] sm:$0xff]
          %v2067 = vld [vmem:[#allocation7 + $0xfe8] sm:$0xff]
          %v2068 = vld [vmem:[#allocation7 + $0xff0] sm:$0xff]
          %v2069 = vld [vmem:[#allocation7 + $0xff8] sm:$0xff]
          %v2070 = vld [vmem:[#allocation8] sm:$0xff]
          %v2071 = vld [vmem:[#allocation8 + $0x8] sm:$0xff]
          %v2074 = vlaneseq
          %v2075 = vshrl.u32 %v2074, 7
          %v2076 = vsub.s32 0, %v2075
          %v2077 = vrot.slane %v2070, %v2076
          %v2078 = vlaneseq
          %v2079 = vshrl.u32 %v2078, 7
          %v2080 = vsub.s32 1, %v2079
          %v2081 = vrot.slane %v2070, %v2080
          %v2082 = vlaneseq
          %v2083 = vshrl.u32 %v2082, 7
          %v2084 = vsub.s32 2, %v2083
          %v2085 = vrot.slane %v2070, %v2084
          %v2086 = vlaneseq
          %v2087 = vshrl.u32 %v2086, 7
          %v2088 = vsub.s32 3, %v2087
          %v2089 = vrot.slane %v2070, %v2088
          %v2090 = vlaneseq
          %v2091 = vshrl.u32 %v2090, 7
          %v2092 = vsub.s32 4, %v2091
          %v2093 = vrot.slane %v2070, %v2092
          %v2094 = vlaneseq
          %v2095 = vshrl.u32 %v2094, 7
          %v2096 = vsub.s32 5, %v2095
          %v2097 = vrot.slane %v2070, %v2096
          %v2098 = vlaneseq
          %v2099 = vshrl.u32 %v2098, 7
          %v2100 = vsub.s32 6, %v2099
          %v2101 = vrot.slane %v2070, %v2100
          %v2102 = vlaneseq
          %v2103 = vshrl.u32 %v2102, 7
          %v2104 = vsub.s32 7, %v2103
          %v2105 = vrot.slane %v2070, %v2104
          %v2106 = vlaneseq
          %v2107 = vshrl.u32 %v2106, 7
          %v2108 = vsub.s32 0, %v2107
          %v2109 = vrot.slane %v2071, %v2108
          %v2110 = vlaneseq
          %v2111 = vshrl.u32 %v2110, 7
          %v2112 = vsub.s32 1, %v2111
          %v2113 = vrot.slane %v2071, %v2112
          %v2114 = vlaneseq
          %v2115 = vshrl.u32 %v2114, 7
          %v2116 = vsub.s32 2, %v2115
          %v2117 = vrot.slane %v2071, %v2116
          %v2118 = vlaneseq
          %v2119 = vshrl.u32 %v2118, 7
          %v2120 = vsub.s32 3, %v2119
          %v2121 = vrot.slane %v2071, %v2120
          %v2122 = vlaneseq
          %v2123 = vshrl.u32 %v2122, 7
          %v2124 = vsub.s32 4, %v2123
          %v2125 = vrot.slane %v2071, %v2124
          %v2126 = vlaneseq
          %v2127 = vshrl.u32 %v2126, 7
          %v2128 = vsub.s32 5, %v2127
          %v2129 = vrot.slane %v2071, %v2128
          %v2130 = vlaneseq
          %v2131 = vshrl.u32 %v2130, 7
          %v2132 = vsub.s32 6, %v2131
          %v2133 = vrot.slane %v2071, %v2132
          %v2134 = vlaneseq
          %v2135 = vshrl.u32 %v2134, 7
          %v2136 = vsub.s32 7, %v2135
          %v2137 = vrot.slane %v2071, %v2136
          %v2666 = vunpack.c.l.b16 %v1558
          %v2667 = vunpack.c.h.b16 %v1558
          %v2668 = vunpack.c.l.b16 %v1559
          %v2669 = vunpack.c.h.b16 %v1559
          %v2670 = vunpack.c.l.b16 %v1560
          %v2671 = vunpack.c.h.b16 %v1560
          %v2672 = vunpack.c.l.b16 %v1561
          %v2673 = vunpack.c.h.b16 %v1561
          %v2674 = vunpack.c.l.b16 %v1562
          %v2675 = vunpack.c.h.b16 %v1562
          %v2676 = vunpack.c.l.b16 %v1563
          %v2677 = vunpack.c.h.b16 %v1563
          %v2678 = vunpack.c.l.b16 %v1564
          %v2679 = vunpack.c.h.b16 %v1564
          %v2680 = vunpack.c.l.b16 %v1565
          %v2681 = vunpack.c.h.b16 %v1565
          %v2682 = vunpack.c.l.b16 %v1566
          %v2683 = vunpack.c.h.b16 %v1566
          %v2684 = vunpack.c.l.b16 %v1567
          %v2685 = vunpack.c.h.b16 %v1567
          %v2686 = vunpack.c.l.b16 %v1568
          %v2687 = vunpack.c.h.b16 %v1568
          %v2688 = vunpack.c.l.b16 %v1569
          %v2689 = vunpack.c.h.b16 %v1569
          %v2690 = vunpack.c.l.b16 %v1570
          %v2691 = vunpack.c.h.b16 %v1570
          %v2692 = vunpack.c.l.b16 %v1571
          %v2693 = vunpack.c.h.b16 %v1571
          %v2694 = vunpack.c.l.b16 %v1572
          %v2695 = vunpack.c.h.b16 %v1572
          %v2696 = vunpack.c.l.b16 %v1573
          %v2697 = vunpack.c.h.b16 %v1573
          %v2698 = vunpack.c.l.b16 %v1574
          %v2699 = vunpack.c.h.b16 %v1574
          %v2700 = vunpack.c.l.b16 %v1575
          %v2701 = vunpack.c.h.b16 %v1575
          %v2702 = vunpack.c.l.b16 %v1576
          %v2703 = vunpack.c.h.b16 %v1576
          %v2704 = vunpack.c.l.b16 %v1577
          %v2705 = vunpack.c.h.b16 %v1577
          %v2706 = vunpack.c.l.b16 %v1578
          %v2707 = vunpack.c.h.b16 %v1578
          %v2708 = vunpack.c.l.b16 %v1579
          %v2709 = vunpack.c.h.b16 %v1579
          %v2710 = vunpack.c.l.b16 %v1580
          %v2711 = vunpack.c.h.b16 %v1580
          %v2712 = vunpack.c.l.b16 %v1581
          %v2713 = vunpack.c.h.b16 %v1581
          %v2714 = vunpack.c.l.b16 %v1582
          %v2715 = vunpack.c.h.b16 %v1582
          %v2716 = vunpack.c.l.b16 %v1583
          %v2717 = vunpack.c.h.b16 %v1583
          %v2718 = vunpack.c.l.b16 %v1584
          %v2719 = vunpack.c.h.b16 %v1584
          %v2720 = vunpack.c.l.b16 %v1585
          %v2721 = vunpack.c.h.b16 %v1585
          %v2722 = vunpack.c.l.b16 %v1586
          %v2723 = vunpack.c.h.b16 %v1586
          %v2724 = vunpack.c.l.b16 %v1587
          %v2725 = vunpack.c.h.b16 %v1587
          %v2726 = vunpack.c.l.b16 %v1588
          %v2727 = vunpack.c.h.b16 %v1588
          %v2728 = vunpack.c.l.b16 %v1589
          %v2729 = vunpack.c.h.b16 %v1589
          %v2730 = vunpack.c.l.b16 %v1590
          %v2731 = vunpack.c.h.b16 %v1590
          %v2732 = vunpack.c.l.b16 %v1591
          %v2733 = vunpack.c.h.b16 %v1591
          %v2734 = vunpack.c.l.b16 %v1592
          %v2735 = vunpack.c.h.b16 %v1592
          %v2736 = vunpack.c.l.b16 %v1593
          %v2737 = vunpack.c.h.b16 %v1593
          %v2738 = vunpack.c.l.b16 %v1594
          %v2739 = vunpack.c.h.b16 %v1594
          %v2740 = vunpack.c.l.b16 %v1595
          %v2741 = vunpack.c.h.b16 %v1595
          %v2742 = vunpack.c.l.b16 %v1596
          %v2743 = vunpack.c.h.b16 %v1596
          %v2744 = vunpack.c.l.b16 %v1597
          %v2745 = vunpack.c.h.b16 %v1597
          %v2746 = vunpack.c.l.b16 %v1598
          %v2747 = vunpack.c.h.b16 %v1598
          %v2748 = vunpack.c.l.b16 %v1599
          %v2749 = vunpack.c.h.b16 %v1599
          %v2750 = vunpack.c.l.b16 %v1600
          %v2751 = vunpack.c.h.b16 %v1600
          %v2752 = vunpack.c.l.b16 %v1601
          %v2753 = vunpack.c.h.b16 %v1601
          %v2754 = vunpack.c.l.b16 %v1602
          %v2755 = vunpack.c.h.b16 %v1602
          %v2756 = vunpack.c.l.b16 %v1603
          %v2757 = vunpack.c.h.b16 %v1603
          %v2758 = vunpack.c.l.b16 %v1604
          %v2759 = vunpack.c.h.b16 %v1604
          %v2760 = vunpack.c.l.b16 %v1605
          %v2761 = vunpack.c.h.b16 %v1605
          %v2762 = vunpack.c.l.b16 %v1606
          %v2763 = vunpack.c.h.b16 %v1606
          %v2764 = vunpack.c.l.b16 %v1607
          %v2765 = vunpack.c.h.b16 %v1607
          %v2766 = vunpack.c.l.b16 %v1608
          %v2767 = vunpack.c.h.b16 %v1608
          %v2768 = vunpack.c.l.b16 %v1609
          %v2769 = vunpack.c.h.b16 %v1609
          %v2770 = vunpack.c.l.b16 %v1610
          %v2771 = vunpack.c.h.b16 %v1610
          %v2772 = vunpack.c.l.b16 %v1611
          %v2773 = vunpack.c.h.b16 %v1611
          %v2774 = vunpack.c.l.b16 %v1612
          %v2775 = vunpack.c.h.b16 %v1612
          %v2776 = vunpack.c.l.b16 %v1613
          %v2777 = vunpack.c.h.b16 %v1613
          %v2778 = vunpack.c.l.b16 %v1614
          %v2779 = vunpack.c.h.b16 %v1614
          %v2780 = vunpack.c.l.b16 %v1615
          %v2781 = vunpack.c.h.b16 %v1615
          %v2782 = vunpack.c.l.b16 %v1616
          %v2783 = vunpack.c.h.b16 %v1616
          %v2784 = vunpack.c.l.b16 %v1617
          %v2785 = vunpack.c.h.b16 %v1617
          %v2786 = vunpack.c.l.b16 %v1618
          %v2787 = vunpack.c.h.b16 %v1618
          %v2788 = vunpack.c.l.b16 %v1619
          %v2789 = vunpack.c.h.b16 %v1619
          %v2790 = vunpack.c.l.b16 %v1620
          %v2791 = vunpack.c.h.b16 %v1620
          %v2792 = vunpack.c.l.b16 %v1621
          %v2793 = vunpack.c.h.b16 %v1621
          %v2794 = vunpack.c.l.b16 %v1622
          %v2795 = vunpack.c.h.b16 %v1622
          %v2796 = vunpack.c.l.b16 %v1623
          %v2797 = vunpack.c.h.b16 %v1623
          %v2798 = vunpack.c.l.b16 %v1624
          %v2799 = vunpack.c.h.b16 %v1624
          %v2800 = vunpack.c.l.b16 %v1625
          %v2801 = vunpack.c.h.b16 %v1625
          %v2802 = vunpack.c.l.b16 %v1626
          %v2803 = vunpack.c.h.b16 %v1626
          %v2804 = vunpack.c.l.b16 %v1627
          %v2805 = vunpack.c.h.b16 %v1627
          %v2806 = vunpack.c.l.b16 %v1628
          %v2807 = vunpack.c.h.b16 %v1628
          %v2808 = vunpack.c.l.b16 %v1629
          %v2809 = vunpack.c.h.b16 %v1629
          %v2810 = vunpack.c.l.b16 %v1630
          %v2811 = vunpack.c.h.b16 %v1630
          %v2812 = vunpack.c.l.b16 %v1631
          %v2813 = vunpack.c.h.b16 %v1631
          %v2814 = vunpack.c.l.b16 %v1632
          %v2815 = vunpack.c.h.b16 %v1632
          %v2816 = vunpack.c.l.b16 %v1633
          %v2817 = vunpack.c.h.b16 %v1633
          %v2818 = vunpack.c.l.b16 %v1634
          %v2819 = vunpack.c.h.b16 %v1634
          %v2820 = vunpack.c.l.b16 %v1635
          %v2821 = vunpack.c.h.b16 %v1635
          %v2822 = vunpack.c.l.b16 %v1636
          %v2823 = vunpack.c.h.b16 %v1636
          %v2824 = vunpack.c.l.b16 %v1637
          %v2825 = vunpack.c.h.b16 %v1637
          %v2826 = vunpack.c.l.b16 %v1638
          %v2827 = vunpack.c.h.b16 %v1638
          %v2828 = vunpack.c.l.b16 %v1639
          %v2829 = vunpack.c.h.b16 %v1639
          %v2830 = vunpack.c.l.b16 %v1640
          %v2831 = vunpack.c.h.b16 %v1640
          %v2832 = vunpack.c.l.b16 %v1641
          %v2833 = vunpack.c.h.b16 %v1641
          %v2834 = vunpack.c.l.b16 %v1642
          %v2835 = vunpack.c.h.b16 %v1642
          %v2836 = vunpack.c.l.b16 %v1643
          %v2837 = vunpack.c.h.b16 %v1643
          %v2838 = vunpack.c.l.b16 %v1644
          %v2839 = vunpack.c.h.b16 %v1644
          %v2840 = vunpack.c.l.b16 %v1645
          %v2841 = vunpack.c.h.b16 %v1645
          %v2842 = vunpack.c.l.b16 %v1646
          %v2843 = vunpack.c.h.b16 %v1646
          %v2844 = vunpack.c.l.b16 %v1647
          %v2845 = vunpack.c.h.b16 %v1647
          %v2846 = vunpack.c.l.b16 %v1648
          %v2847 = vunpack.c.h.b16 %v1648
          %v2848 = vunpack.c.l.b16 %v1649
          %v2849 = vunpack.c.h.b16 %v1649
          %v2850 = vunpack.c.l.b16 %v1650
          %v2851 = vunpack.c.h.b16 %v1650
          %v2852 = vunpack.c.l.b16 %v1651
          %v2853 = vunpack.c.h.b16 %v1651
          %v2854 = vunpack.c.l.b16 %v1652
          %v2855 = vunpack.c.h.b16 %v1652
          %v2856 = vunpack.c.l.b16 %v1653
          %v2857 = vunpack.c.h.b16 %v1653
          %v2858 = vunpack.c.l.b16 %v1654
          %v2859 = vunpack.c.h.b16 %v1654
          %v2860 = vunpack.c.l.b16 %v1655
          %v2861 = vunpack.c.h.b16 %v1655
          %v2862 = vunpack.c.l.b16 %v1656
          %v2863 = vunpack.c.h.b16 %v1656
          %v2864 = vunpack.c.l.b16 %v1657
          %v2865 = vunpack.c.h.b16 %v1657
          %v2866 = vunpack.c.l.b16 %v1658
          %v2867 = vunpack.c.h.b16 %v1658
          %v2868 = vunpack.c.l.b16 %v1659
          %v2869 = vunpack.c.h.b16 %v1659
          %v2870 = vunpack.c.l.b16 %v1660
          %v2871 = vunpack.c.h.b16 %v1660
          %v2872 = vunpack.c.l.b16 %v1661
          %v2873 = vunpack.c.h.b16 %v1661
          %v2874 = vunpack.c.l.b16 %v1662
          %v2875 = vunpack.c.h.b16 %v1662
          %v2876 = vunpack.c.l.b16 %v1663
          %v2877 = vunpack.c.h.b16 %v1663
          %v2878 = vunpack.c.l.b16 %v1664
          %v2879 = vunpack.c.h.b16 %v1664
          %v2880 = vunpack.c.l.b16 %v1665
          %v2881 = vunpack.c.h.b16 %v1665
          %v2882 = vunpack.c.l.b16 %v1666
          %v2883 = vunpack.c.h.b16 %v1666
          %v2884 = vunpack.c.l.b16 %v1667
          %v2885 = vunpack.c.h.b16 %v1667
          %v2886 = vunpack.c.l.b16 %v1668
          %v2887 = vunpack.c.h.b16 %v1668
          %v2888 = vunpack.c.l.b16 %v1669
          %v2889 = vunpack.c.h.b16 %v1669
          %v2890 = vunpack.c.l.b16 %v1670
          %v2891 = vunpack.c.h.b16 %v1670
          %v2892 = vunpack.c.l.b16 %v1671
          %v2893 = vunpack.c.h.b16 %v1671
          %v2894 = vunpack.c.l.b16 %v1672
          %v2895 = vunpack.c.h.b16 %v1672
          %v2896 = vunpack.c.l.b16 %v1673
          %v2897 = vunpack.c.h.b16 %v1673
          %v2898 = vunpack.c.l.b16 %v1674
          %v2899 = vunpack.c.h.b16 %v1674
          %v2900 = vunpack.c.l.b16 %v1675
          %v2901 = vunpack.c.h.b16 %v1675
          %v2902 = vunpack.c.l.b16 %v1676
          %v2903 = vunpack.c.h.b16 %v1676
          %v2904 = vunpack.c.l.b16 %v1677
          %v2905 = vunpack.c.h.b16 %v1677
          %v2906 = vunpack.c.l.b16 %v1678
          %v2907 = vunpack.c.h.b16 %v1678
          %v2908 = vunpack.c.l.b16 %v1679
          %v2909 = vunpack.c.h.b16 %v1679
          %v2910 = vunpack.c.l.b16 %v1680
          %v2911 = vunpack.c.h.b16 %v1680
          %v2912 = vunpack.c.l.b16 %v1681
          %v2913 = vunpack.c.h.b16 %v1681
          %v2914 = vunpack.c.l.b16 %v1682
          %v2915 = vunpack.c.h.b16 %v1682
          %v2916 = vunpack.c.l.b16 %v1683
          %v2917 = vunpack.c.h.b16 %v1683
          %v2918 = vunpack.c.l.b16 %v1684
          %v2919 = vunpack.c.h.b16 %v1684
          %v2920 = vunpack.c.l.b16 %v1685
          %v2921 = vunpack.c.h.b16 %v1685
          %v2922 = vunpack.c.l.b16 %v1686
          %v2923 = vunpack.c.h.b16 %v1686
          %v2924 = vunpack.c.l.b16 %v1687
          %v2925 = vunpack.c.h.b16 %v1687
          %v2926 = vunpack.c.l.b16 %v1688
          %v2927 = vunpack.c.h.b16 %v1688
          %v2928 = vunpack.c.l.b16 %v1689
          %v2929 = vunpack.c.h.b16 %v1689
          %v2930 = vunpack.c.l.b16 %v1690
          %v2931 = vunpack.c.h.b16 %v1690
          %v2932 = vunpack.c.l.b16 %v1691
          %v2933 = vunpack.c.h.b16 %v1691
          %v2934 = vunpack.c.l.b16 %v1692
          %v2935 = vunpack.c.h.b16 %v1692
          %v2936 = vunpack.c.l.b16 %v1693
          %v2937 = vunpack.c.h.b16 %v1693
          %v2938 = vunpack.c.l.b16 %v1694
          %v2939 = vunpack.c.h.b16 %v1694
          %v2940 = vunpack.c.l.b16 %v1695
          %v2941 = vunpack.c.h.b16 %v1695
          %v2942 = vunpack.c.l.b16 %v1696
          %v2943 = vunpack.c.h.b16 %v1696
          %v2944 = vunpack.c.l.b16 %v1697
          %v2945 = vunpack.c.h.b16 %v1697
          %v2946 = vunpack.c.l.b16 %v1698
          %v2947 = vunpack.c.h.b16 %v1698
          %v2948 = vunpack.c.l.b16 %v1699
          %v2949 = vunpack.c.h.b16 %v1699
          %v2950 = vunpack.c.l.b16 %v1700
          %v2951 = vunpack.c.h.b16 %v1700
          %v2952 = vunpack.c.l.b16 %v1701
          %v2953 = vunpack.c.h.b16 %v1701
          %v2954 = vunpack.c.l.b16 %v1702
          %v2955 = vunpack.c.h.b16 %v1702
          %v2956 = vunpack.c.l.b16 %v1703
          %v2957 = vunpack.c.h.b16 %v1703
          %v2958 = vunpack.c.l.b16 %v1704
          %v2959 = vunpack.c.h.b16 %v1704
          %v2960 = vunpack.c.l.b16 %v1705
          %v2961 = vunpack.c.h.b16 %v1705
          %v2962 = vunpack.c.l.b16 %v1706
          %v2963 = vunpack.c.h.b16 %v1706
          %v2964 = vunpack.c.l.b16 %v1707
          %v2965 = vunpack.c.h.b16 %v1707
          %v2966 = vunpack.c.l.b16 %v1708
          %v2967 = vunpack.c.h.b16 %v1708
          %v2968 = vunpack.c.l.b16 %v1709
          %v2969 = vunpack.c.h.b16 %v1709
          %v2970 = vunpack.c.l.b16 %v1710
          %v2971 = vunpack.c.h.b16 %v1710
          %v2972 = vunpack.c.l.b16 %v1711
          %v2973 = vunpack.c.h.b16 %v1711
          %v2974 = vunpack.c.l.b16 %v1712
          %v2975 = vunpack.c.h.b16 %v1712
          %v2976 = vunpack.c.l.b16 %v1713
          %v2977 = vunpack.c.h.b16 %v1713
          %v2978 = vunpack.c.l.b16 %v1714
          %v2979 = vunpack.c.h.b16 %v1714
          %v2980 = vunpack.c.l.b16 %v1715
          %v2981 = vunpack.c.h.b16 %v1715
          %v2982 = vunpack.c.l.b16 %v1716
          %v2983 = vunpack.c.h.b16 %v1716
          %v2984 = vunpack.c.l.b16 %v1717
          %v2985 = vunpack.c.h.b16 %v1717
          %v2986 = vunpack.c.l.b16 %v1718
          %v2987 = vunpack.c.h.b16 %v1718
          %v2988 = vunpack.c.l.b16 %v1719
          %v2989 = vunpack.c.h.b16 %v1719
          %v2990 = vunpack.c.l.b16 %v1720
          %v2991 = vunpack.c.h.b16 %v1720
          %v2992 = vunpack.c.l.b16 %v1721
          %v2993 = vunpack.c.h.b16 %v1721
          %v2994 = vunpack.c.l.b16 %v1722
          %v2995 = vunpack.c.h.b16 %v1722
          %v2996 = vunpack.c.l.b16 %v1723
          %v2997 = vunpack.c.h.b16 %v1723
          %v2998 = vunpack.c.l.b16 %v1724
          %v2999 = vunpack.c.h.b16 %v1724
          %v3000 = vunpack.c.l.b16 %v1725
          %v3001 = vunpack.c.h.b16 %v1725
          %v3002 = vunpack.c.l.b16 %v1726
          %v3003 = vunpack.c.h.b16 %v1726
          %v3004 = vunpack.c.l.b16 %v1727
          %v3005 = vunpack.c.h.b16 %v1727
          %v3006 = vunpack.c.l.b16 %v1728
          %v3007 = vunpack.c.h.b16 %v1728
          %v3008 = vunpack.c.l.b16 %v1729
          %v3009 = vunpack.c.h.b16 %v1729
          %v3010 = vunpack.c.l.b16 %v1730
          %v3011 = vunpack.c.h.b16 %v1730
          %v3012 = vunpack.c.l.b16 %v1731
          %v3013 = vunpack.c.h.b16 %v1731
          %v3014 = vunpack.c.l.b16 %v1732
          %v3015 = vunpack.c.h.b16 %v1732
          %v3016 = vunpack.c.l.b16 %v1733
          %v3017 = vunpack.c.h.b16 %v1733
          %v3018 = vunpack.c.l.b16 %v1734
          %v3019 = vunpack.c.h.b16 %v1734
          %v3020 = vunpack.c.l.b16 %v1735
          %v3021 = vunpack.c.h.b16 %v1735
          %v3022 = vunpack.c.l.b16 %v1736
          %v3023 = vunpack.c.h.b16 %v1736
          %v3024 = vunpack.c.l.b16 %v1737
          %v3025 = vunpack.c.h.b16 %v1737
          %v3026 = vunpack.c.l.b16 %v1738
          %v3027 = vunpack.c.h.b16 %v1738
          %v3028 = vunpack.c.l.b16 %v1739
          %v3029 = vunpack.c.h.b16 %v1739
          %v3030 = vunpack.c.l.b16 %v1740
          %v3031 = vunpack.c.h.b16 %v1740
          %v3032 = vunpack.c.l.b16 %v1741
          %v3033 = vunpack.c.h.b16 %v1741
          %v3034 = vunpack.c.l.b16 %v1742
          %v3035 = vunpack.c.h.b16 %v1742
          %v3036 = vunpack.c.l.b16 %v1743
          %v3037 = vunpack.c.h.b16 %v1743
          %v3038 = vunpack.c.l.b16 %v1744
          %v3039 = vunpack.c.h.b16 %v1744
          %v3040 = vunpack.c.l.b16 %v1745
          %v3041 = vunpack.c.h.b16 %v1745
          %v3042 = vunpack.c.l.b16 %v1746
          %v3043 = vunpack.c.h.b16 %v1746
          %v3044 = vunpack.c.l.b16 %v1747
          %v3045 = vunpack.c.h.b16 %v1747
          %v3046 = vunpack.c.l.b16 %v1748
          %v3047 = vunpack.c.h.b16 %v1748
          %v3048 = vunpack.c.l.b16 %v1749
          %v3049 = vunpack.c.h.b16 %v1749
          %v3050 = vunpack.c.l.b16 %v1750
          %v3051 = vunpack.c.h.b16 %v1750
          %v3052 = vunpack.c.l.b16 %v1751
          %v3053 = vunpack.c.h.b16 %v1751
          %v3054 = vunpack.c.l.b16 %v1752
          %v3055 = vunpack.c.h.b16 %v1752
          %v3056 = vunpack.c.l.b16 %v1753
          %v3057 = vunpack.c.h.b16 %v1753
          %v3058 = vunpack.c.l.b16 %v1754
          %v3059 = vunpack.c.h.b16 %v1754
          %v3060 = vunpack.c.l.b16 %v1755
          %v3061 = vunpack.c.h.b16 %v1755
          %v3062 = vunpack.c.l.b16 %v1756
          %v3063 = vunpack.c.h.b16 %v1756
          %v3064 = vunpack.c.l.b16 %v1757
          %v3065 = vunpack.c.h.b16 %v1757
          %v3066 = vunpack.c.l.b16 %v1758
          %v3067 = vunpack.c.h.b16 %v1758
          %v3068 = vunpack.c.l.b16 %v1759
          %v3069 = vunpack.c.h.b16 %v1759
          %v3070 = vunpack.c.l.b16 %v1760
          %v3071 = vunpack.c.h.b16 %v1760
          %v3072 = vunpack.c.l.b16 %v1761
          %v3073 = vunpack.c.h.b16 %v1761
          %v3074 = vunpack.c.l.b16 %v1762
          %v3075 = vunpack.c.h.b16 %v1762
          %v3076 = vunpack.c.l.b16 %v1763
          %v3077 = vunpack.c.h.b16 %v1763
          %v3078 = vunpack.c.l.b16 %v1764
          %v3079 = vunpack.c.h.b16 %v1764
          %v3080 = vunpack.c.l.b16 %v1765
          %v3081 = vunpack.c.h.b16 %v1765
          %v3082 = vunpack.c.l.b16 %v1766
          %v3083 = vunpack.c.h.b16 %v1766
          %v3084 = vunpack.c.l.b16 %v1767
          %v3085 = vunpack.c.h.b16 %v1767
          %v3086 = vunpack.c.l.b16 %v1768
          %v3087 = vunpack.c.h.b16 %v1768
          %v3088 = vunpack.c.l.b16 %v1769
          %v3089 = vunpack.c.h.b16 %v1769
          %v3090 = vunpack.c.l.b16 %v1770
          %v3091 = vunpack.c.h.b16 %v1770
          %v3092 = vunpack.c.l.b16 %v1771
          %v3093 = vunpack.c.h.b16 %v1771
          %v3094 = vunpack.c.l.b16 %v1772
          %v3095 = vunpack.c.h.b16 %v1772
          %v3096 = vunpack.c.l.b16 %v1773
          %v3097 = vunpack.c.h.b16 %v1773
          %v3098 = vunpack.c.l.b16 %v1774
          %v3099 = vunpack.c.h.b16 %v1774
          %v3100 = vunpack.c.l.b16 %v1775
          %v3101 = vunpack.c.h.b16 %v1775
          %v3102 = vunpack.c.l.b16 %v1776
          %v3103 = vunpack.c.h.b16 %v1776
          %v3104 = vunpack.c.l.b16 %v1777
          %v3105 = vunpack.c.h.b16 %v1777
          %v3106 = vunpack.c.l.b16 %v1778
          %v3107 = vunpack.c.h.b16 %v1778
          %v3108 = vunpack.c.l.b16 %v1779
          %v3109 = vunpack.c.h.b16 %v1779
          %v3110 = vunpack.c.l.b16 %v1780
          %v3111 = vunpack.c.h.b16 %v1780
          %v3112 = vunpack.c.l.b16 %v1781
          %v3113 = vunpack.c.h.b16 %v1781
          %v3114 = vunpack.c.l.b16 %v1782
          %v3115 = vunpack.c.h.b16 %v1782
          %v3116 = vunpack.c.l.b16 %v1783
          %v3117 = vunpack.c.h.b16 %v1783
          %v3118 = vunpack.c.l.b16 %v1784
          %v3119 = vunpack.c.h.b16 %v1784
          %v3120 = vunpack.c.l.b16 %v1785
          %v3121 = vunpack.c.h.b16 %v1785
          %v3122 = vunpack.c.l.b16 %v1786
          %v3123 = vunpack.c.h.b16 %v1786
          %v3124 = vunpack.c.l.b16 %v1787
          %v3125 = vunpack.c.h.b16 %v1787
          %v3126 = vunpack.c.l.b16 %v1788
          %v3127 = vunpack.c.h.b16 %v1788
          %v3128 = vunpack.c.l.b16 %v1789
          %v3129 = vunpack.c.h.b16 %v1789
          %v3130 = vunpack.c.l.b16 %v1790
          %v3131 = vunpack.c.h.b16 %v1790
          %v3132 = vunpack.c.l.b16 %v1791
          %v3133 = vunpack.c.h.b16 %v1791
          %v3134 = vunpack.c.l.b16 %v1792
          %v3135 = vunpack.c.h.b16 %v1792
          %v3136 = vunpack.c.l.b16 %v1793
          %v3137 = vunpack.c.h.b16 %v1793
          %v3138 = vunpack.c.l.b16 %v1794
          %v3139 = vunpack.c.h.b16 %v1794
          %v3140 = vunpack.c.l.b16 %v1795
          %v3141 = vunpack.c.h.b16 %v1795
          %v3142 = vunpack.c.l.b16 %v1796
          %v3143 = vunpack.c.h.b16 %v1796
          %v3144 = vunpack.c.l.b16 %v1797
          %v3145 = vunpack.c.h.b16 %v1797
          %v3146 = vunpack.c.l.b16 %v1798
          %v3147 = vunpack.c.h.b16 %v1798
          %v3148 = vunpack.c.l.b16 %v1799
          %v3149 = vunpack.c.h.b16 %v1799
          %v3150 = vunpack.c.l.b16 %v1800
          %v3151 = vunpack.c.h.b16 %v1800
          %v3152 = vunpack.c.l.b16 %v1801
          %v3153 = vunpack.c.h.b16 %v1801
          %v3154 = vunpack.c.l.b16 %v1802
          %v3155 = vunpack.c.h.b16 %v1802
          %v3156 = vunpack.c.l.b16 %v1803
          %v3157 = vunpack.c.h.b16 %v1803
          %v3158 = vunpack.c.l.b16 %v1804
          %v3159 = vunpack.c.h.b16 %v1804
          %v3160 = vunpack.c.l.b16 %v1805
          %v3161 = vunpack.c.h.b16 %v1805
          %v3162 = vunpack.c.l.b16 %v1806
          %v3163 = vunpack.c.h.b16 %v1806
          %v3164 = vunpack.c.l.b16 %v1807
          %v3165 = vunpack.c.h.b16 %v1807
          %v3166 = vunpack.c.l.b16 %v1808
          %v3167 = vunpack.c.h.b16 %v1808
          %v3168 = vunpack.c.l.b16 %v1809
          %v3169 = vunpack.c.h.b16 %v1809
          %v3170 = vunpack.c.l.b16 %v1810
          %v3171 = vunpack.c.h.b16 %v1810
          %v3172 = vunpack.c.l.b16 %v1811
          %v3173 = vunpack.c.h.b16 %v1811
          %v3174 = vunpack.c.l.b16 %v1812
          %v3175 = vunpack.c.h.b16 %v1812
          %v3176 = vunpack.c.l.b16 %v1813
          %v3177 = vunpack.c.h.b16 %v1813
          %v3178 = vunpack.c.l.b16 %v1814
          %v3179 = vunpack.c.h.b16 %v1814
          %v3180 = vunpack.c.l.b16 %v1815
          %v3181 = vunpack.c.h.b16 %v1815
          %v3182 = vunpack.c.l.b16 %v1816
          %v3183 = vunpack.c.h.b16 %v1816
          %v3184 = vunpack.c.l.b16 %v1817
          %v3185 = vunpack.c.h.b16 %v1817
          %v3186 = vunpack.c.l.b16 %v1818
          %v3187 = vunpack.c.h.b16 %v1818
          %v3188 = vunpack.c.l.b16 %v1819
          %v3189 = vunpack.c.h.b16 %v1819
          %v3190 = vunpack.c.l.b16 %v1820
          %v3191 = vunpack.c.h.b16 %v1820
          %v3192 = vunpack.c.l.b16 %v1821
          %v3193 = vunpack.c.h.b16 %v1821
          %v3194 = vunpack.c.l.b16 %v1822
          %v3195 = vunpack.c.h.b16 %v1822
          %v3196 = vunpack.c.l.b16 %v1823
          %v3197 = vunpack.c.h.b16 %v1823
          %v3198 = vunpack.c.l.b16 %v1824
          %v3199 = vunpack.c.h.b16 %v1824
          %v3200 = vunpack.c.l.b16 %v1825
          %v3201 = vunpack.c.h.b16 %v1825
          %v3202 = vunpack.c.l.b16 %v1826
          %v3203 = vunpack.c.h.b16 %v1826
          %v3204 = vunpack.c.l.b16 %v1827
          %v3205 = vunpack.c.h.b16 %v1827
          %v3206 = vunpack.c.l.b16 %v1828
          %v3207 = vunpack.c.h.b16 %v1828
          %v3208 = vunpack.c.l.b16 %v1829
          %v3209 = vunpack.c.h.b16 %v1829
          %v3210 = vunpack.c.l.b16 %v1830
          %v3211 = vunpack.c.h.b16 %v1830
          %v3212 = vunpack.c.l.b16 %v1831
          %v3213 = vunpack.c.h.b16 %v1831
          %v3214 = vunpack.c.l.b16 %v1832
          %v3215 = vunpack.c.h.b16 %v1832
          %v3216 = vunpack.c.l.b16 %v1833
          %v3217 = vunpack.c.h.b16 %v1833
          %v3218 = vunpack.c.l.b16 %v1834
          %v3219 = vunpack.c.h.b16 %v1834
          %v3220 = vunpack.c.l.b16 %v1835
          %v3221 = vunpack.c.h.b16 %v1835
          %v3222 = vunpack.c.l.b16 %v1836
          %v3223 = vunpack.c.h.b16 %v1836
          %v3224 = vunpack.c.l.b16 %v1837
          %v3225 = vunpack.c.h.b16 %v1837
          %v3226 = vunpack.c.l.b16 %v1838
          %v3227 = vunpack.c.h.b16 %v1838
          %v3228 = vunpack.c.l.b16 %v1839
          %v3229 = vunpack.c.h.b16 %v1839
          %v3230 = vunpack.c.l.b16 %v1840
          %v3231 = vunpack.c.h.b16 %v1840
          %v3232 = vunpack.c.l.b16 %v1841
          %v3233 = vunpack.c.h.b16 %v1841
          %v3234 = vunpack.c.l.b16 %v1842
          %v3235 = vunpack.c.h.b16 %v1842
          %v3236 = vunpack.c.l.b16 %v1843
          %v3237 = vunpack.c.h.b16 %v1843
          %v3238 = vunpack.c.l.b16 %v1844
          %v3239 = vunpack.c.h.b16 %v1844
          %v3240 = vunpack.c.l.b16 %v1845
          %v3241 = vunpack.c.h.b16 %v1845
          %v3242 = vunpack.c.l.b16 %v1846
          %v3243 = vunpack.c.h.b16 %v1846
          %v3244 = vunpack.c.l.b16 %v1847
          %v3245 = vunpack.c.h.b16 %v1847
          %v3246 = vunpack.c.l.b16 %v1848
          %v3247 = vunpack.c.h.b16 %v1848
          %v3248 = vunpack.c.l.b16 %v1849
          %v3249 = vunpack.c.h.b16 %v1849
          %v3250 = vunpack.c.l.b16 %v1850
          %v3251 = vunpack.c.h.b16 %v1850
          %v3252 = vunpack.c.l.b16 %v1851
          %v3253 = vunpack.c.h.b16 %v1851
          %v3254 = vunpack.c.l.b16 %v1852
          %v3255 = vunpack.c.h.b16 %v1852
          %v3256 = vunpack.c.l.b16 %v1853
          %v3257 = vunpack.c.h.b16 %v1853
          %v3258 = vunpack.c.l.b16 %v1854
          %v3259 = vunpack.c.h.b16 %v1854
          %v3260 = vunpack.c.l.b16 %v1855
          %v3261 = vunpack.c.h.b16 %v1855
          %v3262 = vunpack.c.l.b16 %v1856
          %v3263 = vunpack.c.h.b16 %v1856
          %v3264 = vunpack.c.l.b16 %v1857
          %v3265 = vunpack.c.h.b16 %v1857
          %v3266 = vunpack.c.l.b16 %v1858
          %v3267 = vunpack.c.h.b16 %v1858
          %v3268 = vunpack.c.l.b16 %v1859
          %v3269 = vunpack.c.h.b16 %v1859
          %v3270 = vunpack.c.l.b16 %v1860
          %v3271 = vunpack.c.h.b16 %v1860
          %v3272 = vunpack.c.l.b16 %v1861
          %v3273 = vunpack.c.h.b16 %v1861
          %v3274 = vunpack.c.l.b16 %v1862
          %v3275 = vunpack.c.h.b16 %v1862
          %v3276 = vunpack.c.l.b16 %v1863
          %v3277 = vunpack.c.h.b16 %v1863
          %v3278 = vunpack.c.l.b16 %v1864
          %v3279 = vunpack.c.h.b16 %v1864
          %v3280 = vunpack.c.l.b16 %v1865
          %v3281 = vunpack.c.h.b16 %v1865
          %v3282 = vunpack.c.l.b16 %v1866
          %v3283 = vunpack.c.h.b16 %v1866
          %v3284 = vunpack.c.l.b16 %v1867
          %v3285 = vunpack.c.h.b16 %v1867
          %v3286 = vunpack.c.l.b16 %v1868
          %v3287 = vunpack.c.h.b16 %v1868
          %v3288 = vunpack.c.l.b16 %v1869
          %v3289 = vunpack.c.h.b16 %v1869
          %v3290 = vunpack.c.l.b16 %v1870
          %v3291 = vunpack.c.h.b16 %v1870
          %v3292 = vunpack.c.l.b16 %v1871
          %v3293 = vunpack.c.h.b16 %v1871
          %v3294 = vunpack.c.l.b16 %v1872
          %v3295 = vunpack.c.h.b16 %v1872
          %v3296 = vunpack.c.l.b16 %v1873
          %v3297 = vunpack.c.h.b16 %v1873
          %v3298 = vunpack.c.l.b16 %v1874
          %v3299 = vunpack.c.h.b16 %v1874
          %v3300 = vunpack.c.l.b16 %v1875
          %v3301 = vunpack.c.h.b16 %v1875
          %v3302 = vunpack.c.l.b16 %v1876
          %v3303 = vunpack.c.h.b16 %v1876
          %v3304 = vunpack.c.l.b16 %v1877
          %v3305 = vunpack.c.h.b16 %v1877
          %v3306 = vunpack.c.l.b16 %v1878
          %v3307 = vunpack.c.h.b16 %v1878
          %v3308 = vunpack.c.l.b16 %v1879
          %v3309 = vunpack.c.h.b16 %v1879
          %v3310 = vunpack.c.l.b16 %v1880
          %v3311 = vunpack.c.h.b16 %v1880
          %v3312 = vunpack.c.l.b16 %v1881
          %v3313 = vunpack.c.h.b16 %v1881
          %v3314 = vunpack.c.l.b16 %v1882
          %v3315 = vunpack.c.h.b16 %v1882
          %v3316 = vunpack.c.l.b16 %v1883
          %v3317 = vunpack.c.h.b16 %v1883
          %v3318 = vunpack.c.l.b16 %v1884
          %v3319 = vunpack.c.h.b16 %v1884
          %v3320 = vunpack.c.l.b16 %v1885
          %v3321 = vunpack.c.h.b16 %v1885
          %v3322 = vunpack.c.l.b16 %v1886
          %v3323 = vunpack.c.h.b16 %v1886
          %v3324 = vunpack.c.l.b16 %v1887
          %v3325 = vunpack.c.h.b16 %v1887
          %v3326 = vunpack.c.l.b16 %v1888
          %v3327 = vunpack.c.h.b16 %v1888
          %v3328 = vunpack.c.l.b16 %v1889
          %v3329 = vunpack.c.h.b16 %v1889
          %v3330 = vunpack.c.l.b16 %v1890
          %v3331 = vunpack.c.h.b16 %v1890
          %v3332 = vunpack.c.l.b16 %v1891
          %v3333 = vunpack.c.h.b16 %v1891
          %v3334 = vunpack.c.l.b16 %v1892
          %v3335 = vunpack.c.h.b16 %v1892
          %v3336 = vunpack.c.l.b16 %v1893
          %v3337 = vunpack.c.h.b16 %v1893
          %v3338 = vunpack.c.l.b16 %v1894
          %v3339 = vunpack.c.h.b16 %v1894
          %v3340 = vunpack.c.l.b16 %v1895
          %v3341 = vunpack.c.h.b16 %v1895
          %v3342 = vunpack.c.l.b16 %v1896
          %v3343 = vunpack.c.h.b16 %v1896
          %v3344 = vunpack.c.l.b16 %v1897
          %v3345 = vunpack.c.h.b16 %v1897
          %v3346 = vunpack.c.l.b16 %v1898
          %v3347 = vunpack.c.h.b16 %v1898
          %v3348 = vunpack.c.l.b16 %v1899
          %v3349 = vunpack.c.h.b16 %v1899
          %v3350 = vunpack.c.l.b16 %v1900
          %v3351 = vunpack.c.h.b16 %v1900
          %v3352 = vunpack.c.l.b16 %v1901
          %v3353 = vunpack.c.h.b16 %v1901
          %v3354 = vunpack.c.l.b16 %v1902
          %v3355 = vunpack.c.h.b16 %v1902
          %v3356 = vunpack.c.l.b16 %v1903
          %v3357 = vunpack.c.h.b16 %v1903
          %v3358 = vunpack.c.l.b16 %v1904
          %v3359 = vunpack.c.h.b16 %v1904
          %v3360 = vunpack.c.l.b16 %v1905
          %v3361 = vunpack.c.h.b16 %v1905
          %v3362 = vunpack.c.l.b16 %v1906
          %v3363 = vunpack.c.h.b16 %v1906
          %v3364 = vunpack.c.l.b16 %v1907
          %v3365 = vunpack.c.h.b16 %v1907
          %v3366 = vunpack.c.l.b16 %v1908
          %v3367 = vunpack.c.h.b16 %v1908
          %v3368 = vunpack.c.l.b16 %v1909
          %v3369 = vunpack.c.h.b16 %v1909
          %v3370 = vunpack.c.l.b16 %v1910
          %v3371 = vunpack.c.h.b16 %v1910
          %v3372 = vunpack.c.l.b16 %v1911
          %v3373 = vunpack.c.h.b16 %v1911
          %v3374 = vunpack.c.l.b16 %v1912
          %v3375 = vunpack.c.h.b16 %v1912
          %v3376 = vunpack.c.l.b16 %v1913
          %v3377 = vunpack.c.h.b16 %v1913
          %v3378 = vunpack.c.l.b16 %v1914
          %v3379 = vunpack.c.h.b16 %v1914
          %v3380 = vunpack.c.l.b16 %v1915
          %v3381 = vunpack.c.h.b16 %v1915
          %v3382 = vunpack.c.l.b16 %v1916
          %v3383 = vunpack.c.h.b16 %v1916
          %v3384 = vunpack.c.l.b16 %v1917
          %v3385 = vunpack.c.h.b16 %v1917
          %v3386 = vunpack.c.l.b16 %v1918
          %v3387 = vunpack.c.h.b16 %v1918
          %v3388 = vunpack.c.l.b16 %v1919
          %v3389 = vunpack.c.h.b16 %v1919
          %v3390 = vunpack.c.l.b16 %v1920
          %v3391 = vunpack.c.h.b16 %v1920
          %v3392 = vunpack.c.l.b16 %v1921
          %v3393 = vunpack.c.h.b16 %v1921
          %v3394 = vunpack.c.l.b16 %v1922
          %v3395 = vunpack.c.h.b16 %v1922
          %v3396 = vunpack.c.l.b16 %v1923
          %v3397 = vunpack.c.h.b16 %v1923
          %v3398 = vunpack.c.l.b16 %v1924
          %v3399 = vunpack.c.h.b16 %v1924
          %v3400 = vunpack.c.l.b16 %v1925
          %v3401 = vunpack.c.h.b16 %v1925
          %v3402 = vunpack.c.l.b16 %v1926
          %v3403 = vunpack.c.h.b16 %v1926
          %v3404 = vunpack.c.l.b16 %v1927
          %v3405 = vunpack.c.h.b16 %v1927
          %v3406 = vunpack.c.l.b16 %v1928
          %v3407 = vunpack.c.h.b16 %v1928
          %v3408 = vunpack.c.l.b16 %v1929
          %v3409 = vunpack.c.h.b16 %v1929
          %v3410 = vunpack.c.l.b16 %v1930
          %v3411 = vunpack.c.h.b16 %v1930
          %v3412 = vunpack.c.l.b16 %v1931
          %v3413 = vunpack.c.h.b16 %v1931
          %v3414 = vunpack.c.l.b16 %v1932
          %v3415 = vunpack.c.h.b16 %v1932
          %v3416 = vunpack.c.l.b16 %v1933
          %v3417 = vunpack.c.h.b16 %v1933
          %v3418 = vunpack.c.l.b16 %v1934
          %v3419 = vunpack.c.h.b16 %v1934
          %v3420 = vunpack.c.l.b16 %v1935
          %v3421 = vunpack.c.h.b16 %v1935
          %v3422 = vunpack.c.l.b16 %v1936
          %v3423 = vunpack.c.h.b16 %v1936
          %v3424 = vunpack.c.l.b16 %v1937
          %v3425 = vunpack.c.h.b16 %v1937
          %v3426 = vunpack.c.l.b16 %v1938
          %v3427 = vunpack.c.h.b16 %v1938
          %v3428 = vunpack.c.l.b16 %v1939
          %v3429 = vunpack.c.h.b16 %v1939
          %v3430 = vunpack.c.l.b16 %v1940
          %v3431 = vunpack.c.h.b16 %v1940
          %v3432 = vunpack.c.l.b16 %v1941
          %v3433 = vunpack.c.h.b16 %v1941
          %v3434 = vunpack.c.l.b16 %v1942
          %v3435 = vunpack.c.h.b16 %v1942
          %v3436 = vunpack.c.l.b16 %v1943
          %v3437 = vunpack.c.h.b16 %v1943
          %v3438 = vunpack.c.l.b16 %v1944
          %v3439 = vunpack.c.h.b16 %v1944
          %v3440 = vunpack.c.l.b16 %v1945
          %v3441 = vunpack.c.h.b16 %v1945
          %v3442 = vunpack.c.l.b16 %v1946
          %v3443 = vunpack.c.h.b16 %v1946
          %v3444 = vunpack.c.l.b16 %v1947
          %v3445 = vunpack.c.h.b16 %v1947
          %v3446 = vunpack.c.l.b16 %v1948
          %v3447 = vunpack.c.h.b16 %v1948
          %v3448 = vunpack.c.l.b16 %v1949
          %v3449 = vunpack.c.h.b16 %v1949
          %v3450 = vunpack.c.l.b16 %v1950
          %v3451 = vunpack.c.h.b16 %v1950
          %v3452 = vunpack.c.l.b16 %v1951
          %v3453 = vunpack.c.h.b16 %v1951
          %v3454 = vunpack.c.l.b16 %v1952
          %v3455 = vunpack.c.h.b16 %v1952
          %v3456 = vunpack.c.l.b16 %v1953
          %v3457 = vunpack.c.h.b16 %v1953
          %v3458 = vunpack.c.l.b16 %v1954
          %v3459 = vunpack.c.h.b16 %v1954
          %v3460 = vunpack.c.l.b16 %v1955
          %v3461 = vunpack.c.h.b16 %v1955
          %v3462 = vunpack.c.l.b16 %v1956
          %v3463 = vunpack.c.h.b16 %v1956
          %v3464 = vunpack.c.l.b16 %v1957
          %v3465 = vunpack.c.h.b16 %v1957
          %v3466 = vunpack.c.l.b16 %v1958
          %v3467 = vunpack.c.h.b16 %v1958
          %v3468 = vunpack.c.l.b16 %v1959
          %v3469 = vunpack.c.h.b16 %v1959
          %v3470 = vunpack.c.l.b16 %v1960
          %v3471 = vunpack.c.h.b16 %v1960
          %v3472 = vunpack.c.l.b16 %v1961
          %v3473 = vunpack.c.h.b16 %v1961
          %v3474 = vunpack.c.l.b16 %v1962
          %v3475 = vunpack.c.h.b16 %v1962
          %v3476 = vunpack.c.l.b16 %v1963
          %v3477 = vunpack.c.h.b16 %v1963
          %v3478 = vunpack.c.l.b16 %v1964
          %v3479 = vunpack.c.h.b16 %v1964
          %v3480 = vunpack.c.l.b16 %v1965
          %v3481 = vunpack.c.h.b16 %v1965
          %v3482 = vunpack.c.l.b16 %v1966
          %v3483 = vunpack.c.h.b16 %v1966
          %v3484 = vunpack.c.l.b16 %v1967
          %v3485 = vunpack.c.h.b16 %v1967
          %v3486 = vunpack.c.l.b16 %v1968
          %v3487 = vunpack.c.h.b16 %v1968
          %v3488 = vunpack.c.l.b16 %v1969
          %v3489 = vunpack.c.h.b16 %v1969
          %v3490 = vunpack.c.l.b16 %v1970
          %v3491 = vunpack.c.h.b16 %v1970
          %v3492 = vunpack.c.l.b16 %v1971
          %v3493 = vunpack.c.h.b16 %v1971
          %v3494 = vunpack.c.l.b16 %v1972
          %v3495 = vunpack.c.h.b16 %v1972
          %v3496 = vunpack.c.l.b16 %v1973
          %v3497 = vunpack.c.h.b16 %v1973
          %v3498 = vunpack.c.l.b16 %v1974
          %v3499 = vunpack.c.h.b16 %v1974
          %v3500 = vunpack.c.l.b16 %v1975
          %v3501 = vunpack.c.h.b16 %v1975
          %v3502 = vunpack.c.l.b16 %v1976
          %v3503 = vunpack.c.h.b16 %v1976
          %v3504 = vunpack.c.l.b16 %v1977
          %v3505 = vunpack.c.h.b16 %v1977
          %v3506 = vunpack.c.l.b16 %v1978
          %v3507 = vunpack.c.h.b16 %v1978
          %v3508 = vunpack.c.l.b16 %v1979
          %v3509 = vunpack.c.h.b16 %v1979
          %v3510 = vunpack.c.l.b16 %v1980
          %v3511 = vunpack.c.h.b16 %v1980
          %v3512 = vunpack.c.l.b16 %v1981
          %v3513 = vunpack.c.h.b16 %v1981
          %v3514 = vunpack.c.l.b16 %v1982
          %v3515 = vunpack.c.h.b16 %v1982
          %v3516 = vunpack.c.l.b16 %v1983
          %v3517 = vunpack.c.h.b16 %v1983
          %v3518 = vunpack.c.l.b16 %v1984
          %v3519 = vunpack.c.h.b16 %v1984
          %v3520 = vunpack.c.l.b16 %v1985
          %v3521 = vunpack.c.h.b16 %v1985
          %v3522 = vunpack.c.l.b16 %v1986
          %v3523 = vunpack.c.h.b16 %v1986
          %v3524 = vunpack.c.l.b16 %v1987
          %v3525 = vunpack.c.h.b16 %v1987
          %v3526 = vunpack.c.l.b16 %v1988
          %v3527 = vunpack.c.h.b16 %v1988
          %v3528 = vunpack.c.l.b16 %v1989
          %v3529 = vunpack.c.h.b16 %v1989
          %v3530 = vunpack.c.l.b16 %v1990
          %v3531 = vunpack.c.h.b16 %v1990
          %v3532 = vunpack.c.l.b16 %v1991
          %v3533 = vunpack.c.h.b16 %v1991
          %v3534 = vunpack.c.l.b16 %v1992
          %v3535 = vunpack.c.h.b16 %v1992
          %v3536 = vunpack.c.l.b16 %v1993
          %v3537 = vunpack.c.h.b16 %v1993
          %v3538 = vunpack.c.l.b16 %v1994
          %v3539 = vunpack.c.h.b16 %v1994
          %v3540 = vunpack.c.l.b16 %v1995
          %v3541 = vunpack.c.h.b16 %v1995
          %v3542 = vunpack.c.l.b16 %v1996
          %v3543 = vunpack.c.h.b16 %v1996
          %v3544 = vunpack.c.l.b16 %v1997
          %v3545 = vunpack.c.h.b16 %v1997
          %v3546 = vunpack.c.l.b16 %v1998
          %v3547 = vunpack.c.h.b16 %v1998
          %v3548 = vunpack.c.l.b16 %v1999
          %v3549 = vunpack.c.h.b16 %v1999
          %v3550 = vunpack.c.l.b16 %v2000
          %v3551 = vunpack.c.h.b16 %v2000
          %v3552 = vunpack.c.l.b16 %v2001
          %v3553 = vunpack.c.h.b16 %v2001
          %v3554 = vunpack.c.l.b16 %v2002
          %v3555 = vunpack.c.h.b16 %v2002
          %v3556 = vunpack.c.l.b16 %v2003
          %v3557 = vunpack.c.h.b16 %v2003
          %v3558 = vunpack.c.l.b16 %v2004
          %v3559 = vunpack.c.h.b16 %v2004
          %v3560 = vunpack.c.l.b16 %v2005
          %v3561 = vunpack.c.h.b16 %v2005
          %v3562 = vunpack.c.l.b16 %v2006
          %v3563 = vunpack.c.h.b16 %v2006
          %v3564 = vunpack.c.l.b16 %v2007
          %v3565 = vunpack.c.h.b16 %v2007
          %v3566 = vunpack.c.l.b16 %v2008
          %v3567 = vunpack.c.h.b16 %v2008
          %v3568 = vunpack.c.l.b16 %v2009
          %v3569 = vunpack.c.h.b16 %v2009
          %v3570 = vunpack.c.l.b16 %v2010
          %v3571 = vunpack.c.h.b16 %v2010
          %v3572 = vunpack.c.l.b16 %v2011
          %v3573 = vunpack.c.h.b16 %v2011
          %v3574 = vunpack.c.l.b16 %v2012
          %v3575 = vunpack.c.h.b16 %v2012
          %v3576 = vunpack.c.l.b16 %v2013
          %v3577 = vunpack.c.h.b16 %v2013
          %v3578 = vunpack.c.l.b16 %v2014
          %v3579 = vunpack.c.h.b16 %v2014
          %v3580 = vunpack.c.l.b16 %v2015
          %v3581 = vunpack.c.h.b16 %v2015
          %v3582 = vunpack.c.l.b16 %v2016
          %v3583 = vunpack.c.h.b16 %v2016
          %v3584 = vunpack.c.l.b16 %v2017
          %v3585 = vunpack.c.h.b16 %v2017
          %v3586 = vunpack.c.l.b16 %v2018
          %v3587 = vunpack.c.h.b16 %v2018
          %v3588 = vunpack.c.l.b16 %v2019
          %v3589 = vunpack.c.h.b16 %v2019
          %v3590 = vunpack.c.l.b16 %v2020
          %v3591 = vunpack.c.h.b16 %v2020
          %v3592 = vunpack.c.l.b16 %v2021
          %v3593 = vunpack.c.h.b16 %v2021
          %v3594 = vunpack.c.l.b16 %v2022
          %v3595 = vunpack.c.h.b16 %v2022
          %v3596 = vunpack.c.l.b16 %v2023
          %v3597 = vunpack.c.h.b16 %v2023
          %v3598 = vunpack.c.l.b16 %v2024
          %v3599 = vunpack.c.h.b16 %v2024
          %v3600 = vunpack.c.l.b16 %v2025
          %v3601 = vunpack.c.h.b16 %v2025
          %v3602 = vunpack.c.l.b16 %v2026
          %v3603 = vunpack.c.h.b16 %v2026
          %v3604 = vunpack.c.l.b16 %v2027
          %v3605 = vunpack.c.h.b16 %v2027
          %v3606 = vunpack.c.l.b16 %v2028
          %v3607 = vunpack.c.h.b16 %v2028
          %v3608 = vunpack.c.l.b16 %v2029
          %v3609 = vunpack.c.h.b16 %v2029
          %v3610 = vunpack.c.l.b16 %v2030
          %v3611 = vunpack.c.h.b16 %v2030
          %v3612 = vunpack.c.l.b16 %v2031
          %v3613 = vunpack.c.h.b16 %v2031
          %v3614 = vunpack.c.l.b16 %v2032
          %v3615 = vunpack.c.h.b16 %v2032
          %v3616 = vunpack.c.l.b16 %v2033
          %v3617 = vunpack.c.h.b16 %v2033
          %v3618 = vunpack.c.l.b16 %v2034
          %v3619 = vunpack.c.h.b16 %v2034
          %v3620 = vunpack.c.l.b16 %v2035
          %v3621 = vunpack.c.h.b16 %v2035
          %v3622 = vunpack.c.l.b16 %v2036
          %v3623 = vunpack.c.h.b16 %v2036
          %v3624 = vunpack.c.l.b16 %v2037
          %v3625 = vunpack.c.h.b16 %v2037
          %v3626 = vunpack.c.l.b16 %v2038
          %v3627 = vunpack.c.h.b16 %v2038
          %v3628 = vunpack.c.l.b16 %v2039
          %v3629 = vunpack.c.h.b16 %v2039
          %v3630 = vunpack.c.l.b16 %v2040
          %v3631 = vunpack.c.h.b16 %v2040
          %v3632 = vunpack.c.l.b16 %v2041
          %v3633 = vunpack.c.h.b16 %v2041
          %v3634 = vunpack.c.l.b16 %v2042
          %v3635 = vunpack.c.h.b16 %v2042
          %v3636 = vunpack.c.l.b16 %v2043
          %v3637 = vunpack.c.h.b16 %v2043
          %v3638 = vunpack.c.l.b16 %v2044
          %v3639 = vunpack.c.h.b16 %v2044
          %v3640 = vunpack.c.l.b16 %v2045
          %v3641 = vunpack.c.h.b16 %v2045
          %v3642 = vunpack.c.l.b16 %v2046
          %v3643 = vunpack.c.h.b16 %v2046
          %v3644 = vunpack.c.l.b16 %v2047
          %v3645 = vunpack.c.h.b16 %v2047
          %v3646 = vunpack.c.l.b16 %v2048
          %v3647 = vunpack.c.h.b16 %v2048
          %v3648 = vunpack.c.l.b16 %v2049
          %v3649 = vunpack.c.h.b16 %v2049
          %v3650 = vunpack.c.l.b16 %v2050
          %v3651 = vunpack.c.h.b16 %v2050
          %v3652 = vunpack.c.l.b16 %v2051
          %v3653 = vunpack.c.h.b16 %v2051
          %v3654 = vunpack.c.l.b16 %v2052
          %v3655 = vunpack.c.h.b16 %v2052
          %v3656 = vunpack.c.l.b16 %v2053
          %v3657 = vunpack.c.h.b16 %v2053
          %v3658 = vunpack.c.l.b16 %v2054
          %v3659 = vunpack.c.h.b16 %v2054
          %v3660 = vunpack.c.l.b16 %v2055
          %v3661 = vunpack.c.h.b16 %v2055
          %v3662 = vunpack.c.l.b16 %v2056
          %v3663 = vunpack.c.h.b16 %v2056
          %v3664 = vunpack.c.l.b16 %v2057
          %v3665 = vunpack.c.h.b16 %v2057
          %v3666 = vunpack.c.l.b16 %v2058
          %v3667 = vunpack.c.h.b16 %v2058
          %v3668 = vunpack.c.l.b16 %v2059
          %v3669 = vunpack.c.h.b16 %v2059
          %v3670 = vunpack.c.l.b16 %v2060
          %v3671 = vunpack.c.h.b16 %v2060
          %v3672 = vunpack.c.l.b16 %v2061
          %v3673 = vunpack.c.h.b16 %v2061
          %v3674 = vunpack.c.l.b16 %v2062
          %v3675 = vunpack.c.h.b16 %v2062
          %v3676 = vunpack.c.l.b16 %v2063
          %v3677 = vunpack.c.h.b16 %v2063
          %v3678 = vunpack.c.l.b16 %v2064
          %v3679 = vunpack.c.h.b16 %v2064
          %v3680 = vunpack.c.l.b16 %v2065
          %v3681 = vunpack.c.h.b16 %v2065
          %v3682 = vunpack.c.l.b16 %v2066
          %v3683 = vunpack.c.h.b16 %v2066
          %v3684 = vunpack.c.l.b16 %v2067
          %v3685 = vunpack.c.h.b16 %v2067
          %v3686 = vunpack.c.l.b16 %v2068
          %v3687 = vunpack.c.h.b16 %v2068
          %v3688 = vunpack.c.l.b16 %v2069
          %v3689 = vunpack.c.h.b16 %v2069
          %v3690 = vpack.c.b16 %v2682, %v2666
          %v3691 = vpack.c.b16 %v2683, %v2667
          %v3692 = vpack.c.b16 %v2684, %v2668
          %v3693 = vpack.c.b16 %v2685, %v2669
          %v3694 = vpack.c.b16 %v2686, %v2670
          %v3695 = vpack.c.b16 %v2687, %v2671
          %v3696 = vpack.c.b16 %v2688, %v2672
          %v3697 = vpack.c.b16 %v2689, %v2673
          %v3698 = vpack.c.b16 %v2690, %v2674
          %v3699 = vpack.c.b16 %v2691, %v2675
          %v3700 = vpack.c.b16 %v2692, %v2676
          %v3701 = vpack.c.b16 %v2693, %v2677
          %v3702 = vpack.c.b16 %v2694, %v2678
          %v3703 = vpack.c.b16 %v2695, %v2679
          %v3704 = vpack.c.b16 %v2696, %v2680
          %v3705 = vpack.c.b16 %v2697, %v2681
          %v3706 = vpack.c.b16 %v2714, %v2698
          %v3707 = vpack.c.b16 %v2715, %v2699
          %v3708 = vpack.c.b16 %v2716, %v2700
          %v3709 = vpack.c.b16 %v2717, %v2701
          %v3710 = vpack.c.b16 %v2718, %v2702
          %v3711 = vpack.c.b16 %v2719, %v2703
          %v3712 = vpack.c.b16 %v2720, %v2704
          %v3713 = vpack.c.b16 %v2721, %v2705
          %v3714 = vpack.c.b16 %v2722, %v2706
          %v3715 = vpack.c.b16 %v2723, %v2707
          %v3716 = vpack.c.b16 %v2724, %v2708
          %v3717 = vpack.c.b16 %v2725, %v2709
          %v3718 = vpack.c.b16 %v2726, %v2710
          %v3719 = vpack.c.b16 %v2727, %v2711
          %v3720 = vpack.c.b16 %v2728, %v2712
          %v3721 = vpack.c.b16 %v2729, %v2713
          %v3722 = vpack.c.b16 %v2746, %v2730
          %v3723 = vpack.c.b16 %v2747, %v2731
          %v3724 = vpack.c.b16 %v2748, %v2732
          %v3725 = vpack.c.b16 %v2749, %v2733
          %v3726 = vpack.c.b16 %v2750, %v2734
          %v3727 = vpack.c.b16 %v2751, %v2735
          %v3728 = vpack.c.b16 %v2752, %v2736
          %v3729 = vpack.c.b16 %v2753, %v2737
          %v3730 = vpack.c.b16 %v2754, %v2738
          %v3731 = vpack.c.b16 %v2755, %v2739
          %v3732 = vpack.c.b16 %v2756, %v2740
          %v3733 = vpack.c.b16 %v2757, %v2741
          %v3734 = vpack.c.b16 %v2758, %v2742
          %v3735 = vpack.c.b16 %v2759, %v2743
          %v3736 = vpack.c.b16 %v2760, %v2744
          %v3737 = vpack.c.b16 %v2761, %v2745
          %v3738 = vpack.c.b16 %v2778, %v2762
          %v3739 = vpack.c.b16 %v2779, %v2763
          %v3740 = vpack.c.b16 %v2780, %v2764
          %v3741 = vpack.c.b16 %v2781, %v2765
          %v3742 = vpack.c.b16 %v2782, %v2766
          %v3743 = vpack.c.b16 %v2783, %v2767
          %v3744 = vpack.c.b16 %v2784, %v2768
          %v3745 = vpack.c.b16 %v2785, %v2769
          %v3746 = vpack.c.b16 %v2786, %v2770
          %v3747 = vpack.c.b16 %v2787, %v2771
          %v3748 = vpack.c.b16 %v2788, %v2772
          %v3749 = vpack.c.b16 %v2789, %v2773
          %v3750 = vpack.c.b16 %v2790, %v2774
          %v3751 = vpack.c.b16 %v2791, %v2775
          %v3752 = vpack.c.b16 %v2792, %v2776
          %v3753 = vpack.c.b16 %v2793, %v2777
          %v3754 = vpack.c.b16 %v2810, %v2794
          %v3755 = vpack.c.b16 %v2811, %v2795
          %v3756 = vpack.c.b16 %v2812, %v2796
          %v3757 = vpack.c.b16 %v2813, %v2797
          %v3758 = vpack.c.b16 %v2814, %v2798
          %v3759 = vpack.c.b16 %v2815, %v2799
          %v3760 = vpack.c.b16 %v2816, %v2800
          %v3761 = vpack.c.b16 %v2817, %v2801
          %v3762 = vpack.c.b16 %v2818, %v2802
          %v3763 = vpack.c.b16 %v2819, %v2803
          %v3764 = vpack.c.b16 %v2820, %v2804
          %v3765 = vpack.c.b16 %v2821, %v2805
          %v3766 = vpack.c.b16 %v2822, %v2806
          %v3767 = vpack.c.b16 %v2823, %v2807
          %v3768 = vpack.c.b16 %v2824, %v2808
          %v3769 = vpack.c.b16 %v2825, %v2809
          %v3770 = vpack.c.b16 %v2842, %v2826
          %v3771 = vpack.c.b16 %v2843, %v2827
          %v3772 = vpack.c.b16 %v2844, %v2828
          %v3773 = vpack.c.b16 %v2845, %v2829
          %v3774 = vpack.c.b16 %v2846, %v2830
          %v3775 = vpack.c.b16 %v2847, %v2831
          %v3776 = vpack.c.b16 %v2848, %v2832
          %v3777 = vpack.c.b16 %v2849, %v2833
          %v3778 = vpack.c.b16 %v2850, %v2834
          %v3779 = vpack.c.b16 %v2851, %v2835
          %v3780 = vpack.c.b16 %v2852, %v2836
          %v3781 = vpack.c.b16 %v2853, %v2837
          %v3782 = vpack.c.b16 %v2854, %v2838
          %v3783 = vpack.c.b16 %v2855, %v2839
          %v3784 = vpack.c.b16 %v2856, %v2840
          %v3785 = vpack.c.b16 %v2857, %v2841
          %v3786 = vpack.c.b16 %v2874, %v2858
          %v3787 = vpack.c.b16 %v2875, %v2859
          %v3788 = vpack.c.b16 %v2876, %v2860
          %v3789 = vpack.c.b16 %v2877, %v2861
          %v3790 = vpack.c.b16 %v2878, %v2862
          %v3791 = vpack.c.b16 %v2879, %v2863
          %v3792 = vpack.c.b16 %v2880, %v2864
          %v3793 = vpack.c.b16 %v2881, %v2865
          %v3794 = vpack.c.b16 %v2882, %v2866
          %v3795 = vpack.c.b16 %v2883, %v2867
          %v3796 = vpack.c.b16 %v2884, %v2868
          %v3797 = vpack.c.b16 %v2885, %v2869
          %v3798 = vpack.c.b16 %v2886, %v2870
          %v3799 = vpack.c.b16 %v2887, %v2871
          %v3800 = vpack.c.b16 %v2888, %v2872
          %v3801 = vpack.c.b16 %v2889, %v2873
          %v3802 = vpack.c.b16 %v2906, %v2890
          %v3803 = vpack.c.b16 %v2907, %v2891
          %v3804 = vpack.c.b16 %v2908, %v2892
          %v3805 = vpack.c.b16 %v2909, %v2893
          %v3806 = vpack.c.b16 %v2910, %v2894
          %v3807 = vpack.c.b16 %v2911, %v2895
          %v3808 = vpack.c.b16 %v2912, %v2896
          %v3809 = vpack.c.b16 %v2913, %v2897
          %v3810 = vpack.c.b16 %v2914, %v2898
          %v3811 = vpack.c.b16 %v2915, %v2899
          %v3812 = vpack.c.b16 %v2916, %v2900
          %v3813 = vpack.c.b16 %v2917, %v2901
          %v3814 = vpack.c.b16 %v2918, %v2902
          %v3815 = vpack.c.b16 %v2919, %v2903
          %v3816 = vpack.c.b16 %v2920, %v2904
          %v3817 = vpack.c.b16 %v2921, %v2905
          %v3818 = vpack.c.b16 %v2938, %v2922
          %v3819 = vpack.c.b16 %v2939, %v2923
          %v3820 = vpack.c.b16 %v2940, %v2924
          %v3821 = vpack.c.b16 %v2941, %v2925
          %v3822 = vpack.c.b16 %v2942, %v2926
          %v3823 = vpack.c.b16 %v2943, %v2927
          %v3824 = vpack.c.b16 %v2944, %v2928
          %v3825 = vpack.c.b16 %v2945, %v2929
          %v3826 = vpack.c.b16 %v2946, %v2930
          %v3827 = vpack.c.b16 %v2947, %v2931
          %v3828 = vpack.c.b16 %v2948, %v2932
          %v3829 = vpack.c.b16 %v2949, %v2933
          %v3830 = vpack.c.b16 %v2950, %v2934
          %v3831 = vpack.c.b16 %v2951, %v2935
          %v3832 = vpack.c.b16 %v2952, %v2936
          %v3833 = vpack.c.b16 %v2953, %v2937
          %v3834 = vpack.c.b16 %v2970, %v2954
          %v3835 = vpack.c.b16 %v2971, %v2955
          %v3836 = vpack.c.b16 %v2972, %v2956
          %v3837 = vpack.c.b16 %v2973, %v2957
          %v3838 = vpack.c.b16 %v2974, %v2958
          %v3839 = vpack.c.b16 %v2975, %v2959
          %v3840 = vpack.c.b16 %v2976, %v2960
          %v3841 = vpack.c.b16 %v2977, %v2961
          %v3842 = vpack.c.b16 %v2978, %v2962
          %v3843 = vpack.c.b16 %v2979, %v2963
          %v3844 = vpack.c.b16 %v2980, %v2964
          %v3845 = vpack.c.b16 %v2981, %v2965
          %v3846 = vpack.c.b16 %v2982, %v2966
          %v3847 = vpack.c.b16 %v2983, %v2967
          %v3848 = vpack.c.b16 %v2984, %v2968
          %v3849 = vpack.c.b16 %v2985, %v2969
          %v3850 = vpack.c.b16 %v3002, %v2986
          %v3851 = vpack.c.b16 %v3003, %v2987
          %v3852 = vpack.c.b16 %v3004, %v2988
          %v3853 = vpack.c.b16 %v3005, %v2989
          %v3854 = vpack.c.b16 %v3006, %v2990
          %v3855 = vpack.c.b16 %v3007, %v2991
          %v3856 = vpack.c.b16 %v3008, %v2992
          %v3857 = vpack.c.b16 %v3009, %v2993
          %v3858 = vpack.c.b16 %v3010, %v2994
          %v3859 = vpack.c.b16 %v3011, %v2995
          %v3860 = vpack.c.b16 %v3012, %v2996
          %v3861 = vpack.c.b16 %v3013, %v2997
          %v3862 = vpack.c.b16 %v3014, %v2998
          %v3863 = vpack.c.b16 %v3015, %v2999
          %v3864 = vpack.c.b16 %v3016, %v3000
          %v3865 = vpack.c.b16 %v3017, %v3001
          %v3866 = vpack.c.b16 %v3034, %v3018
          %v3867 = vpack.c.b16 %v3035, %v3019
          %v3868 = vpack.c.b16 %v3036, %v3020
          %v3869 = vpack.c.b16 %v3037, %v3021
          %v3870 = vpack.c.b16 %v3038, %v3022
          %v3871 = vpack.c.b16 %v3039, %v3023
          %v3872 = vpack.c.b16 %v3040, %v3024
          %v3873 = vpack.c.b16 %v3041, %v3025
          %v3874 = vpack.c.b16 %v3042, %v3026
          %v3875 = vpack.c.b16 %v3043, %v3027
          %v3876 = vpack.c.b16 %v3044, %v3028
          %v3877 = vpack.c.b16 %v3045, %v3029
          %v3878 = vpack.c.b16 %v3046, %v3030
          %v3879 = vpack.c.b16 %v3047, %v3031
          %v3880 = vpack.c.b16 %v3048, %v3032
          %v3881 = vpack.c.b16 %v3049, %v3033
          %v3882 = vpack.c.b16 %v3066, %v3050
          %v3883 = vpack.c.b16 %v3067, %v3051
          %v3884 = vpack.c.b16 %v3068, %v3052
          %v3885 = vpack.c.b16 %v3069, %v3053
          %v3886 = vpack.c.b16 %v3070, %v3054
          %v3887 = vpack.c.b16 %v3071, %v3055
          %v3888 = vpack.c.b16 %v3072, %v3056
          %v3889 = vpack.c.b16 %v3073, %v3057
          %v3890 = vpack.c.b16 %v3074, %v3058
          %v3891 = vpack.c.b16 %v3075, %v3059
          %v3892 = vpack.c.b16 %v3076, %v3060
          %v3893 = vpack.c.b16 %v3077, %v3061
          %v3894 = vpack.c.b16 %v3078, %v3062
          %v3895 = vpack.c.b16 %v3079, %v3063
          %v3896 = vpack.c.b16 %v3080, %v3064
          %v3897 = vpack.c.b16 %v3081, %v3065
          %v3898 = vpack.c.b16 %v3098, %v3082
          %v3899 = vpack.c.b16 %v3099, %v3083
          %v3900 = vpack.c.b16 %v3100, %v3084
          %v3901 = vpack.c.b16 %v3101, %v3085
          %v3902 = vpack.c.b16 %v3102, %v3086
          %v3903 = vpack.c.b16 %v3103, %v3087
          %v3904 = vpack.c.b16 %v3104, %v3088
          %v3905 = vpack.c.b16 %v3105, %v3089
          %v3906 = vpack.c.b16 %v3106, %v3090
          %v3907 = vpack.c.b16 %v3107, %v3091
          %v3908 = vpack.c.b16 %v3108, %v3092
          %v3909 = vpack.c.b16 %v3109, %v3093
          %v3910 = vpack.c.b16 %v3110, %v3094
          %v3911 = vpack.c.b16 %v3111, %v3095
          %v3912 = vpack.c.b16 %v3112, %v3096
          %v3913 = vpack.c.b16 %v3113, %v3097
          %v3914 = vpack.c.b16 %v3130, %v3114
          %v3915 = vpack.c.b16 %v3131, %v3115
          %v3916 = vpack.c.b16 %v3132, %v3116
          %v3917 = vpack.c.b16 %v3133, %v3117
          %v3918 = vpack.c.b16 %v3134, %v3118
          %v3919 = vpack.c.b16 %v3135, %v3119
          %v3920 = vpack.c.b16 %v3136, %v3120
          %v3921 = vpack.c.b16 %v3137, %v3121
          %v3922 = vpack.c.b16 %v3138, %v3122
          %v3923 = vpack.c.b16 %v3139, %v3123
          %v3924 = vpack.c.b16 %v3140, %v3124
          %v3925 = vpack.c.b16 %v3141, %v3125
          %v3926 = vpack.c.b16 %v3142, %v3126
          %v3927 = vpack.c.b16 %v3143, %v3127
          %v3928 = vpack.c.b16 %v3144, %v3128
          %v3929 = vpack.c.b16 %v3145, %v3129
          %v3930 = vpack.c.b16 %v3162, %v3146
          %v3931 = vpack.c.b16 %v3163, %v3147
          %v3932 = vpack.c.b16 %v3164, %v3148
          %v3933 = vpack.c.b16 %v3165, %v3149
          %v3934 = vpack.c.b16 %v3166, %v3150
          %v3935 = vpack.c.b16 %v3167, %v3151
          %v3936 = vpack.c.b16 %v3168, %v3152
          %v3937 = vpack.c.b16 %v3169, %v3153
          %v3938 = vpack.c.b16 %v3170, %v3154
          %v3939 = vpack.c.b16 %v3171, %v3155
          %v3940 = vpack.c.b16 %v3172, %v3156
          %v3941 = vpack.c.b16 %v3173, %v3157
          %v3942 = vpack.c.b16 %v3174, %v3158
          %v3943 = vpack.c.b16 %v3175, %v3159
          %v3944 = vpack.c.b16 %v3176, %v3160
          %v3945 = vpack.c.b16 %v3177, %v3161
          %v3946 = vpack.c.b16 %v3194, %v3178
          %v3947 = vpack.c.b16 %v3195, %v3179
          %v3948 = vpack.c.b16 %v3196, %v3180
          %v3949 = vpack.c.b16 %v3197, %v3181
          %v3950 = vpack.c.b16 %v3198, %v3182
          %v3951 = vpack.c.b16 %v3199, %v3183
          %v3952 = vpack.c.b16 %v3200, %v3184
          %v3953 = vpack.c.b16 %v3201, %v3185
          %v3954 = vpack.c.b16 %v3202, %v3186
          %v3955 = vpack.c.b16 %v3203, %v3187
          %v3956 = vpack.c.b16 %v3204, %v3188
          %v3957 = vpack.c.b16 %v3205, %v3189
          %v3958 = vpack.c.b16 %v3206, %v3190
          %v3959 = vpack.c.b16 %v3207, %v3191
          %v3960 = vpack.c.b16 %v3208, %v3192
          %v3961 = vpack.c.b16 %v3209, %v3193
          %v3962 = vpack.c.b16 %v3226, %v3210
          %v3963 = vpack.c.b16 %v3227, %v3211
          %v3964 = vpack.c.b16 %v3228, %v3212
          %v3965 = vpack.c.b16 %v3229, %v3213
          %v3966 = vpack.c.b16 %v3230, %v3214
          %v3967 = vpack.c.b16 %v3231, %v3215
          %v3968 = vpack.c.b16 %v3232, %v3216
          %v3969 = vpack.c.b16 %v3233, %v3217
          %v3970 = vpack.c.b16 %v3234, %v3218
          %v3971 = vpack.c.b16 %v3235, %v3219
          %v3972 = vpack.c.b16 %v3236, %v3220
          %v3973 = vpack.c.b16 %v3237, %v3221
          %v3974 = vpack.c.b16 %v3238, %v3222
          %v3975 = vpack.c.b16 %v3239, %v3223
          %v3976 = vpack.c.b16 %v3240, %v3224
          %v3977 = vpack.c.b16 %v3241, %v3225
          %v3978 = vpack.c.b16 %v3258, %v3242
          %v3979 = vpack.c.b16 %v3259, %v3243
          %v3980 = vpack.c.b16 %v3260, %v3244
          %v3981 = vpack.c.b16 %v3261, %v3245
          %v3982 = vpack.c.b16 %v3262, %v3246
          %v3983 = vpack.c.b16 %v3263, %v3247
          %v3984 = vpack.c.b16 %v3264, %v3248
          %v3985 = vpack.c.b16 %v3265, %v3249
          %v3986 = vpack.c.b16 %v3266, %v3250
          %v3987 = vpack.c.b16 %v3267, %v3251
          %v3988 = vpack.c.b16 %v3268, %v3252
          %v3989 = vpack.c.b16 %v3269, %v3253
          %v3990 = vpack.c.b16 %v3270, %v3254
          %v3991 = vpack.c.b16 %v3271, %v3255
          %v3992 = vpack.c.b16 %v3272, %v3256
          %v3993 = vpack.c.b16 %v3273, %v3257
          %v3994 = vpack.c.b16 %v3290, %v3274
          %v3995 = vpack.c.b16 %v3291, %v3275
          %v3996 = vpack.c.b16 %v3292, %v3276
          %v3997 = vpack.c.b16 %v3293, %v3277
          %v3998 = vpack.c.b16 %v3294, %v3278
          %v3999 = vpack.c.b16 %v3295, %v3279
          %v4000 = vpack.c.b16 %v3296, %v3280
          %v4001 = vpack.c.b16 %v3297, %v3281
          %v4002 = vpack.c.b16 %v3298, %v3282
          %v4003 = vpack.c.b16 %v3299, %v3283
          %v4004 = vpack.c.b16 %v3300, %v3284
          %v4005 = vpack.c.b16 %v3301, %v3285
          %v4006 = vpack.c.b16 %v3302, %v3286
          %v4007 = vpack.c.b16 %v3303, %v3287
          %v4008 = vpack.c.b16 %v3304, %v3288
          %v4009 = vpack.c.b16 %v3305, %v3289
          %v4010 = vpack.c.b16 %v3322, %v3306
          %v4011 = vpack.c.b16 %v3323, %v3307
          %v4012 = vpack.c.b16 %v3324, %v3308
          %v4013 = vpack.c.b16 %v3325, %v3309
          %v4014 = vpack.c.b16 %v3326, %v3310
          %v4015 = vpack.c.b16 %v3327, %v3311
          %v4016 = vpack.c.b16 %v3328, %v3312
          %v4017 = vpack.c.b16 %v3329, %v3313
          %v4018 = vpack.c.b16 %v3330, %v3314
          %v4019 = vpack.c.b16 %v3331, %v3315
          %v4020 = vpack.c.b16 %v3332, %v3316
          %v4021 = vpack.c.b16 %v3333, %v3317
          %v4022 = vpack.c.b16 %v3334, %v3318
          %v4023 = vpack.c.b16 %v3335, %v3319
          %v4024 = vpack.c.b16 %v3336, %v3320
          %v4025 = vpack.c.b16 %v3337, %v3321
          %v4026 = vpack.c.b16 %v3354, %v3338
          %v4027 = vpack.c.b16 %v3355, %v3339
          %v4028 = vpack.c.b16 %v3356, %v3340
          %v4029 = vpack.c.b16 %v3357, %v3341
          %v4030 = vpack.c.b16 %v3358, %v3342
          %v4031 = vpack.c.b16 %v3359, %v3343
          %v4032 = vpack.c.b16 %v3360, %v3344
          %v4033 = vpack.c.b16 %v3361, %v3345
          %v4034 = vpack.c.b16 %v3362, %v3346
          %v4035 = vpack.c.b16 %v3363, %v3347
          %v4036 = vpack.c.b16 %v3364, %v3348
          %v4037 = vpack.c.b16 %v3365, %v3349
          %v4038 = vpack.c.b16 %v3366, %v3350
          %v4039 = vpack.c.b16 %v3367, %v3351
          %v4040 = vpack.c.b16 %v3368, %v3352
          %v4041 = vpack.c.b16 %v3369, %v3353
          %v4042 = vpack.c.b16 %v3386, %v3370
          %v4043 = vpack.c.b16 %v3387, %v3371
          %v4044 = vpack.c.b16 %v3388, %v3372
          %v4045 = vpack.c.b16 %v3389, %v3373
          %v4046 = vpack.c.b16 %v3390, %v3374
          %v4047 = vpack.c.b16 %v3391, %v3375
          %v4048 = vpack.c.b16 %v3392, %v3376
          %v4049 = vpack.c.b16 %v3393, %v3377
          %v4050 = vpack.c.b16 %v3394, %v3378
          %v4051 = vpack.c.b16 %v3395, %v3379
          %v4052 = vpack.c.b16 %v3396, %v3380
          %v4053 = vpack.c.b16 %v3397, %v3381
          %v4054 = vpack.c.b16 %v3398, %v3382
          %v4055 = vpack.c.b16 %v3399, %v3383
          %v4056 = vpack.c.b16 %v3400, %v3384
          %v4057 = vpack.c.b16 %v3401, %v3385
          %v4058 = vpack.c.b16 %v3418, %v3402
          %v4059 = vpack.c.b16 %v3419, %v3403
          %v4060 = vpack.c.b16 %v3420, %v3404
          %v4061 = vpack.c.b16 %v3421, %v3405
          %v4062 = vpack.c.b16 %v3422, %v3406
          %v4063 = vpack.c.b16 %v3423, %v3407
          %v4064 = vpack.c.b16 %v3424, %v3408
          %v4065 = vpack.c.b16 %v3425, %v3409
          %v4066 = vpack.c.b16 %v3426, %v3410
          %v4067 = vpack.c.b16 %v3427, %v3411
          %v4068 = vpack.c.b16 %v3428, %v3412
          %v4069 = vpack.c.b16 %v3429, %v3413
          %v4070 = vpack.c.b16 %v3430, %v3414
          %v4071 = vpack.c.b16 %v3431, %v3415
          %v4072 = vpack.c.b16 %v3432, %v3416
          %v4073 = vpack.c.b16 %v3433, %v3417
          %v4074 = vpack.c.b16 %v3450, %v3434
          %v4075 = vpack.c.b16 %v3451, %v3435
          %v4076 = vpack.c.b16 %v3452, %v3436
          %v4077 = vpack.c.b16 %v3453, %v3437
          %v4078 = vpack.c.b16 %v3454, %v3438
          %v4079 = vpack.c.b16 %v3455, %v3439
          %v4080 = vpack.c.b16 %v3456, %v3440
          %v4081 = vpack.c.b16 %v3457, %v3441
          %v4082 = vpack.c.b16 %v3458, %v3442
          %v4083 = vpack.c.b16 %v3459, %v3443
          %v4084 = vpack.c.b16 %v3460, %v3444
          %v4085 = vpack.c.b16 %v3461, %v3445
          %v4086 = vpack.c.b16 %v3462, %v3446
          %v4087 = vpack.c.b16 %v3463, %v3447
          %v4088 = vpack.c.b16 %v3464, %v3448
          %v4089 = vpack.c.b16 %v3465, %v3449
          %v4090 = vpack.c.b16 %v3482, %v3466
          %v4091 = vpack.c.b16 %v3483, %v3467
          %v4092 = vpack.c.b16 %v3484, %v3468
          %v4093 = vpack.c.b16 %v3485, %v3469
          %v4094 = vpack.c.b16 %v3486, %v3470
          %v4095 = vpack.c.b16 %v3487, %v3471
          %v4096 = vpack.c.b16 %v3488, %v3472
          %v4097 = vpack.c.b16 %v3489, %v3473
          %v4098 = vpack.c.b16 %v3490, %v3474
          %v4099 = vpack.c.b16 %v3491, %v3475
          %v4100 = vpack.c.b16 %v3492, %v3476
          %v4101 = vpack.c.b16 %v3493, %v3477
          %v4102 = vpack.c.b16 %v3494, %v3478
          %v4103 = vpack.c.b16 %v3495, %v3479
          %v4104 = vpack.c.b16 %v3496, %v3480
          %v4105 = vpack.c.b16 %v3497, %v3481
          %v4106 = vpack.c.b16 %v3514, %v3498
          %v4107 = vpack.c.b16 %v3515, %v3499
          %v4108 = vpack.c.b16 %v3516, %v3500
          %v4109 = vpack.c.b16 %v3517, %v3501
          %v4110 = vpack.c.b16 %v3518, %v3502
          %v4111 = vpack.c.b16 %v3519, %v3503
          %v4112 = vpack.c.b16 %v3520, %v3504
          %v4113 = vpack.c.b16 %v3521, %v3505
          %v4114 = vpack.c.b16 %v3522, %v3506
          %v4115 = vpack.c.b16 %v3523, %v3507
          %v4116 = vpack.c.b16 %v3524, %v3508
          %v4117 = vpack.c.b16 %v3525, %v3509
          %v4118 = vpack.c.b16 %v3526, %v3510
          %v4119 = vpack.c.b16 %v3527, %v3511
          %v4120 = vpack.c.b16 %v3528, %v3512
          %v4121 = vpack.c.b16 %v3529, %v3513
          %v4122 = vpack.c.b16 %v3546, %v3530
          %v4123 = vpack.c.b16 %v3547, %v3531
          %v4124 = vpack.c.b16 %v3548, %v3532
          %v4125 = vpack.c.b16 %v3549, %v3533
          %v4126 = vpack.c.b16 %v3550, %v3534
          %v4127 = vpack.c.b16 %v3551, %v3535
          %v4128 = vpack.c.b16 %v3552, %v3536
          %v4129 = vpack.c.b16 %v3553, %v3537
          %v4130 = vpack.c.b16 %v3554, %v3538
          %v4131 = vpack.c.b16 %v3555, %v3539
          %v4132 = vpack.c.b16 %v3556, %v3540
          %v4133 = vpack.c.b16 %v3557, %v3541
          %v4134 = vpack.c.b16 %v3558, %v3542
          %v4135 = vpack.c.b16 %v3559, %v3543
          %v4136 = vpack.c.b16 %v3560, %v3544
          %v4137 = vpack.c.b16 %v3561, %v3545
          %v4138 = vpack.c.b16 %v3578, %v3562
          %v4139 = vpack.c.b16 %v3579, %v3563
          %v4140 = vpack.c.b16 %v3580, %v3564
          %v4141 = vpack.c.b16 %v3581, %v3565
          %v4142 = vpack.c.b16 %v3582, %v3566
          %v4143 = vpack.c.b16 %v3583, %v3567
          %v4144 = vpack.c.b16 %v3584, %v3568
          %v4145 = vpack.c.b16 %v3585, %v3569
          %v4146 = vpack.c.b16 %v3586, %v3570
          %v4147 = vpack.c.b16 %v3587, %v3571
          %v4148 = vpack.c.b16 %v3588, %v3572
          %v4149 = vpack.c.b16 %v3589, %v3573
          %v4150 = vpack.c.b16 %v3590, %v3574
          %v4151 = vpack.c.b16 %v3591, %v3575
          %v4152 = vpack.c.b16 %v3592, %v3576
          %v4153 = vpack.c.b16 %v3593, %v3577
          %v4154 = vpack.c.b16 %v3610, %v3594
          %v4155 = vpack.c.b16 %v3611, %v3595
          %v4156 = vpack.c.b16 %v3612, %v3596
          %v4157 = vpack.c.b16 %v3613, %v3597
          %v4158 = vpack.c.b16 %v3614, %v3598
          %v4159 = vpack.c.b16 %v3615, %v3599
          %v4160 = vpack.c.b16 %v3616, %v3600
          %v4161 = vpack.c.b16 %v3617, %v3601
          %v4162 = vpack.c.b16 %v3618, %v3602
          %v4163 = vpack.c.b16 %v3619, %v3603
          %v4164 = vpack.c.b16 %v3620, %v3604
          %v4165 = vpack.c.b16 %v3621, %v3605
          %v4166 = vpack.c.b16 %v3622, %v3606
          %v4167 = vpack.c.b16 %v3623, %v3607
          %v4168 = vpack.c.b16 %v3624, %v3608
          %v4169 = vpack.c.b16 %v3625, %v3609
          %v4170 = vpack.c.b16 %v3642, %v3626
          %v4171 = vpack.c.b16 %v3643, %v3627
          %v4172 = vpack.c.b16 %v3644, %v3628
          %v4173 = vpack.c.b16 %v3645, %v3629
          %v4174 = vpack.c.b16 %v3646, %v3630
          %v4175 = vpack.c.b16 %v3647, %v3631
          %v4176 = vpack.c.b16 %v3648, %v3632
          %v4177 = vpack.c.b16 %v3649, %v3633
          %v4178 = vpack.c.b16 %v3650, %v3634
          %v4179 = vpack.c.b16 %v3651, %v3635
          %v4180 = vpack.c.b16 %v3652, %v3636
          %v4181 = vpack.c.b16 %v3653, %v3637
          %v4182 = vpack.c.b16 %v3654, %v3638
          %v4183 = vpack.c.b16 %v3655, %v3639
          %v4184 = vpack.c.b16 %v3656, %v3640
          %v4185 = vpack.c.b16 %v3657, %v3641
          %v4186 = vpack.c.b16 %v3674, %v3658
          %v4187 = vpack.c.b16 %v3675, %v3659
          %v4188 = vpack.c.b16 %v3676, %v3660
          %v4189 = vpack.c.b16 %v3677, %v3661
          %v4190 = vpack.c.b16 %v3678, %v3662
          %v4191 = vpack.c.b16 %v3679, %v3663
          %v4192 = vpack.c.b16 %v3680, %v3664
          %v4193 = vpack.c.b16 %v3681, %v3665
          %v4194 = vpack.c.b16 %v3682, %v3666
          %v4195 = vpack.c.b16 %v3683, %v3667
          %v4196 = vpack.c.b16 %v3684, %v3668
          %v4197 = vpack.c.b16 %v3685, %v3669
          %v4198 = vpack.c.b16 %v3686, %v3670
          %v4199 = vpack.c.b16 %v3687, %v3671
          %v4200 = vpack.c.b16 %v3688, %v3672
          %v4201 = vpack.c.b16 %v3689, %v3673
          %4714 = vmatprep.subr.bf16.mxu0 %v3691
          %4715 = vmatpush1.bf16.msra.mxu0 %v3690
          %4716 = vmatprep.subr.bf16.mxu0 %v3707
          %4717 = vmatpush1.bf16.msra.mxu0 %v3706
          %4718 = vmatprep.subr.bf16.mxu0 %v3723
          %4719 = vmatpush1.bf16.msra.mxu0 %v3722
          %4720 = vmatprep.subr.bf16.mxu0 %v3739
          %4721 = vmatpush1.bf16.msra.mxu0 %v3738
          %4722 = vmatprep.subr.bf16.mxu0 %v3755
          %4723 = vmatpush1.bf16.msra.mxu0 %v3754
          %4724 = vmatprep.subr.bf16.mxu0 %v3771
          %4725 = vmatpush1.bf16.msra.mxu0 %v3770
          %4726 = vmatprep.subr.bf16.mxu0 %v3787
          %4727 = vmatpush1.bf16.msra.mxu0 %v3786
          %4728 = vmatprep.subr.bf16.mxu0 %v3803
          %4729 = vmatpush1.bf16.msra.mxu0 %v3802
          %4730 = vmatprep.subr.bf16.mxu0 %v3819
          %4731 = vmatpush1.bf16.msra.mxu0 %v3818
          %4732 = vmatprep.subr.bf16.mxu0 %v3835
          %4733 = vmatpush1.bf16.msra.mxu0 %v3834
          %4734 = vmatprep.subr.bf16.mxu0 %v3851
          %4735 = vmatpush1.bf16.msra.mxu0 %v3850
          %4736 = vmatprep.subr.bf16.mxu0 %v3867
          %4737 = vmatpush1.bf16.msra.mxu0 %v3866
          %4738 = vmatprep.subr.bf16.mxu0 %v3883
          %4739 = vmatpush1.bf16.msra.mxu0 %v3882
          %4740 = vmatprep.subr.bf16.mxu0 %v3899
          %4741 = vmatpush1.bf16.msra.mxu0 %v3898
          %4742 = vmatprep.subr.bf16.mxu0 %v3915
          %4743 = vmatpush1.bf16.msra.mxu0 %v3914
          %4744 = vmatprep.subr.bf16.mxu0 %v3931
          %4745 = vmatpush1.bf16.msra.mxu0 %v3930
          %4746 = vmatprep.mubr.bf16.mxu0 %v1555
          %4747 = vmatmul.mubr.bf16.gmra.mrb[0].mxu0 %v1554
          %v4748 = vpop.f32.mrb[0].mxu0
          %v4749 = vadd.f32 %v2077, %v4748
          %v4750 = vpop.f32.mrb[0].mxu0
          %v4751 = vadd.f32 %v2081, %v4750
          %v4752 = vpop.f32.mrb[0].mxu0
          %v4753 = vadd.f32 %v2077, %v4752
          %v4754 = vpop.f32.mrb[0].mxu0
          %v4755 = vadd.f32 %v2081, %v4754
          %4756 = vdwg.mxu0
          %4757 = vmatprep.subr.bf16.mxu0 %v3947
          %4758 = vmatpush1.bf16.msra.mxu0 %v3946
          %4759 = vmatprep.subr.bf16.mxu0 %v3963
          %4760 = vmatpush1.bf16.msra.mxu0 %v3962
          %4761 = vmatprep.subr.bf16.mxu0 %v3979
          %4762 = vmatpush1.bf16.msra.mxu0 %v3978
          %4763 = vmatprep.subr.bf16.mxu0 %v3995
          %4764 = vmatpush1.bf16.msra.mxu0 %v3994
          %4765 = vmatprep.subr.bf16.mxu0 %v4011
          %4766 = vmatpush1.bf16.msra.mxu0 %v4010
          %4767 = vmatprep.subr.bf16.mxu0 %v4027
          %4768 = vmatpush1.bf16.msra.mxu0 %v4026
          %4769 = vmatprep.subr.bf16.mxu0 %v4043
          %4770 = vmatpush1.bf16.msra.mxu0 %v4042
          %4771 = vmatprep.subr.bf16.mxu0 %v4059
          %4772 = vmatpush1.bf16.msra.mxu0 %v4058
          %4773 = vmatprep.subr.bf16.mxu0 %v4075
          %4774 = vmatpush1.bf16.msra.mxu0 %v4074
          %4775 = vmatprep.subr.bf16.mxu0 %v4091
          %4776 = vmatpush1.bf16.msra.mxu0 %v4090
          %4777 = vmatprep.subr.bf16.mxu0 %v4107
          %4778 = vmatpush1.bf16.msra.mxu0 %v4106
          %4779 = vmatprep.subr.bf16.mxu0 %v4123
          %4780 = vmatpush1.bf16.msra.mxu0 %v4122
          %4781 = vmatprep.subr.bf16.mxu0 %v4139
          %4782 = vmatpush1.bf16.msra.mxu0 %v4138
          %4783 = vmatprep.subr.bf16.mxu0 %v4155
          %4784 = vmatpush1.bf16.msra.mxu0 %v4154
          %4785 = vmatprep.subr.bf16.mxu0 %v4171
          %4786 = vmatpush1.bf16.msra.mxu0 %v4170
          %4787 = vmatprep.subr.bf16.mxu0 %v4187
          %4788 = vmatpush1.bf16.msra.mxu0 %v4186
          %4789 = vmatprep.mubr.bf16.mxu0 %v1557
          %4790 = vmatmul.mubr.bf16.gmra.mrb[0].mxu0 %v1556
          %v4791 = vpop.f32.mrb[0].mxu0
          %v4792 = vadd.f32 %v4749, %v4791
          %v4793 = vpop.f32.mrb[0].mxu0
          %v4794 = vadd.f32 %v4751, %v4793
          %v4795 = vpop.f32.mrb[0].mxu0
          %v4796 = vadd.f32 %v4753, %v4795
          %v4797 = vpop.f32.mrb[0].mxu0
          %v4798 = vadd.f32 %v4755, %v4797
          %4799 = vdwg.mxu0
          %4800 = vmatprep.subr.bf16.mxu0 %v3693
          %4801 = vmatpush1.bf16.msra.mxu0 %v3692
          %4802 = vmatprep.subr.bf16.mxu0 %v3709
          %4803 = vmatpush1.bf16.msra.mxu0 %v3708
          %4804 = vmatprep.subr.bf16.mxu0 %v3725
          %4805 = vmatpush1.bf16.msra.mxu0 %v3724
          %4806 = vmatprep.subr.bf16.mxu0 %v3741
          %4807 = vmatpush1.bf16.msra.mxu0 %v3740
          %4808 = vmatprep.subr.bf16.mxu0 %v3757
          %4809 = vmatpush1.bf16.msra.mxu0 %v3756
          %4810 = vmatprep.subr.bf16.mxu0 %v3773
          %4811 = vmatpush1.bf16.msra.mxu0 %v3772
          %4812 = vmatprep.subr.bf16.mxu0 %v3789
          %4813 = vmatpush1.bf16.msra.mxu0 %v3788
          %4814 = vmatprep.subr.bf16.mxu0 %v3805
          %4815 = vmatpush1.bf16.msra.mxu0 %v3804
          %4816 = vmatprep.subr.bf16.mxu0 %v3821
          %4817 = vmatpush1.bf16.msra.mxu0 %v3820
          %4818 = vmatprep.subr.bf16.mxu0 %v3837
          %4819 = vmatpush1.bf16.msra.mxu0 %v3836
          %4820 = vmatprep.subr.bf16.mxu0 %v3853
          %4821 = vmatpush1.bf16.msra.mxu0 %v3852
          %4822 = vmatprep.subr.bf16.mxu0 %v3869
          %4823 = vmatpush1.bf16.msra.mxu0 %v3868
          %4824 = vmatprep.subr.bf16.mxu0 %v3885
          %4825 = vmatpush1.bf16.msra.mxu0 %v3884
          %4826 = vmatprep.subr.bf16.mxu0 %v3901
          %4827 = vmatpush1.bf16.msra.mxu0 %v3900
          %4828 = vmatprep.subr.bf16.mxu0 %v3917
          %4829 = vmatpush1.bf16.msra.mxu0 %v3916
          %4830 = vmatprep.subr.bf16.mxu0 %v3933
          %4831 = vmatpush1.bf16.msra.mxu0 %v3932
          %4832 = vmatprep.mubr.bf16.mxu0 %v1555
          %4833 = vmatmul.mubr.bf16.gmra.mrb[0].mxu0 %v1554
          %v4834 = vpop.f32.mrb[0].mxu0
          %v4835 = vadd.f32 %v2085, %v4834
          %v4836 = vpop.f32.mrb[0].mxu0
          %v4837 = vadd.f32 %v2089, %v4836
          %v4838 = vpop.f32.mrb[0].mxu0
          %v4839 = vadd.f32 %v2085, %v4838
          %v4840 = vpop.f32.mrb[0].mxu0
          %v4841 = vadd.f32 %v2089, %v4840
          %4842 = vdwg.mxu0
          %4843 = vmatprep.subr.bf16.mxu0 %v3949
          %4844 = vmatpush1.bf16.msra.mxu0 %v3948
          %4845 = vmatprep.subr.bf16.mxu0 %v3965
          %4846 = vmatpush1.bf16.msra.mxu0 %v3964
          %4847 = vmatprep.subr.bf16.mxu0 %v3981
          %4848 = vmatpush1.bf16.msra.mxu0 %v3980
          %4849 = vmatprep.subr.bf16.mxu0 %v3997
          %4850 = vmatpush1.bf16.msra.mxu0 %v3996
          %4851 = vmatprep.subr.bf16.mxu0 %v4013
          %4852 = vmatpush1.bf16.msra.mxu0 %v4012
          %4853 = vmatprep.subr.bf16.mxu0 %v4029
          %4854 = vmatpush1.bf16.msra.mxu0 %v4028
          %4855 = vmatprep.subr.bf16.mxu0 %v4045
          %4856 = vmatpush1.bf16.msra.mxu0 %v4044
          %4857 = vmatprep.subr.bf16.mxu0 %v4061
          %4858 = vmatpush1.bf16.msra.mxu0 %v4060
          %4859 = vmatprep.subr.bf16.mxu0 %v4077
          %4860 = vmatpush1.bf16.msra.mxu0 %v4076
          %4861 = vmatprep.subr.bf16.mxu0 %v4093
          %4862 = vmatpush1.bf16.msra.mxu0 %v4092
          %4863 = vmatprep.subr.bf16.mxu0 %v4109
          %4864 = vmatpush1.bf16.msra.mxu0 %v4108
          %4865 = vmatprep.subr.bf16.mxu0 %v4125
          %4866 = vmatpush1.bf16.msra.mxu0 %v4124
          %4867 = vmatprep.subr.bf16.mxu0 %v4141
          %4868 = vmatpush1.bf16.msra.mxu0 %v4140
          %4869 = vmatprep.subr.bf16.mxu0 %v4157
          %4870 = vmatpush1.bf16.msra.mxu0 %v4156
          %4871 = vmatprep.subr.bf16.mxu0 %v4173
          %4872 = vmatpush1.bf16.msra.mxu0 %v4172
          %4873 = vmatprep.subr.bf16.mxu0 %v4189
          %4874 = vmatpush1.bf16.msra.mxu0 %v4188
          %4875 = vmatprep.mubr.bf16.mxu0 %v1557
          %4876 = vmatmul.mubr.bf16.gmra.mrb[0].mxu0 %v1556
          %v4877 = vpop.f32.mrb[0].mxu0
          %v4878 = vadd.f32 %v4835, %v4877
          %v4879 = vpop.f32.mrb[0].mxu0
          %v4880 = vadd.f32 %v4837, %v4879
          %v4881 = vpop.f32.mrb[0].mxu0
          %v4882 = vadd.f32 %v4839, %v4881
          %v4883 = vpop.f32.mrb[0].mxu0
          %v4884 = vadd.f32 %v4841, %v4883
          %4885 = vdwg.mxu0
          %4886 = vmatprep.subr.bf16.mxu0 %v3695
          %4887 = vmatpush1.bf16.msra.mxu0 %v3694
          %4888 = vmatprep.subr.bf16.mxu0 %v3711
          %4889 = vmatpush1.bf16.msra.mxu0 %v3710
          %4890 = vmatprep.subr.bf16.mxu0 %v3727
          %4891 = vmatpush1.bf16.msra.mxu0 %v3726
          %4892 = vmatprep.subr.bf16.mxu0 %v3743
          %4893 = vmatpush1.bf16.msra.mxu0 %v3742
          %4894 = vmatprep.subr.bf16.mxu0 %v3759
          %4895 = vmatpush1.bf16.msra.mxu0 %v3758
          %4896 = vmatprep.subr.bf16.mxu0 %v3775
          %4897 = vmatpush1.bf16.msra.mxu0 %v3774
          %4898 = vmatprep.subr.bf16.mxu0 %v3791
          %4899 = vmatpush1.bf16.msra.mxu0 %v3790
          %4900 = vmatprep.subr.bf16.mxu0 %v3807
          %4901 = vmatpush1.bf16.msra.mxu0 %v3806
          %4902 = vmatprep.subr.bf16.mxu0 %v3823
          %4903 = vmatpush1.bf16.msra.mxu0 %v3822
          %4904 = vmatprep.subr.bf16.mxu0 %v3839
          %4905 = vmatpush1.bf16.msra.mxu0 %v3838
          %4906 = vmatprep.subr.bf16.mxu0 %v3855
          %4907 = vmatpush1.bf16.msra.mxu0 %v3854
          %4908 = vmatprep.subr.bf16.mxu0 %v3871
          %4909 = vmatpush1.bf16.msra.mxu0 %v3870
          %4910 = vmatprep.subr.bf16.mxu0 %v3887
          %4911 = vmatpush1.bf16.msra.mxu0 %v3886
          %4912 = vmatprep.subr.bf16.mxu0 %v3903
          %4913 = vmatpush1.bf16.msra.mxu0 %v3902
          %4914 = vmatprep.subr.bf16.mxu0 %v3919
          %4915 = vmatpush1.bf16.msra.mxu0 %v3918
          %4916 = vmatprep.subr.bf16.mxu0 %v3935
          %4917 = vmatpush1.bf16.msra.mxu0 %v3934
          %4918 = vmatprep.mubr.bf16.mxu0 %v1555
          %4919 = vmatmul.mubr.bf16.gmra.mrb[0].mxu0 %v1554
          %v4920 = vpop.f32.mrb[0].mxu0
          %v4921 = vadd.f32 %v2093, %v4920
          %v4922 = vpop.f32.mrb[0].mxu0
          %v4923 = vadd.f32 %v2097, %v4922
          %v4924 = vpop.f32.mrb[0].mxu0
          %v4925 = vadd.f32 %v2093, %v4924
          %v4926 = vpop.f32.mrb[0].mxu0
          %v4927 = vadd.f32 %v2097, %v4926
          %4928 = vdwg.mxu0
          %4929 = vmatprep.subr.bf16.mxu0 %v3951
          %4930 = vmatpush1.bf16.msra.mxu0 %v3950
          %4931 = vmatprep.subr.bf16.mxu0 %v3967
          %4932 = vmatpush1.bf16.msra.mxu0 %v3966
          %4933 = vmatprep.subr.bf16.mxu0 %v3983
          %4934 = vmatpush1.bf16.msra.mxu0 %v3982
          %4935 = vmatprep.subr.bf16.mxu0 %v3999
          %4936 = vmatpush1.bf16.msra.mxu0 %v3998
          %4937 = vmatprep.subr.bf16.mxu0 %v4015
          %4938 = vmatpush1.bf16.msra.mxu0 %v4014
          %4939 = vmatprep.subr.bf16.mxu0 %v4031
          %4940 = vmatpush1.bf16.msra.mxu0 %v4030
          %4941 = vmatprep.subr.bf16.mxu0 %v4047
          %4942 = vmatpush1.bf16.msra.mxu0 %v4046
          %4943 = vmatprep.subr.bf16.mxu0 %v4063
          %4944 = vmatpush1.bf16.msra.mxu0 %v4062
          %4945 = vmatprep.subr.bf16.mxu0 %v4079
          %4946 = vmatpush1.bf16.msra.mxu0 %v4078
          %4947 = vmatprep.subr.bf16.mxu0 %v4095
          %4948 = vmatpush1.bf16.msra.mxu0 %v4094
          %4949 = vmatprep.subr.bf16.mxu0 %v4111
          %4950 = vmatpush1.bf16.msra.mxu0 %v4110
          %4951 = vmatprep.subr.bf16.mxu0 %v4127
          %4952 = vmatpush1.bf16.msra.mxu0 %v4126
          %4953 = vmatprep.subr.bf16.mxu0 %v4143
          %4954 = vmatpush1.bf16.msra.mxu0 %v4142
          %4955 = vmatprep.subr.bf16.mxu0 %v4159
          %4956 = vmatpush1.bf16.msra.mxu0 %v4158
          %4957 = vmatprep.subr.bf16.mxu0 %v4175
          %4958 = vmatpush1.bf16.msra.mxu0 %v4174
          %4959 = vmatprep.subr.bf16.mxu0 %v4191
          %4960 = vmatpush1.bf16.msra.mxu0 %v4190
          %4961 = vmatprep.mubr.bf16.mxu0 %v1557
          %4962 = vmatmul.mubr.bf16.gmra.mrb[0].mxu0 %v1556
          %v4963 = vpop.f32.mrb[0].mxu0
          %v4964 = vadd.f32 %v4921, %v4963
          %v4965 = vpop.f32.mrb[0].mxu0
          %v4966 = vadd.f32 %v4923, %v4965
          %v4967 = vpop.f32.mrb[0].mxu0
          %v4968 = vadd.f32 %v4925, %v4967
          %v4969 = vpop.f32.mrb[0].mxu0
          %v4970 = vadd.f32 %v4927, %v4969
          %4971 = vdwg.mxu0
          %4972 = vmatprep.subr.bf16.mxu0 %v3697
          %4973 = vmatpush1.bf16.msra.mxu0 %v3696
          %4974 = vmatprep.subr.bf16.mxu0 %v3713
          %4975 = vmatpush1.bf16.msra.mxu0 %v3712
          %4976 = vmatprep.subr.bf16.mxu0 %v3729
          %4977 = vmatpush1.bf16.msra.mxu0 %v3728
          %4978 = vmatprep.subr.bf16.mxu0 %v3745
          %4979 = vmatpush1.bf16.msra.mxu0 %v3744
          %4980 = vmatprep.subr.bf16.mxu0 %v3761
          %4981 = vmatpush1.bf16.msra.mxu0 %v3760
          %4982 = vmatprep.subr.bf16.mxu0 %v3777
          %4983 = vmatpush1.bf16.msra.mxu0 %v3776
          %4984 = vmatprep.subr.bf16.mxu0 %v3793
          %4985 = vmatpush1.bf16.msra.mxu0 %v3792
          %4986 = vmatprep.subr.bf16.mxu0 %v3809
          %4987 = vmatpush1.bf16.msra.mxu0 %v3808
          %4988 = vmatprep.subr.bf16.mxu0 %v3825
          %4989 = vmatpush1.bf16.msra.mxu0 %v3824
          %4990 = vmatprep.subr.bf16.mxu0 %v3841
          %4991 = vmatpush1.bf16.msra.mxu0 %v3840
          %4992 = vmatprep.subr.bf16.mxu0 %v3857
          %4993 = vmatpush1.bf16.msra.mxu0 %v3856
          %4994 = vmatprep.subr.bf16.mxu0 %v3873
          %4995 = vmatpush1.bf16.msra.mxu0 %v3872
          %4996 = vmatprep.subr.bf16.mxu0 %v3889
          %4997 = vmatpush1.bf16.msra.mxu0 %v3888
          %4998 = vmatprep.subr.bf16.mxu0 %v3905
          %4999 = vmatpush1.bf16.msra.mxu0 %v3904
          %5000 = vmatprep.subr.bf16.mxu0 %v3921
          %5001 = vmatpush1.bf16.msra.mxu0 %v3920
          %5002 = vmatprep.subr.bf16.mxu0 %v3937
          %5003 = vmatpush1.bf16.msra.mxu0 %v3936
          %5004 = vmatprep.mubr.bf16.mxu0 %v1555
          %5005 = vmatmul.mubr.bf16.gmra.mrb[0].mxu0 %v1554
          %v5006 = vpop.f32.mrb[0].mxu0
          %v5007 = vadd.f32 %v2101, %v5006
          %v5008 = vpop.f32.mrb[0].mxu0
          %v5009 = vadd.f32 %v2105, %v5008
          %v5010 = vpop.f32.mrb[0].mxu0
          %v5011 = vadd.f32 %v2101, %v5010
          %v5012 = vpop.f32.mrb[0].mxu0
          %v5013 = vadd.f32 %v2105, %v5012
          %5014 = vdwg.mxu0
          %5015 = vmatprep.subr.bf16.mxu0 %v3953
          %5016 = vmatpush1.bf16.msra.mxu0 %v3952
          %5017 = vmatprep.subr.bf16.mxu0 %v3969
          %5018 = vmatpush1.bf16.msra.mxu0 %v3968
          %5019 = vmatprep.subr.bf16.mxu0 %v3985
          %5020 = vmatpush1.bf16.msra.mxu0 %v3984
          %5021 = vmatprep.subr.bf16.mxu0 %v4001
          %5022 = vmatpush1.bf16.msra.mxu0 %v4000
          %5023 = vmatprep.subr.bf16.mxu0 %v4017
          %5024 = vmatpush1.bf16.msra.mxu0 %v4016
          %5025 = vmatprep.subr.bf16.mxu0 %v4033
          %5026 = vmatpush1.bf16.msra.mxu0 %v4032
          %5027 = vmatprep.subr.bf16.mxu0 %v4049
          %5028 = vmatpush1.bf16.msra.mxu0 %v4048
          %5029 = vmatprep.subr.bf16.mxu0 %v4065
          %5030 = vmatpush1.bf16.msra.mxu0 %v4064
          %5031 = vmatprep.subr.bf16.mxu0 %v4081
          %5032 = vmatpush1.bf16.msra.mxu0 %v4080
          %5033 = vmatprep.subr.bf16.mxu0 %v4097
          %5034 = vmatpush1.bf16.msra.mxu0 %v4096
          %5035 = vmatprep.subr.bf16.mxu0 %v4113
          %5036 = vmatpush1.bf16.msra.mxu0 %v4112
          %5037 = vmatprep.subr.bf16.mxu0 %v4129
          %5038 = vmatpush1.bf16.msra.mxu0 %v4128
          %5039 = vmatprep.subr.bf16.mxu0 %v4145
          %5040 = vmatpush1.bf16.msra.mxu0 %v4144
          %5041 = vmatprep.subr.bf16.mxu0 %v4161
          %5042 = vmatpush1.bf16.msra.mxu0 %v4160
          %5043 = vmatprep.subr.bf16.mxu0 %v4177
          %5044 = vmatpush1.bf16.msra.mxu0 %v4176
          %5045 = vmatprep.subr.bf16.mxu0 %v4193
          %5046 = vmatpush1.bf16.msra.mxu0 %v4192
          %5047 = vmatprep.mubr.bf16.mxu0 %v1557
          %5048 = vmatmul.mubr.bf16.gmra.mrb[0].mxu0 %v1556
          %v5049 = vpop.f32.mrb[0].mxu0
          %v5050 = vadd.f32 %v5007, %v5049
          %v5051 = vpop.f32.mrb[0].mxu0
          %v5052 = vadd.f32 %v5009, %v5051
          %v5053 = vpop.f32.mrb[0].mxu0
          %v5054 = vadd.f32 %v5011, %v5053
          %v5055 = vpop.f32.mrb[0].mxu0
          %v5056 = vadd.f32 %v5013, %v5055
          %5057 = vdwg.mxu0
          %5058 = vmatprep.subr.bf16.mxu0 %v3699
          %5059 = vmatpush1.bf16.msra.mxu0 %v3698
          %5060 = vmatprep.subr.bf16.mxu0 %v3715
          %5061 = vmatpush1.bf16.msra.mxu0 %v3714
          %5062 = vmatprep.subr.bf16.mxu0 %v3731
          %5063 = vmatpush1.bf16.msra.mxu0 %v3730
          %5064 = vmatprep.subr.bf16.mxu0 %v3747
          %5065 = vmatpush1.bf16.msra.mxu0 %v3746
          %5066 = vmatprep.subr.bf16.mxu0 %v3763
          %5067 = vmatpush1.bf16.msra.mxu0 %v3762
          %5068 = vmatprep.subr.bf16.mxu0 %v3779
          %5069 = vmatpush1.bf16.msra.mxu0 %v3778
          %5070 = vmatprep.subr.bf16.mxu0 %v3795
          %5071 = vmatpush1.bf16.msra.mxu0 %v3794
          %5072 = vmatprep.subr.bf16.mxu0 %v3811
          %5073 = vmatpush1.bf16.msra.mxu0 %v3810
          %5074 = vmatprep.subr.bf16.mxu0 %v3827
          %5075 = vmatpush1.bf16.msra.mxu0 %v3826
          %5076 = vmatprep.subr.bf16.mxu0 %v3843
          %5077 = vmatpush1.bf16.msra.mxu0 %v3842
          %5078 = vmatprep.subr.bf16.mxu0 %v3859
          %5079 = vmatpush1.bf16.msra.mxu0 %v3858
          %5080 = vmatprep.subr.bf16.mxu0 %v3875
          %5081 = vmatpush1.bf16.msra.mxu0 %v3874
          %5082 = vmatprep.subr.bf16.mxu0 %v3891
          %5083 = vmatpush1.bf16.msra.mxu0 %v3890
          %5084 = vmatprep.subr.bf16.mxu0 %v3907
          %5085 = vmatpush1.bf16.msra.mxu0 %v3906
          %5086 = vmatprep.subr.bf16.mxu0 %v3923
          %5087 = vmatpush1.bf16.msra.mxu0 %v3922
          %5088 = vmatprep.subr.bf16.mxu0 %v3939
          %5089 = vmatpush1.bf16.msra.mxu0 %v3938
          %5090 = vmatprep.mubr.bf16.mxu0 %v1555
          %5091 = vmatmul.mubr.bf16.gmra.mrb[0].mxu0 %v1554
          %v5092 = vpop.f32.mrb[0].mxu0
          %v5093 = vadd.f32 %v2109, %v5092
          %v5094 = vpop.f32.mrb[0].mxu0
          %v5095 = vadd.f32 %v2113, %v5094
          %v5096 = vpop.f32.mrb[0].mxu0
          %v5097 = vadd.f32 %v2109, %v5096
          %v5098 = vpop.f32.mrb[0].mxu0
          %v5099 = vadd.f32 %v2113, %v5098
          %5100 = vdwg.mxu0
          %5101 = vmatprep.subr.bf16.mxu0 %v3955
          %5102 = vmatpush1.bf16.msra.mxu0 %v3954
          %5103 = vmatprep.subr.bf16.mxu0 %v3971
          %5104 = vmatpush1.bf16.msra.mxu0 %v3970
          %5105 = vmatprep.subr.bf16.mxu0 %v3987
          %5106 = vmatpush1.bf16.msra.mxu0 %v3986
          %5107 = vmatprep.subr.bf16.mxu0 %v4003
          %5108 = vmatpush1.bf16.msra.mxu0 %v4002
          %5109 = vmatprep.subr.bf16.mxu0 %v4019
          %5110 = vmatpush1.bf16.msra.mxu0 %v4018
          %5111 = vmatprep.subr.bf16.mxu0 %v4035
          %5112 = vmatpush1.bf16.msra.mxu0 %v4034
          %5113 = vmatprep.subr.bf16.mxu0 %v4051
          %5114 = vmatpush1.bf16.msra.mxu0 %v4050
          %5115 = vmatprep.subr.bf16.mxu0 %v4067
          %5116 = vmatpush1.bf16.msra.mxu0 %v4066
          %5117 = vmatprep.subr.bf16.mxu0 %v4083
          %5118 = vmatpush1.bf16.msra.mxu0 %v4082
          %5119 = vmatprep.subr.bf16.mxu0 %v4099
          %5120 = vmatpush1.bf16.msra.mxu0 %v4098
          %5121 = vmatprep.subr.bf16.mxu0 %v4115
          %5122 = vmatpush1.bf16.msra.mxu0 %v4114
          %5123 = vmatprep.subr.bf16.mxu0 %v4131
          %5124 = vmatpush1.bf16.msra.mxu0 %v4130
          %5125 = vmatprep.subr.bf16.mxu0 %v4147
          %5126 = vmatpush1.bf16.msra.mxu0 %v4146
          %5127 = vmatprep.subr.bf16.mxu0 %v4163
          %5128 = vmatpush1.bf16.msra.mxu0 %v4162
          %5129 = vmatprep.subr.bf16.mxu0 %v4179
          %5130 = vmatpush1.bf16.msra.mxu0 %v4178
          %5131 = vmatprep.subr.bf16.mxu0 %v4195
          %5132 = vmatpush1.bf16.msra.mxu0 %v4194
          %5133 = vmatprep.mubr.bf16.mxu0 %v1557
          %5134 = vmatmul.mubr.bf16.gmra.mrb[0].mxu0 %v1556
          %v5135 = vpop.f32.mrb[0].mxu0
          %v5136 = vadd.f32 %v5093, %v5135
          %v5137 = vpop.f32.mrb[0].mxu0
          %v5138 = vadd.f32 %v5095, %v5137
          %v5139 = vpop.f32.mrb[0].mxu0
          %v5140 = vadd.f32 %v5097, %v5139
          %v5141 = vpop.f32.mrb[0].mxu0
          %v5142 = vadd.f32 %v5099, %v5141
          %5143 = vdwg.mxu0
          %5144 = vmatprep.subr.bf16.mxu0 %v3701
          %5145 = vmatpush1.bf16.msra.mxu0 %v3700
          %5146 = vmatprep.subr.bf16.mxu0 %v3717
          %5147 = vmatpush1.bf16.msra.mxu0 %v3716
          %5148 = vmatprep.subr.bf16.mxu0 %v3733
          %5149 = vmatpush1.bf16.msra.mxu0 %v3732
          %5150 = vmatprep.subr.bf16.mxu0 %v3749
          %5151 = vmatpush1.bf16.msra.mxu0 %v3748
          %5152 = vmatprep.subr.bf16.mxu0 %v3765
          %5153 = vmatpush1.bf16.msra.mxu0 %v3764
          %5154 = vmatprep.subr.bf16.mxu0 %v3781
          %5155 = vmatpush1.bf16.msra.mxu0 %v3780
          %5156 = vmatprep.subr.bf16.mxu0 %v3797
          %5157 = vmatpush1.bf16.msra.mxu0 %v3796
          %5158 = vmatprep.subr.bf16.mxu0 %v3813
          %5159 = vmatpush1.bf16.msra.mxu0 %v3812
          %5160 = vmatprep.subr.bf16.mxu0 %v3829
          %5161 = vmatpush1.bf16.msra.mxu0 %v3828
          %5162 = vmatprep.subr.bf16.mxu0 %v3845
          %5163 = vmatpush1.bf16.msra.mxu0 %v3844
          %5164 = vmatprep.subr.bf16.mxu0 %v3861
          %5165 = vmatpush1.bf16.msra.mxu0 %v3860
          %5166 = vmatprep.subr.bf16.mxu0 %v3877
          %5167 = vmatpush1.bf16.msra.mxu0 %v3876
          %5168 = vmatprep.subr.bf16.mxu0 %v3893
          %5169 = vmatpush1.bf16.msra.mxu0 %v3892
          %5170 = vmatprep.subr.bf16.mxu0 %v3909
          %5171 = vmatpush1.bf16.msra.mxu0 %v3908
          %5172 = vmatprep.subr.bf16.mxu0 %v3925
          %5173 = vmatpush1.bf16.msra.mxu0 %v3924
          %5174 = vmatprep.subr.bf16.mxu0 %v3941
          %5175 = vmatpush1.bf16.msra.mxu0 %v3940
          %5176 = vmatprep.mubr.bf16.mxu0 %v1555
          %5177 = vmatmul.mubr.bf16.gmra.mrb[0].mxu0 %v1554
          %v5178 = vpop.f32.mrb[0].mxu0
          %v5179 = vadd.f32 %v2117, %v5178
          %v5180 = vpop.f32.mrb[0].mxu0
          %v5181 = vadd.f32 %v2121, %v5180
          %v5182 = vpop.f32.mrb[0].mxu0
          %v5183 = vadd.f32 %v2117, %v5182
          %v5184 = vpop.f32.mrb[0].mxu0
          %v5185 = vadd.f32 %v2121, %v5184
          %5186 = vdwg.mxu0
          %5187 = vmatprep.subr.bf16.mxu0 %v3957
          %5188 = vmatpush1.bf16.msra.mxu0 %v3956
          %5189 = vmatprep.subr.bf16.mxu0 %v3973
          %5190 = vmatpush1.bf16.msra.mxu0 %v3972
          %5191 = vmatprep.subr.bf16.mxu0 %v3989
          %5192 = vmatpush1.bf16.msra.mxu0 %v3988
          %5193 = vmatprep.subr.bf16.mxu0 %v4005
          %5194 = vmatpush1.bf16.msra.mxu0 %v4004
          %5195 = vmatprep.subr.bf16.mxu0 %v4021
          %5196 = vmatpush1.bf16.msra.mxu0 %v4020
          %5197 = vmatprep.subr.bf16.mxu0 %v4037
          %5198 = vmatpush1.bf16.msra.mxu0 %v4036
          %5199 = vmatprep.subr.bf16.mxu0 %v4053
          %5200 = vmatpush1.bf16.msra.mxu0 %v4052
          %5201 = vmatprep.subr.bf16.mxu0 %v4069
          %5202 = vmatpush1.bf16.msra.mxu0 %v4068
          %5203 = vmatprep.subr.bf16.mxu0 %v4085
          %5204 = vmatpush1.bf16.msra.mxu0 %v4084
          %5205 = vmatprep.subr.bf16.mxu0 %v4101
          %5206 = vmatpush1.bf16.msra.mxu0 %v4100
          %5207 = vmatprep.subr.bf16.mxu0 %v4117
          %5208 = vmatpush1.bf16.msra.mxu0 %v4116
          %5209 = vmatprep.subr.bf16.mxu0 %v4133
          %5210 = vmatpush1.bf16.msra.mxu0 %v4132
          %5211 = vmatprep.subr.bf16.mxu0 %v4149
          %5212 = vmatpush1.bf16.msra.mxu0 %v4148
          %5213 = vmatprep.subr.bf16.mxu0 %v4165
          %5214 = vmatpush1.bf16.msra.mxu0 %v4164
          %5215 = vmatprep.subr.bf16.mxu0 %v4181
          %5216 = vmatpush1.bf16.msra.mxu0 %v4180
          %5217 = vmatprep.subr.bf16.mxu0 %v4197
          %5218 = vmatpush1.bf16.msra.mxu0 %v4196
          %5219 = vmatprep.mubr.bf16.mxu0 %v1557
          %5220 = vmatmul.mubr.bf16.gmra.mrb[0].mxu0 %v1556
          %v5221 = vpop.f32.mrb[0].mxu0
          %v5222 = vadd.f32 %v5179, %v5221
          %v5223 = vpop.f32.mrb[0].mxu0
          %v5224 = vadd.f32 %v5181, %v5223
          %v5225 = vpop.f32.mrb[0].mxu0
          %v5226 = vadd.f32 %v5183, %v5225
          %v5227 = vpop.f32.mrb[0].mxu0
          %v5228 = vadd.f32 %v5185, %v5227
          %5229 = vdwg.mxu0
          %5230 = vmatprep.subr.bf16.mxu0 %v3703
          %5231 = vmatpush1.bf16.msra.mxu0 %v3702
          %5232 = vmatprep.subr.bf16.mxu0 %v3719
          %5233 = vmatpush1.bf16.msra.mxu0 %v3718
          %5234 = vmatprep.subr.bf16.mxu0 %v3735
          %5235 = vmatpush1.bf16.msra.mxu0 %v3734
          %5236 = vmatprep.subr.bf16.mxu0 %v3751
          %5237 = vmatpush1.bf16.msra.mxu0 %v3750
          %5238 = vmatprep.subr.bf16.mxu0 %v3767
          %5239 = vmatpush1.bf16.msra.mxu0 %v3766
          %5240 = vmatprep.subr.bf16.mxu0 %v3783
          %5241 = vmatpush1.bf16.msra.mxu0 %v3782
          %5242 = vmatprep.subr.bf16.mxu0 %v3799
          %5243 = vmatpush1.bf16.msra.mxu0 %v3798
          %5244 = vmatprep.subr.bf16.mxu0 %v3815
          %5245 = vmatpush1.bf16.msra.mxu0 %v3814
          %5246 = vmatprep.subr.bf16.mxu0 %v3831
          %5247 = vmatpush1.bf16.msra.mxu0 %v3830
          %5248 = vmatprep.subr.bf16.mxu0 %v3847
          %5249 = vmatpush1.bf16.msra.mxu0 %v3846
          %5250 = vmatprep.subr.bf16.mxu0 %v3863
          %5251 = vmatpush1.bf16.msra.mxu0 %v3862
          %5252 = vmatprep.subr.bf16.mxu0 %v3879
          %5253 = vmatpush1.bf16.msra.mxu0 %v3878
          %5254 = vmatprep.subr.bf16.mxu0 %v3895
          %5255 = vmatpush1.bf16.msra.mxu0 %v3894
          %5256 = vmatprep.subr.bf16.mxu0 %v3911
          %5257 = vmatpush1.bf16.msra.mxu0 %v3910
          %5258 = vmatprep.subr.bf16.mxu0 %v3927
          %5259 = vmatpush1.bf16.msra.mxu0 %v3926
          %5260 = vmatprep.subr.bf16.mxu0 %v3943
          %5261 = vmatpush1.bf16.msra.mxu0 %v3942
          %5262 = vmatprep.mubr.bf16.mxu0 %v1555
          %5263 = vmatmul.mubr.bf16.gmra.mrb[0].mxu0 %v1554
          %v5264 = vpop.f32.mrb[0].mxu0
          %v5265 = vadd.f32 %v2125, %v5264
          %v5266 = vpop.f32.mrb[0].mxu0
          %v5267 = vadd.f32 %v2129, %v5266
          %v5268 = vpop.f32.mrb[0].mxu0
          %v5269 = vadd.f32 %v2125, %v5268
          %v5270 = vpop.f32.mrb[0].mxu0
          %v5271 = vadd.f32 %v2129, %v5270
          %5272 = vdwg.mxu0
          %5273 = vmatprep.subr.bf16.mxu0 %v3959
          %5274 = vmatpush1.bf16.msra.mxu0 %v3958
          %5275 = vmatprep.subr.bf16.mxu0 %v3975
          %5276 = vmatpush1.bf16.msra.mxu0 %v3974
          %5277 = vmatprep.subr.bf16.mxu0 %v3991
          %5278 = vmatpush1.bf16.msra.mxu0 %v3990
          %5279 = vmatprep.subr.bf16.mxu0 %v4007
          %5280 = vmatpush1.bf16.msra.mxu0 %v4006
          %5281 = vmatprep.subr.bf16.mxu0 %v4023
          %5282 = vmatpush1.bf16.msra.mxu0 %v4022
          %5283 = vmatprep.subr.bf16.mxu0 %v4039
          %5284 = vmatpush1.bf16.msra.mxu0 %v4038
          %5285 = vmatprep.subr.bf16.mxu0 %v4055
          %5286 = vmatpush1.bf16.msra.mxu0 %v4054
          %5287 = vmatprep.subr.bf16.mxu0 %v4071
          %5288 = vmatpush1.bf16.msra.mxu0 %v4070
          %5289 = vmatprep.subr.bf16.mxu0 %v4087
          %5290 = vmatpush1.bf16.msra.mxu0 %v4086
          %5291 = vmatprep.subr.bf16.mxu0 %v4103
          %5292 = vmatpush1.bf16.msra.mxu0 %v4102
          %5293 = vmatprep.subr.bf16.mxu0 %v4119
          %5294 = vmatpush1.bf16.msra.mxu0 %v4118
          %5295 = vmatprep.subr.bf16.mxu0 %v4135
          %5296 = vmatpush1.bf16.msra.mxu0 %v4134
          %5297 = vmatprep.subr.bf16.mxu0 %v4151
          %5298 = vmatpush1.bf16.msra.mxu0 %v4150
          %5299 = vmatprep.subr.bf16.mxu0 %v4167
          %5300 = vmatpush1.bf16.msra.mxu0 %v4166
          %5301 = vmatprep.subr.bf16.mxu0 %v4183
          %5302 = vmatpush1.bf16.msra.mxu0 %v4182
          %5303 = vmatprep.subr.bf16.mxu0 %v4199
          %5304 = vmatpush1.bf16.msra.mxu0 %v4198
          %5305 = vmatprep.mubr.bf16.mxu0 %v1557
          %5306 = vmatmul.mubr.bf16.gmra.mrb[0].mxu0 %v1556
          %v5307 = vpop.f32.mrb[0].mxu0
          %v5308 = vadd.f32 %v5265, %v5307
          %v5309 = vpop.f32.mrb[0].mxu0
          %v5310 = vadd.f32 %v5267, %v5309
          %v5311 = vpop.f32.mrb[0].mxu0
          %v5312 = vadd.f32 %v5269, %v5311
          %v5313 = vpop.f32.mrb[0].mxu0
          %v5314 = vadd.f32 %v5271, %v5313
          %5315 = vdwg.mxu0
          %5316 = vmatprep.subr.bf16.mxu0 %v3705
          %5317 = vmatpush1.bf16.msra.mxu0 %v3704
          %5318 = vmatprep.subr.bf16.mxu0 %v3721
          %5319 = vmatpush1.bf16.msra.mxu0 %v3720
          %5320 = vmatprep.subr.bf16.mxu0 %v3737
          %5321 = vmatpush1.bf16.msra.mxu0 %v3736
          %5322 = vmatprep.subr.bf16.mxu0 %v3753
          %5323 = vmatpush1.bf16.msra.mxu0 %v3752
          %5324 = vmatprep.subr.bf16.mxu0 %v3769
          %5325 = vmatpush1.bf16.msra.mxu0 %v3768
          %5326 = vmatprep.subr.bf16.mxu0 %v3785
          %5327 = vmatpush1.bf16.msra.mxu0 %v3784
          %5328 = vmatprep.subr.bf16.mxu0 %v3801
          %5329 = vmatpush1.bf16.msra.mxu0 %v3800
          %5330 = vmatprep.subr.bf16.mxu0 %v3817
          %5331 = vmatpush1.bf16.msra.mxu0 %v3816
          %5332 = vmatprep.subr.bf16.mxu0 %v3833
          %5333 = vmatpush1.bf16.msra.mxu0 %v3832
          %5334 = vmatprep.subr.bf16.mxu0 %v3849
          %5335 = vmatpush1.bf16.msra.mxu0 %v3848
          %5336 = vmatprep.subr.bf16.mxu0 %v3865
          %5337 = vmatpush1.bf16.msra.mxu0 %v3864
          %5338 = vmatprep.subr.bf16.mxu0 %v3881
          %5339 = vmatpush1.bf16.msra.mxu0 %v3880
          %5340 = vmatprep.subr.bf16.mxu0 %v3897
          %5341 = vmatpush1.bf16.msra.mxu0 %v3896
          %5342 = vmatprep.subr.bf16.mxu0 %v3913
          %5343 = vmatpush1.bf16.msra.mxu0 %v3912
          %5344 = vmatprep.subr.bf16.mxu0 %v3929
          %5345 = vmatpush1.bf16.msra.mxu0 %v3928
          %5346 = vmatprep.subr.bf16.mxu0 %v3945
          %5347 = vmatpush1.bf16.msra.mxu0 %v3944
          %5348 = vmatprep.mubr.bf16.mxu0 %v1555
          %5349 = vmatmul.mubr.bf16.gmra.mrb[0].mxu0 %v1554
          %v5350 = vpop.f32.mrb[0].mxu0
          %v5351 = vadd.f32 %v2133, %v5350
          %v5352 = vpop.f32.mrb[0].mxu0
          %v5353 = vadd.f32 %v2137, %v5352
          %v5354 = vpop.f32.mrb[0].mxu0
          %v5355 = vadd.f32 %v2133, %v5354
          %v5356 = vpop.f32.mrb[0].mxu0
          %v5357 = vadd.f32 %v2137, %v5356
          %5358 = vdwg.mxu0
          %5359 = vmatprep.subr.bf16.mxu0 %v3961
          %5360 = vmatpush1.bf16.msra.mxu0 %v3960
          %5361 = vmatprep.subr.bf16.mxu0 %v3977
          %5362 = vmatpush1.bf16.msra.mxu0 %v3976
          %5363 = vmatprep.subr.bf16.mxu0 %v3993
          %5364 = vmatpush1.bf16.msra.mxu0 %v3992
          %5365 = vmatprep.subr.bf16.mxu0 %v4009
          %5366 = vmatpush1.bf16.msra.mxu0 %v4008
          %5367 = vmatprep.subr.bf16.mxu0 %v4025
          %5368 = vmatpush1.bf16.msra.mxu0 %v4024
          %5369 = vmatprep.subr.bf16.mxu0 %v4041
          %5370 = vmatpush1.bf16.msra.mxu0 %v4040
          %5371 = vmatprep.subr.bf16.mxu0 %v4057
          %5372 = vmatpush1.bf16.msra.mxu0 %v4056
          %5373 = vmatprep.subr.bf16.mxu0 %v4073
          %5374 = vmatpush1.bf16.msra.mxu0 %v4072
          %5375 = vmatprep.subr.bf16.mxu0 %v4089
          %5376 = vmatpush1.bf16.msra.mxu0 %v4088
          %5377 = vmatprep.subr.bf16.mxu0 %v4105
          %5378 = vmatpush1.bf16.msra.mxu0 %v4104
          %5379 = vmatprep.subr.bf16.mxu0 %v4121
          %5380 = vmatpush1.bf16.msra.mxu0 %v4120
          %5381 = vmatprep.subr.bf16.mxu0 %v4137
          %5382 = vmatpush1.bf16.msra.mxu0 %v4136
          %5383 = vmatprep.subr.bf16.mxu0 %v4153
          %5384 = vmatpush1.bf16.msra.mxu0 %v4152
          %5385 = vmatprep.subr.bf16.mxu0 %v4169
          %5386 = vmatpush1.bf16.msra.mxu0 %v4168
          %5387 = vmatprep.subr.bf16.mxu0 %v4185
          %5388 = vmatpush1.bf16.msra.mxu0 %v4184
          %5389 = vmatprep.subr.bf16.mxu0 %v4201
          %5390 = vmatpush1.bf16.msra.mxu0 %v4200
          %5391 = vmatprep.mubr.bf16.mxu0 %v1557
          %5392 = vmatmul.mubr.bf16.gmra.mrb[0].mxu0 %v1556
          %v5393 = vpop.f32.mrb[0].mxu0
          %v5394 = vadd.f32 %v5351, %v5393
          %v5395 = vpop.f32.mrb[0].mxu0
          %v5396 = vadd.f32 %v5353, %v5395
          %v5397 = vpop.f32.mrb[0].mxu0
          %v5398 = vadd.f32 %v5355, %v5397
          %v5399 = vpop.f32.mrb[0].mxu0
          %v5400 = vadd.f32 %v5357, %v5399
          %5401 = vdwg.mxu0
          %v5402 = vrot.slane %v4792, 4
          %v5403 = vadd.f32 %v4792, %v5402
          %v5404 = vrot.slane %v5403, 2
          %v5405 = vadd.f32 %v5403, %v5404
          %v5406 = vrot.slane %v5405, 1
          %v5407 = vadd.f32 %v5405, %v5406
          %v5408 = vrot.slane %v4794, 4
          %v5409 = vadd.f32 %v4794, %v5408
          %v5410 = vrot.slane %v5409, 2
          %v5411 = vadd.f32 %v5409, %v5410
          %v5412 = vrot.slane %v5411, 1
          %v5413 = vadd.f32 %v5411, %v5412
          %v5414 = vrot.slane %v4878, 4
          %v5415 = vadd.f32 %v4878, %v5414
          %v5416 = vrot.slane %v5415, 2
          %v5417 = vadd.f32 %v5415, %v5416
          %v5418 = vrot.slane %v5417, 1
          %v5419 = vadd.f32 %v5417, %v5418
          %v5420 = vrot.slane %v4880, 4
          %v5421 = vadd.f32 %v4880, %v5420
          %v5422 = vrot.slane %v5421, 2
          %v5423 = vadd.f32 %v5421, %v5422
          %v5424 = vrot.slane %v5423, 1
          %v5425 = vadd.f32 %v5423, %v5424
          %v5426 = vrot.slane %v4964, 4
          %v5427 = vadd.f32 %v4964, %v5426
          %v5428 = vrot.slane %v5427, 2
          %v5429 = vadd.f32 %v5427, %v5428
          %v5430 = vrot.slane %v5429, 1
          %v5431 = vadd.f32 %v5429, %v5430
          %v5432 = vrot.slane %v4966, 4
          %v5433 = vadd.f32 %v4966, %v5432
          %v5434 = vrot.slane %v5433, 2
          %v5435 = vadd.f32 %v5433, %v5434
          %v5436 = vrot.slane %v5435, 1
          %v5437 = vadd.f32 %v5435, %v5436
          %v5438 = vrot.slane %v5050, 4
          %v5439 = vadd.f32 %v5050, %v5438
          %v5440 = vrot.slane %v5439, 2
          %v5441 = vadd.f32 %v5439, %v5440
          %v5442 = vrot.slane %v5441, 1
          %v5443 = vadd.f32 %v5441, %v5442
          %v5444 = vrot.slane %v5052, 4
          %v5445 = vadd.f32 %v5052, %v5444
          %v5446 = vrot.slane %v5445, 2
          %v5447 = vadd.f32 %v5445, %v5446
          %v5448 = vrot.slane %v5447, 1
          %v5449 = vadd.f32 %v5447, %v5448
          %v5450 = vrot.slane %v5136, 4
          %v5451 = vadd.f32 %v5136, %v5450
          %v5452 = vrot.slane %v5451, 2
          %v5453 = vadd.f32 %v5451, %v5452
          %v5454 = vrot.slane %v5453, 1
          %v5455 = vadd.f32 %v5453, %v5454
          %v5456 = vrot.slane %v5138, 4
          %v5457 = vadd.f32 %v5138, %v5456
          %v5458 = vrot.slane %v5457, 2
          %v5459 = vadd.f32 %v5457, %v5458
          %v5460 = vrot.slane %v5459, 1
          %v5461 = vadd.f32 %v5459, %v5460
          %v5462 = vrot.slane %v5222, 4
          %v5463 = vadd.f32 %v5222, %v5462
          %v5464 = vrot.slane %v5463, 2
          %v5465 = vadd.f32 %v5463, %v5464
          %v5466 = vrot.slane %v5465, 1
          %v5467 = vadd.f32 %v5465, %v5466
          %v5468 = vrot.slane %v5224, 4
          %v5469 = vadd.f32 %v5224, %v5468
          %v5470 = vrot.slane %v5469, 2
          %v5471 = vadd.f32 %v5469, %v5470
          %v5472 = vrot.slane %v5471, 1
          %v5473 = vadd.f32 %v5471, %v5472
          %v5474 = vrot.slane %v5308, 4
          %v5475 = vadd.f32 %v5308, %v5474
          %v5476 = vrot.slane %v5475, 2
          %v5477 = vadd.f32 %v5475, %v5476
          %v5478 = vrot.slane %v5477, 1
          %v5479 = vadd.f32 %v5477, %v5478
          %v5480 = vrot.slane %v5310, 4
          %v5481 = vadd.f32 %v5310, %v5480
          %v5482 = vrot.slane %v5481, 2
          %v5483 = vadd.f32 %v5481, %v5482
          %v5484 = vrot.slane %v5483, 1
          %v5485 = vadd.f32 %v5483, %v5484
          %v5486 = vrot.slane %v5394, 4
          %v5487 = vadd.f32 %v5394, %v5486
          %v5488 = vrot.slane %v5487, 2
          %v5489 = vadd.f32 %v5487, %v5488
          %v5490 = vrot.slane %v5489, 1
          %v5491 = vadd.f32 %v5489, %v5490
          %v5492 = vrot.slane %v5396, 4
          %v5493 = vadd.f32 %v5396, %v5492
          %v5494 = vrot.slane %v5493, 2
          %v5495 = vadd.f32 %v5493, %v5494
          %v5496 = vrot.slane %v5495, 1
          %v5497 = vadd.f32 %v5495, %v5496
          %v5498 = vmul.f32 %v4792, %v4792
          %v5499 = vmul.f32 %v4794, %v4794
          %v5500 = vmul.f32 %v4878, %v4878
          %v5501 = vmul.f32 %v4880, %v4880
          %v5502 = vmul.f32 %v4964, %v4964
          %v5503 = vmul.f32 %v4966, %v4966
          %v5504 = vmul.f32 %v5050, %v5050
          %v5505 = vmul.f32 %v5052, %v5052
          %v5506 = vmul.f32 %v5136, %v5136
          %v5507 = vmul.f32 %v5138, %v5138
          %v5508 = vmul.f32 %v5222, %v5222
          %v5509 = vmul.f32 %v5224, %v5224
          %v5510 = vmul.f32 %v5308, %v5308
          %v5511 = vmul.f32 %v5310, %v5310
          %v5512 = vmul.f32 %v5394, %v5394
          %v5513 = vmul.f32 %v5396, %v5396
          %v5514 = vrot.slane %v5498, 4
          %v5515 = vadd.f32 %v5498, %v5514
          %v5516 = vrot.slane %v5515, 2
          %v5517 = vadd.f32 %v5515, %v5516
          %v5518 = vrot.slane %v5517, 1
          %v5519 = vadd.f32 %v5517, %v5518
          %v5520 = vrot.slane %v5499, 4
          %v5521 = vadd.f32 %v5499, %v5520
          %v5522 = vrot.slane %v5521, 2
          %v5523 = vadd.f32 %v5521, %v5522
          %v5524 = vrot.slane %v5523, 1
          %v5525 = vadd.f32 %v5523, %v5524
          %v5526 = vrot.slane %v5500, 4
          %v5527 = vadd.f32 %v5500, %v5526
          %v5528 = vrot.slane %v5527, 2
          %v5529 = vadd.f32 %v5527, %v5528
          %v5530 = vrot.slane %v5529, 1
          %v5531 = vadd.f32 %v5529, %v5530
          %v5532 = vrot.slane %v5501, 4
          %v5533 = vadd.f32 %v5501, %v5532
          %v5534 = vrot.slane %v5533, 2
          %v5535 = vadd.f32 %v5533, %v5534
          %v5536 = vrot.slane %v5535, 1
          %v5537 = vadd.f32 %v5535, %v5536
          %v5538 = vrot.slane %v5502, 4
          %v5539 = vadd.f32 %v5502, %v5538
          %v5540 = vrot.slane %v5539, 2
          %v5541 = vadd.f32 %v5539, %v5540
          %v5542 = vrot.slane %v5541, 1
          %v5543 = vadd.f32 %v5541, %v5542
          %v5544 = vrot.slane %v5503, 4
          %v5545 = vadd.f32 %v5503, %v5544
          %v5546 = vrot.slane %v5545, 2
          %v5547 = vadd.f32 %v5545, %v5546
          %v5548 = vrot.slane %v5547, 1
          %v5549 = vadd.f32 %v5547, %v5548
          %v5550 = vrot.slane %v5504, 4
          %v5551 = vadd.f32 %v5504, %v5550
          %v5552 = vrot.slane %v5551, 2
          %v5553 = vadd.f32 %v5551, %v5552
          %v5554 = vrot.slane %v5553, 1
          %v5555 = vadd.f32 %v5553, %v5554
          %v5556 = vrot.slane %v5505, 4
          %v5557 = vadd.f32 %v5505, %v5556
          %v5558 = vrot.slane %v5557, 2
          %v5559 = vadd.f32 %v5557, %v5558
          %v5560 = vrot.slane %v5559, 1
          %v5561 = vadd.f32 %v5559, %v5560
          %v5562 = vrot.slane %v5506, 4
          %v5563 = vadd.f32 %v5506, %v5562
          %v5564 = vrot.slane %v5563, 2
          %v5565 = vadd.f32 %v5563, %v5564
          %v5566 = vrot.slane %v5565, 1
          %v5567 = vadd.f32 %v5565, %v5566
          %v5568 = vrot.slane %v5507, 4
          %v5569 = vadd.f32 %v5507, %v5568
          %v5570 = vrot.slane %v5569, 2
          %v5571 = vadd.f32 %v5569, %v5570
          %v5572 = vrot.slane %v5571, 1
          %v5573 = vadd.f32 %v5571, %v5572
          %v5574 = vrot.slane %v5508, 4
          %v5575 = vadd.f32 %v5508, %v5574
          %v5576 = vrot.slane %v5575, 2
          %v5577 = vadd.f32 %v5575, %v5576
          %v5578 = vrot.slane %v5577, 1
          %v5579 = vadd.f32 %v5577, %v5578
          %v5580 = vrot.slane %v5509, 4
          %v5581 = vadd.f32 %v5509, %v5580
          %v5582 = vrot.slane %v5581, 2
          %v5583 = vadd.f32 %v5581, %v5582
          %v5584 = vrot.slane %v5583, 1
          %v5585 = vadd.f32 %v5583, %v5584
          %v5586 = vrot.slane %v5510, 4
          %v5587 = vadd.f32 %v5510, %v5586
          %v5588 = vrot.slane %v5587, 2
          %v5589 = vadd.f32 %v5587, %v5588
          %v5590 = vrot.slane %v5589, 1
          %v5591 = vadd.f32 %v5589, %v5590
          %v5592 = vrot.slane %v5511, 4
          %v5593 = vadd.f32 %v5511, %v5592
          %v5594 = vrot.slane %v5593, 2
          %v5595 = vadd.f32 %v5593, %v5594
          %v5596 = vrot.slane %v5595, 1
          %v5597 = vadd.f32 %v5595, %v5596
          %v5598 = vrot.slane %v5512, 4
          %v5599 = vadd.f32 %v5512, %v5598
          %v5600 = vrot.slane %v5599, 2
          %v5601 = vadd.f32 %v5599, %v5600
          %v5602 = vrot.slane %v5601, 1
          %v5603 = vadd.f32 %v5601, %v5602
          %v5604 = vrot.slane %v5513, 4
          %v5605 = vadd.f32 %v5513, %v5604
          %v5606 = vrot.slane %v5605, 2
          %v5607 = vadd.f32 %v5605, %v5606
          %v5608 = vrot.slane %v5607, 1
          %v5609 = vadd.f32 %v5607, %v5608
          %v5610 = vmul.f32 %v5407, 0.125
          %v5611 = vmul.f32 %v5413, 0.125
          %v5612 = vmul.f32 %v5419, 0.125
          %v5613 = vmul.f32 %v5425, 0.125
          %v5614 = vmul.f32 %v5431, 0.125
          %v5615 = vmul.f32 %v5437, 0.125
          %v5616 = vmul.f32 %v5443, 0.125
          %v5617 = vmul.f32 %v5449, 0.125
          %v5618 = vmul.f32 %v5455, 0.125
          %v5619 = vmul.f32 %v5461, 0.125
          %v5620 = vmul.f32 %v5467, 0.125
          %v5621 = vmul.f32 %v5473, 0.125
          %v5622 = vmul.f32 %v5479, 0.125
          %v5623 = vmul.f32 %v5485, 0.125
          %v5624 = vmul.f32 %v5491, 0.125
          %v5625 = vmul.f32 %v5497, 0.125
          %v5626 = vmul.f32 %v5519, 0.125
          %v5627 = vmul.f32 %v5525, 0.125
          %v5628 = vmul.f32 %v5531, 0.125
          %v5629 = vmul.f32 %v5537, 0.125
          %v5630 = vmul.f32 %v5543, 0.125
          %v5631 = vmul.f32 %v5549, 0.125
          %v5632 = vmul.f32 %v5555, 0.125
          %v5633 = vmul.f32 %v5561, 0.125
          %v5634 = vmul.f32 %v5567, 0.125
          %v5635 = vmul.f32 %v5573, 0.125
          %v5636 = vmul.f32 %v5579, 0.125
          %v5637 = vmul.f32 %v5585, 0.125
          %v5638 = vmul.f32 %v5591, 0.125
          %v5639 = vmul.f32 %v5597, 0.125
          %v5640 = vmul.f32 %v5603, 0.125
          %v5641 = vmul.f32 %v5609, 0.125
          %v5642 = vmul.f32 %v5610, %v5610
          %v5643 = vmul.f32 %v5611, %v5611
          %v5644 = vmul.f32 %v5612, %v5612
          %v5645 = vmul.f32 %v5613, %v5613
          %v5646 = vmul.f32 %v5614, %v5614
          %v5647 = vmul.f32 %v5615, %v5615
          %v5648 = vmul.f32 %v5616, %v5616
          %v5649 = vmul.f32 %v5617, %v5617
          %v5650 = vmul.f32 %v5618, %v5618
          %v5651 = vmul.f32 %v5619, %v5619
          %v5652 = vmul.f32 %v5620, %v5620
          %v5653 = vmul.f32 %v5621, %v5621
          %v5654 = vmul.f32 %v5622, %v5622
          %v5655 = vmul.f32 %v5623, %v5623
          %v5656 = vmul.f32 %v5624, %v5624
          %v5657 = vmul.f32 %v5625, %v5625
          %v5658 = vsub.f32 %v5626, %v5642
          %v5659 = vsub.f32 %v5627, %v5643
          %v5660 = vsub.f32 %v5628, %v5644
          %v5661 = vsub.f32 %v5629, %v5645
          %v5662 = vsub.f32 %v5630, %v5646
          %v5663 = vsub.f32 %v5631, %v5647
          %v5664 = vsub.f32 %v5632, %v5648
          %v5665 = vsub.f32 %v5633, %v5649
          %v5666 = vsub.f32 %v5634, %v5650
          %v5667 = vsub.f32 %v5635, %v5651
          %v5668 = vsub.f32 %v5636, %v5652
          %v5669 = vsub.f32 %v5637, %v5653
          %v5670 = vsub.f32 %v5638, %v5654
          %v5671 = vsub.f32 %v5639, %v5655
          %v5672 = vsub.f32 %v5640, %v5656
          %v5673 = vsub.f32 %v5641, %v5657
          %v5674 = vsub.f32 %v4792, %v5610
          %v5675 = vsub.f32 %v4794, %v5611
          %v5676 = vsub.f32 %v4878, %v5612
          %v5677 = vsub.f32 %v4880, %v5613
          %v5678 = vsub.f32 %v4964, %v5614
          %v5679 = vsub.f32 %v4966, %v5615
          %v5680 = vsub.f32 %v5050, %v5616
          %v5681 = vsub.f32 %v5052, %v5617
          %v5682 = vsub.f32 %v5136, %v5618
          %v5683 = vsub.f32 %v5138, %v5619
          %v5684 = vsub.f32 %v5222, %v5620
          %v5685 = vsub.f32 %v5224, %v5621
          %v5686 = vsub.f32 %v5308, %v5622
          %v5687 = vsub.f32 %v5310, %v5623
          %v5688 = vsub.f32 %v5394, %v5624
          %v5689 = vsub.f32 %v5396, %v5625
          %v5690 = vadd.f32 %v5658, 1e-05
          %v5691 = vadd.f32 %v5659, 1e-05
          %v5692 = vadd.f32 %v5660, 1e-05
          %v5693 = vadd.f32 %v5661, 1e-05
          %v5694 = vadd.f32 %v5662, 1e-05
          %v5695 = vadd.f32 %v5663, 1e-05
          %v5696 = vadd.f32 %v5664, 1e-05
          %v5697 = vadd.f32 %v5665, 1e-05
          %v5698 = vadd.f32 %v5666, 1e-05
          %v5699 = vadd.f32 %v5667, 1e-05
          %v5700 = vadd.f32 %v5668, 1e-05
          %v5701 = vadd.f32 %v5669, 1e-05
          %v5702 = vadd.f32 %v5670, 1e-05
          %v5703 = vadd.f32 %v5671, 1e-05
          %v5704 = vadd.f32 %v5672, 1e-05
          %v5705 = vadd.f32 %v5673, 1e-05
          %v5706 = vrsqrt.pop %v5690
          %v5707 = vrsqrt.pop %v5691
          %v5708 = vrsqrt.pop %v5692
          %v5709 = vrsqrt.pop %v5693
          %v5710 = vrsqrt.pop %v5694
          %v5711 = vrsqrt.pop %v5695
          %v5712 = vrsqrt.pop %v5696
          %v5713 = vrsqrt.pop %v5697
          %v5714 = vrsqrt.pop %v5698
          %v5715 = vrsqrt.pop %v5699
          %v5716 = vrsqrt.pop %v5700
          %v5717 = vrsqrt.pop %v5701
          %v5718 = vrsqrt.pop %v5702
          %v5719 = vrsqrt.pop %v5703
          %v5720 = vrsqrt.pop %v5704
          %v5721 = vrsqrt.pop %v5705
          %v5722 = vmul.f32 %v5674, %v5706
          %v5723 = vmul.f32 %v5675, %v5707
          %v5724 = vmul.f32 %v5676, %v5708
          %v5725 = vmul.f32 %v5677, %v5709
          %v5726 = vmul.f32 %v5678, %v5710
          %v5727 = vmul.f32 %v5679, %v5711
          %v5728 = vmul.f32 %v5680, %v5712
          %v5729 = vmul.f32 %v5681, %v5713
          %v5730 = vmul.f32 %v5682, %v5714
          %v5731 = vmul.f32 %v5683, %v5715
          %v5732 = vmul.f32 %v5684, %v5716
          %v5733 = vmul.f32 %v5685, %v5717
          %v5734 = vmul.f32 %v5686, %v5718
          %v5735 = vmul.f32 %v5687, %v5719
          %v5736 = vmul.f32 %v5688, %v5720
          %v5737 = vmul.f32 %v5689, %v5721
          %v5738 = vld [vmem:[#allocation10] sm:$0xff]
          %v5739 = vld [vmem:[#allocation10 + $0x8] sm:$0xff]
          %v5742 = vlaneseq
          %v5743 = vshrl.u32 %v5742, 7
          %v5744 = vsub.s32 0, %v5743
          %v5745 = vrot.slane %v5738, %v5744
          %v5746 = vlaneseq
          %v5747 = vshrl.u32 %v5746, 7
          %v5748 = vsub.s32 1, %v5747
          %v5749 = vrot.slane %v5738, %v5748
          %v5750 = vlaneseq
          %v5751 = vshrl.u32 %v5750, 7
          %v5752 = vsub.s32 2, %v5751
          %v5753 = vrot.slane %v5738, %v5752
          %v5754 = vlaneseq
          %v5755 = vshrl.u32 %v5754, 7
          %v5756 = vsub.s32 3, %v5755
          %v5757 = vrot.slane %v5738, %v5756
          %v5758 = vlaneseq
          %v5759 = vshrl.u32 %v5758, 7
          %v5760 = vsub.s32 4, %v5759
          %v5761 = vrot.slane %v5738, %v5760
          %v5762 = vlaneseq
          %v5763 = vshrl.u32 %v5762, 7
          %v5764 = vsub.s32 5, %v5763
          %v5765 = vrot.slane %v5738, %v5764
          %v5766 = vlaneseq
          %v5767 = vshrl.u32 %v5766, 7
          %v5768 = vsub.s32 6, %v5767
          %v5769 = vrot.slane %v5738, %v5768
          %v5770 = vlaneseq
          %v5771 = vshrl.u32 %v5770, 7
          %v5772 = vsub.s32 7, %v5771
          %v5773 = vrot.slane %v5738, %v5772
          %v5774 = vlaneseq
          %v5775 = vshrl.u32 %v5774, 7
          %v5776 = vsub.s32 0, %v5775
          %v5777 = vrot.slane %v5739, %v5776
          %v5778 = vlaneseq
          %v5779 = vshrl.u32 %v5778, 7
          %v5780 = vsub.s32 1, %v5779
          %v5781 = vrot.slane %v5739, %v5780
          %v5782 = vlaneseq
          %v5783 = vshrl.u32 %v5782, 7
          %v5784 = vsub.s32 2, %v5783
          %v5785 = vrot.slane %v5739, %v5784
          %v5786 = vlaneseq
          %v5787 = vshrl.u32 %v5786, 7
          %v5788 = vsub.s32 3, %v5787
          %v5789 = vrot.slane %v5739, %v5788
          %v5790 = vlaneseq
          %v5791 = vshrl.u32 %v5790, 7
          %v5792 = vsub.s32 4, %v5791
          %v5793 = vrot.slane %v5739, %v5792
          %v5794 = vlaneseq
          %v5795 = vshrl.u32 %v5794, 7
          %v5796 = vsub.s32 5, %v5795
          %v5797 = vrot.slane %v5739, %v5796
          %v5798 = vlaneseq
          %v5799 = vshrl.u32 %v5798, 7
          %v5800 = vsub.s32 6, %v5799
          %v5801 = vrot.slane %v5739, %v5800
          %v5802 = vlaneseq
          %v5803 = vshrl.u32 %v5802, 7
          %v5804 = vsub.s32 7, %v5803
          %v5805 = vrot.slane %v5739, %v5804
          %v5822 = vmul.f32 %v5722, %v5745
          %v5823 = vmul.f32 %v5723, %v5749
          %v5824 = vmul.f32 %v5724, %v5753
          %v5825 = vmul.f32 %v5725, %v5757
          %v5826 = vmul.f32 %v5726, %v5761
          %v5827 = vmul.f32 %v5727, %v5765
          %v5828 = vmul.f32 %v5728, %v5769
          %v5829 = vmul.f32 %v5729, %v5773
          %v5830 = vmul.f32 %v5730, %v5777
          %v5831 = vmul.f32 %v5731, %v5781
          %v5832 = vmul.f32 %v5732, %v5785
          %v5833 = vmul.f32 %v5733, %v5789
          %v5834 = vmul.f32 %v5734, %v5793
          %v5835 = vmul.f32 %v5735, %v5797
          %v5836 = vmul.f32 %v5736, %v5801
          %v5837 = vmul.f32 %v5737, %v5805
          %v5838 = vld [vmem:[#allocation11] sm:$0xff]
          %v5839 = vld [vmem:[#allocation11 + $0x8] sm:$0xff]
          %v5842 = vlaneseq
          %v5843 = vshrl.u32 %v5842, 7
          %v5844 = vsub.s32 0, %v5843
          %v5845 = vrot.slane %v5838, %v5844
          %v5846 = vlaneseq
          %v5847 = vshrl.u32 %v5846, 7
          %v5848 = vsub.s32 1, %v5847
          %v5849 = vrot.slane %v5838, %v5848
          %v5850 = vlaneseq
          %v5851 = vshrl.u32 %v5850, 7
          %v5852 = vsub.s32 2, %v5851
          %v5853 = vrot.slane %v5838, %v5852
          %v5854 = vlaneseq
          %v5855 = vshrl.u32 %v5854, 7
          %v5856 = vsub.s32 3, %v5855
          %v5857 = vrot.slane %v5838, %v5856
          %v5858 = vlaneseq
          %v5859 = vshrl.u32 %v5858, 7
          %v5860 = vsub.s32 4, %v5859
          %v5861 = vrot.slane %v5838, %v5860
          %v5862 = vlaneseq
          %v5863 = vshrl.u32 %v5862, 7
          %v5864 = vsub.s32 5, %v5863
          %v5865 = vrot.slane %v5838, %v5864
          %v5866 = vlaneseq
          %v5867 = vshrl.u32 %v5866, 7
          %v5868 = vsub.s32 6, %v5867
          %v5869 = vrot.slane %v5838, %v5868
          %v5870 = vlaneseq
          %v5871 = vshrl.u32 %v5870, 7
          %v5872 = vsub.s32 7, %v5871
          %v5873 = vrot.slane %v5838, %v5872
          %v5874 = vlaneseq
          %v5875 = vshrl.u32 %v5874, 7
          %v5876 = vsub.s32 0, %v5875
          %v5877 = vrot.slane %v5839, %v5876
          %v5878 = vlaneseq
          %v5879 = vshrl.u32 %v5878, 7
          %v5880 = vsub.s32 1, %v5879
          %v5881 = vrot.slane %v5839, %v5880
          %v5882 = vlaneseq
          %v5883 = vshrl.u32 %v5882, 7
          %v5884 = vsub.s32 2, %v5883
          %v5885 = vrot.slane %v5839, %v5884
          %v5886 = vlaneseq
          %v5887 = vshrl.u32 %v5886, 7
          %v5888 = vsub.s32 3, %v5887
          %v5889 = vrot.slane %v5839, %v5888
          %v5890 = vlaneseq
          %v5891 = vshrl.u32 %v5890, 7
          %v5892 = vsub.s32 4, %v5891
          %v5893 = vrot.slane %v5839, %v5892
          %v5894 = vlaneseq
          %v5895 = vshrl.u32 %v5894, 7
          %v5896 = vsub.s32 5, %v5895
          %v5897 = vrot.slane %v5839, %v5896
          %v5898 = vlaneseq
          %v5899 = vshrl.u32 %v5898, 7
          %v5900 = vsub.s32 6, %v5899
          %v5901 = vrot.slane %v5839, %v5900
          %v5902 = vlaneseq
          %v5903 = vshrl.u32 %v5902, 7
          %v5904 = vsub.s32 7, %v5903
          %v5905 = vrot.slane %v5839, %v5904
          %v5922 = vadd.f32 %v5822, %v5845
          %v5923 = vadd.f32 %v5823, %v5849
          %v5924 = vadd.f32 %v5824, %v5853
          %v5925 = vadd.f32 %v5825, %v5857
          %v5926 = vadd.f32 %v5826, %v5861
          %v5927 = vadd.f32 %v5827, %v5865
          %v5928 = vadd.f32 %v5828, %v5869
          %v5929 = vadd.f32 %v5829, %v5873
          %v5930 = vadd.f32 %v5830, %v5877
          %v5931 = vadd.f32 %v5831, %v5881
          %v5932 = vadd.f32 %v5832, %v5885
          %v5933 = vadd.f32 %v5833, %v5889
          %v5934 = vadd.f32 %v5834, %v5893
          %v5935 = vadd.f32 %v5835, %v5897
          %v5936 = vadd.f32 %v5836, %v5901
          %v5937 = vadd.f32 %v5837, %v5905
          %v5938 = vmax.f32 %v5922, 0.0
          %v5939 = vmax.f32 %v5923, 0.0
          %v5940 = vmax.f32 %v5924, 0.0
          %v5941 = vmax.f32 %v5925, 0.0
          %v5942 = vmax.f32 %v5926, 0.0
          %v5943 = vmax.f32 %v5927, 0.0
          %v5944 = vmax.f32 %v5928, 0.0
          %v5945 = vmax.f32 %v5929, 0.0
          %v5946 = vmax.f32 %v5930, 0.0
          %v5947 = vmax.f32 %v5931, 0.0
          %v5948 = vmax.f32 %v5932, 0.0
          %v5949 = vmax.f32 %v5933, 0.0
          %v5950 = vmax.f32 %v5934, 0.0
          %v5951 = vmax.f32 %v5935, 0.0
          %v5952 = vmax.f32 %v5936, 0.0
          %v5953 = vmax.f32 %v5937, 0.0
          %v5954 = vrot.slane %v4796, 4
          %v5955 = vadd.f32 %v4796, %v5954
          %v5956 = vrot.slane %v5955, 2
          %v5957 = vadd.f32 %v5955, %v5956
          %v5958 = vrot.slane %v5957, 1
          %v5959 = vadd.f32 %v5957, %v5958
          %v5960 = vrot.slane %v4798, 4
          %v5961 = vadd.f32 %v4798, %v5960
          %v5962 = vrot.slane %v5961, 2
          %v5963 = vadd.f32 %v5961, %v5962
          %v5964 = vrot.slane %v5963, 1
          %v5965 = vadd.f32 %v5963, %v5964
          %v5966 = vrot.slane %v4882, 4
          %v5967 = vadd.f32 %v4882, %v5966
          %v5968 = vrot.slane %v5967, 2
          %v5969 = vadd.f32 %v5967, %v5968
          %v5970 = vrot.slane %v5969, 1
          %v5971 = vadd.f32 %v5969, %v5970
          %v5972 = vrot.slane %v4884, 4
          %v5973 = vadd.f32 %v4884, %v5972
          %v5974 = vrot.slane %v5973, 2
          %v5975 = vadd.f32 %v5973, %v5974
          %v5976 = vrot.slane %v5975, 1
          %v5977 = vadd.f32 %v5975, %v5976
          %v5978 = vrot.slane %v4968, 4
          %v5979 = vadd.f32 %v4968, %v5978
          %v5980 = vrot.slane %v5979, 2
          %v5981 = vadd.f32 %v5979, %v5980
          %v5982 = vrot.slane %v5981, 1
          %v5983 = vadd.f32 %v5981, %v5982
          %v5984 = vrot.slane %v4970, 4
          %v5985 = vadd.f32 %v4970, %v5984
          %v5986 = vrot.slane %v5985, 2
          %v5987 = vadd.f32 %v5985, %v5986
          %v5988 = vrot.slane %v5987, 1
          %v5989 = vadd.f32 %v5987, %v5988
          %v5990 = vrot.slane %v5054, 4
          %v5991 = vadd.f32 %v5054, %v5990
          %v5992 = vrot.slane %v5991, 2
          %v5993 = vadd.f32 %v5991, %v5992
          %v5994 = vrot.slane %v5993, 1
          %v5995 = vadd.f32 %v5993, %v5994
          %v5996 = vrot.slane %v5056, 4
          %v5997 = vadd.f32 %v5056, %v5996
          %v5998 = vrot.slane %v5997, 2
          %v5999 = vadd.f32 %v5997, %v5998
          %v6000 = vrot.slane %v5999, 1
          %v6001 = vadd.f32 %v5999, %v6000
          %v6002 = vrot.slane %v5140, 4
          %v6003 = vadd.f32 %v5140, %v6002
          %v6004 = vrot.slane %v6003, 2
          %v6005 = vadd.f32 %v6003, %v6004
          %v6006 = vrot.slane %v6005, 1
          %v6007 = vadd.f32 %v6005, %v6006
          %v6008 = vrot.slane %v5142, 4
          %v6009 = vadd.f32 %v5142, %v6008
          %v6010 = vrot.slane %v6009, 2
          %v6011 = vadd.f32 %v6009, %v6010
          %v6012 = vrot.slane %v6011, 1
          %v6013 = vadd.f32 %v6011, %v6012
          %v6014 = vrot.slane %v5226, 4
          %v6015 = vadd.f32 %v5226, %v6014
          %v6016 = vrot.slane %v6015, 2
          %v6017 = vadd.f32 %v6015, %v6016
          %v6018 = vrot.slane %v6017, 1
          %v6019 = vadd.f32 %v6017, %v6018
          %v6020 = vrot.slane %v5228, 4
          %v6021 = vadd.f32 %v5228, %v6020
          %v6022 = vrot.slane %v6021, 2
          %v6023 = vadd.f32 %v6021, %v6022
          %v6024 = vrot.slane %v6023, 1
          %v6025 = vadd.f32 %v6023, %v6024
          %v6026 = vrot.slane %v5312, 4
          %v6027 = vadd.f32 %v5312, %v6026
          %v6028 = vrot.slane %v6027, 2
          %v6029 = vadd.f32 %v6027, %v6028
          %v6030 = vrot.slane %v6029, 1
          %v6031 = vadd.f32 %v6029, %v6030
          %v6032 = vrot.slane %v5314, 4
          %v6033 = vadd.f32 %v5314, %v6032
          %v6034 = vrot.slane %v6033, 2
          %v6035 = vadd.f32 %v6033, %v6034
          %v6036 = vrot.slane %v6035, 1
          %v6037 = vadd.f32 %v6035, %v6036
          %v6038 = vrot.slane %v5398, 4
          %v6039 = vadd.f32 %v5398, %v6038
          %v6040 = vrot.slane %v6039, 2
          %v6041 = vadd.f32 %v6039, %v6040
          %v6042 = vrot.slane %v6041, 1
          %v6043 = vadd.f32 %v6041, %v6042
          %v6044 = vrot.slane %v5400, 4
          %v6045 = vadd.f32 %v5400, %v6044
          %v6046 = vrot.slane %v6045, 2
          %v6047 = vadd.f32 %v6045, %v6046
          %v6048 = vrot.slane %v6047, 1
          %v6049 = vadd.f32 %v6047, %v6048
          %v6050 = vmul.f32 %v4796, %v4796
          %v6051 = vmul.f32 %v4798, %v4798
          %v6052 = vmul.f32 %v4882, %v4882
          %v6053 = vmul.f32 %v4884, %v4884
          %v6054 = vmul.f32 %v4968, %v4968
          %v6055 = vmul.f32 %v4970, %v4970
          %v6056 = vmul.f32 %v5054, %v5054
          %v6057 = vmul.f32 %v5056, %v5056
          %v6058 = vmul.f32 %v5140, %v5140
          %v6059 = vmul.f32 %v5142, %v5142
          %v6060 = vmul.f32 %v5226, %v5226
          %v6061 = vmul.f32 %v5228, %v5228
          %v6062 = vmul.f32 %v5312, %v5312
          %v6063 = vmul.f32 %v5314, %v5314
          %v6064 = vmul.f32 %v5398, %v5398
          %v6065 = vmul.f32 %v5400, %v5400
          %v6066 = vrot.slane %v6050, 4
          %v6067 = vadd.f32 %v6050, %v6066
          %v6068 = vrot.slane %v6067, 2
          %v6069 = vadd.f32 %v6067, %v6068
          %v6070 = vrot.slane %v6069, 1
          %v6071 = vadd.f32 %v6069, %v6070
          %v6072 = vrot.slane %v6051, 4
          %v6073 = vadd.f32 %v6051, %v6072
          %v6074 = vrot.slane %v6073, 2
          %v6075 = vadd.f32 %v6073, %v6074
          %v6076 = vrot.slane %v6075, 1
          %v6077 = vadd.f32 %v6075, %v6076
          %v6078 = vrot.slane %v6052, 4
          %v6079 = vadd.f32 %v6052, %v6078
          %v6080 = vrot.slane %v6079, 2
          %v6081 = vadd.f32 %v6079, %v6080
          %v6082 = vrot.slane %v6081, 1
          %v6083 = vadd.f32 %v6081, %v6082
          %v6084 = vrot.slane %v6053, 4
          %v6085 = vadd.f32 %v6053, %v6084
          %v6086 = vrot.slane %v6085, 2
          %v6087 = vadd.f32 %v6085, %v6086
          %v6088 = vrot.slane %v6087, 1
          %v6089 = vadd.f32 %v6087, %v6088
          %v6090 = vrot.slane %v6054, 4
          %v6091 = vadd.f32 %v6054, %v6090
          %v6092 = vrot.slane %v6091, 2
          %v6093 = vadd.f32 %v6091, %v6092
          %v6094 = vrot.slane %v6093, 1
          %v6095 = vadd.f32 %v6093, %v6094
          %v6096 = vrot.slane %v6055, 4
          %v6097 = vadd.f32 %v6055, %v6096
          %v6098 = vrot.slane %v6097, 2
          %v6099 = vadd.f32 %v6097, %v6098
          %v6100 = vrot.slane %v6099, 1
          %v6101 = vadd.f32 %v6099, %v6100
          %v6102 = vrot.slane %v6056, 4
          %v6103 = vadd.f32 %v6056, %v6102
          %v6104 = vrot.slane %v6103, 2
          %v6105 = vadd.f32 %v6103, %v6104
          %v6106 = vrot.slane %v6105, 1
          %v6107 = vadd.f32 %v6105, %v6106
          %v6108 = vrot.slane %v6057, 4
          %v6109 = vadd.f32 %v6057, %v6108
          %v6110 = vrot.slane %v6109, 2
          %v6111 = vadd.f32 %v6109, %v6110
          %v6112 = vrot.slane %v6111, 1
          %v6113 = vadd.f32 %v6111, %v6112
          %v6114 = vrot.slane %v6058, 4
          %v6115 = vadd.f32 %v6058, %v6114
          %v6116 = vrot.slane %v6115, 2
          %v6117 = vadd.f32 %v6115, %v6116
          %v6118 = vrot.slane %v6117, 1
          %v6119 = vadd.f32 %v6117, %v6118
          %v6120 = vrot.slane %v6059, 4
          %v6121 = vadd.f32 %v6059, %v6120
          %v6122 = vrot.slane %v6121, 2
          %v6123 = vadd.f32 %v6121, %v6122
          %v6124 = vrot.slane %v6123, 1
          %v6125 = vadd.f32 %v6123, %v6124
          %v6126 = vrot.slane %v6060, 4
          %v6127 = vadd.f32 %v6060, %v6126
          %v6128 = vrot.slane %v6127, 2
          %v6129 = vadd.f32 %v6127, %v6128
          %v6130 = vrot.slane %v6129, 1
          %v6131 = vadd.f32 %v6129, %v6130
          %v6132 = vrot.slane %v6061, 4
          %v6133 = vadd.f32 %v6061, %v6132
          %v6134 = vrot.slane %v6133, 2
          %v6135 = vadd.f32 %v6133, %v6134
          %v6136 = vrot.slane %v6135, 1
          %v6137 = vadd.f32 %v6135, %v6136
          %v6138 = vrot.slane %v6062, 4
          %v6139 = vadd.f32 %v6062, %v6138
          %v6140 = vrot.slane %v6139, 2
          %v6141 = vadd.f32 %v6139, %v6140
          %v6142 = vrot.slane %v6141, 1
          %v6143 = vadd.f32 %v6141, %v6142
          %v6144 = vrot.slane %v6063, 4
          %v6145 = vadd.f32 %v6063, %v6144
          %v6146 = vrot.slane %v6145, 2
          %v6147 = vadd.f32 %v6145, %v6146
          %v6148 = vrot.slane %v6147, 1
          %v6149 = vadd.f32 %v6147, %v6148
          %v6150 = vrot.slane %v6064, 4
          %v6151 = vadd.f32 %v6064, %v6150
          %v6152 = vrot.slane %v6151, 2
          %v6153 = vadd.f32 %v6151, %v6152
          %v6154 = vrot.slane %v6153, 1
          %v6155 = vadd.f32 %v6153, %v6154
          %v6156 = vrot.slane %v6065, 4
          %v6157 = vadd.f32 %v6065, %v6156
          %v6158 = vrot.slane %v6157, 2
          %v6159 = vadd.f32 %v6157, %v6158
          %v6160 = vrot.slane %v6159, 1
          %v6161 = vadd.f32 %v6159, %v6160
          %v6162 = vmul.f32 %v5959, 0.125
          %v6163 = vmul.f32 %v5965, 0.125
          %v6164 = vmul.f32 %v5971, 0.125
          %v6165 = vmul.f32 %v5977, 0.125
          %v6166 = vmul.f32 %v5983, 0.125
          %v6167 = vmul.f32 %v5989, 0.125
          %v6168 = vmul.f32 %v5995, 0.125
          %v6169 = vmul.f32 %v6001, 0.125
          %v6170 = vmul.f32 %v6007, 0.125
          %v6171 = vmul.f32 %v6013, 0.125
          %v6172 = vmul.f32 %v6019, 0.125
          %v6173 = vmul.f32 %v6025, 0.125
          %v6174 = vmul.f32 %v6031, 0.125
          %v6175 = vmul.f32 %v6037, 0.125
          %v6176 = vmul.f32 %v6043, 0.125
          %v6177 = vmul.f32 %v6049, 0.125
          %v6178 = vmul.f32 %v6071, 0.125
          %v6179 = vmul.f32 %v6077, 0.125
          %v6180 = vmul.f32 %v6083, 0.125
          %v6181 = vmul.f32 %v6089, 0.125
          %v6182 = vmul.f32 %v6095, 0.125
          %v6183 = vmul.f32 %v6101, 0.125
          %v6184 = vmul.f32 %v6107, 0.125
          %v6185 = vmul.f32 %v6113, 0.125
          %v6186 = vmul.f32 %v6119, 0.125
          %v6187 = vmul.f32 %v6125, 0.125
          %v6188 = vmul.f32 %v6131, 0.125
          %v6189 = vmul.f32 %v6137, 0.125
          %v6190 = vmul.f32 %v6143, 0.125
          %v6191 = vmul.f32 %v6149, 0.125
          %v6192 = vmul.f32 %v6155, 0.125
          %v6193 = vmul.f32 %v6161, 0.125
          %v6194 = vmul.f32 %v6162, %v6162
          %v6195 = vmul.f32 %v6163, %v6163
          %v6196 = vmul.f32 %v6164, %v6164
          %v6197 = vmul.f32 %v6165, %v6165
          %v6198 = vmul.f32 %v6166, %v6166
          %v6199 = vmul.f32 %v6167, %v6167
          %v6200 = vmul.f32 %v6168, %v6168
          %v6201 = vmul.f32 %v6169, %v6169
          %v6202 = vmul.f32 %v6170, %v6170
          %v6203 = vmul.f32 %v6171, %v6171
          %v6204 = vmul.f32 %v6172, %v6172
          %v6205 = vmul.f32 %v6173, %v6173
          %v6206 = vmul.f32 %v6174, %v6174
          %v6207 = vmul.f32 %v6175, %v6175
          %v6208 = vmul.f32 %v6176, %v6176
          %v6209 = vmul.f32 %v6177, %v6177
          %v6210 = vsub.f32 %v6178, %v6194
          %v6211 = vsub.f32 %v6179, %v6195
          %v6212 = vsub.f32 %v6180, %v6196
          %v6213 = vsub.f32 %v6181, %v6197
          %v6214 = vsub.f32 %v6182, %v6198
          %v6215 = vsub.f32 %v6183, %v6199
          %v6216 = vsub.f32 %v6184, %v6200
          %v6217 = vsub.f32 %v6185, %v6201
          %v6218 = vsub.f32 %v6186, %v6202
          %v6219 = vsub.f32 %v6187, %v6203
          %v6220 = vsub.f32 %v6188, %v6204
          %v6221 = vsub.f32 %v6189, %v6205
          %v6222 = vsub.f32 %v6190, %v6206
          %v6223 = vsub.f32 %v6191, %v6207
          %v6224 = vsub.f32 %v6192, %v6208
          %v6225 = vsub.f32 %v6193, %v6209
          %v6226 = vsub.f32 %v4796, %v6162
          %v6227 = vsub.f32 %v4798, %v6163
          %v6228 = vsub.f32 %v4882, %v6164
          %v6229 = vsub.f32 %v4884, %v6165
          %v6230 = vsub.f32 %v4968, %v6166
          %v6231 = vsub.f32 %v4970, %v6167
          %v6232 = vsub.f32 %v5054, %v6168
          %v6233 = vsub.f32 %v5056, %v6169
          %v6234 = vsub.f32 %v5140, %v6170
          %v6235 = vsub.f32 %v5142, %v6171
          %v6236 = vsub.f32 %v5226, %v6172
          %v6237 = vsub.f32 %v5228, %v6173
          %v6238 = vsub.f32 %v5312, %v6174
          %v6239 = vsub.f32 %v5314, %v6175
          %v6240 = vsub.f32 %v5398, %v6176
          %v6241 = vsub.f32 %v5400, %v6177
          %v6242 = vadd.f32 %v6210, 1e-05
          %v6243 = vadd.f32 %v6211, 1e-05
          %v6244 = vadd.f32 %v6212, 1e-05
          %v6245 = vadd.f32 %v6213, 1e-05
          %v6246 = vadd.f32 %v6214, 1e-05
          %v6247 = vadd.f32 %v6215, 1e-05
          %v6248 = vadd.f32 %v6216, 1e-05
          %v6249 = vadd.f32 %v6217, 1e-05
          %v6250 = vadd.f32 %v6218, 1e-05
          %v6251 = vadd.f32 %v6219, 1e-05
          %v6252 = vadd.f32 %v6220, 1e-05
          %v6253 = vadd.f32 %v6221, 1e-05
          %v6254 = vadd.f32 %v6222, 1e-05
          %v6255 = vadd.f32 %v6223, 1e-05
          %v6256 = vadd.f32 %v6224, 1e-05
          %v6257 = vadd.f32 %v6225, 1e-05
          %v6258 = vrsqrt.pop %v6242
          %v6259 = vrsqrt.pop %v6243
          %v6260 = vrsqrt.pop %v6244
          %v6261 = vrsqrt.pop %v6245
          %v6262 = vrsqrt.pop %v6246
          %v6263 = vrsqrt.pop %v6247
          %v6264 = vrsqrt.pop %v6248
          %v6265 = vrsqrt.pop %v6249
          %v6266 = vrsqrt.pop %v6250
          %v6267 = vrsqrt.pop %v6251
          %v6268 = vrsqrt.pop %v6252
          %v6269 = vrsqrt.pop %v6253
          %v6270 = vrsqrt.pop %v6254
          %v6271 = vrsqrt.pop %v6255
          %v6272 = vrsqrt.pop %v6256
          %v6273 = vrsqrt.pop %v6257
          %v6274 = vmul.f32 %v6226, %v6258
          %v6275 = vmul.f32 %v6227, %v6259
          %v6276 = vmul.f32 %v6228, %v6260
          %v6277 = vmul.f32 %v6229, %v6261
          %v6278 = vmul.f32 %v6230, %v6262
          %v6279 = vmul.f32 %v6231, %v6263
          %v6280 = vmul.f32 %v6232, %v6264
          %v6281 = vmul.f32 %v6233, %v6265
          %v6282 = vmul.f32 %v6234, %v6266
          %v6283 = vmul.f32 %v6235, %v6267
          %v6284 = vmul.f32 %v6236, %v6268
          %v6285 = vmul.f32 %v6237, %v6269
          %v6286 = vmul.f32 %v6238, %v6270
          %v6287 = vmul.f32 %v6239, %v6271
          %v6288 = vmul.f32 %v6240, %v6272
          %v6289 = vmul.f32 %v6241, %v6273
          %v6290 = vmul.f32 %v6274, %v5745
          %v6291 = vmul.f32 %v6275, %v5749
          %v6292 = vmul.f32 %v6276, %v5753
          %v6293 = vmul.f32 %v6277, %v5757
          %v6294 = vmul.f32 %v6278, %v5761
          %v6295 = vmul.f32 %v6279, %v5765
          %v6296 = vmul.f32 %v6280, %v5769
          %v6297 = vmul.f32 %v6281, %v5773
          %v6298 = vmul.f32 %v6282, %v5777
          %v6299 = vmul.f32 %v6283, %v5781
          %v6300 = vmul.f32 %v6284, %v5785
          %v6301 = vmul.f32 %v6285, %v5789
          %v6302 = vmul.f32 %v6286, %v5793
          %v6303 = vmul.f32 %v6287, %v5797
          %v6304 = vmul.f32 %v6288, %v5801
          %v6305 = vmul.f32 %v6289, %v5805
          %v6306 = vadd.f32 %v6290, %v5845
          %v6307 = vadd.f32 %v6291, %v5849
          %v6308 = vadd.f32 %v6292, %v5853
          %v6309 = vadd.f32 %v6293, %v5857
          %v6310 = vadd.f32 %v6294, %v5861
          %v6311 = vadd.f32 %v6295, %v5865
          %v6312 = vadd.f32 %v6296, %v5869
          %v6313 = vadd.f32 %v6297, %v5873
          %v6314 = vadd.f32 %v6298, %v5877
          %v6315 = vadd.f32 %v6299, %v5881
          %v6316 = vadd.f32 %v6300, %v5885
          %v6317 = vadd.f32 %v6301, %v5889
          %v6318 = vadd.f32 %v6302, %v5893
          %v6319 = vadd.f32 %v6303, %v5897
          %v6320 = vadd.f32 %v6304, %v5901
          %v6321 = vadd.f32 %v6305, %v5905
          %v6322 = vmax.f32 %v6306, 0.0
          %v6323 = vmax.f32 %v6307, 0.0
          %v6324 = vmax.f32 %v6308, 0.0
          %v6325 = vmax.f32 %v6309, 0.0
          %v6326 = vmax.f32 %v6310, 0.0
          %v6327 = vmax.f32 %v6311, 0.0
          %v6328 = vmax.f32 %v6312, 0.0
          %v6329 = vmax.f32 %v6313, 0.0
          %v6330 = vmax.f32 %v6314, 0.0
          %v6331 = vmax.f32 %v6315, 0.0
          %v6332 = vmax.f32 %v6316, 0.0
          %v6333 = vmax.f32 %v6317, 0.0
          %v6334 = vmax.f32 %v6318, 0.0
          %v6335 = vmax.f32 %v6319, 0.0
          %v6336 = vmax.f32 %v6320, 0.0
          %v6337 = vmax.f32 %v6321, 0.0
          %v6338 = vpack.c.bf16 %v6322, %v5938
          %v6339 = vpack.c.bf16 %v6323, %v5939
          %v6340 = vpack.c.bf16 %v6324, %v5940
          %v6341 = vpack.c.bf16 %v6325, %v5941
          %v6342 = vpack.c.bf16 %v6326, %v5942
          %v6343 = vpack.c.bf16 %v6327, %v5943
          %v6344 = vpack.c.bf16 %v6328, %v5944
          %v6345 = vpack.c.bf16 %v6329, %v5945
          %v6346 = vpack.c.bf16 %v6330, %v5946
          %v6347 = vpack.c.bf16 %v6331, %v5947
          %v6348 = vpack.c.bf16 %v6332, %v5948
          %v6349 = vpack.c.bf16 %v6333, %v5949
          %v6350 = vpack.c.bf16 %v6334, %v5950
          %v6351 = vpack.c.bf16 %v6335, %v5951
          %v6352 = vpack.c.bf16 %v6336, %v5952
          %v6353 = vpack.c.bf16 %v6337, %v5953
          %v6354 = vld [vmem:[#allocation13] sm:$0xff]
          %v6355 = vld [vmem:[#allocation13 + $0x8] sm:$0xff]
          %v6356 = vld [vmem:[#allocation13 + $0x10] sm:$0xff]
          %v6357 = vld [vmem:[#allocation13 + $0x18] sm:$0xff]
          %v6358 = vld [vmem:[#allocation13 + $0x20] sm:$0xff]
          %v6359 = vld [vmem:[#allocation13 + $0x28] sm:$0xff]
          %v6360 = vld [vmem:[#allocation13 + $0x30] sm:$0xff]
          %v6361 = vld [vmem:[#allocation13 + $0x38] sm:$0xff]
          %v6362 = vld [vmem:[#allocation13 + $0x40] sm:$0xff]
          %v6363 = vld [vmem:[#allocation13 + $0x48] sm:$0xff]
          %v6364 = vld [vmem:[#allocation13 + $0x50] sm:$0xff]
          %v6365 = vld [vmem:[#allocation13 + $0x58] sm:$0xff]
          %v6366 = vld [vmem:[#allocation13 + $0x60] sm:$0xff]
          %v6367 = vld [vmem:[#allocation13 + $0x68] sm:$0xff]
          %v6368 = vld [vmem:[#allocation13 + $0x70] sm:$0xff]
          %v6369 = vld [vmem:[#allocation13 + $0x78] sm:$0xff]
          %v6370 = vld [vmem:[#allocation13 + $0x80] sm:$0xff]
          %v6371 = vld [vmem:[#allocation13 + $0x88] sm:$0xff]
          %v6372 = vld [vmem:[#allocation13 + $0x90] sm:$0xff]
          %v6373 = vld [vmem:[#allocation13 + $0x98] sm:$0xff]
          %v6374 = vld [vmem:[#allocation13 + $0xa0] sm:$0xff]
          %v6375 = vld [vmem:[#allocation13 + $0xa8] sm:$0xff]
          %v6376 = vld [vmem:[#allocation13 + $0xb0] sm:$0xff]
          %v6377 = vld [vmem:[#allocation13 + $0xb8] sm:$0xff]
          %v6378 = vld [vmem:[#allocation13 + $0xc0] sm:$0xff]
          %v6379 = vld [vmem:[#allocation13 + $0xc8] sm:$0xff]
          %v6380 = vld [vmem:[#allocation13 + $0xd0] sm:$0xff]
          %v6381 = vld [vmem:[#allocation13 + $0xd8] sm:$0xff]
          %v6382 = vld [vmem:[#allocation13 + $0xe0] sm:$0xff]
          %v6383 = vld [vmem:[#allocation13 + $0xe8] sm:$0xff]
          %v6384 = vld [vmem:[#allocation13 + $0xf0] sm:$0xff]
          %v6385 = vld [vmem:[#allocation13 + $0xf8] sm:$0xff]
          %v6386 = vld [vmem:[#allocation13 + $0x100] sm:$0xff]
          %v6387 = vld [vmem:[#allocation13 + $0x108] sm:$0xff]
          %v6388 = vld [vmem:[#allocation13 + $0x110] sm:$0xff]
          %v6389 = vld [vmem:[#allocation13 + $0x118] sm:$0xff]
          %v6390 = vld [vmem:[#allocation13 + $0x120] sm:$0xff]
          %v6391 = vld [vmem:[#allocation13 + $0x128] sm:$0xff]
          %v6392 = vld [vmem:[#allocation13 + $0x130] sm:$0xff]
          %v6393 = vld [vmem:[#allocation13 + $0x138] sm:$0xff]
          %v6394 = vld [vmem:[#allocation13 + $0x140] sm:$0xff]
          %v6395 = vld [vmem:[#allocation13 + $0x148] sm:$0xff]
          %v6396 = vld [vmem:[#allocation13 + $0x150] sm:$0xff]
          %v6397 = vld [vmem:[#allocation13 + $0x158] sm:$0xff]
          %v6398 = vld [vmem:[#allocation13 + $0x160] sm:$0xff]
          %v6399 = vld [vmem:[#allocation13 + $0x168] sm:$0xff]
          %v6400 = vld [vmem:[#allocation13 + $0x170] sm:$0xff]
          %v6401 = vld [vmem:[#allocation13 + $0x178] sm:$0xff]
          %v6402 = vld [vmem:[#allocation13 + $0x180] sm:$0xff]
          %v6403 = vld [vmem:[#allocation13 + $0x188] sm:$0xff]
          %v6404 = vld [vmem:[#allocation13 + $0x190] sm:$0xff]
          %v6405 = vld [vmem:[#allocation13 + $0x198] sm:$0xff]
          %v6406 = vld [vmem:[#allocation13 + $0x1a0] sm:$0xff]
          %v6407 = vld [vmem:[#allocation13 + $0x1a8] sm:$0xff]
          %v6408 = vld [vmem:[#allocation13 + $0x1b0] sm:$0xff]
          %v6409 = vld [vmem:[#allocation13 + $0x1b8] sm:$0xff]
          %v6410 = vld [vmem:[#allocation13 + $0x1c0] sm:$0xff]
          %v6411 = vld [vmem:[#allocation13 + $0x1c8] sm:$0xff]
          %v6412 = vld [vmem:[#allocation13 + $0x1d0] sm:$0xff]
          %v6413 = vld [vmem:[#allocation13 + $0x1d8] sm:$0xff]
          %v6414 = vld [vmem:[#allocation13 + $0x1e0] sm:$0xff]
          %v6415 = vld [vmem:[#allocation13 + $0x1e8] sm:$0xff]
          %v6416 = vld [vmem:[#allocation13 + $0x1f0] sm:$0xff]
          %v6417 = vld [vmem:[#allocation13 + $0x1f8] sm:$0xff]
          %v6418 = vld [vmem:[#allocation13 + $0x200] sm:$0xff]
          %v6419 = vld [vmem:[#allocation13 + $0x208] sm:$0xff]
          %v6420 = vld [vmem:[#allocation13 + $0x210] sm:$0xff]
          %v6421 = vld [vmem:[#allocation13 + $0x218] sm:$0xff]
          %v6422 = vld [vmem:[#allocation13 + $0x220] sm:$0xff]
          %v6423 = vld [vmem:[#allocation13 + $0x228] sm:$0xff]
          %v6424 = vld [vmem:[#allocation13 + $0x230] sm:$0xff]
          %v6425 = vld [vmem:[#allocation13 + $0x238] sm:$0xff]
          %v6426 = vld [vmem:[#allocation13 + $0x240] sm:$0xff]
          %v6427 = vld [vmem:[#allocation13 + $0x248] sm:$0xff]
          %v6428 = vld [vmem:[#allocation13 + $0x250] sm:$0xff]
          %v6429 = vld [vmem:[#allocation13 + $0x258] sm:$0xff]
          %v6430 = vld [vmem:[#allocation13 + $0x260] sm:$0xff]
          %v6431 = vld [vmem:[#allocation13 + $0x268] sm:$0xff]
          %v6432 = vld [vmem:[#allocation13 + $0x270] sm:$0xff]
          %v6433 = vld [vmem:[#allocation13 + $0x278] sm:$0xff]
          %v6434 = vld [vmem:[#allocation13 + $0x280] sm:$0xff]
          %v6435 = vld [vmem:[#allocation13 + $0x288] sm:$0xff]
          %v6436 = vld [vmem:[#allocation13 + $0x290] sm:$0xff]
          %v6437 = vld [vmem:[#allocation13 + $0x298] sm:$0xff]
          %v6438 = vld [vmem:[#allocation13 + $0x2a0] sm:$0xff]
          %v6439 = vld [vmem:[#allocation13 + $0x2a8] sm:$0xff]
          %v6440 = vld [vmem:[#allocation13 + $0x2b0] sm:$0xff]
          %v6441 = vld [vmem:[#allocation13 + $0x2b8] sm:$0xff]
          %v6442 = vld [vmem:[#allocation13 + $0x2c0] sm:$0xff]
          %v6443 = vld [vmem:[#allocation13 + $0x2c8] sm:$0xff]
          %v6444 = vld [vmem:[#allocation13 + $0x2d0] sm:$0xff]
          %v6445 = vld [vmem:[#allocation13 + $0x2d8] sm:$0xff]
          %v6446 = vld [vmem:[#allocation13 + $0x2e0] sm:$0xff]
          %v6447 = vld [vmem:[#allocation13 + $0x2e8] sm:$0xff]
          %v6448 = vld [vmem:[#allocation13 + $0x2f0] sm:$0xff]
          %v6449 = vld [vmem:[#allocation13 + $0x2f8] sm:$0xff]
          %v6450 = vld [vmem:[#allocation13 + $0x300] sm:$0xff]
          %v6451 = vld [vmem:[#allocation13 + $0x308] sm:$0xff]
          %v6452 = vld [vmem:[#allocation13 + $0x310] sm:$0xff]
          %v6453 = vld [vmem:[#allocation13 + $0x318] sm:$0xff]
          %v6454 = vld [vmem:[#allocation13 + $0x320] sm:$0xff]
          %v6455 = vld [vmem:[#allocation13 + $0x328] sm:$0xff]
          %v6456 = vld [vmem:[#allocation13 + $0x330] sm:$0xff]
          %v6457 = vld [vmem:[#allocation13 + $0x338] sm:$0xff]
          %v6458 = vld [vmem:[#allocation13 + $0x340] sm:$0xff]
          %v6459 = vld [vmem:[#allocation13 + $0x348] sm:$0xff]
          %v6460 = vld [vmem:[#allocation13 + $0x350] sm:$0xff]
          %v6461 = vld [vmem:[#allocation13 + $0x358] sm:$0xff]
          %v6462 = vld [vmem:[#allocation13 + $0x360] sm:$0xff]
          %v6463 = vld [vmem:[#allocation13 + $0x368] sm:$0xff]
          %v6464 = vld [vmem:[#allocation13 + $0x370] sm:$0xff]
          %v6465 = vld [vmem:[#allocation13 + $0x378] sm:$0xff]
          %v6466 = vld [vmem:[#allocation13 + $0x380] sm:$0xff]
          %v6467 = vld [vmem:[#allocation13 + $0x388] sm:$0xff]
          %v6468 = vld [vmem:[#allocation13 + $0x390] sm:$0xff]
          %v6469 = vld [vmem:[#allocation13 + $0x398] sm:$0xff]
          %v6470 = vld [vmem:[#allocation13 + $0x3a0] sm:$0xff]
          %v6471 = vld [vmem:[#allocation13 + $0x3a8] sm:$0xff]
          %v6472 = vld [vmem:[#allocation13 + $0x3b0] sm:$0xff]
          %v6473 = vld [vmem:[#allocation13 + $0x3b8] sm:$0xff]
          %v6474 = vld [vmem:[#allocation13 + $0x3c0] sm:$0xff]
          %v6475 = vld [vmem:[#allocation13 + $0x3c8] sm:$0xff]
          %v6476 = vld [vmem:[#allocation13 + $0x3d0] sm:$0xff]
          %v6477 = vld [vmem:[#allocation13 + $0x3d8] sm:$0xff]
          %v6478 = vld [vmem:[#allocation13 + $0x3e0] sm:$0xff]
          %v6479 = vld [vmem:[#allocation13 + $0x3e8] sm:$0xff]
          %v6480 = vld [vmem:[#allocation13 + $0x3f0] sm:$0xff]
          %v6481 = vld [vmem:[#allocation13 + $0x3f8] sm:$0xff]
          %v6482 = vld [vmem:[#allocation13 + $0x400] sm:$0xff]
          %v6483 = vld [vmem:[#allocation13 + $0x408] sm:$0xff]
          %v6484 = vld [vmem:[#allocation13 + $0x410] sm:$0xff]
          %v6485 = vld [vmem:[#allocation13 + $0x418] sm:$0xff]
          %v6486 = vld [vmem:[#allocation13 + $0x420] sm:$0xff]
          %v6487 = vld [vmem:[#allocation13 + $0x428] sm:$0xff]
          %v6488 = vld [vmem:[#allocation13 + $0x430] sm:$0xff]
          %v6489 = vld [vmem:[#allocation13 + $0x438] sm:$0xff]
          %v6490 = vld [vmem:[#allocation13 + $0x440] sm:$0xff]
          %v6491 = vld [vmem:[#allocation13 + $0x448] sm:$0xff]
          %v6492 = vld [vmem:[#allocation13 + $0x450] sm:$0xff]
          %v6493 = vld [vmem:[#allocation13 + $0x458] sm:$0xff]
          %v6494 = vld [vmem:[#allocation13 + $0x460] sm:$0xff]
          %v6495 = vld [vmem:[#allocation13 + $0x468] sm:$0xff]
          %v6496 = vld [vmem:[#allocation13 + $0x470] sm:$0xff]
          %v6497 = vld [vmem:[#allocation13 + $0x478] sm:$0xff]
          %v6498 = vld [vmem:[#allocation13 + $0x480] sm:$0xff]
          %v6499 = vld [vmem:[#allocation13 + $0x488] sm:$0xff]
          %v6500 = vld [vmem:[#allocation13 + $0x490] sm:$0xff]
          %v6501 = vld [vmem:[#allocation13 + $0x498] sm:$0xff]
          %v6502 = vld [vmem:[#allocation13 + $0x4a0] sm:$0xff]
          %v6503 = vld [vmem:[#allocation13 + $0x4a8] sm:$0xff]
          %v6504 = vld [vmem:[#allocation13 + $0x4b0] sm:$0xff]
          %v6505 = vld [vmem:[#allocation13 + $0x4b8] sm:$0xff]
          %v6506 = vld [vmem:[#allocation13 + $0x4c0] sm:$0xff]
          %v6507 = vld [vmem:[#allocation13 + $0x4c8] sm:$0xff]
          %v6508 = vld [vmem:[#allocation13 + $0x4d0] sm:$0xff]
          %v6509 = vld [vmem:[#allocation13 + $0x4d8] sm:$0xff]
          %v6510 = vld [vmem:[#allocation13 + $0x4e0] sm:$0xff]
          %v6511 = vld [vmem:[#allocation13 + $0x4e8] sm:$0xff]
          %v6512 = vld [vmem:[#allocation13 + $0x4f0] sm:$0xff]
          %v6513 = vld [vmem:[#allocation13 + $0x4f8] sm:$0xff]
          %v6514 = vld [vmem:[#allocation13 + $0x500] sm:$0xff]
          %v6515 = vld [vmem:[#allocation13 + $0x508] sm:$0xff]
          %v6516 = vld [vmem:[#allocation13 + $0x510] sm:$0xff]
          %v6517 = vld [vmem:[#allocation13 + $0x518] sm:$0xff]
          %v6518 = vld [vmem:[#allocation13 + $0x520] sm:$0xff]
          %v6519 = vld [vmem:[#allocation13 + $0x528] sm:$0xff]
          %v6520 = vld [vmem:[#allocation13 + $0x530] sm:$0xff]
          %v6521 = vld [vmem:[#allocation13 + $0x538] sm:$0xff]
          %v6522 = vld [vmem:[#allocation13 + $0x540] sm:$0xff]
          %v6523 = vld [vmem:[#allocation13 + $0x548] sm:$0xff]
          %v6524 = vld [vmem:[#allocation13 + $0x550] sm:$0xff]
          %v6525 = vld [vmem:[#allocation13 + $0x558] sm:$0xff]
          %v6526 = vld [vmem:[#allocation13 + $0x560] sm:$0xff]
          %v6527 = vld [vmem:[#allocation13 + $0x568] sm:$0xff]
          %v6528 = vld [vmem:[#allocation13 + $0x570] sm:$0xff]
          %v6529 = vld [vmem:[#allocation13 + $0x578] sm:$0xff]
          %v6530 = vld [vmem:[#allocation13 + $0x580] sm:$0xff]
          %v6531 = vld [vmem:[#allocation13 + $0x588] sm:$0xff]
          %v6532 = vld [vmem:[#allocation13 + $0x590] sm:$0xff]
          %v6533 = vld [vmem:[#allocation13 + $0x598] sm:$0xff]
          %v6534 = vld [vmem:[#allocation13 + $0x5a0] sm:$0xff]
          %v6535 = vld [vmem:[#allocation13 + $0x5a8] sm:$0xff]
          %v6536 = vld [vmem:[#allocation13 + $0x5b0] sm:$0xff]
          %v6537 = vld [vmem:[#allocation13 + $0x5b8] sm:$0xff]
          %v6538 = vld [vmem:[#allocation13 + $0x5c0] sm:$0xff]
          %v6539 = vld [vmem:[#allocation13 + $0x5c8] sm:$0xff]
          %v6540 = vld [vmem:[#allocation13 + $0x5d0] sm:$0xff]
          %v6541 = vld [vmem:[#allocation13 + $0x5d8] sm:$0xff]
          %v6542 = vld [vmem:[#allocation13 + $0x5e0] sm:$0xff]
          %v6543 = vld [vmem:[#allocation13 + $0x5e8] sm:$0xff]
          %v6544 = vld [vmem:[#allocation13 + $0x5f0] sm:$0xff]
          %v6545 = vld [vmem:[#allocation13 + $0x5f8] sm:$0xff]
          %v6546 = vld [vmem:[#allocation13 + $0x600] sm:$0xff]
          %v6547 = vld [vmem:[#allocation13 + $0x608] sm:$0xff]
          %v6548 = vld [vmem:[#allocation13 + $0x610] sm:$0xff]
          %v6549 = vld [vmem:[#allocation13 + $0x618] sm:$0xff]
          %v6550 = vld [vmem:[#allocation13 + $0x620] sm:$0xff]
          %v6551 = vld [vmem:[#allocation13 + $0x628] sm:$0xff]
          %v6552 = vld [vmem:[#allocation13 + $0x630] sm:$0xff]
          %v6553 = vld [vmem:[#allocation13 + $0x638] sm:$0xff]
          %v6554 = vld [vmem:[#allocation13 + $0x640] sm:$0xff]
          %v6555 = vld [vmem:[#allocation13 + $0x648] sm:$0xff]
          %v6556 = vld [vmem:[#allocation13 + $0x650] sm:$0xff]
          %v6557 = vld [vmem:[#allocation13 + $0x658] sm:$0xff]
          %v6558 = vld [vmem:[#allocation13 + $0x660] sm:$0xff]
          %v6559 = vld [vmem:[#allocation13 + $0x668] sm:$0xff]
          %v6560 = vld [vmem:[#allocation13 + $0x670] sm:$0xff]
          %v6561 = vld [vmem:[#allocation13 + $0x678] sm:$0xff]
          %v6562 = vld [vmem:[#allocation13 + $0x680] sm:$0xff]
          %v6563 = vld [vmem:[#allocation13 + $0x688] sm:$0xff]
          %v6564 = vld [vmem:[#allocation13 + $0x690] sm:$0xff]
          %v6565 = vld [vmem:[#allocation13 + $0x698] sm:$0xff]
          %v6566 = vld [vmem:[#allocation13 + $0x6a0] sm:$0xff]
          %v6567 = vld [vmem:[#allocation13 + $0x6a8] sm:$0xff]
          %v6568 = vld [vmem:[#allocation13 + $0x6b0] sm:$0xff]
          %v6569 = vld [vmem:[#allocation13 + $0x6b8] sm:$0xff]
          %v6570 = vld [vmem:[#allocation13 + $0x6c0] sm:$0xff]
          %v6571 = vld [vmem:[#allocation13 + $0x6c8] sm:$0xff]
          %v6572 = vld [vmem:[#allocation13 + $0x6d0] sm:$0xff]
          %v6573 = vld [vmem:[#allocation13 + $0x6d8] sm:$0xff]
          %v6574 = vld [vmem:[#allocation13 + $0x6e0] sm:$0xff]
          %v6575 = vld [vmem:[#allocation13 + $0x6e8] sm:$0xff]
          %v6576 = vld [vmem:[#allocation13 + $0x6f0] sm:$0xff]
          %v6577 = vld [vmem:[#allocation13 + $0x6f8] sm:$0xff]
          %v6578 = vld [vmem:[#allocation13 + $0x700] sm:$0xff]
          %v6579 = vld [vmem:[#allocation13 + $0x708] sm:$0xff]
          %v6580 = vld [vmem:[#allocation13 + $0x710] sm:$0xff]
          %v6581 = vld [vmem:[#allocation13 + $0x718] sm:$0xff]
          %v6582 = vld [vmem:[#allocation13 + $0x720] sm:$0xff]
          %v6583 = vld [vmem:[#allocation13 + $0x728] sm:$0xff]
          %v6584 = vld [vmem:[#allocation13 + $0x730] sm:$0xff]
          %v6585 = vld [vmem:[#allocation13 + $0x738] sm:$0xff]
          %v6586 = vld [vmem:[#allocation13 + $0x740] sm:$0xff]
          %v6587 = vld [vmem:[#allocation13 + $0x748] sm:$0xff]
          %v6588 = vld [vmem:[#allocation13 + $0x750] sm:$0xff]
          %v6589 = vld [vmem:[#allocation13 + $0x758] sm:$0xff]
          %v6590 = vld [vmem:[#allocation13 + $0x760] sm:$0xff]
          %v6591 = vld [vmem:[#allocation13 + $0x768] sm:$0xff]
          %v6592 = vld [vmem:[#allocation13 + $0x770] sm:$0xff]
          %v6593 = vld [vmem:[#allocation13 + $0x778] sm:$0xff]
          %v6594 = vld [vmem:[#allocation13 + $0x780] sm:$0xff]
          %v6595 = vld [vmem:[#allocation13 + $0x788] sm:$0xff]
          %v6596 = vld [vmem:[#allocation13 + $0x790] sm:$0xff]
          %v6597 = vld [vmem:[#allocation13 + $0x798] sm:$0xff]
          %v6598 = vld [vmem:[#allocation13 + $0x7a0] sm:$0xff]
          %v6599 = vld [vmem:[#allocation13 + $0x7a8] sm:$0xff]
          %v6600 = vld [vmem:[#allocation13 + $0x7b0] sm:$0xff]
          %v6601 = vld [vmem:[#allocation13 + $0x7b8] sm:$0xff]
          %v6602 = vld [vmem:[#allocation13 + $0x7c0] sm:$0xff]
          %v6603 = vld [vmem:[#allocation13 + $0x7c8] sm:$0xff]
          %v6604 = vld [vmem:[#allocation13 + $0x7d0] sm:$0xff]
          %v6605 = vld [vmem:[#allocation13 + $0x7d8] sm:$0xff]
          %v6606 = vld [vmem:[#allocation13 + $0x7e0] sm:$0xff]
          %v6607 = vld [vmem:[#allocation13 + $0x7e8] sm:$0xff]
          %v6608 = vld [vmem:[#allocation13 + $0x7f0] sm:$0xff]
          %v6609 = vld [vmem:[#allocation13 + $0x7f8] sm:$0xff]
          %v6610 = vld [vmem:[#allocation13 + $0x800] sm:$0xff]
          %v6611 = vld [vmem:[#allocation13 + $0x808] sm:$0xff]
          %v6612 = vld [vmem:[#allocation13 + $0x810] sm:$0xff]
          %v6613 = vld [vmem:[#allocation13 + $0x818] sm:$0xff]
          %v6614 = vld [vmem:[#allocation13 + $0x820] sm:$0xff]
          %v6615 = vld [vmem:[#allocation13 + $0x828] sm:$0xff]
          %v6616 = vld [vmem:[#allocation13 + $0x830] sm:$0xff]
          %v6617 = vld [vmem:[#allocation13 + $0x838] sm:$0xff]
          %v6618 = vld [vmem:[#allocation13 + $0x840] sm:$0xff]
          %v6619 = vld [vmem:[#allocation13 + $0x848] sm:$0xff]
          %v6620 = vld [vmem:[#allocation13 + $0x850] sm:$0xff]
          %v6621 = vld [vmem:[#allocation13 + $0x858] sm:$0xff]
          %v6622 = vld [vmem:[#allocation13 + $0x860] sm:$0xff]
          %v6623 = vld [vmem:[#allocation13 + $0x868] sm:$0xff]
          %v6624 = vld [vmem:[#allocation13 + $0x870] sm:$0xff]
          %v6625 = vld [vmem:[#allocation13 + $0x878] sm:$0xff]
          %v6626 = vld [vmem:[#allocation13 + $0x880] sm:$0xff]
          %v6627 = vld [vmem:[#allocation13 + $0x888] sm:$0xff]
          %v6628 = vld [vmem:[#allocation13 + $0x890] sm:$0xff]
          %v6629 = vld [vmem:[#allocation13 + $0x898] sm:$0xff]
          %v6630 = vld [vmem:[#allocation13 + $0x8a0] sm:$0xff]
          %v6631 = vld [vmem:[#allocation13 + $0x8a8] sm:$0xff]
          %v6632 = vld [vmem:[#allocation13 + $0x8b0] sm:$0xff]
          %v6633 = vld [vmem:[#allocation13 + $0x8b8] sm:$0xff]
          %v6634 = vld [vmem:[#allocation13 + $0x8c0] sm:$0xff]
          %v6635 = vld [vmem:[#allocation13 + $0x8c8] sm:$0xff]
          %v6636 = vld [vmem:[#allocation13 + $0x8d0] sm:$0xff]
          %v6637 = vld [vmem:[#allocation13 + $0x8d8] sm:$0xff]
          %v6638 = vld [vmem:[#allocation13 + $0x8e0] sm:$0xff]
          %v6639 = vld [vmem:[#allocation13 + $0x8e8] sm:$0xff]
          %v6640 = vld [vmem:[#allocation13 + $0x8f0] sm:$0xff]
          %v6641 = vld [vmem:[#allocation13 + $0x8f8] sm:$0xff]
          %v6642 = vld [vmem:[#allocation13 + $0x900] sm:$0xff]
          %v6643 = vld [vmem:[#allocation13 + $0x908] sm:$0xff]
          %v6644 = vld [vmem:[#allocation13 + $0x910] sm:$0xff]
          %v6645 = vld [vmem:[#allocation13 + $0x918] sm:$0xff]
          %v6646 = vld [vmem:[#allocation13 + $0x920] sm:$0xff]
          %v6647 = vld [vmem:[#allocation13 + $0x928] sm:$0xff]
          %v6648 = vld [vmem:[#allocation13 + $0x930] sm:$0xff]
          %v6649 = vld [vmem:[#allocation13 + $0x938] sm:$0xff]
          %v6650 = vld [vmem:[#allocation13 + $0x940] sm:$0xff]
          %v6651 = vld [vmem:[#allocation13 + $0x948] sm:$0xff]
          %v6652 = vld [vmem:[#allocation13 + $0x950] sm:$0xff]
          %v6653 = vld [vmem:[#allocation13 + $0x958] sm:$0xff]
          %v6654 = vld [vmem:[#allocation13 + $0x960] sm:$0xff]
          %v6655 = vld [vmem:[#allocation13 + $0x968] sm:$0xff]
          %v6656 = vld [vmem:[#allocation13 + $0x970] sm:$0xff]
          %v6657 = vld [vmem:[#allocation13 + $0x978] sm:$0xff]
          %v6658 = vld [vmem:[#allocation13 + $0x980] sm:$0xff]
          %v6659 = vld [vmem:[#allocation13 + $0x988] sm:$0xff]
          %v6660 = vld [vmem:[#allocation13 + $0x990] sm:$0xff]
          %v6661 = vld [vmem:[#allocation13 + $0x998] sm:$0xff]
          %v6662 = vld [vmem:[#allocation13 + $0x9a0] sm:$0xff]
          %v6663 = vld [vmem:[#allocation13 + $0x9a8] sm:$0xff]
          %v6664 = vld [vmem:[#allocation13 + $0x9b0] sm:$0xff]
          %v6665 = vld [vmem:[#allocation13 + $0x9b8] sm:$0xff]
          %v6666 = vld [vmem:[#allocation13 + $0x9c0] sm:$0xff]
          %v6667 = vld [vmem:[#allocation13 + $0x9c8] sm:$0xff]
          %v6668 = vld [vmem:[#allocation13 + $0x9d0] sm:$0xff]
          %v6669 = vld [vmem:[#allocation13 + $0x9d8] sm:$0xff]
          %v6670 = vld [vmem:[#allocation13 + $0x9e0] sm:$0xff]
          %v6671 = vld [vmem:[#allocation13 + $0x9e8] sm:$0xff]
          %v6672 = vld [vmem:[#allocation13 + $0x9f0] sm:$0xff]
          %v6673 = vld [vmem:[#allocation13 + $0x9f8] sm:$0xff]
          %v6674 = vld [vmem:[#allocation13 + $0xa00] sm:$0xff]
          %v6675 = vld [vmem:[#allocation13 + $0xa08] sm:$0xff]
          %v6676 = vld [vmem:[#allocation13 + $0xa10] sm:$0xff]
          %v6677 = vld [vmem:[#allocation13 + $0xa18] sm:$0xff]
          %v6678 = vld [vmem:[#allocation13 + $0xa20] sm:$0xff]
          %v6679 = vld [vmem:[#allocation13 + $0xa28] sm:$0xff]
          %v6680 = vld [vmem:[#allocation13 + $0xa30] sm:$0xff]
          %v6681 = vld [vmem:[#allocation13 + $0xa38] sm:$0xff]
          %v6682 = vld [vmem:[#allocation13 + $0xa40] sm:$0xff]
          %v6683 = vld [vmem:[#allocation13 + $0xa48] sm:$0xff]
          %v6684 = vld [vmem:[#allocation13 + $0xa50] sm:$0xff]
          %v6685 = vld [vmem:[#allocation13 + $0xa58] sm:$0xff]
          %v6686 = vld [vmem:[#allocation13 + $0xa60] sm:$0xff]
          %v6687 = vld [vmem:[#allocation13 + $0xa68] sm:$0xff]
          %v6688 = vld [vmem:[#allocation13 + $0xa70] sm:$0xff]
          %v6689 = vld [vmem:[#allocation13 + $0xa78] sm:$0xff]
          %v6690 = vld [vmem:[#allocation13 + $0xa80] sm:$0xff]
          %v6691 = vld [vmem:[#allocation13 + $0xa88] sm:$0xff]
          %v6692 = vld [vmem:[#allocation13 + $0xa90] sm:$0xff]
          %v6693 = vld [vmem:[#allocation13 + $0xa98] sm:$0xff]
          %v6694 = vld [vmem:[#allocation13 + $0xaa0] sm:$0xff]
          %v6695 = vld [vmem:[#allocation13 + $0xaa8] sm:$0xff]
          %v6696 = vld [vmem:[#allocation13 + $0xab0] sm:$0xff]
          %v6697 = vld [vmem:[#allocation13 + $0xab8] sm:$0xff]
          %v6698 = vld [vmem:[#allocation13 + $0xac0] sm:$0xff]
          %v6699 = vld [vmem:[#allocation13 + $0xac8] sm:$0xff]
          %v6700 = vld [vmem:[#allocation13 + $0xad0] sm:$0xff]
          %v6701 = vld [vmem:[#allocation13 + $0xad8] sm:$0xff]
          %v6702 = vld [vmem:[#allocation13 + $0xae0] sm:$0xff]
          %v6703 = vld [vmem:[#allocation13 + $0xae8] sm:$0xff]
          %v6704 = vld [vmem:[#allocation13 + $0xaf0] sm:$0xff]
          %v6705 = vld [vmem:[#allocation13 + $0xaf8] sm:$0xff]
          %v6706 = vld [vmem:[#allocation13 + $0xb00] sm:$0xff]
          %v6707 = vld [vmem:[#allocation13 + $0xb08] sm:$0xff]
          %v6708 = vld [vmem:[#allocation13 + $0xb10] sm:$0xff]
          %v6709 = vld [vmem:[#allocation13 + $0xb18] sm:$0xff]
          %v6710 = vld [vmem:[#allocation13 + $0xb20] sm:$0xff]
          %v6711 = vld [vmem:[#allocation13 + $0xb28] sm:$0xff]
          %v6712 = vld [vmem:[#allocation13 + $0xb30] sm:$0xff]
          %v6713 = vld [vmem:[#allocation13 + $0xb38] sm:$0xff]
          %v6714 = vld [vmem:[#allocation13 + $0xb40] sm:$0xff]
          %v6715 = vld [vmem:[#allocation13 + $0xb48] sm:$0xff]
          %v6716 = vld [vmem:[#allocation13 + $0xb50] sm:$0xff]
          %v6717 = vld [vmem:[#allocation13 + $0xb58] sm:$0xff]
          %v6718 = vld [vmem:[#allocation13 + $0xb60] sm:$0xff]
          %v6719 = vld [vmem:[#allocation13 + $0xb68] sm:$0xff]
          %v6720 = vld [vmem:[#allocation13 + $0xb70] sm:$0xff]
          %v6721 = vld [vmem:[#allocation13 + $0xb78] sm:$0xff]
          %v6722 = vld [vmem:[#allocation13 + $0xb80] sm:$0xff]
          %v6723 = vld [vmem:[#allocation13 + $0xb88] sm:$0xff]
          %v6724 = vld [vmem:[#allocation13 + $0xb90] sm:$0xff]
          %v6725 = vld [vmem:[#allocation13 + $0xb98] sm:$0xff]
          %v6726 = vld [vmem:[#allocation13 + $0xba0] sm:$0xff]
          %v6727 = vld [vmem:[#allocation13 + $0xba8] sm:$0xff]
          %v6728 = vld [vmem:[#allocation13 + $0xbb0] sm:$0xff]
          %v6729 = vld [vmem:[#allocation13 + $0xbb8] sm:$0xff]
          %v6730 = vld [vmem:[#allocation13 + $0xbc0] sm:$0xff]
          %v6731 = vld [vmem:[#allocation13 + $0xbc8] sm:$0xff]
          %v6732 = vld [vmem:[#allocation13 + $0xbd0] sm:$0xff]
          %v6733 = vld [vmem:[#allocation13 + $0xbd8] sm:$0xff]
          %v6734 = vld [vmem:[#allocation13 + $0xbe0] sm:$0xff]
          %v6735 = vld [vmem:[#allocation13 + $0xbe8] sm:$0xff]
          %v6736 = vld [vmem:[#allocation13 + $0xbf0] sm:$0xff]
          %v6737 = vld [vmem:[#allocation13 + $0xbf8] sm:$0xff]
          %v6738 = vld [vmem:[#allocation13 + $0xc00] sm:$0xff]
          %v6739 = vld [vmem:[#allocation13 + $0xc08] sm:$0xff]
          %v6740 = vld [vmem:[#allocation13 + $0xc10] sm:$0xff]
          %v6741 = vld [vmem:[#allocation13 + $0xc18] sm:$0xff]
          %v6742 = vld [vmem:[#allocation13 + $0xc20] sm:$0xff]
          %v6743 = vld [vmem:[#allocation13 + $0xc28] sm:$0xff]
          %v6744 = vld [vmem:[#allocation13 + $0xc30] sm:$0xff]
          %v6745 = vld [vmem:[#allocation13 + $0xc38] sm:$0xff]
          %v6746 = vld [vmem:[#allocation13 + $0xc40] sm:$0xff]
          %v6747 = vld [vmem:[#allocation13 + $0xc48] sm:$0xff]
          %v6748 = vld [vmem:[#allocation13 + $0xc50] sm:$0xff]
          %v6749 = vld [vmem:[#allocation13 + $0xc58] sm:$0xff]
          %v6750 = vld [vmem:[#allocation13 + $0xc60] sm:$0xff]
          %v6751 = vld [vmem:[#allocation13 + $0xc68] sm:$0xff]
          %v6752 = vld [vmem:[#allocation13 + $0xc70] sm:$0xff]
          %v6753 = vld [vmem:[#allocation13 + $0xc78] sm:$0xff]
          %v6754 = vld [vmem:[#allocation13 + $0xc80] sm:$0xff]
          %v6755 = vld [vmem:[#allocation13 + $0xc88] sm:$0xff]
          %v6756 = vld [vmem:[#allocation13 + $0xc90] sm:$0xff]
          %v6757 = vld [vmem:[#allocation13 + $0xc98] sm:$0xff]
          %v6758 = vld [vmem:[#allocation13 + $0xca0] sm:$0xff]
          %v6759 = vld [vmem:[#allocation13 + $0xca8] sm:$0xff]
          %v6760 = vld [vmem:[#allocation13 + $0xcb0] sm:$0xff]
          %v6761 = vld [vmem:[#allocation13 + $0xcb8] sm:$0xff]
          %v6762 = vld [vmem:[#allocation13 + $0xcc0] sm:$0xff]
          %v6763 = vld [vmem:[#allocation13 + $0xcc8] sm:$0xff]
          %v6764 = vld [vmem:[#allocation13 + $0xcd0] sm:$0xff]
          %v6765 = vld [vmem:[#allocation13 + $0xcd8] sm:$0xff]
          %v6766 = vld [vmem:[#allocation13 + $0xce0] sm:$0xff]
          %v6767 = vld [vmem:[#allocation13 + $0xce8] sm:$0xff]
          %v6768 = vld [vmem:[#allocation13 + $0xcf0] sm:$0xff]
          %v6769 = vld [vmem:[#allocation13 + $0xcf8] sm:$0xff]
          %v6770 = vld [vmem:[#allocation13 + $0xd00] sm:$0xff]
          %v6771 = vld [vmem:[#allocation13 + $0xd08] sm:$0xff]
          %v6772 = vld [vmem:[#allocation13 + $0xd10] sm:$0xff]
          %v6773 = vld [vmem:[#allocation13 + $0xd18] sm:$0xff]
          %v6774 = vld [vmem:[#allocation13 + $0xd20] sm:$0xff]
          %v6775 = vld [vmem:[#allocation13 + $0xd28] sm:$0xff]
          %v6776 = vld [vmem:[#allocation13 + $0xd30] sm:$0xff]
          %v6777 = vld [vmem:[#allocation13 + $0xd38] sm:$0xff]
          %v6778 = vld [vmem:[#allocation13 + $0xd40] sm:$0xff]
          %v6779 = vld [vmem:[#allocation13 + $0xd48] sm:$0xff]
          %v6780 = vld [vmem:[#allocation13 + $0xd50] sm:$0xff]
          %v6781 = vld [vmem:[#allocation13 + $0xd58] sm:$0xff]
          %v6782 = vld [vmem:[#allocation13 + $0xd60] sm:$0xff]
          %v6783 = vld [vmem:[#allocation13 + $0xd68] sm:$0xff]
          %v6784 = vld [vmem:[#allocation13 + $0xd70] sm:$0xff]
          %v6785 = vld [vmem:[#allocation13 + $0xd78] sm:$0xff]
          %v6786 = vld [vmem:[#allocation13 + $0xd80] sm:$0xff]
          %v6787 = vld [vmem:[#allocation13 + $0xd88] sm:$0xff]
          %v6788 = vld [vmem:[#allocation13 + $0xd90] sm:$0xff]
          %v6789 = vld [vmem:[#allocation13 + $0xd98] sm:$0xff]
          %v6790 = vld [vmem:[#allocation13 + $0xda0] sm:$0xff]
          %v6791 = vld [vmem:[#allocation13 + $0xda8] sm:$0xff]
          %v6792 = vld [vmem:[#allocation13 + $0xdb0] sm:$0xff]
          %v6793 = vld [vmem:[#allocation13 + $0xdb8] sm:$0xff]
          %v6794 = vld [vmem:[#allocation13 + $0xdc0] sm:$0xff]
          %v6795 = vld [vmem:[#allocation13 + $0xdc8] sm:$0xff]
          %v6796 = vld [vmem:[#allocation13 + $0xdd0] sm:$0xff]
          %v6797 = vld [vmem:[#allocation13 + $0xdd8] sm:$0xff]
          %v6798 = vld [vmem:[#allocation13 + $0xde0] sm:$0xff]
          %v6799 = vld [vmem:[#allocation13 + $0xde8] sm:$0xff]
          %v6800 = vld [vmem:[#allocation13 + $0xdf0] sm:$0xff]
          %v6801 = vld [vmem:[#allocation13 + $0xdf8] sm:$0xff]
          %v6802 = vld [vmem:[#allocation13 + $0xe00] sm:$0xff]
          %v6803 = vld [vmem:[#allocation13 + $0xe08] sm:$0xff]
          %v6804 = vld [vmem:[#allocation13 + $0xe10] sm:$0xff]
          %v6805 = vld [vmem:[#allocation13 + $0xe18] sm:$0xff]
          %v6806 = vld [vmem:[#allocation13 + $0xe20] sm:$0xff]
          %v6807 = vld [vmem:[#allocation13 + $0xe28] sm:$0xff]
          %v6808 = vld [vmem:[#allocation13 + $0xe30] sm:$0xff]
          %v6809 = vld [vmem:[#allocation13 + $0xe38] sm:$0xff]
          %v6810 = vld [vmem:[#allocation13 + $0xe40] sm:$0xff]
          %v6811 = vld [vmem:[#allocation13 + $0xe48] sm:$0xff]
          %v6812 = vld [vmem:[#allocation13 + $0xe50] sm:$0xff]
          %v6813 = vld [vmem:[#allocation13 + $0xe58] sm:$0xff]
          %v6814 = vld [vmem:[#allocation13 + $0xe60] sm:$0xff]
          %v6815 = vld [vmem:[#allocation13 + $0xe68] sm:$0xff]
          %v6816 = vld [vmem:[#allocation13 + $0xe70] sm:$0xff]
          %v6817 = vld [vmem:[#allocation13 + $0xe78] sm:$0xff]
          %v6818 = vld [vmem:[#allocation13 + $0xe80] sm:$0xff]
          %v6819 = vld [vmem:[#allocation13 + $0xe88] sm:$0xff]
          %v6820 = vld [vmem:[#allocation13 + $0xe90] sm:$0xff]
          %v6821 = vld [vmem:[#allocation13 + $0xe98] sm:$0xff]
          %v6822 = vld [vmem:[#allocation13 + $0xea0] sm:$0xff]
          %v6823 = vld [vmem:[#allocation13 + $0xea8] sm:$0xff]
          %v6824 = vld [vmem:[#allocation13 + $0xeb0] sm:$0xff]
          %v6825 = vld [vmem:[#allocation13 + $0xeb8] sm:$0xff]
          %v6826 = vld [vmem:[#allocation13 + $0xec0] sm:$0xff]
          %v6827 = vld [vmem:[#allocation13 + $0xec8] sm:$0xff]
          %v6828 = vld [vmem:[#allocation13 + $0xed0] sm:$0xff]
          %v6829 = vld [vmem:[#allocation13 + $0xed8] sm:$0xff]
          %v6830 = vld [vmem:[#allocation13 + $0xee0] sm:$0xff]
          %v6831 = vld [vmem:[#allocation13 + $0xee8] sm:$0xff]
          %v6832 = vld [vmem:[#allocation13 + $0xef0] sm:$0xff]
          %v6833 = vld [vmem:[#allocation13 + $0xef8] sm:$0xff]
          %v6834 = vld [vmem:[#allocation13 + $0xf00] sm:$0xff]
          %v6835 = vld [vmem:[#allocation13 + $0xf08] sm:$0xff]
          %v6836 = vld [vmem:[#allocation13 + $0xf10] sm:$0xff]
          %v6837 = vld [vmem:[#allocation13 + $0xf18] sm:$0xff]
          %v6838 = vld [vmem:[#allocation13 + $0xf20] sm:$0xff]
          %v6839 = vld [vmem:[#allocation13 + $0xf28] sm:$0xff]
          %v6840 = vld [vmem:[#allocation13 + $0xf30] sm:$0xff]
          %v6841 = vld [vmem:[#allocation13 + $0xf38] sm:$0xff]
          %v6842 = vld [vmem:[#allocation13 + $0xf40] sm:$0xff]
          %v6843 = vld [vmem:[#allocation13 + $0xf48] sm:$0xff]
          %v6844 = vld [vmem:[#allocation13 + $0xf50] sm:$0xff]
          %v6845 = vld [vmem:[#allocation13 + $0xf58] sm:$0xff]
          %v6846 = vld [vmem:[#allocation13 + $0xf60] sm:$0xff]
          %v6847 = vld [vmem:[#allocation13 + $0xf68] sm:$0xff]
          %v6848 = vld [vmem:[#allocation13 + $0xf70] sm:$0xff]
          %v6849 = vld [vmem:[#allocation13 + $0xf78] sm:$0xff]
          %v6850 = vld [vmem:[#allocation13 + $0xf80] sm:$0xff]
          %v6851 = vld [vmem:[#allocation13 + $0xf88] sm:$0xff]
          %v6852 = vld [vmem:[#allocation13 + $0xf90] sm:$0xff]
          %v6853 = vld [vmem:[#allocation13 + $0xf98] sm:$0xff]
          %v6854 = vld [vmem:[#allocation13 + $0xfa0] sm:$0xff]
          %v6855 = vld [vmem:[#allocation13 + $0xfa8] sm:$0xff]
          %v6856 = vld [vmem:[#allocation13 + $0xfb0] sm:$0xff]
          %v6857 = vld [vmem:[#allocation13 + $0xfb8] sm:$0xff]
          %v6858 = vld [vmem:[#allocation13 + $0xfc0] sm:$0xff]
          %v6859 = vld [vmem:[#allocation13 + $0xfc8] sm:$0xff]
          %v6860 = vld [vmem:[#allocation13 + $0xfd0] sm:$0xff]
          %v6861 = vld [vmem:[#allocation13 + $0xfd8] sm:$0xff]
          %v6862 = vld [vmem:[#allocation13 + $0xfe0] sm:$0xff]
          %v6863 = vld [vmem:[#allocation13 + $0xfe8] sm:$0xff]
          %v6864 = vld [vmem:[#allocation13 + $0xff0] sm:$0xff]
          %v6865 = vld [vmem:[#allocation13 + $0xff8] sm:$0xff]
          %v6866 = vld [vmem:[#allocation14] sm:$0xf]
          %v6868 = vlaneseq
          %v6869 = vshrl.u32 %v6868, 7
          %v6870 = vsub.s32 0, %v6869
          %v6871 = vrot.slane %v6866, %v6870
          %v6872 = vlaneseq
          %v6873 = vshrl.u32 %v6872, 7
          %v6874 = vsub.s32 1, %v6873
          %v6875 = vrot.slane %v6866, %v6874
          %v6876 = vlaneseq
          %v6877 = vshrl.u32 %v6876, 7
          %v6878 = vsub.s32 2, %v6877
          %v6879 = vrot.slane %v6866, %v6878
          %v6880 = vlaneseq
          %v6881 = vshrl.u32 %v6880, 7
          %v6882 = vsub.s32 3, %v6881
          %v6883 = vrot.slane %v6866, %v6882
          %v7400 = vunpack.c.l.b16 %v6354
          %v7401 = vunpack.c.h.b16 %v6354
          %v7402 = vunpack.c.l.b16 %v6355
          %v7403 = vunpack.c.h.b16 %v6355
          %v7404 = vunpack.c.l.b16 %v6356
          %v7405 = vunpack.c.h.b16 %v6356
          %v7406 = vunpack.c.l.b16 %v6357
          %v7407 = vunpack.c.h.b16 %v6357
          %v7408 = vunpack.c.l.b16 %v6358
          %v7409 = vunpack.c.h.b16 %v6358
          %v7410 = vunpack.c.l.b16 %v6359
          %v7411 = vunpack.c.h.b16 %v6359
          %v7412 = vunpack.c.l.b16 %v6360
          %v7413 = vunpack.c.h.b16 %v6360
          %v7414 = vunpack.c.l.b16 %v6361
          %v7415 = vunpack.c.h.b16 %v6361
          %v7416 = vunpack.c.l.b16 %v6362
          %v7417 = vunpack.c.h.b16 %v6362
          %v7418 = vunpack.c.l.b16 %v6363
          %v7419 = vunpack.c.h.b16 %v6363
          %v7420 = vunpack.c.l.b16 %v6364
          %v7421 = vunpack.c.h.b16 %v6364
          %v7422 = vunpack.c.l.b16 %v6365
          %v7423 = vunpack.c.h.b16 %v6365
          %v7424 = vunpack.c.l.b16 %v6366
          %v7425 = vunpack.c.h.b16 %v6366
          %v7426 = vunpack.c.l.b16 %v6367
          %v7427 = vunpack.c.h.b16 %v6367
          %v7428 = vunpack.c.l.b16 %v6368
          %v7429 = vunpack.c.h.b16 %v6368
          %v7430 = vunpack.c.l.b16 %v6369
          %v7431 = vunpack.c.h.b16 %v6369
          %v7432 = vunpack.c.l.b16 %v6370
          %v7433 = vunpack.c.h.b16 %v6370
          %v7434 = vunpack.c.l.b16 %v6371
          %v7435 = vunpack.c.h.b16 %v6371
          %v7436 = vunpack.c.l.b16 %v6372
          %v7437 = vunpack.c.h.b16 %v6372
          %v7438 = vunpack.c.l.b16 %v6373
          %v7439 = vunpack.c.h.b16 %v6373
          %v7440 = vunpack.c.l.b16 %v6374
          %v7441 = vunpack.c.h.b16 %v6374
          %v7442 = vunpack.c.l.b16 %v6375
          %v7443 = vunpack.c.h.b16 %v6375
          %v7444 = vunpack.c.l.b16 %v6376
          %v7445 = vunpack.c.h.b16 %v6376
          %v7446 = vunpack.c.l.b16 %v6377
          %v7447 = vunpack.c.h.b16 %v6377
          %v7448 = vunpack.c.l.b16 %v6378
          %v7449 = vunpack.c.h.b16 %v6378
          %v7450 = vunpack.c.l.b16 %v6379
          %v7451 = vunpack.c.h.b16 %v6379
          %v7452 = vunpack.c.l.b16 %v6380
          %v7453 = vunpack.c.h.b16 %v6380
          %v7454 = vunpack.c.l.b16 %v6381
          %v7455 = vunpack.c.h.b16 %v6381
          %v7456 = vunpack.c.l.b16 %v6382
          %v7457 = vunpack.c.h.b16 %v6382
          %v7458 = vunpack.c.l.b16 %v6383
          %v7459 = vunpack.c.h.b16 %v6383
          %v7460 = vunpack.c.l.b16 %v6384
          %v7461 = vunpack.c.h.b16 %v6384
          %v7462 = vunpack.c.l.b16 %v6385
          %v7463 = vunpack.c.h.b16 %v6385
          %v7464 = vunpack.c.l.b16 %v6386
          %v7465 = vunpack.c.h.b16 %v6386
          %v7466 = vunpack.c.l.b16 %v6387
          %v7467 = vunpack.c.h.b16 %v6387
          %v7468 = vunpack.c.l.b16 %v6388
          %v7469 = vunpack.c.h.b16 %v6388
          %v7470 = vunpack.c.l.b16 %v6389
          %v7471 = vunpack.c.h.b16 %v6389
          %v7472 = vunpack.c.l.b16 %v6390
          %v7473 = vunpack.c.h.b16 %v6390
          %v7474 = vunpack.c.l.b16 %v6391
          %v7475 = vunpack.c.h.b16 %v6391
          %v7476 = vunpack.c.l.b16 %v6392
          %v7477 = vunpack.c.h.b16 %v6392
          %v7478 = vunpack.c.l.b16 %v6393
          %v7479 = vunpack.c.h.b16 %v6393
          %v7480 = vunpack.c.l.b16 %v6394
          %v7481 = vunpack.c.h.b16 %v6394
          %v7482 = vunpack.c.l.b16 %v6395
          %v7483 = vunpack.c.h.b16 %v6395
          %v7484 = vunpack.c.l.b16 %v6396
          %v7485 = vunpack.c.h.b16 %v6396
          %v7486 = vunpack.c.l.b16 %v6397
          %v7487 = vunpack.c.h.b16 %v6397
          %v7488 = vunpack.c.l.b16 %v6398
          %v7489 = vunpack.c.h.b16 %v6398
          %v7490 = vunpack.c.l.b16 %v6399
          %v7491 = vunpack.c.h.b16 %v6399
          %v7492 = vunpack.c.l.b16 %v6400
          %v7493 = vunpack.c.h.b16 %v6400
          %v7494 = vunpack.c.l.b16 %v6401
          %v7495 = vunpack.c.h.b16 %v6401
          %v7496 = vunpack.c.l.b16 %v6402
          %v7497 = vunpack.c.h.b16 %v6402
          %v7498 = vunpack.c.l.b16 %v6403
          %v7499 = vunpack.c.h.b16 %v6403
          %v7500 = vunpack.c.l.b16 %v6404
          %v7501 = vunpack.c.h.b16 %v6404
          %v7502 = vunpack.c.l.b16 %v6405
          %v7503 = vunpack.c.h.b16 %v6405
          %v7504 = vunpack.c.l.b16 %v6406
          %v7505 = vunpack.c.h.b16 %v6406
          %v7506 = vunpack.c.l.b16 %v6407
          %v7507 = vunpack.c.h.b16 %v6407
          %v7508 = vunpack.c.l.b16 %v6408
          %v7509 = vunpack.c.h.b16 %v6408
          %v7510 = vunpack.c.l.b16 %v6409
          %v7511 = vunpack.c.h.b16 %v6409
          %v7512 = vunpack.c.l.b16 %v6410
          %v7513 = vunpack.c.h.b16 %v6410
          %v7514 = vunpack.c.l.b16 %v6411
          %v7515 = vunpack.c.h.b16 %v6411
          %v7516 = vunpack.c.l.b16 %v6412
          %v7517 = vunpack.c.h.b16 %v6412
          %v7518 = vunpack.c.l.b16 %v6413
          %v7519 = vunpack.c.h.b16 %v6413
          %v7520 = vunpack.c.l.b16 %v6414
          %v7521 = vunpack.c.h.b16 %v6414
          %v7522 = vunpack.c.l.b16 %v6415
          %v7523 = vunpack.c.h.b16 %v6415
          %v7524 = vunpack.c.l.b16 %v6416
          %v7525 = vunpack.c.h.b16 %v6416
          %v7526 = vunpack.c.l.b16 %v6417
          %v7527 = vunpack.c.h.b16 %v6417
          %v7528 = vunpack.c.l.b16 %v6418
          %v7529 = vunpack.c.h.b16 %v6418
          %v7530 = vunpack.c.l.b16 %v6419
          %v7531 = vunpack.c.h.b16 %v6419
          %v7532 = vunpack.c.l.b16 %v6420
          %v7533 = vunpack.c.h.b16 %v6420
          %v7534 = vunpack.c.l.b16 %v6421
          %v7535 = vunpack.c.h.b16 %v6421
          %v7536 = vunpack.c.l.b16 %v6422
          %v7537 = vunpack.c.h.b16 %v6422
          %v7538 = vunpack.c.l.b16 %v6423
          %v7539 = vunpack.c.h.b16 %v6423
          %v7540 = vunpack.c.l.b16 %v6424
          %v7541 = vunpack.c.h.b16 %v6424
          %v7542 = vunpack.c.l.b16 %v6425
          %v7543 = vunpack.c.h.b16 %v6425
          %v7544 = vunpack.c.l.b16 %v6426
          %v7545 = vunpack.c.h.b16 %v6426
          %v7546 = vunpack.c.l.b16 %v6427
          %v7547 = vunpack.c.h.b16 %v6427
          %v7548 = vunpack.c.l.b16 %v6428
          %v7549 = vunpack.c.h.b16 %v6428
          %v7550 = vunpack.c.l.b16 %v6429
          %v7551 = vunpack.c.h.b16 %v6429
          %v7552 = vunpack.c.l.b16 %v6430
          %v7553 = vunpack.c.h.b16 %v6430
          %v7554 = vunpack.c.l.b16 %v6431
          %v7555 = vunpack.c.h.b16 %v6431
          %v7556 = vunpack.c.l.b16 %v6432
          %v7557 = vunpack.c.h.b16 %v6432
          %v7558 = vunpack.c.l.b16 %v6433
          %v7559 = vunpack.c.h.b16 %v6433
          %v7560 = vunpack.c.l.b16 %v6434
          %v7561 = vunpack.c.h.b16 %v6434
          %v7562 = vunpack.c.l.b16 %v6435
          %v7563 = vunpack.c.h.b16 %v6435
          %v7564 = vunpack.c.l.b16 %v6436
          %v7565 = vunpack.c.h.b16 %v6436
          %v7566 = vunpack.c.l.b16 %v6437
          %v7567 = vunpack.c.h.b16 %v6437
          %v7568 = vunpack.c.l.b16 %v6438
          %v7569 = vunpack.c.h.b16 %v6438
          %v7570 = vunpack.c.l.b16 %v6439
          %v7571 = vunpack.c.h.b16 %v6439
          %v7572 = vunpack.c.l.b16 %v6440
          %v7573 = vunpack.c.h.b16 %v6440
          %v7574 = vunpack.c.l.b16 %v6441
          %v7575 = vunpack.c.h.b16 %v6441
          %v7576 = vunpack.c.l.b16 %v6442
          %v7577 = vunpack.c.h.b16 %v6442
          %v7578 = vunpack.c.l.b16 %v6443
          %v7579 = vunpack.c.h.b16 %v6443
          %v7580 = vunpack.c.l.b16 %v6444
          %v7581 = vunpack.c.h.b16 %v6444
          %v7582 = vunpack.c.l.b16 %v6445
          %v7583 = vunpack.c.h.b16 %v6445
          %v7584 = vunpack.c.l.b16 %v6446
          %v7585 = vunpack.c.h.b16 %v6446
          %v7586 = vunpack.c.l.b16 %v6447
          %v7587 = vunpack.c.h.b16 %v6447
          %v7588 = vunpack.c.l.b16 %v6448
          %v7589 = vunpack.c.h.b16 %v6448
          %v7590 = vunpack.c.l.b16 %v6449
          %v7591 = vunpack.c.h.b16 %v6449
          %v7592 = vunpack.c.l.b16 %v6450
          %v7593 = vunpack.c.h.b16 %v6450
          %v7594 = vunpack.c.l.b16 %v6451
          %v7595 = vunpack.c.h.b16 %v6451
          %v7596 = vunpack.c.l.b16 %v6452
          %v7597 = vunpack.c.h.b16 %v6452
          %v7598 = vunpack.c.l.b16 %v6453
          %v7599 = vunpack.c.h.b16 %v6453
          %v7600 = vunpack.c.l.b16 %v6454
          %v7601 = vunpack.c.h.b16 %v6454
          %v7602 = vunpack.c.l.b16 %v6455
          %v7603 = vunpack.c.h.b16 %v6455
          %v7604 = vunpack.c.l.b16 %v6456
          %v7605 = vunpack.c.h.b16 %v6456
          %v7606 = vunpack.c.l.b16 %v6457
          %v7607 = vunpack.c.h.b16 %v6457
          %v7608 = vunpack.c.l.b16 %v6458
          %v7609 = vunpack.c.h.b16 %v6458
          %v7610 = vunpack.c.l.b16 %v6459
          %v7611 = vunpack.c.h.b16 %v6459
          %v7612 = vunpack.c.l.b16 %v6460
          %v7613 = vunpack.c.h.b16 %v6460
          %v7614 = vunpack.c.l.b16 %v6461
          %v7615 = vunpack.c.h.b16 %v6461
          %v7616 = vunpack.c.l.b16 %v6462
          %v7617 = vunpack.c.h.b16 %v6462
          %v7618 = vunpack.c.l.b16 %v6463
          %v7619 = vunpack.c.h.b16 %v6463
          %v7620 = vunpack.c.l.b16 %v6464
          %v7621 = vunpack.c.h.b16 %v6464
          %v7622 = vunpack.c.l.b16 %v6465
          %v7623 = vunpack.c.h.b16 %v6465
          %v7624 = vunpack.c.l.b16 %v6466
          %v7625 = vunpack.c.h.b16 %v6466
          %v7626 = vunpack.c.l.b16 %v6467
          %v7627 = vunpack.c.h.b16 %v6467
          %v7628 = vunpack.c.l.b16 %v6468
          %v7629 = vunpack.c.h.b16 %v6468
          %v7630 = vunpack.c.l.b16 %v6469
          %v7631 = vunpack.c.h.b16 %v6469
          %v7632 = vunpack.c.l.b16 %v6470
          %v7633 = vunpack.c.h.b16 %v6470
          %v7634 = vunpack.c.l.b16 %v6471
          %v7635 = vunpack.c.h.b16 %v6471
          %v7636 = vunpack.c.l.b16 %v6472
          %v7637 = vunpack.c.h.b16 %v6472
          %v7638 = vunpack.c.l.b16 %v6473
          %v7639 = vunpack.c.h.b16 %v6473
          %v7640 = vunpack.c.l.b16 %v6474
          %v7641 = vunpack.c.h.b16 %v6474
          %v7642 = vunpack.c.l.b16 %v6475
          %v7643 = vunpack.c.h.b16 %v6475
          %v7644 = vunpack.c.l.b16 %v6476
          %v7645 = vunpack.c.h.b16 %v6476
          %v7646 = vunpack.c.l.b16 %v6477
          %v7647 = vunpack.c.h.b16 %v6477
          %v7648 = vunpack.c.l.b16 %v6478
          %v7649 = vunpack.c.h.b16 %v6478
          %v7650 = vunpack.c.l.b16 %v6479
          %v7651 = vunpack.c.h.b16 %v6479
          %v7652 = vunpack.c.l.b16 %v6480
          %v7653 = vunpack.c.h.b16 %v6480
          %v7654 = vunpack.c.l.b16 %v6481
          %v7655 = vunpack.c.h.b16 %v6481
          %v7656 = vunpack.c.l.b16 %v6482
          %v7657 = vunpack.c.h.b16 %v6482
          %v7658 = vunpack.c.l.b16 %v6483
          %v7659 = vunpack.c.h.b16 %v6483
          %v7660 = vunpack.c.l.b16 %v6484
          %v7661 = vunpack.c.h.b16 %v6484
          %v7662 = vunpack.c.l.b16 %v6485
          %v7663 = vunpack.c.h.b16 %v6485
          %v7664 = vunpack.c.l.b16 %v6486
          %v7665 = vunpack.c.h.b16 %v6486
          %v7666 = vunpack.c.l.b16 %v6487
          %v7667 = vunpack.c.h.b16 %v6487
          %v7668 = vunpack.c.l.b16 %v6488
          %v7669 = vunpack.c.h.b16 %v6488
          %v7670 = vunpack.c.l.b16 %v6489
          %v7671 = vunpack.c.h.b16 %v6489
          %v7672 = vunpack.c.l.b16 %v6490
          %v7673 = vunpack.c.h.b16 %v6490
          %v7674 = vunpack.c.l.b16 %v6491
          %v7675 = vunpack.c.h.b16 %v6491
          %v7676 = vunpack.c.l.b16 %v6492
          %v7677 = vunpack.c.h.b16 %v6492
          %v7678 = vunpack.c.l.b16 %v6493
          %v7679 = vunpack.c.h.b16 %v6493
          %v7680 = vunpack.c.l.b16 %v6494
          %v7681 = vunpack.c.h.b16 %v6494
          %v7682 = vunpack.c.l.b16 %v6495
          %v7683 = vunpack.c.h.b16 %v6495
          %v7684 = vunpack.c.l.b16 %v6496
          %v7685 = vunpack.c.h.b16 %v6496
          %v7686 = vunpack.c.l.b16 %v6497
          %v7687 = vunpack.c.h.b16 %v6497
          %v7688 = vunpack.c.l.b16 %v6498
          %v7689 = vunpack.c.h.b16 %v6498
          %v7690 = vunpack.c.l.b16 %v6499
          %v7691 = vunpack.c.h.b16 %v6499
          %v7692 = vunpack.c.l.b16 %v6500
          %v7693 = vunpack.c.h.b16 %v6500
          %v7694 = vunpack.c.l.b16 %v6501
          %v7695 = vunpack.c.h.b16 %v6501
          %v7696 = vunpack.c.l.b16 %v6502
          %v7697 = vunpack.c.h.b16 %v6502
          %v7698 = vunpack.c.l.b16 %v6503
          %v7699 = vunpack.c.h.b16 %v6503
          %v7700 = vunpack.c.l.b16 %v6504
          %v7701 = vunpack.c.h.b16 %v6504
          %v7702 = vunpack.c.l.b16 %v6505
          %v7703 = vunpack.c.h.b16 %v6505
          %v7704 = vunpack.c.l.b16 %v6506
          %v7705 = vunpack.c.h.b16 %v6506
          %v7706 = vunpack.c.l.b16 %v6507
          %v7707 = vunpack.c.h.b16 %v6507
          %v7708 = vunpack.c.l.b16 %v6508
          %v7709 = vunpack.c.h.b16 %v6508
          %v7710 = vunpack.c.l.b16 %v6509
          %v7711 = vunpack.c.h.b16 %v6509
          %v7712 = vunpack.c.l.b16 %v6510
          %v7713 = vunpack.c.h.b16 %v6510
          %v7714 = vunpack.c.l.b16 %v6511
          %v7715 = vunpack.c.h.b16 %v6511
          %v7716 = vunpack.c.l.b16 %v6512
          %v7717 = vunpack.c.h.b16 %v6512
          %v7718 = vunpack.c.l.b16 %v6513
          %v7719 = vunpack.c.h.b16 %v6513
          %v7720 = vunpack.c.l.b16 %v6514
          %v7721 = vunpack.c.h.b16 %v6514
          %v7722 = vunpack.c.l.b16 %v6515
          %v7723 = vunpack.c.h.b16 %v6515
          %v7724 = vunpack.c.l.b16 %v6516
          %v7725 = vunpack.c.h.b16 %v6516
          %v7726 = vunpack.c.l.b16 %v6517
          %v7727 = vunpack.c.h.b16 %v6517
          %v7728 = vunpack.c.l.b16 %v6518
          %v7729 = vunpack.c.h.b16 %v6518
          %v7730 = vunpack.c.l.b16 %v6519
          %v7731 = vunpack.c.h.b16 %v6519
          %v7732 = vunpack.c.l.b16 %v6520
          %v7733 = vunpack.c.h.b16 %v6520
          %v7734 = vunpack.c.l.b16 %v6521
          %v7735 = vunpack.c.h.b16 %v6521
          %v7736 = vunpack.c.l.b16 %v6522
          %v7737 = vunpack.c.h.b16 %v6522
          %v7738 = vunpack.c.l.b16 %v6523
          %v7739 = vunpack.c.h.b16 %v6523
          %v7740 = vunpack.c.l.b16 %v6524
          %v7741 = vunpack.c.h.b16 %v6524
          %v7742 = vunpack.c.l.b16 %v6525
          %v7743 = vunpack.c.h.b16 %v6525
          %v7744 = vunpack.c.l.b16 %v6526
          %v7745 = vunpack.c.h.b16 %v6526
          %v7746 = vunpack.c.l.b16 %v6527
          %v7747 = vunpack.c.h.b16 %v6527
          %v7748 = vunpack.c.l.b16 %v6528
          %v7749 = vunpack.c.h.b16 %v6528
          %v7750 = vunpack.c.l.b16 %v6529
          %v7751 = vunpack.c.h.b16 %v6529
          %v7752 = vunpack.c.l.b16 %v6530
          %v7753 = vunpack.c.h.b16 %v6530
          %v7754 = vunpack.c.l.b16 %v6531
          %v7755 = vunpack.c.h.b16 %v6531
          %v7756 = vunpack.c.l.b16 %v6532
          %v7757 = vunpack.c.h.b16 %v6532
          %v7758 = vunpack.c.l.b16 %v6533
          %v7759 = vunpack.c.h.b16 %v6533
          %v7760 = vunpack.c.l.b16 %v6534
          %v7761 = vunpack.c.h.b16 %v6534
          %v7762 = vunpack.c.l.b16 %v6535
          %v7763 = vunpack.c.h.b16 %v6535
          %v7764 = vunpack.c.l.b16 %v6536
          %v7765 = vunpack.c.h.b16 %v6536
          %v7766 = vunpack.c.l.b16 %v6537
          %v7767 = vunpack.c.h.b16 %v6537
          %v7768 = vunpack.c.l.b16 %v6538
          %v7769 = vunpack.c.h.b16 %v6538
          %v7770 = vunpack.c.l.b16 %v6539
          %v7771 = vunpack.c.h.b16 %v6539
          %v7772 = vunpack.c.l.b16 %v6540
          %v7773 = vunpack.c.h.b16 %v6540
          %v7774 = vunpack.c.l.b16 %v6541
          %v7775 = vunpack.c.h.b16 %v6541
          %v7776 = vunpack.c.l.b16 %v6542
          %v7777 = vunpack.c.h.b16 %v6542
          %v7778 = vunpack.c.l.b16 %v6543
          %v7779 = vunpack.c.h.b16 %v6543
          %v7780 = vunpack.c.l.b16 %v6544
          %v7781 = vunpack.c.h.b16 %v6544
          %v7782 = vunpack.c.l.b16 %v6545
          %v7783 = vunpack.c.h.b16 %v6545
          %v7784 = vunpack.c.l.b16 %v6546
          %v7785 = vunpack.c.h.b16 %v6546
          %v7786 = vunpack.c.l.b16 %v6547
          %v7787 = vunpack.c.h.b16 %v6547
          %v7788 = vunpack.c.l.b16 %v6548
          %v7789 = vunpack.c.h.b16 %v6548
          %v7790 = vunpack.c.l.b16 %v6549
          %v7791 = vunpack.c.h.b16 %v6549
          %v7792 = vunpack.c.l.b16 %v6550
          %v7793 = vunpack.c.h.b16 %v6550
          %v7794 = vunpack.c.l.b16 %v6551
          %v7795 = vunpack.c.h.b16 %v6551
          %v7796 = vunpack.c.l.b16 %v6552
          %v7797 = vunpack.c.h.b16 %v6552
          %v7798 = vunpack.c.l.b16 %v6553
          %v7799 = vunpack.c.h.b16 %v6553
          %v7800 = vunpack.c.l.b16 %v6554
          %v7801 = vunpack.c.h.b16 %v6554
          %v7802 = vunpack.c.l.b16 %v6555
          %v7803 = vunpack.c.h.b16 %v6555
          %v7804 = vunpack.c.l.b16 %v6556
          %v7805 = vunpack.c.h.b16 %v6556
          %v7806 = vunpack.c.l.b16 %v6557
          %v7807 = vunpack.c.h.b16 %v6557
          %v7808 = vunpack.c.l.b16 %v6558
          %v7809 = vunpack.c.h.b16 %v6558
          %v7810 = vunpack.c.l.b16 %v6559
          %v7811 = vunpack.c.h.b16 %v6559
          %v7812 = vunpack.c.l.b16 %v6560
          %v7813 = vunpack.c.h.b16 %v6560
          %v7814 = vunpack.c.l.b16 %v6561
          %v7815 = vunpack.c.h.b16 %v6561
          %v7816 = vunpack.c.l.b16 %v6562
          %v7817 = vunpack.c.h.b16 %v6562
          %v7818 = vunpack.c.l.b16 %v6563
          %v7819 = vunpack.c.h.b16 %v6563
          %v7820 = vunpack.c.l.b16 %v6564
          %v7821 = vunpack.c.h.b16 %v6564
          %v7822 = vunpack.c.l.b16 %v6565
          %v7823 = vunpack.c.h.b16 %v6565
          %v7824 = vunpack.c.l.b16 %v6566
          %v7825 = vunpack.c.h.b16 %v6566
          %v7826 = vunpack.c.l.b16 %v6567
          %v7827 = vunpack.c.h.b16 %v6567
          %v7828 = vunpack.c.l.b16 %v6568
          %v7829 = vunpack.c.h.b16 %v6568
          %v7830 = vunpack.c.l.b16 %v6569
          %v7831 = vunpack.c.h.b16 %v6569
          %v7832 = vunpack.c.l.b16 %v6570
          %v7833 = vunpack.c.h.b16 %v6570
          %v7834 = vunpack.c.l.b16 %v6571
          %v7835 = vunpack.c.h.b16 %v6571
          %v7836 = vunpack.c.l.b16 %v6572
          %v7837 = vunpack.c.h.b16 %v6572
          %v7838 = vunpack.c.l.b16 %v6573
          %v7839 = vunpack.c.h.b16 %v6573
          %v7840 = vunpack.c.l.b16 %v6574
          %v7841 = vunpack.c.h.b16 %v6574
          %v7842 = vunpack.c.l.b16 %v6575
          %v7843 = vunpack.c.h.b16 %v6575
          %v7844 = vunpack.c.l.b16 %v6576
          %v7845 = vunpack.c.h.b16 %v6576
          %v7846 = vunpack.c.l.b16 %v6577
          %v7847 = vunpack.c.h.b16 %v6577
          %v7848 = vunpack.c.l.b16 %v6578
          %v7849 = vunpack.c.h.b16 %v6578
          %v7850 = vunpack.c.l.b16 %v6579
          %v7851 = vunpack.c.h.b16 %v6579
          %v7852 = vunpack.c.l.b16 %v6580
          %v7853 = vunpack.c.h.b16 %v6580
          %v7854 = vunpack.c.l.b16 %v6581
          %v7855 = vunpack.c.h.b16 %v6581
          %v7856 = vunpack.c.l.b16 %v6582
          %v7857 = vunpack.c.h.b16 %v6582
          %v7858 = vunpack.c.l.b16 %v6583
          %v7859 = vunpack.c.h.b16 %v6583
          %v7860 = vunpack.c.l.b16 %v6584
          %v7861 = vunpack.c.h.b16 %v6584
          %v7862 = vunpack.c.l.b16 %v6585
          %v7863 = vunpack.c.h.b16 %v6585
          %v7864 = vunpack.c.l.b16 %v6586
          %v7865 = vunpack.c.h.b16 %v6586
          %v7866 = vunpack.c.l.b16 %v6587
          %v7867 = vunpack.c.h.b16 %v6587
          %v7868 = vunpack.c.l.b16 %v6588
          %v7869 = vunpack.c.h.b16 %v6588
          %v7870 = vunpack.c.l.b16 %v6589
          %v7871 = vunpack.c.h.b16 %v6589
          %v7872 = vunpack.c.l.b16 %v6590
          %v7873 = vunpack.c.h.b16 %v6590
          %v7874 = vunpack.c.l.b16 %v6591
          %v7875 = vunpack.c.h.b16 %v6591
          %v7876 = vunpack.c.l.b16 %v6592
          %v7877 = vunpack.c.h.b16 %v6592
          %v7878 = vunpack.c.l.b16 %v6593
          %v7879 = vunpack.c.h.b16 %v6593
          %v7880 = vunpack.c.l.b16 %v6594
          %v7881 = vunpack.c.h.b16 %v6594
          %v7882 = vunpack.c.l.b16 %v6595
          %v7883 = vunpack.c.h.b16 %v6595
          %v7884 = vunpack.c.l.b16 %v6596
          %v7885 = vunpack.c.h.b16 %v6596
          %v7886 = vunpack.c.l.b16 %v6597
          %v7887 = vunpack.c.h.b16 %v6597
          %v7888 = vunpack.c.l.b16 %v6598
          %v7889 = vunpack.c.h.b16 %v6598
          %v7890 = vunpack.c.l.b16 %v6599
          %v7891 = vunpack.c.h.b16 %v6599
          %v7892 = vunpack.c.l.b16 %v6600
          %v7893 = vunpack.c.h.b16 %v6600
          %v7894 = vunpack.c.l.b16 %v6601
          %v7895 = vunpack.c.h.b16 %v6601
          %v7896 = vunpack.c.l.b16 %v6602
          %v7897 = vunpack.c.h.b16 %v6602
          %v7898 = vunpack.c.l.b16 %v6603
          %v7899 = vunpack.c.h.b16 %v6603
          %v7900 = vunpack.c.l.b16 %v6604
          %v7901 = vunpack.c.h.b16 %v6604
          %v7902 = vunpack.c.l.b16 %v6605
          %v7903 = vunpack.c.h.b16 %v6605
          %v7904 = vunpack.c.l.b16 %v6606
          %v7905 = vunpack.c.h.b16 %v6606
          %v7906 = vunpack.c.l.b16 %v6607
          %v7907 = vunpack.c.h.b16 %v6607
          %v7908 = vunpack.c.l.b16 %v6608
          %v7909 = vunpack.c.h.b16 %v6608
          %v7910 = vunpack.c.l.b16 %v6609
          %v7911 = vunpack.c.h.b16 %v6609
          %v7912 = vunpack.c.l.b16 %v6610
          %v7913 = vunpack.c.h.b16 %v6610
          %v7914 = vunpack.c.l.b16 %v6611
          %v7915 = vunpack.c.h.b16 %v6611
          %v7916 = vunpack.c.l.b16 %v6612
          %v7917 = vunpack.c.h.b16 %v6612
          %v7918 = vunpack.c.l.b16 %v6613
          %v7919 = vunpack.c.h.b16 %v6613
          %v7920 = vunpack.c.l.b16 %v6614
          %v7921 = vunpack.c.h.b16 %v6614
          %v7922 = vunpack.c.l.b16 %v6615
          %v7923 = vunpack.c.h.b16 %v6615
          %v7924 = vunpack.c.l.b16 %v6616
          %v7925 = vunpack.c.h.b16 %v6616
          %v7926 = vunpack.c.l.b16 %v6617
          %v7927 = vunpack.c.h.b16 %v6617
          %v7928 = vunpack.c.l.b16 %v6618
          %v7929 = vunpack.c.h.b16 %v6618
          %v7930 = vunpack.c.l.b16 %v6619
          %v7931 = vunpack.c.h.b16 %v6619
          %v7932 = vunpack.c.l.b16 %v6620
          %v7933 = vunpack.c.h.b16 %v6620
          %v7934 = vunpack.c.l.b16 %v6621
          %v7935 = vunpack.c.h.b16 %v6621
          %v7936 = vunpack.c.l.b16 %v6622
          %v7937 = vunpack.c.h.b16 %v6622
          %v7938 = vunpack.c.l.b16 %v6623
          %v7939 = vunpack.c.h.b16 %v6623
          %v7940 = vunpack.c.l.b16 %v6624
          %v7941 = vunpack.c.h.b16 %v6624
          %v7942 = vunpack.c.l.b16 %v6625
          %v7943 = vunpack.c.h.b16 %v6625
          %v7944 = vunpack.c.l.b16 %v6626
          %v7945 = vunpack.c.h.b16 %v6626
          %v7946 = vunpack.c.l.b16 %v6627
          %v7947 = vunpack.c.h.b16 %v6627
          %v7948 = vunpack.c.l.b16 %v6628
          %v7949 = vunpack.c.h.b16 %v6628
          %v7950 = vunpack.c.l.b16 %v6629
          %v7951 = vunpack.c.h.b16 %v6629
          %v7952 = vunpack.c.l.b16 %v6630
          %v7953 = vunpack.c.h.b16 %v6630
          %v7954 = vunpack.c.l.b16 %v6631
          %v7955 = vunpack.c.h.b16 %v6631
          %v7956 = vunpack.c.l.b16 %v6632
          %v7957 = vunpack.c.h.b16 %v6632
          %v7958 = vunpack.c.l.b16 %v6633
          %v7959 = vunpack.c.h.b16 %v6633
          %v7960 = vunpack.c.l.b16 %v6634
          %v7961 = vunpack.c.h.b16 %v6634
          %v7962 = vunpack.c.l.b16 %v6635
          %v7963 = vunpack.c.h.b16 %v6635
          %v7964 = vunpack.c.l.b16 %v6636
          %v7965 = vunpack.c.h.b16 %v6636
          %v7966 = vunpack.c.l.b16 %v6637
          %v7967 = vunpack.c.h.b16 %v6637
          %v7968 = vunpack.c.l.b16 %v6638
          %v7969 = vunpack.c.h.b16 %v6638
          %v7970 = vunpack.c.l.b16 %v6639
          %v7971 = vunpack.c.h.b16 %v6639
          %v7972 = vunpack.c.l.b16 %v6640
          %v7973 = vunpack.c.h.b16 %v6640
          %v7974 = vunpack.c.l.b16 %v6641
          %v7975 = vunpack.c.h.b16 %v6641
          %v7976 = vunpack.c.l.b16 %v6642
          %v7977 = vunpack.c.h.b16 %v6642
          %v7978 = vunpack.c.l.b16 %v6643
          %v7979 = vunpack.c.h.b16 %v6643
          %v7980 = vunpack.c.l.b16 %v6644
          %v7981 = vunpack.c.h.b16 %v6644
          %v7982 = vunpack.c.l.b16 %v6645
          %v7983 = vunpack.c.h.b16 %v6645
          %v7984 = vunpack.c.l.b16 %v6646
          %v7985 = vunpack.c.h.b16 %v6646
          %v7986 = vunpack.c.l.b16 %v6647
          %v7987 = vunpack.c.h.b16 %v6647
          %v7988 = vunpack.c.l.b16 %v6648
          %v7989 = vunpack.c.h.b16 %v6648
          %v7990 = vunpack.c.l.b16 %v6649
          %v7991 = vunpack.c.h.b16 %v6649
          %v7992 = vunpack.c.l.b16 %v6650
          %v7993 = vunpack.c.h.b16 %v6650
          %v7994 = vunpack.c.l.b16 %v6651
          %v7995 = vunpack.c.h.b16 %v6651
          %v7996 = vunpack.c.l.b16 %v6652
          %v7997 = vunpack.c.h.b16 %v6652
          %v7998 = vunpack.c.l.b16 %v6653
          %v7999 = vunpack.c.h.b16 %v6653
          %v8000 = vunpack.c.l.b16 %v6654
          %v8001 = vunpack.c.h.b16 %v6654
          %v8002 = vunpack.c.l.b16 %v6655
          %v8003 = vunpack.c.h.b16 %v6655
          %v8004 = vunpack.c.l.b16 %v6656
          %v8005 = vunpack.c.h.b16 %v6656
          %v8006 = vunpack.c.l.b16 %v6657
          %v8007 = vunpack.c.h.b16 %v6657
          %v8008 = vunpack.c.l.b16 %v6658
          %v8009 = vunpack.c.h.b16 %v6658
          %v8010 = vunpack.c.l.b16 %v6659
          %v8011 = vunpack.c.h.b16 %v6659
          %v8012 = vunpack.c.l.b16 %v6660
          %v8013 = vunpack.c.h.b16 %v6660
          %v8014 = vunpack.c.l.b16 %v6661
          %v8015 = vunpack.c.h.b16 %v6661
          %v8016 = vunpack.c.l.b16 %v6662
          %v8017 = vunpack.c.h.b16 %v6662
          %v8018 = vunpack.c.l.b16 %v6663
          %v8019 = vunpack.c.h.b16 %v6663
          %v8020 = vunpack.c.l.b16 %v6664
          %v8021 = vunpack.c.h.b16 %v6664
          %v8022 = vunpack.c.l.b16 %v6665
          %v8023 = vunpack.c.h.b16 %v6665
          %v8024 = vunpack.c.l.b16 %v6666
          %v8025 = vunpack.c.h.b16 %v6666
          %v8026 = vunpack.c.l.b16 %v6667
          %v8027 = vunpack.c.h.b16 %v6667
          %v8028 = vunpack.c.l.b16 %v6668
          %v8029 = vunpack.c.h.b16 %v6668
          %v8030 = vunpack.c.l.b16 %v6669
          %v8031 = vunpack.c.h.b16 %v6669
          %v8032 = vunpack.c.l.b16 %v6670
          %v8033 = vunpack.c.h.b16 %v6670
          %v8034 = vunpack.c.l.b16 %v6671
          %v8035 = vunpack.c.h.b16 %v6671
          %v8036 = vunpack.c.l.b16 %v6672
          %v8037 = vunpack.c.h.b16 %v6672
          %v8038 = vunpack.c.l.b16 %v6673
          %v8039 = vunpack.c.h.b16 %v6673
          %v8040 = vunpack.c.l.b16 %v6674
          %v8041 = vunpack.c.h.b16 %v6674
          %v8042 = vunpack.c.l.b16 %v6675
          %v8043 = vunpack.c.h.b16 %v6675
          %v8044 = vunpack.c.l.b16 %v6676
          %v8045 = vunpack.c.h.b16 %v6676
          %v8046 = vunpack.c.l.b16 %v6677
          %v8047 = vunpack.c.h.b16 %v6677
          %v8048 = vunpack.c.l.b16 %v6678
          %v8049 = vunpack.c.h.b16 %v6678
          %v8050 = vunpack.c.l.b16 %v6679
          %v8051 = vunpack.c.h.b16 %v6679
          %v8052 = vunpack.c.l.b16 %v6680
          %v8053 = vunpack.c.h.b16 %v6680
          %v8054 = vunpack.c.l.b16 %v6681
          %v8055 = vunpack.c.h.b16 %v6681
          %v8056 = vunpack.c.l.b16 %v6682
          %v8057 = vunpack.c.h.b16 %v6682
          %v8058 = vunpack.c.l.b16 %v6683
          %v8059 = vunpack.c.h.b16 %v6683
          %v8060 = vunpack.c.l.b16 %v6684
          %v8061 = vunpack.c.h.b16 %v6684
          %v8062 = vunpack.c.l.b16 %v6685
          %v8063 = vunpack.c.h.b16 %v6685
          %v8064 = vunpack.c.l.b16 %v6686
          %v8065 = vunpack.c.h.b16 %v6686
          %v8066 = vunpack.c.l.b16 %v6687
          %v8067 = vunpack.c.h.b16 %v6687
          %v8068 = vunpack.c.l.b16 %v6688
          %v8069 = vunpack.c.h.b16 %v6688
          %v8070 = vunpack.c.l.b16 %v6689
          %v8071 = vunpack.c.h.b16 %v6689
          %v8072 = vunpack.c.l.b16 %v6690
          %v8073 = vunpack.c.h.b16 %v6690
          %v8074 = vunpack.c.l.b16 %v6691
          %v8075 = vunpack.c.h.b16 %v6691
          %v8076 = vunpack.c.l.b16 %v6692
          %v8077 = vunpack.c.h.b16 %v6692
          %v8078 = vunpack.c.l.b16 %v6693
          %v8079 = vunpack.c.h.b16 %v6693
          %v8080 = vunpack.c.l.b16 %v6694
          %v8081 = vunpack.c.h.b16 %v6694
          %v8082 = vunpack.c.l.b16 %v6695
          %v8083 = vunpack.c.h.b16 %v6695
          %v8084 = vunpack.c.l.b16 %v6696
          %v8085 = vunpack.c.h.b16 %v6696
          %v8086 = vunpack.c.l.b16 %v6697
          %v8087 = vunpack.c.h.b16 %v6697
          %v8088 = vunpack.c.l.b16 %v6698
          %v8089 = vunpack.c.h.b16 %v6698
          %v8090 = vunpack.c.l.b16 %v6699
          %v8091 = vunpack.c.h.b16 %v6699
          %v8092 = vunpack.c.l.b16 %v6700
          %v8093 = vunpack.c.h.b16 %v6700
          %v8094 = vunpack.c.l.b16 %v6701
          %v8095 = vunpack.c.h.b16 %v6701
          %v8096 = vunpack.c.l.b16 %v6702
          %v8097 = vunpack.c.h.b16 %v6702
          %v8098 = vunpack.c.l.b16 %v6703
          %v8099 = vunpack.c.h.b16 %v6703
          %v8100 = vunpack.c.l.b16 %v6704
          %v8101 = vunpack.c.h.b16 %v6704
          %v8102 = vunpack.c.l.b16 %v6705
          %v8103 = vunpack.c.h.b16 %v6705
          %v8104 = vunpack.c.l.b16 %v6706
          %v8105 = vunpack.c.h.b16 %v6706
          %v8106 = vunpack.c.l.b16 %v6707
          %v8107 = vunpack.c.h.b16 %v6707
          %v8108 = vunpack.c.l.b16 %v6708
          %v8109 = vunpack.c.h.b16 %v6708
          %v8110 = vunpack.c.l.b16 %v6709
          %v8111 = vunpack.c.h.b16 %v6709
          %v8112 = vunpack.c.l.b16 %v6710
          %v8113 = vunpack.c.h.b16 %v6710
          %v8114 = vunpack.c.l.b16 %v6711
          %v8115 = vunpack.c.h.b16 %v6711
          %v8116 = vunpack.c.l.b16 %v6712
          %v8117 = vunpack.c.h.b16 %v6712
          %v8118 = vunpack.c.l.b16 %v6713
          %v8119 = vunpack.c.h.b16 %v6713
          %v8120 = vunpack.c.l.b16 %v6714
          %v8121 = vunpack.c.h.b16 %v6714
          %v8122 = vunpack.c.l.b16 %v6715
          %v8123 = vunpack.c.h.b16 %v6715
          %v8124 = vunpack.c.l.b16 %v6716
          %v8125 = vunpack.c.h.b16 %v6716
          %v8126 = vunpack.c.l.b16 %v6717
          %v8127 = vunpack.c.h.b16 %v6717
          %v8128 = vunpack.c.l.b16 %v6718
          %v8129 = vunpack.c.h.b16 %v6718
          %v8130 = vunpack.c.l.b16 %v6719
          %v8131 = vunpack.c.h.b16 %v6719
          %v8132 = vunpack.c.l.b16 %v6720
          %v8133 = vunpack.c.h.b16 %v6720
          %v8134 = vunpack.c.l.b16 %v6721
          %v8135 = vunpack.c.h.b16 %v6721
          %v8136 = vunpack.c.l.b16 %v6722
          %v8137 = vunpack.c.h.b16 %v6722
          %v8138 = vunpack.c.l.b16 %v6723
          %v8139 = vunpack.c.h.b16 %v6723
          %v8140 = vunpack.c.l.b16 %v6724
          %v8141 = vunpack.c.h.b16 %v6724
          %v8142 = vunpack.c.l.b16 %v6725
          %v8143 = vunpack.c.h.b16 %v6725
          %v8144 = vunpack.c.l.b16 %v6726
          %v8145 = vunpack.c.h.b16 %v6726
          %v8146 = vunpack.c.l.b16 %v6727
          %v8147 = vunpack.c.h.b16 %v6727
          %v8148 = vunpack.c.l.b16 %v6728
          %v8149 = vunpack.c.h.b16 %v6728
          %v8150 = vunpack.c.l.b16 %v6729
          %v8151 = vunpack.c.h.b16 %v6729
          %v8152 = vunpack.c.l.b16 %v6730
          %v8153 = vunpack.c.h.b16 %v6730
          %v8154 = vunpack.c.l.b16 %v6731
          %v8155 = vunpack.c.h.b16 %v6731
          %v8156 = vunpack.c.l.b16 %v6732
          %v8157 = vunpack.c.h.b16 %v6732
          %v8158 = vunpack.c.l.b16 %v6733
          %v8159 = vunpack.c.h.b16 %v6733
          %v8160 = vunpack.c.l.b16 %v6734
          %v8161 = vunpack.c.h.b16 %v6734
          %v8162 = vunpack.c.l.b16 %v6735
          %v8163 = vunpack.c.h.b16 %v6735
          %v8164 = vunpack.c.l.b16 %v6736
          %v8165 = vunpack.c.h.b16 %v6736
          %v8166 = vunpack.c.l.b16 %v6737
          %v8167 = vunpack.c.h.b16 %v6737
          %v8168 = vunpack.c.l.b16 %v6738
          %v8169 = vunpack.c.h.b16 %v6738
          %v8170 = vunpack.c.l.b16 %v6739
          %v8171 = vunpack.c.h.b16 %v6739
          %v8172 = vunpack.c.l.b16 %v6740
          %v8173 = vunpack.c.h.b16 %v6740
          %v8174 = vunpack.c.l.b16 %v6741
          %v8175 = vunpack.c.h.b16 %v6741
          %v8176 = vunpack.c.l.b16 %v6742
          %v8177 = vunpack.c.h.b16 %v6742
          %v8178 = vunpack.c.l.b16 %v6743
          %v8179 = vunpack.c.h.b16 %v6743
          %v8180 = vunpack.c.l.b16 %v6744
          %v8181 = vunpack.c.h.b16 %v6744
          %v8182 = vunpack.c.l.b16 %v6745
          %v8183 = vunpack.c.h.b16 %v6745
          %v8184 = vunpack.c.l.b16 %v6746
          %v8185 = vunpack.c.h.b16 %v6746
          %v8186 = vunpack.c.l.b16 %v6747
          %v8187 = vunpack.c.h.b16 %v6747
          %v8188 = vunpack.c.l.b16 %v6748
          %v8189 = vunpack.c.h.b16 %v6748
          %v8190 = vunpack.c.l.b16 %v6749
          %v8191 = vunpack.c.h.b16 %v6749
          %v8192 = vunpack.c.l.b16 %v6750
          %v8193 = vunpack.c.h.b16 %v6750
          %v8194 = vunpack.c.l.b16 %v6751
          %v8195 = vunpack.c.h.b16 %v6751
          %v8196 = vunpack.c.l.b16 %v6752
          %v8197 = vunpack.c.h.b16 %v6752
          %v8198 = vunpack.c.l.b16 %v6753
          %v8199 = vunpack.c.h.b16 %v6753
          %v8200 = vunpack.c.l.b16 %v6754
          %v8201 = vunpack.c.h.b16 %v6754
          %v8202 = vunpack.c.l.b16 %v6755
          %v8203 = vunpack.c.h.b16 %v6755
          %v8204 = vunpack.c.l.b16 %v6756
          %v8205 = vunpack.c.h.b16 %v6756
          %v8206 = vunpack.c.l.b16 %v6757
          %v8207 = vunpack.c.h.b16 %v6757
          %v8208 = vunpack.c.l.b16 %v6758
          %v8209 = vunpack.c.h.b16 %v6758
          %v8210 = vunpack.c.l.b16 %v6759
          %v8211 = vunpack.c.h.b16 %v6759
          %v8212 = vunpack.c.l.b16 %v6760
          %v8213 = vunpack.c.h.b16 %v6760
          %v8214 = vunpack.c.l.b16 %v6761
          %v8215 = vunpack.c.h.b16 %v6761
          %v8216 = vunpack.c.l.b16 %v6762
          %v8217 = vunpack.c.h.b16 %v6762
          %v8218 = vunpack.c.l.b16 %v6763
          %v8219 = vunpack.c.h.b16 %v6763
          %v8220 = vunpack.c.l.b16 %v6764
          %v8221 = vunpack.c.h.b16 %v6764
          %v8222 = vunpack.c.l.b16 %v6765
          %v8223 = vunpack.c.h.b16 %v6765
          %v8224 = vunpack.c.l.b16 %v6766
          %v8225 = vunpack.c.h.b16 %v6766
          %v8226 = vunpack.c.l.b16 %v6767
          %v8227 = vunpack.c.h.b16 %v6767
          %v8228 = vunpack.c.l.b16 %v6768
          %v8229 = vunpack.c.h.b16 %v6768
          %v8230 = vunpack.c.l.b16 %v6769
          %v8231 = vunpack.c.h.b16 %v6769
          %v8232 = vunpack.c.l.b16 %v6770
          %v8233 = vunpack.c.h.b16 %v6770
          %v8234 = vunpack.c.l.b16 %v6771
          %v8235 = vunpack.c.h.b16 %v6771
          %v8236 = vunpack.c.l.b16 %v6772
          %v8237 = vunpack.c.h.b16 %v6772
          %v8238 = vunpack.c.l.b16 %v6773
          %v8239 = vunpack.c.h.b16 %v6773
          %v8240 = vunpack.c.l.b16 %v6774
          %v8241 = vunpack.c.h.b16 %v6774
          %v8242 = vunpack.c.l.b16 %v6775
          %v8243 = vunpack.c.h.b16 %v6775
          %v8244 = vunpack.c.l.b16 %v6776
          %v8245 = vunpack.c.h.b16 %v6776
          %v8246 = vunpack.c.l.b16 %v6777
          %v8247 = vunpack.c.h.b16 %v6777
          %v8248 = vunpack.c.l.b16 %v6778
          %v8249 = vunpack.c.h.b16 %v6778
          %v8250 = vunpack.c.l.b16 %v6779
          %v8251 = vunpack.c.h.b16 %v6779
          %v8252 = vunpack.c.l.b16 %v6780
          %v8253 = vunpack.c.h.b16 %v6780
          %v8254 = vunpack.c.l.b16 %v6781
          %v8255 = vunpack.c.h.b16 %v6781
          %v8256 = vunpack.c.l.b16 %v6782
          %v8257 = vunpack.c.h.b16 %v6782
          %v8258 = vunpack.c.l.b16 %v6783
          %v8259 = vunpack.c.h.b16 %v6783
          %v8260 = vunpack.c.l.b16 %v6784
          %v8261 = vunpack.c.h.b16 %v6784
          %v8262 = vunpack.c.l.b16 %v6785
          %v8263 = vunpack.c.h.b16 %v6785
          %v8264 = vunpack.c.l.b16 %v6786
          %v8265 = vunpack.c.h.b16 %v6786
          %v8266 = vunpack.c.l.b16 %v6787
          %v8267 = vunpack.c.h.b16 %v6787
          %v8268 = vunpack.c.l.b16 %v6788
          %v8269 = vunpack.c.h.b16 %v6788
          %v8270 = vunpack.c.l.b16 %v6789
          %v8271 = vunpack.c.h.b16 %v6789
          %v8272 = vunpack.c.l.b16 %v6790
          %v8273 = vunpack.c.h.b16 %v6790
          %v8274 = vunpack.c.l.b16 %v6791
          %v8275 = vunpack.c.h.b16 %v6791
          %v8276 = vunpack.c.l.b16 %v6792
          %v8277 = vunpack.c.h.b16 %v6792
          %v8278 = vunpack.c.l.b16 %v6793
          %v8279 = vunpack.c.h.b16 %v6793
          %v8280 = vunpack.c.l.b16 %v6794
          %v8281 = vunpack.c.h.b16 %v6794
          %v8282 = vunpack.c.l.b16 %v6795
          %v8283 = vunpack.c.h.b16 %v6795
          %v8284 = vunpack.c.l.b16 %v6796
          %v8285 = vunpack.c.h.b16 %v6796
          %v8286 = vunpack.c.l.b16 %v6797
          %v8287 = vunpack.c.h.b16 %v6797
          %v8288 = vunpack.c.l.b16 %v6798
          %v8289 = vunpack.c.h.b16 %v6798
          %v8290 = vunpack.c.l.b16 %v6799
          %v8291 = vunpack.c.h.b16 %v6799
          %v8292 = vunpack.c.l.b16 %v6800
          %v8293 = vunpack.c.h.b16 %v6800
          %v8294 = vunpack.c.l.b16 %v6801
          %v8295 = vunpack.c.h.b16 %v6801
          %v8296 = vunpack.c.l.b16 %v6802
          %v8297 = vunpack.c.h.b16 %v6802
          %v8298 = vunpack.c.l.b16 %v6803
          %v8299 = vunpack.c.h.b16 %v6803
          %v8300 = vunpack.c.l.b16 %v6804
          %v8301 = vunpack.c.h.b16 %v6804
          %v8302 = vunpack.c.l.b16 %v6805
          %v8303 = vunpack.c.h.b16 %v6805
          %v8304 = vunpack.c.l.b16 %v6806
          %v8305 = vunpack.c.h.b16 %v6806
          %v8306 = vunpack.c.l.b16 %v6807
          %v8307 = vunpack.c.h.b16 %v6807
          %v8308 = vunpack.c.l.b16 %v6808
          %v8309 = vunpack.c.h.b16 %v6808
          %v8310 = vunpack.c.l.b16 %v6809
          %v8311 = vunpack.c.h.b16 %v6809
          %v8312 = vunpack.c.l.b16 %v6810
          %v8313 = vunpack.c.h.b16 %v6810
          %v8314 = vunpack.c.l.b16 %v6811
          %v8315 = vunpack.c.h.b16 %v6811
          %v8316 = vunpack.c.l.b16 %v6812
          %v8317 = vunpack.c.h.b16 %v6812
          %v8318 = vunpack.c.l.b16 %v6813
          %v8319 = vunpack.c.h.b16 %v6813
          %v8320 = vunpack.c.l.b16 %v6814
          %v8321 = vunpack.c.h.b16 %v6814
          %v8322 = vunpack.c.l.b16 %v6815
          %v8323 = vunpack.c.h.b16 %v6815
          %v8324 = vunpack.c.l.b16 %v6816
          %v8325 = vunpack.c.h.b16 %v6816
          %v8326 = vunpack.c.l.b16 %v6817
          %v8327 = vunpack.c.h.b16 %v6817
          %v8328 = vunpack.c.l.b16 %v6818
          %v8329 = vunpack.c.h.b16 %v6818
          %v8330 = vunpack.c.l.b16 %v6819
          %v8331 = vunpack.c.h.b16 %v6819
          %v8332 = vunpack.c.l.b16 %v6820
          %v8333 = vunpack.c.h.b16 %v6820
          %v8334 = vunpack.c.l.b16 %v6821
          %v8335 = vunpack.c.h.b16 %v6821
          %v8336 = vunpack.c.l.b16 %v6822
          %v8337 = vunpack.c.h.b16 %v6822
          %v8338 = vunpack.c.l.b16 %v6823
          %v8339 = vunpack.c.h.b16 %v6823
          %v8340 = vunpack.c.l.b16 %v6824
          %v8341 = vunpack.c.h.b16 %v6824
          %v8342 = vunpack.c.l.b16 %v6825
          %v8343 = vunpack.c.h.b16 %v6825
          %v8344 = vunpack.c.l.b16 %v6826
          %v8345 = vunpack.c.h.b16 %v6826
          %v8346 = vunpack.c.l.b16 %v6827
          %v8347 = vunpack.c.h.b16 %v6827
          %v8348 = vunpack.c.l.b16 %v6828
          %v8349 = vunpack.c.h.b16 %v6828
          %v8350 = vunpack.c.l.b16 %v6829
          %v8351 = vunpack.c.h.b16 %v6829
          %v8352 = vunpack.c.l.b16 %v6830
          %v8353 = vunpack.c.h.b16 %v6830
          %v8354 = vunpack.c.l.b16 %v6831
          %v8355 = vunpack.c.h.b16 %v6831
          %v8356 = vunpack.c.l.b16 %v6832
          %v8357 = vunpack.c.h.b16 %v6832
          %v8358 = vunpack.c.l.b16 %v6833
          %v8359 = vunpack.c.h.b16 %v6833
          %v8360 = vunpack.c.l.b16 %v6834
          %v8361 = vunpack.c.h.b16 %v6834
          %v8362 = vunpack.c.l.b16 %v6835
          %v8363 = vunpack.c.h.b16 %v6835
          %v8364 = vunpack.c.l.b16 %v6836
          %v8365 = vunpack.c.h.b16 %v6836
          %v8366 = vunpack.c.l.b16 %v6837
          %v8367 = vunpack.c.h.b16 %v6837
          %v8368 = vunpack.c.l.b16 %v6838
          %v8369 = vunpack.c.h.b16 %v6838
          %v8370 = vunpack.c.l.b16 %v6839
          %v8371 = vunpack.c.h.b16 %v6839
          %v8372 = vunpack.c.l.b16 %v6840
          %v8373 = vunpack.c.h.b16 %v6840
          %v8374 = vunpack.c.l.b16 %v6841
          %v8375 = vunpack.c.h.b16 %v6841
          %v8376 = vunpack.c.l.b16 %v6842
          %v8377 = vunpack.c.h.b16 %v6842
          %v8378 = vunpack.c.l.b16 %v6843
          %v8379 = vunpack.c.h.b16 %v6843
          %v8380 = vunpack.c.l.b16 %v6844
          %v8381 = vunpack.c.h.b16 %v6844
          %v8382 = vunpack.c.l.b16 %v6845
          %v8383 = vunpack.c.h.b16 %v6845
          %v8384 = vunpack.c.l.b16 %v6846
          %v8385 = vunpack.c.h.b16 %v6846
          %v8386 = vunpack.c.l.b16 %v6847
          %v8387 = vunpack.c.h.b16 %v6847
          %v8388 = vunpack.c.l.b16 %v6848
          %v8389 = vunpack.c.h.b16 %v6848
          %v8390 = vunpack.c.l.b16 %v6849
          %v8391 = vunpack.c.h.b16 %v6849
          %v8392 = vunpack.c.l.b16 %v6850
          %v8393 = vunpack.c.h.b16 %v6850
          %v8394 = vunpack.c.l.b16 %v6851
          %v8395 = vunpack.c.h.b16 %v6851
          %v8396 = vunpack.c.l.b16 %v6852
          %v8397 = vunpack.c.h.b16 %v6852
          %v8398 = vunpack.c.l.b16 %v6853
          %v8399 = vunpack.c.h.b16 %v6853
          %v8400 = vunpack.c.l.b16 %v6854
          %v8401 = vunpack.c.h.b16 %v6854
          %v8402 = vunpack.c.l.b16 %v6855
          %v8403 = vunpack.c.h.b16 %v6855
          %v8404 = vunpack.c.l.b16 %v6856
          %v8405 = vunpack.c.h.b16 %v6856
          %v8406 = vunpack.c.l.b16 %v6857
          %v8407 = vunpack.c.h.b16 %v6857
          %v8408 = vunpack.c.l.b16 %v6858
          %v8409 = vunpack.c.h.b16 %v6858
          %v8410 = vunpack.c.l.b16 %v6859
          %v8411 = vunpack.c.h.b16 %v6859
          %v8412 = vunpack.c.l.b16 %v6860
          %v8413 = vunpack.c.h.b16 %v6860
          %v8414 = vunpack.c.l.b16 %v6861
          %v8415 = vunpack.c.h.b16 %v6861
          %v8416 = vunpack.c.l.b16 %v6862
          %v8417 = vunpack.c.h.b16 %v6862
          %v8418 = vunpack.c.l.b16 %v6863
          %v8419 = vunpack.c.h.b16 %v6863
          %v8420 = vunpack.c.l.b16 %v6864
          %v8421 = vunpack.c.h.b16 %v6864
          %v8422 = vunpack.c.l.b16 %v6865
          %v8423 = vunpack.c.h.b16 %v6865
          %v8424 = vpack.c.b16 %v7404, %v7400
          %v8425 = vpack.c.b16 %v7405, %v7401
          %v8426 = vpack.c.b16 %v7406, %v7402
          %v8427 = vpack.c.b16 %v7407, %v7403
          %v8428 = vpack.c.b16 %v7412, %v7408
          %v8429 = vpack.c.b16 %v7413, %v7409
          %v8430 = vpack.c.b16 %v7414, %v7410
          %v8431 = vpack.c.b16 %v7415, %v7411
          %v8432 = vpack.c.b16 %v7420, %v7416
          %v8433 = vpack.c.b16 %v7421, %v7417
          %v8434 = vpack.c.b16 %v7422, %v7418
          %v8435 = vpack.c.b16 %v7423, %v7419
          %v8436 = vpack.c.b16 %v7428, %v7424
          %v8437 = vpack.c.b16 %v7429, %v7425
          %v8438 = vpack.c.b16 %v7430, %v7426
          %v8439 = vpack.c.b16 %v7431, %v7427
          %v8440 = vpack.c.b16 %v7436, %v7432
          %v8441 = vpack.c.b16 %v7437, %v7433
          %v8442 = vpack.c.b16 %v7438, %v7434
          %v8443 = vpack.c.b16 %v7439, %v7435
          %v8444 = vpack.c.b16 %v7444, %v7440
          %v8445 = vpack.c.b16 %v7445, %v7441
          %v8446 = vpack.c.b16 %v7446, %v7442
          %v8447 = vpack.c.b16 %v7447, %v7443
          %v8448 = vpack.c.b16 %v7452, %v7448
          %v8449 = vpack.c.b16 %v7453, %v7449
          %v8450 = vpack.c.b16 %v7454, %v7450
          %v8451 = vpack.c.b16 %v7455, %v7451
          %v8452 = vpack.c.b16 %v7460, %v7456
          %v8453 = vpack.c.b16 %v7461, %v7457
          %v8454 = vpack.c.b16 %v7462, %v7458
          %v8455 = vpack.c.b16 %v7463, %v7459
          %v8456 = vpack.c.b16 %v7468, %v7464
          %v8457 = vpack.c.b16 %v7469, %v7465
          %v8458 = vpack.c.b16 %v7470, %v7466
          %v8459 = vpack.c.b16 %v7471, %v7467
          %v8460 = vpack.c.b16 %v7476, %v7472
          %v8461 = vpack.c.b16 %v7477, %v7473
          %v8462 = vpack.c.b16 %v7478, %v7474
          %v8463 = vpack.c.b16 %v7479, %v7475
          %v8464 = vpack.c.b16 %v7484, %v7480
          %v8465 = vpack.c.b16 %v7485, %v7481
          %v8466 = vpack.c.b16 %v7486, %v7482
          %v8467 = vpack.c.b16 %v7487, %v7483
          %v8468 = vpack.c.b16 %v7492, %v7488
          %v8469 = vpack.c.b16 %v7493, %v7489
          %v8470 = vpack.c.b16 %v7494, %v7490
          %v8471 = vpack.c.b16 %v7495, %v7491
          %v8472 = vpack.c.b16 %v7500, %v7496
          %v8473 = vpack.c.b16 %v7501, %v7497
          %v8474 = vpack.c.b16 %v7502, %v7498
          %v8475 = vpack.c.b16 %v7503, %v7499
          %v8476 = vpack.c.b16 %v7508, %v7504
          %v8477 = vpack.c.b16 %v7509, %v7505
          %v8478 = vpack.c.b16 %v7510, %v7506
          %v8479 = vpack.c.b16 %v7511, %v7507
          %v8480 = vpack.c.b16 %v7516, %v7512
          %v8481 = vpack.c.b16 %v7517, %v7513
          %v8482 = vpack.c.b16 %v7518, %v7514
          %v8483 = vpack.c.b16 %v7519, %v7515
          %v8484 = vpack.c.b16 %v7524, %v7520
          %v8485 = vpack.c.b16 %v7525, %v7521
          %v8486 = vpack.c.b16 %v7526, %v7522
          %v8487 = vpack.c.b16 %v7527, %v7523
          %v8488 = vpack.c.b16 %v7532, %v7528
          %v8489 = vpack.c.b16 %v7533, %v7529
          %v8490 = vpack.c.b16 %v7534, %v7530
          %v8491 = vpack.c.b16 %v7535, %v7531
          %v8492 = vpack.c.b16 %v7540, %v7536
          %v8493 = vpack.c.b16 %v7541, %v7537
          %v8494 = vpack.c.b16 %v7542, %v7538
          %v8495 = vpack.c.b16 %v7543, %v7539
          %v8496 = vpack.c.b16 %v7548, %v7544
          %v8497 = vpack.c.b16 %v7549, %v7545
          %v8498 = vpack.c.b16 %v7550, %v7546
          %v8499 = vpack.c.b16 %v7551, %v7547
          %v8500 = vpack.c.b16 %v7556, %v7552
          %v8501 = vpack.c.b16 %v7557, %v7553
          %v8502 = vpack.c.b16 %v7558, %v7554
          %v8503 = vpack.c.b16 %v7559, %v7555
          %v8504 = vpack.c.b16 %v7564, %v7560
          %v8505 = vpack.c.b16 %v7565, %v7561
          %v8506 = vpack.c.b16 %v7566, %v7562
          %v8507 = vpack.c.b16 %v7567, %v7563
          %v8508 = vpack.c.b16 %v7572, %v7568
          %v8509 = vpack.c.b16 %v7573, %v7569
          %v8510 = vpack.c.b16 %v7574, %v7570
          %v8511 = vpack.c.b16 %v7575, %v7571
          %v8512 = vpack.c.b16 %v7580, %v7576
          %v8513 = vpack.c.b16 %v7581, %v7577
          %v8514 = vpack.c.b16 %v7582, %v7578
          %v8515 = vpack.c.b16 %v7583, %v7579
          %v8516 = vpack.c.b16 %v7588, %v7584
          %v8517 = vpack.c.b16 %v7589, %v7585
          %v8518 = vpack.c.b16 %v7590, %v7586
          %v8519 = vpack.c.b16 %v7591, %v7587
          %v8520 = vpack.c.b16 %v7596, %v7592
          %v8521 = vpack.c.b16 %v7597, %v7593
          %v8522 = vpack.c.b16 %v7598, %v7594
          %v8523 = vpack.c.b16 %v7599, %v7595
          %v8524 = vpack.c.b16 %v7604, %v7600
          %v8525 = vpack.c.b16 %v7605, %v7601
          %v8526 = vpack.c.b16 %v7606, %v7602
          %v8527 = vpack.c.b16 %v7607, %v7603
          %v8528 = vpack.c.b16 %v7612, %v7608
          %v8529 = vpack.c.b16 %v7613, %v7609
          %v8530 = vpack.c.b16 %v7614, %v7610
          %v8531 = vpack.c.b16 %v7615, %v7611
          %v8532 = vpack.c.b16 %v7620, %v7616
          %v8533 = vpack.c.b16 %v7621, %v7617
          %v8534 = vpack.c.b16 %v7622, %v7618
          %v8535 = vpack.c.b16 %v7623, %v7619
          %v8536 = vpack.c.b16 %v7628, %v7624
          %v8537 = vpack.c.b16 %v7629, %v7625
          %v8538 = vpack.c.b16 %v7630, %v7626
          %v8539 = vpack.c.b16 %v7631, %v7627
          %v8540 = vpack.c.b16 %v7636, %v7632
          %v8541 = vpack.c.b16 %v7637, %v7633
          %v8542 = vpack.c.b16 %v7638, %v7634
          %v8543 = vpack.c.b16 %v7639, %v7635
          %v8544 = vpack.c.b16 %v7644, %v7640
          %v8545 = vpack.c.b16 %v7645, %v7641
          %v8546 = vpack.c.b16 %v7646, %v7642
          %v8547 = vpack.c.b16 %v7647, %v7643
          %v8548 = vpack.c.b16 %v7652, %v7648
          %v8549 = vpack.c.b16 %v7653, %v7649
          %v8550 = vpack.c.b16 %v7654, %v7650
          %v8551 = vpack.c.b16 %v7655, %v7651
          %v8552 = vpack.c.b16 %v7660, %v7656
          %v8553 = vpack.c.b16 %v7661, %v7657
          %v8554 = vpack.c.b16 %v7662, %v7658
          %v8555 = vpack.c.b16 %v7663, %v7659
          %v8556 = vpack.c.b16 %v7668, %v7664
          %v8557 = vpack.c.b16 %v7669, %v7665
          %v8558 = vpack.c.b16 %v7670, %v7666
          %v8559 = vpack.c.b16 %v7671, %v7667
          %v8560 = vpack.c.b16 %v7676, %v7672
          %v8561 = vpack.c.b16 %v7677, %v7673
          %v8562 = vpack.c.b16 %v7678, %v7674
          %v8563 = vpack.c.b16 %v7679, %v7675
          %v8564 = vpack.c.b16 %v7684, %v7680
          %v8565 = vpack.c.b16 %v7685, %v7681
          %v8566 = vpack.c.b16 %v7686, %v7682
          %v8567 = vpack.c.b16 %v7687, %v7683
          %v8568 = vpack.c.b16 %v7692, %v7688
          %v8569 = vpack.c.b16 %v7693, %v7689
          %v8570 = vpack.c.b16 %v7694, %v7690
          %v8571 = vpack.c.b16 %v7695, %v7691
          %v8572 = vpack.c.b16 %v7700, %v7696
          %v8573 = vpack.c.b16 %v7701, %v7697
          %v8574 = vpack.c.b16 %v7702, %v7698
          %v8575 = vpack.c.b16 %v7703, %v7699
          %v8576 = vpack.c.b16 %v7708, %v7704
          %v8577 = vpack.c.b16 %v7709, %v7705
          %v8578 = vpack.c.b16 %v7710, %v7706
          %v8579 = vpack.c.b16 %v7711, %v7707
          %v8580 = vpack.c.b16 %v7716, %v7712
          %v8581 = vpack.c.b16 %v7717, %v7713
          %v8582 = vpack.c.b16 %v7718, %v7714
          %v8583 = vpack.c.b16 %v7719, %v7715
          %v8584 = vpack.c.b16 %v7724, %v7720
          %v8585 = vpack.c.b16 %v7725, %v7721
          %v8586 = vpack.c.b16 %v7726, %v7722
          %v8587 = vpack.c.b16 %v7727, %v7723
          %v8588 = vpack.c.b16 %v7732, %v7728
          %v8589 = vpack.c.b16 %v7733, %v7729
          %v8590 = vpack.c.b16 %v7734, %v7730
          %v8591 = vpack.c.b16 %v7735, %v7731
          %v8592 = vpack.c.b16 %v7740, %v7736
          %v8593 = vpack.c.b16 %v7741, %v7737
          %v8594 = vpack.c.b16 %v7742, %v7738
          %v8595 = vpack.c.b16 %v7743, %v7739
          %v8596 = vpack.c.b16 %v7748, %v7744
          %v8597 = vpack.c.b16 %v7749, %v7745
          %v8598 = vpack.c.b16 %v7750, %v7746
          %v8599 = vpack.c.b16 %v7751, %v7747
          %v8600 = vpack.c.b16 %v7756, %v7752
          %v8601 = vpack.c.b16 %v7757, %v7753
          %v8602 = vpack.c.b16 %v7758, %v7754
          %v8603 = vpack.c.b16 %v7759, %v7755
          %v8604 = vpack.c.b16 %v7764, %v7760
          %v8605 = vpack.c.b16 %v7765, %v7761
          %v8606 = vpack.c.b16 %v7766, %v7762
          %v8607 = vpack.c.b16 %v7767, %v7763
          %v8608 = vpack.c.b16 %v7772, %v7768
          %v8609 = vpack.c.b16 %v7773, %v7769
          %v8610 = vpack.c.b16 %v7774, %v7770
          %v8611 = vpack.c.b16 %v7775, %v7771
          %v8612 = vpack.c.b16 %v7780, %v7776
          %v8613 = vpack.c.b16 %v7781, %v7777
          %v8614 = vpack.c.b16 %v7782, %v7778
          %v8615 = vpack.c.b16 %v7783, %v7779
          %v8616 = vpack.c.b16 %v7788, %v7784
          %v8617 = vpack.c.b16 %v7789, %v7785
          %v8618 = vpack.c.b16 %v7790, %v7786
          %v8619 = vpack.c.b16 %v7791, %v7787
          %v8620 = vpack.c.b16 %v7796, %v7792
          %v8621 = vpack.c.b16 %v7797, %v7793
          %v8622 = vpack.c.b16 %v7798, %v7794
          %v8623 = vpack.c.b16 %v7799, %v7795
          %v8624 = vpack.c.b16 %v7804, %v7800
          %v8625 = vpack.c.b16 %v7805, %v7801
          %v8626 = vpack.c.b16 %v7806, %v7802
          %v8627 = vpack.c.b16 %v7807, %v7803
          %v8628 = vpack.c.b16 %v7812, %v7808
          %v8629 = vpack.c.b16 %v7813, %v7809
          %v8630 = vpack.c.b16 %v7814, %v7810
          %v8631 = vpack.c.b16 %v7815, %v7811
          %v8632 = vpack.c.b16 %v7820, %v7816
          %v8633 = vpack.c.b16 %v7821, %v7817
          %v8634 = vpack.c.b16 %v7822, %v7818
          %v8635 = vpack.c.b16 %v7823, %v7819
          %v8636 = vpack.c.b16 %v7828, %v7824
          %v8637 = vpack.c.b16 %v7829, %v7825
          %v8638 = vpack.c.b16 %v7830, %v7826
          %v8639 = vpack.c.b16 %v7831, %v7827
          %v8640 = vpack.c.b16 %v7836, %v7832
          %v8641 = vpack.c.b16 %v7837, %v7833
          %v8642 = vpack.c.b16 %v7838, %v7834
          %v8643 = vpack.c.b16 %v7839, %v7835
          %v8644 = vpack.c.b16 %v7844, %v7840
          %v8645 = vpack.c.b16 %v7845, %v7841
          %v8646 = vpack.c.b16 %v7846, %v7842
          %v8647 = vpack.c.b16 %v7847, %v7843
          %v8648 = vpack.c.b16 %v7852, %v7848
          %v8649 = vpack.c.b16 %v7853, %v7849
          %v8650 = vpack.c.b16 %v7854, %v7850
          %v8651 = vpack.c.b16 %v7855, %v7851
          %v8652 = vpack.c.b16 %v7860, %v7856
          %v8653 = vpack.c.b16 %v7861, %v7857
          %v8654 = vpack.c.b16 %v7862, %v7858
          %v8655 = vpack.c.b16 %v7863, %v7859
          %v8656 = vpack.c.b16 %v7868, %v7864
          %v8657 = vpack.c.b16 %v7869, %v7865
          %v8658 = vpack.c.b16 %v7870, %v7866
          %v8659 = vpack.c.b16 %v7871, %v7867
          %v8660 = vpack.c.b16 %v7876, %v7872
          %v8661 = vpack.c.b16 %v7877, %v7873
          %v8662 = vpack.c.b16 %v7878, %v7874
          %v8663 = vpack.c.b16 %v7879, %v7875
          %v8664 = vpack.c.b16 %v7884, %v7880
          %v8665 = vpack.c.b16 %v7885, %v7881
          %v8666 = vpack.c.b16 %v7886, %v7882
          %v8667 = vpack.c.b16 %v7887, %v7883
          %v8668 = vpack.c.b16 %v7892, %v7888
          %v8669 = vpack.c.b16 %v7893, %v7889
          %v8670 = vpack.c.b16 %v7894, %v7890
          %v8671 = vpack.c.b16 %v7895, %v7891
          %v8672 = vpack.c.b16 %v7900, %v7896
          %v8673 = vpack.c.b16 %v7901, %v7897
          %v8674 = vpack.c.b16 %v7902, %v7898
          %v8675 = vpack.c.b16 %v7903, %v7899
          %v8676 = vpack.c.b16 %v7908, %v7904
          %v8677 = vpack.c.b16 %v7909, %v7905
          %v8678 = vpack.c.b16 %v7910, %v7906
          %v8679 = vpack.c.b16 %v7911, %v7907
          %v8680 = vpack.c.b16 %v7916, %v7912
          %v8681 = vpack.c.b16 %v7917, %v7913
          %v8682 = vpack.c.b16 %v7918, %v7914
          %v8683 = vpack.c.b16 %v7919, %v7915
          %v8684 = vpack.c.b16 %v7924, %v7920
          %v8685 = vpack.c.b16 %v7925, %v7921
          %v8686 = vpack.c.b16 %v7926, %v7922
          %v8687 = vpack.c.b16 %v7927, %v7923
          %v8688 = vpack.c.b16 %v7932, %v7928
          %v8689 = vpack.c.b16 %v7933, %v7929
          %v8690 = vpack.c.b16 %v7934, %v7930
          %v8691 = vpack.c.b16 %v7935, %v7931
          %v8692 = vpack.c.b16 %v7940, %v7936
          %v8693 = vpack.c.b16 %v7941, %v7937
          %v8694 = vpack.c.b16 %v7942, %v7938
          %v8695 = vpack.c.b16 %v7943, %v7939
          %v8696 = vpack.c.b16 %v7948, %v7944
          %v8697 = vpack.c.b16 %v7949, %v7945
          %v8698 = vpack.c.b16 %v7950, %v7946
          %v8699 = vpack.c.b16 %v7951, %v7947
          %v8700 = vpack.c.b16 %v7956, %v7952
          %v8701 = vpack.c.b16 %v7957, %v7953
          %v8702 = vpack.c.b16 %v7958, %v7954
          %v8703 = vpack.c.b16 %v7959, %v7955
          %v8704 = vpack.c.b16 %v7964, %v7960
          %v8705 = vpack.c.b16 %v7965, %v7961
          %v8706 = vpack.c.b16 %v7966, %v7962
          %v8707 = vpack.c.b16 %v7967, %v7963
          %v8708 = vpack.c.b16 %v7972, %v7968
          %v8709 = vpack.c.b16 %v7973, %v7969
          %v8710 = vpack.c.b16 %v7974, %v7970
          %v8711 = vpack.c.b16 %v7975, %v7971
          %v8712 = vpack.c.b16 %v7980, %v7976
          %v8713 = vpack.c.b16 %v7981, %v7977
          %v8714 = vpack.c.b16 %v7982, %v7978
          %v8715 = vpack.c.b16 %v7983, %v7979
          %v8716 = vpack.c.b16 %v7988, %v7984
          %v8717 = vpack.c.b16 %v7989, %v7985
          %v8718 = vpack.c.b16 %v7990, %v7986
          %v8719 = vpack.c.b16 %v7991, %v7987
          %v8720 = vpack.c.b16 %v7996, %v7992
          %v8721 = vpack.c.b16 %v7997, %v7993
          %v8722 = vpack.c.b16 %v7998, %v7994
          %v8723 = vpack.c.b16 %v7999, %v7995
          %v8724 = vpack.c.b16 %v8004, %v8000
          %v8725 = vpack.c.b16 %v8005, %v8001
          %v8726 = vpack.c.b16 %v8006, %v8002
          %v8727 = vpack.c.b16 %v8007, %v8003
          %v8728 = vpack.c.b16 %v8012, %v8008
          %v8729 = vpack.c.b16 %v8013, %v8009
          %v8730 = vpack.c.b16 %v8014, %v8010
          %v8731 = vpack.c.b16 %v8015, %v8011
          %v8732 = vpack.c.b16 %v8020, %v8016
          %v8733 = vpack.c.b16 %v8021, %v8017
          %v8734 = vpack.c.b16 %v8022, %v8018
          %v8735 = vpack.c.b16 %v8023, %v8019
          %v8736 = vpack.c.b16 %v8028, %v8024
          %v8737 = vpack.c.b16 %v8029, %v8025
          %v8738 = vpack.c.b16 %v8030, %v8026
          %v8739 = vpack.c.b16 %v8031, %v8027
          %v8740 = vpack.c.b16 %v8036, %v8032
          %v8741 = vpack.c.b16 %v8037, %v8033
          %v8742 = vpack.c.b16 %v8038, %v8034
          %v8743 = vpack.c.b16 %v8039, %v8035
          %v8744 = vpack.c.b16 %v8044, %v8040
          %v8745 = vpack.c.b16 %v8045, %v8041
          %v8746 = vpack.c.b16 %v8046, %v8042
          %v8747 = vpack.c.b16 %v8047, %v8043
          %v8748 = vpack.c.b16 %v8052, %v8048
          %v8749 = vpack.c.b16 %v8053, %v8049
          %v8750 = vpack.c.b16 %v8054, %v8050
          %v8751 = vpack.c.b16 %v8055, %v8051
          %v8752 = vpack.c.b16 %v8060, %v8056
          %v8753 = vpack.c.b16 %v8061, %v8057
          %v8754 = vpack.c.b16 %v8062, %v8058
          %v8755 = vpack.c.b16 %v8063, %v8059
          %v8756 = vpack.c.b16 %v8068, %v8064
          %v8757 = vpack.c.b16 %v8069, %v8065
          %v8758 = vpack.c.b16 %v8070, %v8066
          %v8759 = vpack.c.b16 %v8071, %v8067
          %v8760 = vpack.c.b16 %v8076, %v8072
          %v8761 = vpack.c.b16 %v8077, %v8073
          %v8762 = vpack.c.b16 %v8078, %v8074
          %v8763 = vpack.c.b16 %v8079, %v8075
          %v8764 = vpack.c.b16 %v8084, %v8080
          %v8765 = vpack.c.b16 %v8085, %v8081
          %v8766 = vpack.c.b16 %v8086, %v8082
          %v8767 = vpack.c.b16 %v8087, %v8083
          %v8768 = vpack.c.b16 %v8092, %v8088
          %v8769 = vpack.c.b16 %v8093, %v8089
          %v8770 = vpack.c.b16 %v8094, %v8090
          %v8771 = vpack.c.b16 %v8095, %v8091
          %v8772 = vpack.c.b16 %v8100, %v8096
          %v8773 = vpack.c.b16 %v8101, %v8097
          %v8774 = vpack.c.b16 %v8102, %v8098
          %v8775 = vpack.c.b16 %v8103, %v8099
          %v8776 = vpack.c.b16 %v8108, %v8104
          %v8777 = vpack.c.b16 %v8109, %v8105
          %v8778 = vpack.c.b16 %v8110, %v8106
          %v8779 = vpack.c.b16 %v8111, %v8107
          %v8780 = vpack.c.b16 %v8116, %v8112
          %v8781 = vpack.c.b16 %v8117, %v8113
          %v8782 = vpack.c.b16 %v8118, %v8114
          %v8783 = vpack.c.b16 %v8119, %v8115
          %v8784 = vpack.c.b16 %v8124, %v8120
          %v8785 = vpack.c.b16 %v8125, %v8121
          %v8786 = vpack.c.b16 %v8126, %v8122
          %v8787 = vpack.c.b16 %v8127, %v8123
          %v8788 = vpack.c.b16 %v8132, %v8128
          %v8789 = vpack.c.b16 %v8133, %v8129
          %v8790 = vpack.c.b16 %v8134, %v8130
          %v8791 = vpack.c.b16 %v8135, %v8131
          %v8792 = vpack.c.b16 %v8140, %v8136
          %v8793 = vpack.c.b16 %v8141, %v8137
          %v8794 = vpack.c.b16 %v8142, %v8138
          %v8795 = vpack.c.b16 %v8143, %v8139
          %v8796 = vpack.c.b16 %v8148, %v8144
          %v8797 = vpack.c.b16 %v8149, %v8145
          %v8798 = vpack.c.b16 %v8150, %v8146
          %v8799 = vpack.c.b16 %v8151, %v8147
          %v8800 = vpack.c.b16 %v8156, %v8152
          %v8801 = vpack.c.b16 %v8157, %v8153
          %v8802 = vpack.c.b16 %v8158, %v8154
          %v8803 = vpack.c.b16 %v8159, %v8155
          %v8804 = vpack.c.b16 %v8164, %v8160
          %v8805 = vpack.c.b16 %v8165, %v8161
          %v8806 = vpack.c.b16 %v8166, %v8162
          %v8807 = vpack.c.b16 %v8167, %v8163
          %v8808 = vpack.c.b16 %v8172, %v8168
          %v8809 = vpack.c.b16 %v8173, %v8169
          %v8810 = vpack.c.b16 %v8174, %v8170
          %v8811 = vpack.c.b16 %v8175, %v8171
          %v8812 = vpack.c.b16 %v8180, %v8176
          %v8813 = vpack.c.b16 %v8181, %v8177
          %v8814 = vpack.c.b16 %v8182, %v8178
          %v8815 = vpack.c.b16 %v8183, %v8179
          %v8816 = vpack.c.b16 %v8188, %v8184
          %v8817 = vpack.c.b16 %v8189, %v8185
          %v8818 = vpack.c.b16 %v8190, %v8186
          %v8819 = vpack.c.b16 %v8191, %v8187
          %v8820 = vpack.c.b16 %v8196, %v8192
          %v8821 = vpack.c.b16 %v8197, %v8193
          %v8822 = vpack.c.b16 %v8198, %v8194
          %v8823 = vpack.c.b16 %v8199, %v8195
          %v8824 = vpack.c.b16 %v8204, %v8200
          %v8825 = vpack.c.b16 %v8205, %v8201
          %v8826 = vpack.c.b16 %v8206, %v8202
          %v8827 = vpack.c.b16 %v8207, %v8203
          %v8828 = vpack.c.b16 %v8212, %v8208
          %v8829 = vpack.c.b16 %v8213, %v8209
          %v8830 = vpack.c.b16 %v8214, %v8210
          %v8831 = vpack.c.b16 %v8215, %v8211
          %v8832 = vpack.c.b16 %v8220, %v8216
          %v8833 = vpack.c.b16 %v8221, %v8217
          %v8834 = vpack.c.b16 %v8222, %v8218
          %v8835 = vpack.c.b16 %v8223, %v8219
          %v8836 = vpack.c.b16 %v8228, %v8224
          %v8837 = vpack.c.b16 %v8229, %v8225
          %v8838 = vpack.c.b16 %v8230, %v8226
          %v8839 = vpack.c.b16 %v8231, %v8227
          %v8840 = vpack.c.b16 %v8236, %v8232
          %v8841 = vpack.c.b16 %v8237, %v8233
          %v8842 = vpack.c.b16 %v8238, %v8234
          %v8843 = vpack.c.b16 %v8239, %v8235
          %v8844 = vpack.c.b16 %v8244, %v8240
          %v8845 = vpack.c.b16 %v8245, %v8241
          %v8846 = vpack.c.b16 %v8246, %v8242
          %v8847 = vpack.c.b16 %v8247, %v8243
          %v8848 = vpack.c.b16 %v8252, %v8248
          %v8849 = vpack.c.b16 %v8253, %v8249
          %v8850 = vpack.c.b16 %v8254, %v8250
          %v8851 = vpack.c.b16 %v8255, %v8251
          %v8852 = vpack.c.b16 %v8260, %v8256
          %v8853 = vpack.c.b16 %v8261, %v8257
          %v8854 = vpack.c.b16 %v8262, %v8258
          %v8855 = vpack.c.b16 %v8263, %v8259
          %v8856 = vpack.c.b16 %v8268, %v8264
          %v8857 = vpack.c.b16 %v8269, %v8265
          %v8858 = vpack.c.b16 %v8270, %v8266
          %v8859 = vpack.c.b16 %v8271, %v8267
          %v8860 = vpack.c.b16 %v8276, %v8272
          %v8861 = vpack.c.b16 %v8277, %v8273
          %v8862 = vpack.c.b16 %v8278, %v8274
          %v8863 = vpack.c.b16 %v8279, %v8275
          %v8864 = vpack.c.b16 %v8284, %v8280
          %v8865 = vpack.c.b16 %v8285, %v8281
          %v8866 = vpack.c.b16 %v8286, %v8282
          %v8867 = vpack.c.b16 %v8287, %v8283
          %v8868 = vpack.c.b16 %v8292, %v8288
          %v8869 = vpack.c.b16 %v8293, %v8289
          %v8870 = vpack.c.b16 %v8294, %v8290
          %v8871 = vpack.c.b16 %v8295, %v8291
          %v8872 = vpack.c.b16 %v8300, %v8296
          %v8873 = vpack.c.b16 %v8301, %v8297
          %v8874 = vpack.c.b16 %v8302, %v8298
          %v8875 = vpack.c.b16 %v8303, %v8299
          %v8876 = vpack.c.b16 %v8308, %v8304
          %v8877 = vpack.c.b16 %v8309, %v8305
          %v8878 = vpack.c.b16 %v8310, %v8306
          %v8879 = vpack.c.b16 %v8311, %v8307
          %v8880 = vpack.c.b16 %v8316, %v8312
          %v8881 = vpack.c.b16 %v8317, %v8313
          %v8882 = vpack.c.b16 %v8318, %v8314
          %v8883 = vpack.c.b16 %v8319, %v8315
          %v8884 = vpack.c.b16 %v8324, %v8320
          %v8885 = vpack.c.b16 %v8325, %v8321
          %v8886 = vpack.c.b16 %v8326, %v8322
          %v8887 = vpack.c.b16 %v8327, %v8323
          %v8888 = vpack.c.b16 %v8332, %v8328
          %v8889 = vpack.c.b16 %v8333, %v8329
          %v8890 = vpack.c.b16 %v8334, %v8330
          %v8891 = vpack.c.b16 %v8335, %v8331
          %v8892 = vpack.c.b16 %v8340, %v8336
          %v8893 = vpack.c.b16 %v8341, %v8337
          %v8894 = vpack.c.b16 %v8342, %v8338
          %v8895 = vpack.c.b16 %v8343, %v8339
          %v8896 = vpack.c.b16 %v8348, %v8344
          %v8897 = vpack.c.b16 %v8349, %v8345
          %v8898 = vpack.c.b16 %v8350, %v8346
          %v8899 = vpack.c.b16 %v8351, %v8347
          %v8900 = vpack.c.b16 %v8356, %v8352
          %v8901 = vpack.c.b16 %v8357, %v8353
          %v8902 = vpack.c.b16 %v8358, %v8354
          %v8903 = vpack.c.b16 %v8359, %v8355
          %v8904 = vpack.c.b16 %v8364, %v8360
          %v8905 = vpack.c.b16 %v8365, %v8361
          %v8906 = vpack.c.b16 %v8366, %v8362
          %v8907 = vpack.c.b16 %v8367, %v8363
          %v8908 = vpack.c.b16 %v8372, %v8368
          %v8909 = vpack.c.b16 %v8373, %v8369
          %v8910 = vpack.c.b16 %v8374, %v8370
          %v8911 = vpack.c.b16 %v8375, %v8371
          %v8912 = vpack.c.b16 %v8380, %v8376
          %v8913 = vpack.c.b16 %v8381, %v8377
          %v8914 = vpack.c.b16 %v8382, %v8378
          %v8915 = vpack.c.b16 %v8383, %v8379
          %v8916 = vpack.c.b16 %v8388, %v8384
          %v8917 = vpack.c.b16 %v8389, %v8385
          %v8918 = vpack.c.b16 %v8390, %v8386
          %v8919 = vpack.c.b16 %v8391, %v8387
          %v8920 = vpack.c.b16 %v8396, %v8392
          %v8921 = vpack.c.b16 %v8397, %v8393
          %v8922 = vpack.c.b16 %v8398, %v8394
          %v8923 = vpack.c.b16 %v8399, %v8395
          %v8924 = vpack.c.b16 %v8404, %v8400
          %v8925 = vpack.c.b16 %v8405, %v8401
          %v8926 = vpack.c.b16 %v8406, %v8402
          %v8927 = vpack.c.b16 %v8407, %v8403
          %v8928 = vpack.c.b16 %v8412, %v8408
          %v8929 = vpack.c.b16 %v8413, %v8409
          %v8930 = vpack.c.b16 %v8414, %v8410
          %v8931 = vpack.c.b16 %v8415, %v8411
          %v8932 = vpack.c.b16 %v8420, %v8416
          %v8933 = vpack.c.b16 %v8421, %v8417
          %v8934 = vpack.c.b16 %v8422, %v8418
          %v8935 = vpack.c.b16 %v8423, %v8419
          %9448 = vmatprep.subr.bf16.mxu0 %v8425
          %9449 = vmatpush1.bf16.msra.mxu0 %v8424
          %9450 = vmatprep.subr.bf16.mxu0 %v8429
          %9451 = vmatpush1.bf16.msra.mxu0 %v8428
          %9452 = vmatprep.subr.bf16.mxu0 %v8433
          %9453 = vmatpush1.bf16.msra.mxu0 %v8432
          %9454 = vmatprep.subr.bf16.mxu0 %v8437
          %9455 = vmatpush1.bf16.msra.mxu0 %v8436
          %9456 = vmatprep.subr.bf16.mxu0 %v8441
          %9457 = vmatpush1.bf16.msra.mxu0 %v8440
          %9458 = vmatprep.subr.bf16.mxu0 %v8445
          %9459 = vmatpush1.bf16.msra.mxu0 %v8444
          %9460 = vmatprep.subr.bf16.mxu0 %v8449
          %9461 = vmatpush1.bf16.msra.mxu0 %v8448
          %9462 = vmatprep.subr.bf16.mxu0 %v8453
          %9463 = vmatpush1.bf16.msra.mxu0 %v8452
          %9464 = vmatprep.subr.bf16.mxu0 %v8457
          %9465 = vmatpush1.bf16.msra.mxu0 %v8456
          %9466 = vmatprep.subr.bf16.mxu0 %v8461
          %9467 = vmatpush1.bf16.msra.mxu0 %v8460
          %9468 = vmatprep.subr.bf16.mxu0 %v8465
          %9469 = vmatpush1.bf16.msra.mxu0 %v8464
          %9470 = vmatprep.subr.bf16.mxu0 %v8469
          %9471 = vmatpush1.bf16.msra.mxu0 %v8468
          %9472 = vmatprep.subr.bf16.mxu0 %v8473
          %9473 = vmatpush1.bf16.msra.mxu0 %v8472
          %9474 = vmatprep.subr.bf16.mxu0 %v8477
          %9475 = vmatpush1.bf16.msra.mxu0 %v8476
          %9476 = vmatprep.subr.bf16.mxu0 %v8481
          %9477 = vmatpush1.bf16.msra.mxu0 %v8480
          %9478 = vmatprep.subr.bf16.mxu0 %v8485
          %9479 = vmatpush1.bf16.msra.mxu0 %v8484
          %9480 = vmatprep.mubr.bf16.mxu0 %v6339
          %9481 = vmatmul.mubr.bf16.gmra.mrb[0].mxu0 %v6338
          %v9482 = vpop.f32.mrb[0].mxu0
          %v9483 = vadd.f32 %v6871, %v9482
          %v9484 = vpop.f32.mrb[0].mxu0
          %v9485 = vadd.f32 %v6875, %v9484
          %v9486 = vpop.f32.mrb[0].mxu0
          %v9487 = vadd.f32 %v6871, %v9486
          %v9488 = vpop.f32.mrb[0].mxu0
          %v9489 = vadd.f32 %v6875, %v9488
          %9490 = vdwg.mxu0
          %9491 = vmatprep.subr.bf16.mxu0 %v8489
          %9492 = vmatpush1.bf16.msra.mxu0 %v8488
          %9493 = vmatprep.subr.bf16.mxu0 %v8493
          %9494 = vmatpush1.bf16.msra.mxu0 %v8492
          %9495 = vmatprep.subr.bf16.mxu0 %v8497
          %9496 = vmatpush1.bf16.msra.mxu0 %v8496
          %9497 = vmatprep.subr.bf16.mxu0 %v8501
          %9498 = vmatpush1.bf16.msra.mxu0 %v8500
          %9499 = vmatprep.subr.bf16.mxu0 %v8505
          %9500 = vmatpush1.bf16.msra.mxu0 %v8504
          %9501 = vmatprep.subr.bf16.mxu0 %v8509
          %9502 = vmatpush1.bf16.msra.mxu0 %v8508
          %9503 = vmatprep.subr.bf16.mxu0 %v8513
          %9504 = vmatpush1.bf16.msra.mxu0 %v8512
          %9505 = vmatprep.subr.bf16.mxu0 %v8517
          %9506 = vmatpush1.bf16.msra.mxu0 %v8516
          %9507 = vmatprep.subr.bf16.mxu0 %v8521
          %9508 = vmatpush1.bf16.msra.mxu0 %v8520
          %9509 = vmatprep.subr.bf16.mxu0 %v8525
          %9510 = vmatpush1.bf16.msra.mxu0 %v8524
          %9511 = vmatprep.subr.bf16.mxu0 %v8529
          %9512 = vmatpush1.bf16.msra.mxu0 %v8528
          %9513 = vmatprep.subr.bf16.mxu0 %v8533
          %9514 = vmatpush1.bf16.msra.mxu0 %v8532
          %9515 = vmatprep.subr.bf16.mxu0 %v8537
          %9516 = vmatpush1.bf16.msra.mxu0 %v8536
          %9517 = vmatprep.subr.bf16.mxu0 %v8541
          %9518 = vmatpush1.bf16.msra.mxu0 %v8540
          %9519 = vmatprep.subr.bf16.mxu0 %v8545
          %9520 = vmatpush1.bf16.msra.mxu0 %v8544
          %9521 = vmatprep.subr.bf16.mxu0 %v8549
          %9522 = vmatpush1.bf16.msra.mxu0 %v8548
          %9523 = vmatprep.mubr.bf16.mxu0 %v6341
          %9524 = vmatmul.mubr.bf16.gmra.mrb[0].mxu0 %v6340
          %v9525 = vpop.f32.mrb[0].mxu0
          %v9526 = vadd.f32 %v9483, %v9525
          %v9527 = vpop.f32.mrb[0].mxu0
          %v9528 = vadd.f32 %v9485, %v9527
          %v9529 = vpop.f32.mrb[0].mxu0
          %v9530 = vadd.f32 %v9487, %v9529
          %v9531 = vpop.f32.mrb[0].mxu0
          %v9532 = vadd.f32 %v9489, %v9531
          %9533 = vdwg.mxu0
          %9534 = vmatprep.subr.bf16.mxu0 %v8553
          %9535 = vmatpush1.bf16.msra.mxu0 %v8552
          %9536 = vmatprep.subr.bf16.mxu0 %v8557
          %9537 = vmatpush1.bf16.msra.mxu0 %v8556
          %9538 = vmatprep.subr.bf16.mxu0 %v8561
          %9539 = vmatpush1.bf16.msra.mxu0 %v8560
          %9540 = vmatprep.subr.bf16.mxu0 %v8565
          %9541 = vmatpush1.bf16.msra.mxu0 %v8564
          %9542 = vmatprep.subr.bf16.mxu0 %v8569
          %9543 = vmatpush1.bf16.msra.mxu0 %v8568
          %9544 = vmatprep.subr.bf16.mxu0 %v8573
          %9545 = vmatpush1.bf16.msra.mxu0 %v8572
          %9546 = vmatprep.subr.bf16.mxu0 %v8577
          %9547 = vmatpush1.bf16.msra.mxu0 %v8576
          %9548 = vmatprep.subr.bf16.mxu0 %v8581
          %9549 = vmatpush1.bf16.msra.mxu0 %v8580
          %9550 = vmatprep.subr.bf16.mxu0 %v8585
          %9551 = vmatpush1.bf16.msra.mxu0 %v8584
          %9552 = vmatprep.subr.bf16.mxu0 %v8589
          %9553 = vmatpush1.bf16.msra.mxu0 %v8588
          %9554 = vmatprep.subr.bf16.mxu0 %v8593
          %9555 = vmatpush1.bf16.msra.mxu0 %v8592
          %9556 = vmatprep.subr.bf16.mxu0 %v8597
          %9557 = vmatpush1.bf16.msra.mxu0 %v8596
          %9558 = vmatprep.subr.bf16.mxu0 %v8601
          %9559 = vmatpush1.bf16.msra.mxu0 %v8600
          %9560 = vmatprep.subr.bf16.mxu0 %v8605
          %9561 = vmatpush1.bf16.msra.mxu0 %v8604
          %9562 = vmatprep.subr.bf16.mxu0 %v8609
          %9563 = vmatpush1.bf16.msra.mxu0 %v8608
          %9564 = vmatprep.subr.bf16.mxu0 %v8613
          %9565 = vmatpush1.bf16.msra.mxu0 %v8612
          %9566 = vmatprep.mubr.bf16.mxu0 %v6343
          %9567 = vmatmul.mubr.bf16.gmra.mrb[0].mxu0 %v6342
          %v9568 = vpop.f32.mrb[0].mxu0
          %v9569 = vadd.f32 %v9526, %v9568
          %v9570 = vpop.f32.mrb[0].mxu0
          %v9571 = vadd.f32 %v9528, %v9570
          %v9572 = vpop.f32.mrb[0].mxu0
          %v9573 = vadd.f32 %v9530, %v9572
          %v9574 = vpop.f32.mrb[0].mxu0
          %v9575 = vadd.f32 %v9532, %v9574
          %9576 = vdwg.mxu0
          %9577 = vmatprep.subr.bf16.mxu0 %v8617
          %9578 = vmatpush1.bf16.msra.mxu0 %v8616
          %9579 = vmatprep.subr.bf16.mxu0 %v8621
          %9580 = vmatpush1.bf16.msra.mxu0 %v8620
          %9581 = vmatprep.subr.bf16.mxu0 %v8625
          %9582 = vmatpush1.bf16.msra.mxu0 %v8624
          %9583 = vmatprep.subr.bf16.mxu0 %v8629
          %9584 = vmatpush1.bf16.msra.mxu0 %v8628
          %9585 = vmatprep.subr.bf16.mxu0 %v8633
          %9586 = vmatpush1.bf16.msra.mxu0 %v8632
          %9587 = vmatprep.subr.bf16.mxu0 %v8637
          %9588 = vmatpush1.bf16.msra.mxu0 %v8636
          %9589 = vmatprep.subr.bf16.mxu0 %v8641
          %9590 = vmatpush1.bf16.msra.mxu0 %v8640
          %9591 = vmatprep.subr.bf16.mxu0 %v8645
          %9592 = vmatpush1.bf16.msra.mxu0 %v8644
          %9593 = vmatprep.subr.bf16.mxu0 %v8649
          %9594 = vmatpush1.bf16.msra.mxu0 %v8648
          %9595 = vmatprep.subr.bf16.mxu0 %v8653
          %9596 = vmatpush1.bf16.msra.mxu0 %v8652
          %9597 = vmatprep.subr.bf16.mxu0 %v8657
          %9598 = vmatpush1.bf16.msra.mxu0 %v8656
          %9599 = vmatprep.subr.bf16.mxu0 %v8661
          %9600 = vmatpush1.bf16.msra.mxu0 %v8660
          %9601 = vmatprep.subr.bf16.mxu0 %v8665
          %9602 = vmatpush1.bf16.msra.mxu0 %v8664
          %9603 = vmatprep.subr.bf16.mxu0 %v8669
          %9604 = vmatpush1.bf16.msra.mxu0 %v8668
          %9605 = vmatprep.subr.bf16.mxu0 %v8673
          %9606 = vmatpush1.bf16.msra.mxu0 %v8672
          %9607 = vmatprep.subr.bf16.mxu0 %v8677
          %9608 = vmatpush1.bf16.msra.mxu0 %v8676
          %9609 = vmatprep.mubr.bf16.mxu0 %v6345
          %9610 = vmatmul.mubr.bf16.gmra.mrb[0].mxu0 %v6344
          %v9611 = vpop.f32.mrb[0].mxu0
          %v9612 = vadd.f32 %v9569, %v9611
          %v9613 = vpop.f32.mrb[0].mxu0
          %v9614 = vadd.f32 %v9571, %v9613
          %v9615 = vpop.f32.mrb[0].mxu0
          %v9616 = vadd.f32 %v9573, %v9615
          %v9617 = vpop.f32.mrb[0].mxu0
          %v9618 = vadd.f32 %v9575, %v9617
          %9619 = vdwg.mxu0
          %9620 = vmatprep.subr.bf16.mxu0 %v8681
          %9621 = vmatpush1.bf16.msra.mxu0 %v8680
          %9622 = vmatprep.subr.bf16.mxu0 %v8685
          %9623 = vmatpush1.bf16.msra.mxu0 %v8684
          %9624 = vmatprep.subr.bf16.mxu0 %v8689
          %9625 = vmatpush1.bf16.msra.mxu0 %v8688
          %9626 = vmatprep.subr.bf16.mxu0 %v8693
          %9627 = vmatpush1.bf16.msra.mxu0 %v8692
          %9628 = vmatprep.subr.bf16.mxu0 %v8697
          %9629 = vmatpush1.bf16.msra.mxu0 %v8696
          %9630 = vmatprep.subr.bf16.mxu0 %v8701
          %9631 = vmatpush1.bf16.msra.mxu0 %v8700
          %9632 = vmatprep.subr.bf16.mxu0 %v8705
          %9633 = vmatpush1.bf16.msra.mxu0 %v8704
          %9634 = vmatprep.subr.bf16.mxu0 %v8709
          %9635 = vmatpush1.bf16.msra.mxu0 %v8708
          %9636 = vmatprep.subr.bf16.mxu0 %v8713
          %9637 = vmatpush1.bf16.msra.mxu0 %v8712
          %9638 = vmatprep.subr.bf16.mxu0 %v8717
          %9639 = vmatpush1.bf16.msra.mxu0 %v8716
          %9640 = vmatprep.subr.bf16.mxu0 %v8721
          %9641 = vmatpush1.bf16.msra.mxu0 %v8720
          %9642 = vmatprep.subr.bf16.mxu0 %v8725
          %9643 = vmatpush1.bf16.msra.mxu0 %v8724
          %9644 = vmatprep.subr.bf16.mxu0 %v8729
          %9645 = vmatpush1.bf16.msra.mxu0 %v8728
          %9646 = vmatprep.subr.bf16.mxu0 %v8733
          %9647 = vmatpush1.bf16.msra.mxu0 %v8732
          %9648 = vmatprep.subr.bf16.mxu0 %v8737
          %9649 = vmatpush1.bf16.msra.mxu0 %v8736
          %9650 = vmatprep.subr.bf16.mxu0 %v8741
          %9651 = vmatpush1.bf16.msra.mxu0 %v8740
          %9652 = vmatprep.mubr.bf16.mxu0 %v6347
          %9653 = vmatmul.mubr.bf16.gmra.mrb[0].mxu0 %v6346
          %v9654 = vpop.f32.mrb[0].mxu0
          %v9655 = vadd.f32 %v9612, %v9654
          %v9656 = vpop.f32.mrb[0].mxu0
          %v9657 = vadd.f32 %v9614, %v9656
          %v9658 = vpop.f32.mrb[0].mxu0
          %v9659 = vadd.f32 %v9616, %v9658
          %v9660 = vpop.f32.mrb[0].mxu0
          %v9661 = vadd.f32 %v9618, %v9660
          %9662 = vdwg.mxu0
          %9663 = vmatprep.subr.bf16.mxu0 %v8745
          %9664 = vmatpush1.bf16.msra.mxu0 %v8744
          %9665 = vmatprep.subr.bf16.mxu0 %v8749
          %9666 = vmatpush1.bf16.msra.mxu0 %v8748
          %9667 = vmatprep.subr.bf16.mxu0 %v8753
          %9668 = vmatpush1.bf16.msra.mxu0 %v8752
          %9669 = vmatprep.subr.bf16.mxu0 %v8757
          %9670 = vmatpush1.bf16.msra.mxu0 %v8756
          %9671 = vmatprep.subr.bf16.mxu0 %v8761
          %9672 = vmatpush1.bf16.msra.mxu0 %v8760
          %9673 = vmatprep.subr.bf16.mxu0 %v8765
          %9674 = vmatpush1.bf16.msra.mxu0 %v8764
          %9675 = vmatprep.subr.bf16.mxu0 %v8769
          %9676 = vmatpush1.bf16.msra.mxu0 %v8768
          %9677 = vmatprep.subr.bf16.mxu0 %v8773
          %9678 = vmatpush1.bf16.msra.mxu0 %v8772
          %9679 = vmatprep.subr.bf16.mxu0 %v8777
          %9680 = vmatpush1.bf16.msra.mxu0 %v8776
          %9681 = vmatprep.subr.bf16.mxu0 %v8781
          %9682 = vmatpush1.bf16.msra.mxu0 %v8780
          %9683 = vmatprep.subr.bf16.mxu0 %v8785
          %9684 = vmatpush1.bf16.msra.mxu0 %v8784
          %9685 = vmatprep.subr.bf16.mxu0 %v8789
          %9686 = vmatpush1.bf16.msra.mxu0 %v8788
          %9687 = vmatprep.subr.bf16.mxu0 %v8793
          %9688 = vmatpush1.bf16.msra.mxu0 %v8792
          %9689 = vmatprep.subr.bf16.mxu0 %v8797
          %9690 = vmatpush1.bf16.msra.mxu0 %v8796
          %9691 = vmatprep.subr.bf16.mxu0 %v8801
          %9692 = vmatpush1.bf16.msra.mxu0 %v8800
          %9693 = vmatprep.subr.bf16.mxu0 %v8805
          %9694 = vmatpush1.bf16.msra.mxu0 %v8804
          %9695 = vmatprep.mubr.bf16.mxu0 %v6349
          %9696 = vmatmul.mubr.bf16.gmra.mrb[0].mxu0 %v6348
          %v9697 = vpop.f32.mrb[0].mxu0
          %v9698 = vadd.f32 %v9655, %v9697
          %v9699 = vpop.f32.mrb[0].mxu0
          %v9700 = vadd.f32 %v9657, %v9699
          %v9701 = vpop.f32.mrb[0].mxu0
          %v9702 = vadd.f32 %v9659, %v9701
          %v9703 = vpop.f32.mrb[0].mxu0
          %v9704 = vadd.f32 %v9661, %v9703
          %9705 = vdwg.mxu0
          %9706 = vmatprep.subr.bf16.mxu0 %v8809
          %9707 = vmatpush1.bf16.msra.mxu0 %v8808
          %9708 = vmatprep.subr.bf16.mxu0 %v8813
          %9709 = vmatpush1.bf16.msra.mxu0 %v8812
          %9710 = vmatprep.subr.bf16.mxu0 %v8817
          %9711 = vmatpush1.bf16.msra.mxu0 %v8816
          %9712 = vmatprep.subr.bf16.mxu0 %v8821
          %9713 = vmatpush1.bf16.msra.mxu0 %v8820
          %9714 = vmatprep.subr.bf16.mxu0 %v8825
          %9715 = vmatpush1.bf16.msra.mxu0 %v8824
          %9716 = vmatprep.subr.bf16.mxu0 %v8829
          %9717 = vmatpush1.bf16.msra.mxu0 %v8828
          %9718 = vmatprep.subr.bf16.mxu0 %v8833
          %9719 = vmatpush1.bf16.msra.mxu0 %v8832
          %9720 = vmatprep.subr.bf16.mxu0 %v8837
          %9721 = vmatpush1.bf16.msra.mxu0 %v8836
          %9722 = vmatprep.subr.bf16.mxu0 %v8841
          %9723 = vmatpush1.bf16.msra.mxu0 %v8840
          %9724 = vmatprep.subr.bf16.mxu0 %v8845
          %9725 = vmatpush1.bf16.msra.mxu0 %v8844
          %9726 = vmatprep.subr.bf16.mxu0 %v8849
          %9727 = vmatpush1.bf16.msra.mxu0 %v8848
          %9728 = vmatprep.subr.bf16.mxu0 %v8853
          %9729 = vmatpush1.bf16.msra.mxu0 %v8852
          %9730 = vmatprep.subr.bf16.mxu0 %v8857
          %9731 = vmatpush1.bf16.msra.mxu0 %v8856
          %9732 = vmatprep.subr.bf16.mxu0 %v8861
          %9733 = vmatpush1.bf16.msra.mxu0 %v8860
          %9734 = vmatprep.subr.bf16.mxu0 %v8865
          %9735 = vmatpush1.bf16.msra.mxu0 %v8864
          %9736 = vmatprep.subr.bf16.mxu0 %v8869
          %9737 = vmatpush1.bf16.msra.mxu0 %v8868
          %9738 = vmatprep.mubr.bf16.mxu0 %v6351
          %9739 = vmatmul.mubr.bf16.gmra.mrb[0].mxu0 %v6350
          %v9740 = vpop.f32.mrb[0].mxu0
          %v9741 = vadd.f32 %v9698, %v9740
          %v9742 = vpop.f32.mrb[0].mxu0
          %v9743 = vadd.f32 %v9700, %v9742
          %v9744 = vpop.f32.mrb[0].mxu0
          %v9745 = vadd.f32 %v9702, %v9744
          %v9746 = vpop.f32.mrb[0].mxu0
          %v9747 = vadd.f32 %v9704, %v9746
          %9748 = vdwg.mxu0
          %9749 = vmatprep.subr.bf16.mxu0 %v8873
          %9750 = vmatpush1.bf16.msra.mxu0 %v8872
          %9751 = vmatprep.subr.bf16.mxu0 %v8877
          %9752 = vmatpush1.bf16.msra.mxu0 %v8876
          %9753 = vmatprep.subr.bf16.mxu0 %v8881
          %9754 = vmatpush1.bf16.msra.mxu0 %v8880
          %9755 = vmatprep.subr.bf16.mxu0 %v8885
          %9756 = vmatpush1.bf16.msra.mxu0 %v8884
          %9757 = vmatprep.subr.bf16.mxu0 %v8889
          %9758 = vmatpush1.bf16.msra.mxu0 %v8888
          %9759 = vmatprep.subr.bf16.mxu0 %v8893
          %9760 = vmatpush1.bf16.msra.mxu0 %v8892
          %9761 = vmatprep.subr.bf16.mxu0 %v8897
          %9762 = vmatpush1.bf16.msra.mxu0 %v8896
          %9763 = vmatprep.subr.bf16.mxu0 %v8901
          %9764 = vmatpush1.bf16.msra.mxu0 %v8900
          %9765 = vmatprep.subr.bf16.mxu0 %v8905
          %9766 = vmatpush1.bf16.msra.mxu0 %v8904
          %9767 = vmatprep.subr.bf16.mxu0 %v8909
          %9768 = vmatpush1.bf16.msra.mxu0 %v8908
          %9769 = vmatprep.subr.bf16.mxu0 %v8913
          %9770 = vmatpush1.bf16.msra.mxu0 %v8912
          %9771 = vmatprep.subr.bf16.mxu0 %v8917
          %9772 = vmatpush1.bf16.msra.mxu0 %v8916
          %9773 = vmatprep.subr.bf16.mxu0 %v8921
          %9774 = vmatpush1.bf16.msra.mxu0 %v8920
          %9775 = vmatprep.subr.bf16.mxu0 %v8925
          %9776 = vmatpush1.bf16.msra.mxu0 %v8924
          %9777 = vmatprep.subr.bf16.mxu0 %v8929
          %9778 = vmatpush1.bf16.msra.mxu0 %v8928
          %9779 = vmatprep.subr.bf16.mxu0 %v8933
          %9780 = vmatpush1.bf16.msra.mxu0 %v8932
          %9781 = vmatprep.mubr.bf16.mxu0 %v6353
          %9782 = vmatmul.mubr.bf16.gmra.mrb[0].mxu0 %v6352
          %v9783 = vpop.f32.mrb[0].mxu0
          %v9784 = vadd.f32 %v9741, %v9783
          %v9785 = vpop.f32.mrb[0].mxu0
          %v9786 = vadd.f32 %v9743, %v9785
          %v9787 = vpop.f32.mrb[0].mxu0
          %v9788 = vadd.f32 %v9745, %v9787
          %v9789 = vpop.f32.mrb[0].mxu0
          %v9790 = vadd.f32 %v9747, %v9789
          %9791 = vdwg.mxu0
          %9792 = vmatprep.subr.bf16.mxu0 %v8427
          %9793 = vmatpush1.bf16.msra.mxu0 %v8426
          %9794 = vmatprep.subr.bf16.mxu0 %v8431
          %9795 = vmatpush1.bf16.msra.mxu0 %v8430
          %9796 = vmatprep.subr.bf16.mxu0 %v8435
          %9797 = vmatpush1.bf16.msra.mxu0 %v8434
          %9798 = vmatprep.subr.bf16.mxu0 %v8439
          %9799 = vmatpush1.bf16.msra.mxu0 %v8438
          %9800 = vmatprep.subr.bf16.mxu0 %v8443
          %9801 = vmatpush1.bf16.msra.mxu0 %v8442
          %9802 = vmatprep.subr.bf16.mxu0 %v8447
          %9803 = vmatpush1.bf16.msra.mxu0 %v8446
          %9804 = vmatprep.subr.bf16.mxu0 %v8451
          %9805 = vmatpush1.bf16.msra.mxu0 %v8450
          %9806 = vmatprep.subr.bf16.mxu0 %v8455
          %9807 = vmatpush1.bf16.msra.mxu0 %v8454
          %9808 = vmatprep.subr.bf16.mxu0 %v8459
          %9809 = vmatpush1.bf16.msra.mxu0 %v8458
          %9810 = vmatprep.subr.bf16.mxu0 %v8463
          %9811 = vmatpush1.bf16.msra.mxu0 %v8462
          %9812 = vmatprep.subr.bf16.mxu0 %v8467
          %9813 = vmatpush1.bf16.msra.mxu0 %v8466
          %9814 = vmatprep.subr.bf16.mxu0 %v8471
          %9815 = vmatpush1.bf16.msra.mxu0 %v8470
          %9816 = vmatprep.subr.bf16.mxu0 %v8475
          %9817 = vmatpush1.bf16.msra.mxu0 %v8474
          %9818 = vmatprep.subr.bf16.mxu0 %v8479
          %9819 = vmatpush1.bf16.msra.mxu0 %v8478
          %9820 = vmatprep.subr.bf16.mxu0 %v8483
          %9821 = vmatpush1.bf16.msra.mxu0 %v8482
          %9822 = vmatprep.subr.bf16.mxu0 %v8487
          %9823 = vmatpush1.bf16.msra.mxu0 %v8486
          %9824 = vmatprep.mubr.bf16.mxu0 %v6339
          %9825 = vmatmul.mubr.bf16.gmra.mrb[0].mxu0 %v6338
          %v9826 = vpop.f32.mrb[0].mxu0
          %v9827 = vadd.f32 %v6879, %v9826
          %v9828 = vpop.f32.mrb[0].mxu0
          %v9829 = vadd.f32 %v6883, %v9828
          %v9830 = vpop.f32.mrb[0].mxu0
          %v9831 = vadd.f32 %v6879, %v9830
          %v9832 = vpop.f32.mrb[0].mxu0
          %v9833 = vadd.f32 %v6883, %v9832
          %9834 = vdwg.mxu0
          %9835 = vmatprep.subr.bf16.mxu0 %v8491
          %9836 = vmatpush1.bf16.msra.mxu0 %v8490
          %9837 = vmatprep.subr.bf16.mxu0 %v8495
          %9838 = vmatpush1.bf16.msra.mxu0 %v8494
          %9839 = vmatprep.subr.bf16.mxu0 %v8499
          %9840 = vmatpush1.bf16.msra.mxu0 %v8498
          %9841 = vmatprep.subr.bf16.mxu0 %v8503
          %9842 = vmatpush1.bf16.msra.mxu0 %v8502
          %9843 = vmatprep.subr.bf16.mxu0 %v8507
          %9844 = vmatpush1.bf16.msra.mxu0 %v8506
          %9845 = vmatprep.subr.bf16.mxu0 %v8511
          %9846 = vmatpush1.bf16.msra.mxu0 %v8510
          %9847 = vmatprep.subr.bf16.mxu0 %v8515
          %9848 = vmatpush1.bf16.msra.mxu0 %v8514
          %9849 = vmatprep.subr.bf16.mxu0 %v8519
          %9850 = vmatpush1.bf16.msra.mxu0 %v8518
          %9851 = vmatprep.subr.bf16.mxu0 %v8523
          %9852 = vmatpush1.bf16.msra.mxu0 %v8522
          %9853 = vmatprep.subr.bf16.mxu0 %v8527
          %9854 = vmatpush1.bf16.msra.mxu0 %v8526
          %9855 = vmatprep.subr.bf16.mxu0 %v8531
          %9856 = vmatpush1.bf16.msra.mxu0 %v8530
          %9857 = vmatprep.subr.bf16.mxu0 %v8535
          %9858 = vmatpush1.bf16.msra.mxu0 %v8534
          %9859 = vmatprep.subr.bf16.mxu0 %v8539
          %9860 = vmatpush1.bf16.msra.mxu0 %v8538
          %9861 = vmatprep.subr.bf16.mxu0 %v8543
          %9862 = vmatpush1.bf16.msra.mxu0 %v8542
          %9863 = vmatprep.subr.bf16.mxu0 %v8547
          %9864 = vmatpush1.bf16.msra.mxu0 %v8546
          %9865 = vmatprep.subr.bf16.mxu0 %v8551
          %9866 = vmatpush1.bf16.msra.mxu0 %v8550
          %9867 = vmatprep.mubr.bf16.mxu0 %v6341
          %9868 = vmatmul.mubr.bf16.gmra.mrb[0].mxu0 %v6340
          %v9869 = vpop.f32.mrb[0].mxu0
          %v9870 = vadd.f32 %v9827, %v9869
          %v9871 = vpop.f32.mrb[0].mxu0
          %v9872 = vadd.f32 %v9829, %v9871
          %v9873 = vpop.f32.mrb[0].mxu0
          %v9874 = vadd.f32 %v9831, %v9873
          %v9875 = vpop.f32.mrb[0].mxu0
          %v9876 = vadd.f32 %v9833, %v9875
          %9877 = vdwg.mxu0
          %9878 = vmatprep.subr.bf16.mxu0 %v8555
          %9879 = vmatpush1.bf16.msra.mxu0 %v8554
          %9880 = vmatprep.subr.bf16.mxu0 %v8559
          %9881 = vmatpush1.bf16.msra.mxu0 %v8558
          %9882 = vmatprep.subr.bf16.mxu0 %v8563
          %9883 = vmatpush1.bf16.msra.mxu0 %v8562
          %9884 = vmatprep.subr.bf16.mxu0 %v8567
          %9885 = vmatpush1.bf16.msra.mxu0 %v8566
          %9886 = vmatprep.subr.bf16.mxu0 %v8571
          %9887 = vmatpush1.bf16.msra.mxu0 %v8570
          %9888 = vmatprep.subr.bf16.mxu0 %v8575
          %9889 = vmatpush1.bf16.msra.mxu0 %v8574
          %9890 = vmatprep.subr.bf16.mxu0 %v8579
          %9891 = vmatpush1.bf16.msra.mxu0 %v8578
          %9892 = vmatprep.subr.bf16.mxu0 %v8583
          %9893 = vmatpush1.bf16.msra.mxu0 %v8582
          %9894 = vmatprep.subr.bf16.mxu0 %v8587
          %9895 = vmatpush1.bf16.msra.mxu0 %v8586
          %9896 = vmatprep.subr.bf16.mxu0 %v8591
          %9897 = vmatpush1.bf16.msra.mxu0 %v8590
          %9898 = vmatprep.subr.bf16.mxu0 %v8595
          %9899 = vmatpush1.bf16.msra.mxu0 %v8594
          %9900 = vmatprep.subr.bf16.mxu0 %v8599
          %9901 = vmatpush1.bf16.msra.mxu0 %v8598
          %9902 = vmatprep.subr.bf16.mxu0 %v8603
          %9903 = vmatpush1.bf16.msra.mxu0 %v8602
          %9904 = vmatprep.subr.bf16.mxu0 %v8607
          %9905 = vmatpush1.bf16.msra.mxu0 %v8606
          %9906 = vmatprep.subr.bf16.mxu0 %v8611
          %9907 = vmatpush1.bf16.msra.mxu0 %v8610
          %9908 = vmatprep.subr.bf16.mxu0 %v8615
          %9909 = vmatpush1.bf16.msra.mxu0 %v8614
          %9910 = vmatprep.mubr.bf16.mxu0 %v6343
          %9911 = vmatmul.mubr.bf16.gmra.mrb[0].mxu0 %v6342
          %v9912 = vpop.f32.mrb[0].mxu0
          %v9913 = vadd.f32 %v9870, %v9912
          %v9914 = vpop.f32.mrb[0].mxu0
          %v9915 = vadd.f32 %v9872, %v9914
          %v9916 = vpop.f32.mrb[0].mxu0
          %v9917 = vadd.f32 %v9874, %v9916
          %v9918 = vpop.f32.mrb[0].mxu0
          %v9919 = vadd.f32 %v9876, %v9918
          %9920 = vdwg.mxu0
          %9921 = vmatprep.subr.bf16.mxu0 %v8619
          %9922 = vmatpush1.bf16.msra.mxu0 %v8618
          %9923 = vmatprep.subr.bf16.mxu0 %v8623
          %9924 = vmatpush1.bf16.msra.mxu0 %v8622
          %9925 = vmatprep.subr.bf16.mxu0 %v8627
          %9926 = vmatpush1.bf16.msra.mxu0 %v8626
          %9927 = vmatprep.subr.bf16.mxu0 %v8631
          %9928 = vmatpush1.bf16.msra.mxu0 %v8630
          %9929 = vmatprep.subr.bf16.mxu0 %v8635
          %9930 = vmatpush1.bf16.msra.mxu0 %v8634
          %9931 = vmatprep.subr.bf16.mxu0 %v8639
          %9932 = vmatpush1.bf16.msra.mxu0 %v8638
          %9933 = vmatprep.subr.bf16.mxu0 %v8643
          %9934 = vmatpush1.bf16.msra.mxu0 %v8642
          %9935 = vmatprep.subr.bf16.mxu0 %v8647
          %9936 = vmatpush1.bf16.msra.mxu0 %v8646
          %9937 = vmatprep.subr.bf16.mxu0 %v8651
          %9938 = vmatpush1.bf16.msra.mxu0 %v8650
          %9939 = vmatprep.subr.bf16.mxu0 %v8655
          %9940 = vmatpush1.bf16.msra.mxu0 %v8654
          %9941 = vmatprep.subr.bf16.mxu0 %v8659
          %9942 = vmatpush1.bf16.msra.mxu0 %v8658
          %9943 = vmatprep.subr.bf16.mxu0 %v8663
          %9944 = vmatpush1.bf16.msra.mxu0 %v8662
          %9945 = vmatprep.subr.bf16.mxu0 %v8667
          %9946 = vmatpush1.bf16.msra.mxu0 %v8666
          %9947 = vmatprep.subr.bf16.mxu0 %v8671
          %9948 = vmatpush1.bf16.msra.mxu0 %v8670
          %9949 = vmatprep.subr.bf16.mxu0 %v8675
          %9950 = vmatpush1.bf16.msra.mxu0 %v8674
          %9951 = vmatprep.subr.bf16.mxu0 %v8679
          %9952 = vmatpush1.bf16.msra.mxu0 %v8678
          %9953 = vmatprep.mubr.bf16.mxu0 %v6345
          %9954 = vmatmul.mubr.bf16.gmra.mrb[0].mxu0 %v6344
          %v9955 = vpop.f32.mrb[0].mxu0
          %v9956 = vadd.f32 %v9913, %v9955
          %v9957 = vpop.f32.mrb[0].mxu0
          %v9958 = vadd.f32 %v9915, %v9957
          %v9959 = vpop.f32.mrb[0].mxu0
          %v9960 = vadd.f32 %v9917, %v9959
          %v9961 = vpop.f32.mrb[0].mxu0
          %v9962 = vadd.f32 %v9919, %v9961
          %9963 = vdwg.mxu0
          %9964 = vmatprep.subr.bf16.mxu0 %v8683
          %9965 = vmatpush1.bf16.msra.mxu0 %v8682
          %9966 = vmatprep.subr.bf16.mxu0 %v8687
          %9967 = vmatpush1.bf16.msra.mxu0 %v8686
          %9968 = vmatprep.subr.bf16.mxu0 %v8691
          %9969 = vmatpush1.bf16.msra.mxu0 %v8690
          %9970 = vmatprep.subr.bf16.mxu0 %v8695
          %9971 = vmatpush1.bf16.msra.mxu0 %v8694
          %9972 = vmatprep.subr.bf16.mxu0 %v8699
          %9973 = vmatpush1.bf16.msra.mxu0 %v8698
          %9974 = vmatprep.subr.bf16.mxu0 %v8703
          %9975 = vmatpush1.bf16.msra.mxu0 %v8702
          %9976 = vmatprep.subr.bf16.mxu0 %v8707
          %9977 = vmatpush1.bf16.msra.mxu0 %v8706
          %9978 = vmatprep.subr.bf16.mxu0 %v8711
          %9979 = vmatpush1.bf16.msra.mxu0 %v8710
          %9980 = vmatprep.subr.bf16.mxu0 %v8715
          %9981 = vmatpush1.bf16.msra.mxu0 %v8714
          %9982 = vmatprep.subr.bf16.mxu0 %v8719
          %9983 = vmatpush1.bf16.msra.mxu0 %v8718
          %9984 = vmatprep.subr.bf16.mxu0 %v8723
          %9985 = vmatpush1.bf16.msra.mxu0 %v8722
          %9986 = vmatprep.subr.bf16.mxu0 %v8727
          %9987 = vmatpush1.bf16.msra.mxu0 %v8726
          %9988 = vmatprep.subr.bf16.mxu0 %v8731
          %9989 = vmatpush1.bf16.msra.mxu0 %v8730
          %9990 = vmatprep.subr.bf16.mxu0 %v8735
          %9991 = vmatpush1.bf16.msra.mxu0 %v8734
          %9992 = vmatprep.subr.bf16.mxu0 %v8739
          %9993 = vmatpush1.bf16.msra.mxu0 %v8738
          %9994 = vmatprep.subr.bf16.mxu0 %v8743
          %9995 = vmatpush1.bf16.msra.mxu0 %v8742
          %9996 = vmatprep.mubr.bf16.mxu0 %v6347
          %9997 = vmatmul.mubr.bf16.gmra.mrb[0].mxu0 %v6346
          %v9998 = vpop.f32.mrb[0].mxu0
          %v9999 = vadd.f32 %v9956, %v9998
          %v10000 = vpop.f32.mrb[0].mxu0
          %v10001 = vadd.f32 %v9958, %v10000
          %v10002 = vpop.f32.mrb[0].mxu0
          %v10003 = vadd.f32 %v9960, %v10002
          %v10004 = vpop.f32.mrb[0].mxu0
          %v10005 = vadd.f32 %v9962, %v10004
          %10006 = vdwg.mxu0
          %10007 = vmatprep.subr.bf16.mxu0 %v8747
          %10008 = vmatpush1.bf16.msra.mxu0 %v8746
          %10009 = vmatprep.subr.bf16.mxu0 %v8751
          %10010 = vmatpush1.bf16.msra.mxu0 %v8750
          %10011 = vmatprep.subr.bf16.mxu0 %v8755
          %10012 = vmatpush1.bf16.msra.mxu0 %v8754
          %10013 = vmatprep.subr.bf16.mxu0 %v8759
          %10014 = vmatpush1.bf16.msra.mxu0 %v8758
          %10015 = vmatprep.subr.bf16.mxu0 %v8763
          %10016 = vmatpush1.bf16.msra.mxu0 %v8762
          %10017 = vmatprep.subr.bf16.mxu0 %v8767
          %10018 = vmatpush1.bf16.msra.mxu0 %v8766
          %10019 = vmatprep.subr.bf16.mxu0 %v8771
          %10020 = vmatpush1.bf16.msra.mxu0 %v8770
          %10021 = vmatprep.subr.bf16.mxu0 %v8775
          %10022 = vmatpush1.bf16.msra.mxu0 %v8774
          %10023 = vmatprep.subr.bf16.mxu0 %v8779
          %10024 = vmatpush1.bf16.msra.mxu0 %v8778
          %10025 = vmatprep.subr.bf16.mxu0 %v8783
          %10026 = vmatpush1.bf16.msra.mxu0 %v8782
          %10027 = vmatprep.subr.bf16.mxu0 %v8787
          %10028 = vmatpush1.bf16.msra.mxu0 %v8786
          %10029 = vmatprep.subr.bf16.mxu0 %v8791
          %10030 = vmatpush1.bf16.msra.mxu0 %v8790
          %10031 = vmatprep.subr.bf16.mxu0 %v8795
          %10032 = vmatpush1.bf16.msra.mxu0 %v8794
          %10033 = vmatprep.subr.bf16.mxu0 %v8799
          %10034 = vmatpush1.bf16.msra.mxu0 %v8798
          %10035 = vmatprep.subr.bf16.mxu0 %v8803
          %10036 = vmatpush1.bf16.msra.mxu0 %v8802
          %10037 = vmatprep.subr.bf16.mxu0 %v8807
          %10038 = vmatpush1.bf16.msra.mxu0 %v8806
          %10039 = vmatprep.mubr.bf16.mxu0 %v6349
          %10040 = vmatmul.mubr.bf16.gmra.mrb[0].mxu0 %v6348
          %v10041 = vpop.f32.mrb[0].mxu0
          %v10042 = vadd.f32 %v9999, %v10041
          %v10043 = vpop.f32.mrb[0].mxu0
          %v10044 = vadd.f32 %v10001, %v10043
          %v10045 = vpop.f32.mrb[0].mxu0
          %v10046 = vadd.f32 %v10003, %v10045
          %v10047 = vpop.f32.mrb[0].mxu0
          %v10048 = vadd.f32 %v10005, %v10047
          %10049 = vdwg.mxu0
          %10050 = vmatprep.subr.bf16.mxu0 %v8811
          %10051 = vmatpush1.bf16.msra.mxu0 %v8810
          %10052 = vmatprep.subr.bf16.mxu0 %v8815
          %10053 = vmatpush1.bf16.msra.mxu0 %v8814
          %10054 = vmatprep.subr.bf16.mxu0 %v8819
          %10055 = vmatpush1.bf16.msra.mxu0 %v8818
          %10056 = vmatprep.subr.bf16.mxu0 %v8823
          %10057 = vmatpush1.bf16.msra.mxu0 %v8822
          %10058 = vmatprep.subr.bf16.mxu0 %v8827
          %10059 = vmatpush1.bf16.msra.mxu0 %v8826
          %10060 = vmatprep.subr.bf16.mxu0 %v8831
          %10061 = vmatpush1.bf16.msra.mxu0 %v8830
          %10062 = vmatprep.subr.bf16.mxu0 %v8835
          %10063 = vmatpush1.bf16.msra.mxu0 %v8834
          %10064 = vmatprep.subr.bf16.mxu0 %v8839
          %10065 = vmatpush1.bf16.msra.mxu0 %v8838
          %10066 = vmatprep.subr.bf16.mxu0 %v8843
          %10067 = vmatpush1.bf16.msra.mxu0 %v8842
          %10068 = vmatprep.subr.bf16.mxu0 %v8847
          %10069 = vmatpush1.bf16.msra.mxu0 %v8846
          %10070 = vmatprep.subr.bf16.mxu0 %v8851
          %10071 = vmatpush1.bf16.msra.mxu0 %v8850
          %10072 = vmatprep.subr.bf16.mxu0 %v8855
          %10073 = vmatpush1.bf16.msra.mxu0 %v8854
          %10074 = vmatprep.subr.bf16.mxu0 %v8859
          %10075 = vmatpush1.bf16.msra.mxu0 %v8858
          %10076 = vmatprep.subr.bf16.mxu0 %v8863
          %10077 = vmatpush1.bf16.msra.mxu0 %v8862
          %10078 = vmatprep.subr.bf16.mxu0 %v8867
          %10079 = vmatpush1.bf16.msra.mxu0 %v8866
          %10080 = vmatprep.subr.bf16.mxu0 %v8871
          %10081 = vmatpush1.bf16.msra.mxu0 %v8870
          %10082 = vmatprep.mubr.bf16.mxu0 %v6351
          %10083 = vmatmul.mubr.bf16.gmra.mrb[0].mxu0 %v6350
          %v10084 = vpop.f32.mrb[0].mxu0
          %v10085 = vadd.f32 %v10042, %v10084
          %v10086 = vpop.f32.mrb[0].mxu0
          %v10087 = vadd.f32 %v10044, %v10086
          %v10088 = vpop.f32.mrb[0].mxu0
          %v10089 = vadd.f32 %v10046, %v10088
          %v10090 = vpop.f32.mrb[0].mxu0
          %v10091 = vadd.f32 %v10048, %v10090
          %10092 = vdwg.mxu0
          %10093 = vmatprep.subr.bf16.mxu0 %v8875
          %10094 = vmatpush1.bf16.msra.mxu0 %v8874
          %10095 = vmatprep.subr.bf16.mxu0 %v8879
          %10096 = vmatpush1.bf16.msra.mxu0 %v8878
          %10097 = vmatprep.subr.bf16.mxu0 %v8883
          %10098 = vmatpush1.bf16.msra.mxu0 %v8882
          %10099 = vmatprep.subr.bf16.mxu0 %v8887
          %10100 = vmatpush1.bf16.msra.mxu0 %v8886
          %10101 = vmatprep.subr.bf16.mxu0 %v8891
          %10102 = vmatpush1.bf16.msra.mxu0 %v8890
          %10103 = vmatprep.subr.bf16.mxu0 %v8895
          %10104 = vmatpush1.bf16.msra.mxu0 %v8894
          %10105 = vmatprep.subr.bf16.mxu0 %v8899
          %10106 = vmatpush1.bf16.msra.mxu0 %v8898
          %10107 = vmatprep.subr.bf16.mxu0 %v8903
          %10108 = vmatpush1.bf16.msra.mxu0 %v8902
          %10109 = vmatprep.subr.bf16.mxu0 %v8907
          %10110 = vmatpush1.bf16.msra.mxu0 %v8906
          %10111 = vmatprep.subr.bf16.mxu0 %v8911
          %10112 = vmatpush1.bf16.msra.mxu0 %v8910
          %10113 = vmatprep.subr.bf16.mxu0 %v8915
          %10114 = vmatpush1.bf16.msra.mxu0 %v8914
          %10115 = vmatprep.subr.bf16.mxu0 %v8919
          %10116 = vmatpush1.bf16.msra.mxu0 %v8918
          %10117 = vmatprep.subr.bf16.mxu0 %v8923
          %10118 = vmatpush1.bf16.msra.mxu0 %v8922
          %10119 = vmatprep.subr.bf16.mxu0 %v8927
          %10120 = vmatpush1.bf16.msra.mxu0 %v8926
          %10121 = vmatprep.subr.bf16.mxu0 %v8931
          %10122 = vmatpush1.bf16.msra.mxu0 %v8930
          %10123 = vmatprep.subr.bf16.mxu0 %v8935
          %10124 = vmatpush1.bf16.msra.mxu0 %v8934
          %10125 = vmatprep.mubr.bf16.mxu0 %v6353
          %10126 = vmatmul.mubr.bf16.gmra.mrb[0].mxu0 %v6352
          %v10127 = vpop.f32.mrb[0].mxu0
          %v10128 = vadd.f32 %v10085, %v10127
          %v10129 = vpop.f32.mrb[0].mxu0
          %v10130 = vadd.f32 %v10087, %v10129
          %v10131 = vpop.f32.mrb[0].mxu0
          %v10132 = vadd.f32 %v10089, %v10131
          %v10133 = vpop.f32.mrb[0].mxu0
          %v10134 = vadd.f32 %v10091, %v10133
          %10135 = vdwg.mxu0
          %10136 = vst [vmem:[%s10] sm:$0xff] %v9784
          %10137 = vst [vmem:[%s10 + $0x8] sm:$0xff] %v9786
          %10138 = vst [vmem:[%s10 + $0x10] sm:$0xff] %v10128
          %10139 = vst [vmem:[%s10 + $0x18] sm:$0xff] %v10130
          %10140 = vst [vmem:[%s10 + $0x20] sm:$0xff] %v9788
          %10141 = vst [vmem:[%s10 + $0x28] sm:$0xff] %v9790
          %10142 = vst [vmem:[%s10 + $0x30] sm:$0xff] %v10132
          %10143 = vst [vmem:[%s10 + $0x38] sm:$0xff] %v10134
        $region119: #{simsiam_forward.1} parent=74 // pred_fallthru
          _
        // Predicated region
        $region120: #{simsiam_forward.1} parent=74 // pred_check
          %p10144 = pneg %p241
        $region121: #{simsiam_forward.1} parent=74 // pred_check_branch
          %10146 = sbr.rel (%p10144) target = $region123
        $region122: #{simsiam_forward.1} parent=74 // pred_region
          _
        $region123: #{simsiam_forward.1} parent=74 // pred_fallthru
          _
        // Predicated region
        $region124: #{simsiam_forward.1} parent=74 // pred_check
          %p10147 = pneg %p262
        $region125: #{simsiam_forward.1} parent=74 // pred_check_branch
          %10149 = sbr.rel (%p10147) target = $region127
        $region126: #{simsiam_forward.1} parent=74 // pred_region
          _
        $region127: #{simsiam_forward.1} parent=74 // pred_fallthru
          _
        // Predicated region
        $region128: #{simsiam_forward.1} parent=74 // pred_check
          %p10150 = pneg %p241
        $region129: #{simsiam_forward.1} parent=74 // pred_check_branch
          %10152 = sbr.rel (%p10150) target = $region131
        $region130: #{simsiam_forward.1} parent=74 // pred_region
          _
        $region131: #{simsiam_forward.1} parent=74 // pred_fallthru
          _
        // Predicated region
        $region132: #{simsiam_forward.1} parent=74 // pred_check
          %p10153 = pneg %p262
        $region133: #{simsiam_forward.1} parent=74 // pred_check_branch
          %10155 = sbr.rel (%p10153) target = $region135
        $region134: #{simsiam_forward.1} parent=74 // pred_region
          _
        $region135: #{simsiam_forward.1} parent=74 // pred_fallthru
          _
      $region75: #{simsiam_forward.1} parent=5 // pred_fallthru
        _
      %p10156 = scmp.le.s32.totalorder 2, %s24
      // Predicated region
      $region136: #{simsiam_forward.1} parent=5 // pred_check
        %p10157 = pneg %p10156
      $region137: #{simsiam_forward.1} parent=5 // pred_check_branch
        %10159 = sbr.rel (%p10157) target = $region139
      $region138: #{simsiam_forward.1} parent=5 // pred_region
        %s10160 = ssub.s32 %s24, 2
      $region139: #{simsiam_forward.1} parent=5 // pred_fallthru
        _
    $region6: #{simsiam_forward.1} parent=1 // loop_footer
      %s28 = sadd.s32 1, %s24
    $region7: #{simsiam_forward.1} parent=1 // loop_footer_branch
      %23 = sbr.rel target = $region3
    $region8: #{simsiam_forward.1} parent=1 // loop_exit
      _
    %10161 = vsyncpa [#allocation4], 1
    %s10162 = scalar_lea.sflag [#allocation4], 1
    %10163 = vsyncpa %s10162, 1
    %10164 = vsyncpa [#allocation6], 1
    %10165 = vsyncpa [#allocation9], 1
    %10166 = vsyncpa [#allocation12], 1
    %10167 = vsyncpa [#allocation15], 1

</llo_original>
